<compile_context>
chip_gen: v5e
topology: v5e:2x2
jax: 0.10.0
libtpu: 0.0.40
codegen_flags: <defaults>
</compile_context>

<pallas_src>
import math

import jax
import jax.numpy as jnp
from jax.experimental import pallas as pl
from jax.experimental.pallas import tpu as pltpu

# ------------------------- model hyper-parameters ----------------------------
D_MODEL = 32                 # hidden_dim passed to BirdForecastingModel
N_HEAD = 8                   # fixed in the module
HEAD_DIM = D_MODEL // N_HEAD
FFN = 2048                   # nn.Transformer default dim_feedforward
FFN_CHUNK = 512              # sweep to 1024/2048 on v7x (MRB); 512 is safe on v5e/v6e
N_ENC = 2                    # num_layers passed to BirdForecastingModel
N_DEC = 6                    # nn.Transformer default num_decoder_layers
EPS = 1e-5
SEQ = 8
BATCH = 2
ROWS = SEQ * BATCH           # tokens, batch-major rows: r = b*SEQ + s
COLS = N_HEAD * ROWS         # folded (head, key_row) lane dimension = 128
N_LAYER_STEPS = N_ENC + N_DEC


# ------------------------------ fused kernel ----------------------------------
def _fused_kernel(
    # constant inputs (fetched once)
    x_ref, rep_kc_ref, head_kc_ref, head_cl_ref, bias_ref,
    # encoder per-layer weights (pipelined over steps 0..N_ENC-1)
    e_wqkv, e_bqkv, e_wo, e_bo, e_ln1g, e_ln1b, e_ln2g, e_ln2b,
    e_w1, e_b1, e_w2t, e_b2,
    # encoder final norm + hoisted cross-attn K/V projection (fetched once)
    en_g, en_b, d_cwkv_cat, d_cbkv_cat,
    # decoder per-layer weights (pipelined over steps N_ENC..N_ENC+N_DEC-1)
    d_wqkv, d_bqkv, d_wo, d_bo,
    d_cwq, d_cbq, d_cwo, d_cbo,
    d_ln1g, d_ln1b, d_ln2g, d_ln2b, d_ln3g, d_ln3b,
    d_w1, d_b1, d_w2t, d_b2,
    # decoder final norm + output head (fetched once)
    dn_g, dn_b, w_out, b_out,
    # output
    o_ref,
    # scratch (persists across grid steps)
    out_s, kv_s,
):
    f32, bf16 = jnp.float32, jnp.bfloat16
    i = pl.program_id(0)

    rep_kc = rep_kc_ref[...]          # (ROWS, COLS) key-row replicator
    head_kc = head_kc_ref[...]        # (D_MODEL, COLS) per-head mask
    head_cl = head_cl_ref[...]        # (COLS, D_MODEL) per-head mask
    batch_bias = bias_ref[...]        # (ROWS, COLS) -1e30 outside own batch element
    scale = 1.0 / math.sqrt(HEAD_DIM)

    def layer_norm(y, g, b):
        mu = jnp.mean(y, axis=-1, keepdims=True)
        yc = y - mu
        var = jnp.mean(yc * yc, axis=-1, keepdims=True)
        return yc * jax.lax.rsqrt(var + EPS) * g + b

    def attention(q, k, v):
        # Lane-dense per-head scores: columns c = h*ROWS + key_row.
        # k_big[l, h*ROWS+rk] = k[rk, l], masked to head h (one MXU push, no transpose).
        k_big = jax.lax.dot_general(k, rep_kc, (((0,), (0,)), ((), ())),
                                    preferred_element_type=f32) * head_kc        # (32,128)
        s = jnp.dot(q, k_big, preferred_element_type=f32) * scale + batch_bias   # (16,128)
        p = jnp.exp(s - jnp.max(s, axis=-1, keepdims=True))
        # V replicated per head along sublanes on the XLU (no MXU push), then masked.
        v_big = jnp.concatenate([v] * N_HEAD, axis=0) * head_cl                  # (128,32)
        o = jnp.dot(p, v_big, preferred_element_type=f32)                        # (16,32)
        den = jnp.dot(p, head_cl, preferred_element_type=f32)                    # (16,32)
        return o * pl.reciprocal(den, approx=True)

    def self_attn_block(y, wqkv, bqkv, wo, bo):
        qkv = jnp.dot(y, wqkv, preferred_element_type=f32) + bqkv
        a = attention(qkv[:, :D_MODEL], qkv[:, D_MODEL:2 * D_MODEL], qkv[:, 2 * D_MODEL:])
        return jnp.dot(a, wo, preferred_element_type=f32) + bo

    def ffn(y, w1, b1, w2t, b2):
        # w1, w2t refs: (1, 32, FFN) bf16, lane-dense (w2t == PyTorch linear2.weight).
        yb = y.astype(bf16)
        acc = jnp.zeros((ROWS, D_MODEL), f32)
        for c0 in range(0, FFN, FFN_CHUNK):
            c1 = c0 + FFN_CHUNK
            h = jnp.dot(yb, w1[0, :, c0:c1], preferred_element_type=f32) + b1[0, :, c0:c1]
            h = jnp.maximum(h, 0.0).astype(bf16)
            acc = acc + jax.lax.dot_general(h, w2t[0, :, c0:c1],
                                            (((1,), (1,)), ((), ())),
                                            preferred_element_type=f32)
        return acc + b2[0]

    # ----------------------- step 0: seed the running state -----------------------
    @pl.when(i == 0)
    def _():
        out_s[...] = x_ref[...]

    # ------------------ steps [0, N_ENC): one encoder layer per step ---------------
    @pl.when(i < N_ENC)
    def _():
        mem = out_s[...]
        a = self_attn_block(mem, e_wqkv[0], e_bqkv[0], e_wo[0], e_bo[0])
        mem = layer_norm(mem + a, e_ln1g[0], e_ln1b[0])
        mem = layer_norm(mem + ffn(mem, e_w1, e_b1, e_w2t, e_b2), e_ln2g[0], e_ln2b[0])
        out_s[...] = mem

    # -- phase boundary: final encoder LN + hoisted cross-attn K/V for all 6 layers --
    @pl.when(i == N_ENC - 1)
    def _():
        mem = layer_norm(out_s[...], en_g[...], en_b[...])
        kv_all = jnp.dot(mem, d_cwkv_cat[...], preferred_element_type=f32) + d_cbkv_cat[...]
        for j in range(N_DEC):
            kv_s[j] = kv_all[:, 2 * D_MODEL * j:2 * D_MODEL * (j + 1)]
        out_s[...] = x_ref[...]          # decoder input (tgt = x)

    # ------------- steps [N_ENC, N_ENC+N_DEC): one decoder layer per step -----------
    @pl.when(i >= N_ENC)
    def _():
        out = out_s[...]

        a = self_attn_block(out, d_wqkv[0], d_bqkv[0], d_wo[0], d_bo[0])
        out = layer_norm(out + a, d_ln1g[0], d_ln1b[0])

        q = jnp.dot(out, d_cwq[0], preferred_element_type=f32) + d_cbq[0]
        kv = kv_s[i - N_ENC]
        a = attention(q, kv[:, :D_MODEL], kv[:, D_MODEL:])
        a = jnp.dot(a, d_cwo[0], preferred_element_type=f32) + d_cbo[0]
        out = layer_norm(out + a, d_ln2g[0], d_ln2b[0])

        out = layer_norm(out + ffn(out, d_w1, d_b1, d_w2t, d_b2), d_ln3g[0], d_ln3b[0])
        out_s[...] = out

        # final decoder LayerNorm + fc_out (MXU matmul head) on the last layer
        @pl.when(i == N_LAYER_STEPS - 1)
        def _():
            y = layer_norm(out, dn_g[...], dn_b[...])
            o_ref[...] = jnp.dot(y, w_out[...], preferred_element_type=f32) + b_out[...]


# ------------------------------ forward wrapper --------------------------------
def bird_forecasting_forward(x, params):
    """x: (SEQ, BATCH, D_MODEL) -> (SEQ, BATCH, 1)."""
    s, b, d = x.shape
    assert (s, b, d) == (SEQ, BATCH, D_MODEL)
    x2d = x.transpose(1, 0, 2).reshape(s * b, d)      # batch-major token rows r = b*SEQ + s

    # attention layout constants (built outside the kernel: frees vregs / prologue work)
    r = jnp.arange(ROWS)
    c = jnp.arange(COLS)
    l = jnp.arange(D_MODEL)
    rep_kc = (r[:, None] == c[None, :] % ROWS).astype(jnp.float32)                        # (16,128)
    head_kc = ((l[:, None] // HEAD_DIM) == (c[None, :] // ROWS)).astype(jnp.float32)      # (32,128)
    head_cl = ((c[:, None] // ROWS) == (l[None, :] // HEAD_DIM)).astype(jnp.float32)      # (128,32)
    batch_bias = jnp.where((r[:, None] // SEQ) == ((c[None, :] % ROWS) // SEQ),
                           0.0, -1e30).astype(jnp.float32)                                # (16,128)

    e, dc = params["enc"], params["dec"]
    # hoisted cross-attention K/V projection, concatenated over decoder layers
    cwkv_cat = dc["cwkv"].transpose(1, 0, 2).reshape(D_MODEL, N_DEC * 2 * D_MODEL)        # (32,384)
    cbkv_cat = dc["cbkv"].transpose(1, 0, 2).reshape(1, N_DEC * 2 * D_MODEL)              # (1,384)

    args, specs = [], []

    def full(a):          # fetched once (index_map constant across the grid)
        args.append(a)
        specs.append(pl.BlockSpec(a.shape, lambda i, nd=a.ndim: (0,) * nd))

    def enc_layer(a):     # pipelined over encoder steps, clamped afterwards (no refetch)
        args.append(a)
        specs.append(pl.BlockSpec((1,) + a.shape[1:],
                                  lambda i: (jnp.minimum(i, N_ENC - 1), 0, 0)))

    def dec_layer(a):     # pipelined over decoder steps, clamped before (no refetch)
        args.append(a)
        specs.append(pl.BlockSpec((1,) + a.shape[1:],
                                  lambda i: (jnp.maximum(i - N_ENC, 0), 0, 0)))

    for a in (x2d, rep_kc, head_kc, head_cl, batch_bias):
        full(a)
    for a in (e["wqkv"], e["bqkv"], e["wo"], e["bo"],
              e["ln1g"], e["ln1b"], e["ln2g"], e["ln2b"],
              e["w1"], e["b1"], e["w2t"], e["b2"]):
        enc_layer(a)
    for a in (params["enc_norm_g"], params["enc_norm_b"], cwkv_cat, cbkv_cat):
        full(a)
    for a in (dc["wqkv"], dc["bqkv"], dc["wo"], dc["bo"],
              dc["cwq"], dc["cbq"], dc["cwo"], dc["cbo"],
              dc["ln1g"], dc["ln1b"], dc["ln2g"], dc["ln2b"], dc["ln3g"], dc["ln3b"],
              dc["w1"], dc["b1"], dc["w2t"], dc["b2"]):
        dec_layer(a)
    for a in (params["dec_norm_g"], params["dec_norm_b"], params["w_out"], params["b_out"]):
        full(a)

    y2d = pl.pallas_call(
        _fused_kernel,
        grid=(N_LAYER_STEPS,),
        out_shape=jax.ShapeDtypeStruct((s * b, 1), jnp.float32),
        in_specs=specs,
        out_specs=pl.BlockSpec((s * b, 1), lambda i: (0, 0)),
        scratch_shapes=[
            pltpu.VMEM((ROWS, D_MODEL), jnp.float32),              # running activations
            pltpu.VMEM((N_DEC, ROWS, 2 * D_MODEL), jnp.float32),   # hoisted cross-attn K/V
        ],
        compiler_params=pltpu.CompilerParams(dimension_semantics=("arbitrary",)),
    )(*args)
    return y2d.reshape(b, s, 1).transpose(1, 0, 2)


# ------------------------------- parameter init --------------------------------
def _dense_stack(key, n, din, dout, w_dtype=jnp.float32, scale=0.05, b_dim=None):
    kw, kb = jax.random.split(key)
    w = (scale * jax.random.normal(kw, (n, din, dout), jnp.float32)).astype(w_dtype)
    b = scale * jax.random.normal(kb, (n, 1, dout if b_dim is None else b_dim), jnp.float32)
    return w, b


def _ln_stack(n):
    return (jnp.ones((n, 1, D_MODEL), jnp.float32),
            jnp.zeros((n, 1, D_MODEL), jnp.float32))


def init_params(key):
    ks = jax.random.split(key, 12)
    bf16 = jnp.bfloat16

    enc = {}
    enc["wqkv"], enc["bqkv"] = _dense_stack(ks[0], N_ENC, D_MODEL, 3 * D_MODEL)
    enc["wo"], enc["bo"] = _dense_stack(ks[1], N_ENC, D_MODEL, D_MODEL)
    enc["w1"], enc["b1"] = _dense_stack(ks[2], N_ENC, D_MODEL, FFN, w_dtype=bf16)
    # w2 stored lane-dense (N, 32, 2048) == PyTorch linear2.weight layout.
    enc["w2t"], enc["b2"] = _dense_stack(ks[3], N_ENC, D_MODEL, FFN, w_dtype=bf16, b_dim=D_MODEL)
    enc["ln1g"], enc["ln1b"] = _ln_stack(N_ENC)
    enc["ln2g"], enc["ln2b"] = _ln_stack(N_ENC)

    dec = {}
    dec["wqkv"], dec["bqkv"] = _dense_stack(ks[4], N_DEC, D_MODEL, 3 * D_MODEL)
    dec["wo"], dec["bo"] = _dense_stack(ks[5], N_DEC, D_MODEL, D_MODEL)
    dec["cwq"], dec["cbq"] = _dense_stack(ks[6], N_DEC, D_MODEL, D_MODEL)
    dec["cwkv"], dec["cbkv"] = _dense_stack(ks[7], N_DEC, D_MODEL, 2 * D_MODEL)
    dec["cwo"], dec["cbo"] = _dense_stack(ks[8], N_DEC, D_MODEL, D_MODEL)
    dec["w1"], dec["b1"] = _dense_stack(ks[9], N_DEC, D_MODEL, FFN, w_dtype=bf16)
    dec["w2t"], dec["b2"] = _dense_stack(ks[10], N_DEC, D_MODEL, FFN, w_dtype=bf16, b_dim=D_MODEL)
    dec["ln1g"], dec["ln1b"] = _ln_stack(N_DEC)
    dec["ln2g"], dec["ln2b"] = _ln_stack(N_DEC)
    dec["ln3g"], dec["ln3b"] = _ln_stack(N_DEC)

    kw, kb = jax.random.split(ks[11])
    w_out = 0.05 * jax.random.normal(kw, (D_MODEL, 1), jnp.float32)
    b_out = 0.05 * jax.random.normal(kb, (1, 1), jnp.float32)

    return dict(enc=enc, dec=dec,
                enc_norm_g=jnp.ones((1, D_MODEL), jnp.float32),
                enc_norm_b=jnp.zeros((1, D_MODEL), jnp.float32),
                dec_norm_g=jnp.ones((1, D_MODEL), jnp.float32),
                dec_norm_b=jnp.zeros((1, D_MODEL), jnp.float32),
                w_out=w_out, b_out=b_out)


# ------------------------------------ main --------------------------------------
if __name__ == "__main__":
    root = jax.random.PRNGKey(0)
    k_params, k_x = jax.random.split(root)
    params = init_params(k_params)
    x = jax.random.normal(k_x, (SEQ, BATCH, D_MODEL), jnp.float32)

    y = jax.jit(bird_forecasting_forward)(x, params)
    y = jax.block_until_ready(y)

    assert y.shape == (SEQ, BATCH, 1), y.shape
    assert bool(jnp.all(jnp.isfinite(y)))
    print("KERNEL_OK")
</pallas_src>

<mosaic_0001>
module attributes {stable_mosaic.version = 11 : i64} {
  func.func @_fused_kernel(%arg0: i32, %arg1: memref<16x32xf32, #tpu.memory_space<vmem>>, %arg2: memref<16x128xf32, #tpu.memory_space<vmem>>, %arg3: memref<32x128xf32, #tpu.memory_space<vmem>>, %arg4: memref<128x32xf32, #tpu.memory_space<vmem>>, %arg5: memref<16x128xf32, #tpu.memory_space<vmem>>, %arg6: memref<1x32x96xf32, #tpu.memory_space<vmem>>, %arg7: memref<1x1x96xf32, #tpu.memory_space<vmem>>, %arg8: memref<1x32x32xf32, #tpu.memory_space<vmem>>, %arg9: memref<1x1x32xf32, #tpu.memory_space<vmem>>, %arg10: memref<1x1x32xf32, #tpu.memory_space<vmem>>, %arg11: memref<1x1x32xf32, #tpu.memory_space<vmem>>, %arg12: memref<1x1x32xf32, #tpu.memory_space<vmem>>, %arg13: memref<1x1x32xf32, #tpu.memory_space<vmem>>, %arg14: memref<1x32x2048xbf16, #tpu.memory_space<vmem>>, %arg15: memref<1x1x2048xf32, #tpu.memory_space<vmem>>, %arg16: memref<1x32x2048xbf16, #tpu.memory_space<vmem>>, %arg17: memref<1x1x32xf32, #tpu.memory_space<vmem>>, %arg18: memref<1x32xf32, #tpu.memory_space<vmem>>, %arg19: memref<1x32xf32, #tpu.memory_space<vmem>>, %arg20: memref<32x384xf32, #tpu.memory_space<vmem>>, %arg21: memref<1x384xf32, #tpu.memory_space<vmem>>, %arg22: memref<1x32x96xf32, #tpu.memory_space<vmem>>, %arg23: memref<1x1x96xf32, #tpu.memory_space<vmem>>, %arg24: memref<1x32x32xf32, #tpu.memory_space<vmem>>, %arg25: memref<1x1x32xf32, #tpu.memory_space<vmem>>, %arg26: memref<1x32x32xf32, #tpu.memory_space<vmem>>, %arg27: memref<1x1x32xf32, #tpu.memory_space<vmem>>, %arg28: memref<1x32x32xf32, #tpu.memory_space<vmem>>, %arg29: memref<1x1x32xf32, #tpu.memory_space<vmem>>, %arg30: memref<1x1x32xf32, #tpu.memory_space<vmem>>, %arg31: memref<1x1x32xf32, #tpu.memory_space<vmem>>, %arg32: memref<1x1x32xf32, #tpu.memory_space<vmem>>, %arg33: memref<1x1x32xf32, #tpu.memory_space<vmem>>, %arg34: memref<1x1x32xf32, #tpu.memory_space<vmem>>, %arg35: memref<1x1x32xf32, #tpu.memory_space<vmem>>, %arg36: memref<1x32x2048xbf16, #tpu.memory_space<vmem>>, %arg37: memref<1x1x2048xf32, #tpu.memory_space<vmem>>, %arg38: memref<1x32x2048xbf16, #tpu.memory_space<vmem>>, %arg39: memref<1x1x32xf32, #tpu.memory_space<vmem>>, %arg40: memref<1x32xf32, #tpu.memory_space<vmem>>, %arg41: memref<1x32xf32, #tpu.memory_space<vmem>>, %arg42: memref<32x1xf32, #tpu.memory_space<vmem>>, %arg43: memref<1x1xf32, #tpu.memory_space<vmem>>, %arg44: memref<16x1xf32, #tpu.memory_space<vmem>>, %arg45: memref<16x32xf32, #tpu.memory_space<vmem>>, %arg46: memref<6x16x64xf32, #tpu.memory_space<vmem>>) attributes {dimension_semantics = [#tpu.dimension_semantics<arbitrary>], iteration_bounds = array<i64: 8>, scalar_prefetch = 0 : i64, scratch_operands = 2 : i64, tpu.core_type = #tpu.core_type<tc>, window_params = [{pipeline_mode = #tpu.pipeline_mode<synchronous>, transform_indices = @transform_0, window_bounds = array<i64: 16, 32>}, {pipeline_mode = #tpu.pipeline_mode<synchronous>, transform_indices = @transform_1, window_bounds = array<i64: 16, 128>}, {pipeline_mode = #tpu.pipeline_mode<synchronous>, transform_indices = @transform_2, window_bounds = array<i64: 32, 128>}, {pipeline_mode = #tpu.pipeline_mode<synchronous>, transform_indices = @transform_3, window_bounds = array<i64: 128, 32>}, {pipeline_mode = #tpu.pipeline_mode<synchronous>, transform_indices = @transform_4, window_bounds = array<i64: 16, 128>}, {transform_indices = @transform_5, window_bounds = array<i64: 1, 32, 96>}, {transform_indices = @transform_6, window_bounds = array<i64: 1, 1, 96>}, {transform_indices = @transform_7, window_bounds = array<i64: 1, 32, 32>}, {transform_indices = @transform_8, window_bounds = array<i64: 1, 1, 32>}, {transform_indices = @transform_9, window_bounds = array<i64: 1, 1, 32>}, {transform_indices = @transform_10, window_bounds = array<i64: 1, 1, 32>}, {transform_indices = @transform_11, window_bounds = array<i64: 1, 1, 32>}, {transform_indices = @transform_12, window_bounds = array<i64: 1, 1, 32>}, {transform_indices = @transform_13, window_bounds = array<i64: 1, 32, 2048>}, {transform_indices = @transform_14, window_bounds = array<i64: 1, 1, 2048>}, {transform_indices = @transform_15, window_bounds = array<i64: 1, 32, 2048>}, {transform_indices = @transform_16, window_bounds = array<i64: 1, 1, 32>}, {pipeline_mode = #tpu.pipeline_mode<synchronous>, transform_indices = @transform_17, window_bounds = array<i64: 1, 32>}, {pipeline_mode = #tpu.pipeline_mode<synchronous>, transform_indices = @transform_18, window_bounds = array<i64: 1, 32>}, {pipeline_mode = #tpu.pipeline_mode<synchronous>, transform_indices = @transform_19, window_bounds = array<i64: 32, 384>}, {pipeline_mode = #tpu.pipeline_mode<synchronous>, transform_indices = @transform_20, window_bounds = array<i64: 1, 384>}, {transform_indices = @transform_21, window_bounds = array<i64: 1, 32, 96>}, {transform_indices = @transform_22, window_bounds = array<i64: 1, 1, 96>}, {transform_indices = @transform_23, window_bounds = array<i64: 1, 32, 32>}, {transform_indices = @transform_24, window_bounds = array<i64: 1, 1, 32>}, {transform_indices = @transform_25, window_bounds = array<i64: 1, 32, 32>}, {transform_indices = @transform_26, window_bounds = array<i64: 1, 1, 32>}, {transform_indices = @transform_27, window_bounds = array<i64: 1, 32, 32>}, {transform_indices = @transform_28, window_bounds = array<i64: 1, 1, 32>}, {transform_indices = @transform_29, window_bounds = array<i64: 1, 1, 32>}, {transform_indices = @transform_30, window_bounds = array<i64: 1, 1, 32>}, {transform_indices = @transform_31, window_bounds = array<i64: 1, 1, 32>}, {transform_indices = @transform_32, window_bounds = array<i64: 1, 1, 32>}, {transform_indices = @transform_33, window_bounds = array<i64: 1, 1, 32>}, {transform_indices = @transform_34, window_bounds = array<i64: 1, 1, 32>}, {transform_indices = @transform_35, window_bounds = array<i64: 1, 32, 2048>}, {transform_indices = @transform_36, window_bounds = array<i64: 1, 1, 2048>}, {transform_indices = @transform_37, window_bounds = array<i64: 1, 32, 2048>}, {transform_indices = @transform_38, window_bounds = array<i64: 1, 1, 32>}, {pipeline_mode = #tpu.pipeline_mode<synchronous>, transform_indices = @transform_39, window_bounds = array<i64: 1, 32>}, {pipeline_mode = #tpu.pipeline_mode<synchronous>, transform_indices = @transform_40, window_bounds = array<i64: 1, 32>}, {pipeline_mode = #tpu.pipeline_mode<synchronous>, transform_indices = @transform_41, window_bounds = array<i64: 32, 1>}, {pipeline_mode = #tpu.pipeline_mode<synchronous>, transform_indices = @transform_42, window_bounds = array<i64: 1, 1>}, {pipeline_mode = #tpu.pipeline_mode<synchronous>, transform_indices = @transform_43, window_bounds = array<i64: 16, 1>}]} {
    %c0 = arith.constant 0 : index
    %c0_0 = arith.constant 0 : index
    %0 = vector.load %arg2[%c0, %c0_0] : memref<16x128xf32, #tpu.memory_space<vmem>>, vector<16x128xf32>
    %c0_1 = arith.constant 0 : index
    %c0_2 = arith.constant 0 : index
    %1 = vector.load %arg3[%c0_1, %c0_2] : memref<32x128xf32, #tpu.memory_space<vmem>>, vector<32x128xf32>
    %c0_3 = arith.constant 0 : index
    %c0_4 = arith.constant 0 : index
    %2 = vector.load %arg4[%c0_3, %c0_4] : memref<128x32xf32, #tpu.memory_space<vmem>>, vector<128x32xf32>
    %c0_5 = arith.constant 0 : index
    %c0_6 = arith.constant 0 : index
    %3 = vector.load %arg5[%c0_5, %c0_6] : memref<16x128xf32, #tpu.memory_space<vmem>>, vector<16x128xf32>
    %c0_i32 = arith.constant 0 : i32
    %4 = arith.cmpi eq, %arg0, %c0_i32 : i32
    %5 = arith.extui %4 : i1 to i32
    %c0_i32_7 = arith.constant 0 : i32
    %6 = arith.cmpi ne, %5, %c0_i32_7 : i32
    scf.if %6 {
      %c0_12 = arith.constant 0 : index
      %c0_13 = arith.constant 0 : index
      %16 = vector.load %arg1[%c0_12, %c0_13] : memref<16x32xf32, #tpu.memory_space<vmem>>, vector<16x32xf32>
      %c0_14 = arith.constant 0 : index
      %c0_15 = arith.constant 0 : index
      %17 = vector.load %arg45[%c0_14, %c0_15] : memref<16x32xf32, #tpu.memory_space<vmem>>, vector<16x32xf32>
      tpu.vector_store %arg45[%c0_14, %c0_15], %16 {strides = array<i32>} : memref<16x32xf32, #tpu.memory_space<vmem>>, vector<16x32xf32>,
    } else {
    }
    %c2_i32 = arith.constant 2 : i32
    %7 = arith.cmpi slt, %arg0, %c2_i32 : i32
    %8 = arith.extui %7 : i1 to i32
    %c0_i32_8 = arith.constant 0 : i32
    %9 = arith.cmpi ne, %8, %c0_i32_8 : i32
    scf.if %9 {
      %c0_12 = arith.constant 0 : index
      %c0_13 = arith.constant 0 : index
      %16 = vector.load %arg45[%c0_12, %c0_13] : memref<16x32xf32, #tpu.memory_space<vmem>>, vector<16x32xf32>
      %c0_14 = arith.constant 0 : index
      %c0_15 = arith.constant 0 : index
      %c0_16 = arith.constant 0 : index
      %17 = vector.load %arg6[%c0_14, %c0_15, %c0_16] : memref<1x32x96xf32, #tpu.memory_space<vmem>>, vector<1x32x96xf32>
      %18 = vector.shape_cast %17 : vector<1x32x96xf32> to vector<32x96xf32>
      %c0_17 = arith.constant 0 : index
      %c0_18 = arith.constant 0 : index
      %c0_19 = arith.constant 0 : index
      %19 = vector.load %arg7[%c0_17, %c0_18, %c0_19] : memref<1x1x96xf32, #tpu.memory_space<vmem>>, vector<1x1x96xf32>
      %20 = vector.shape_cast %19 : vector<1x1x96xf32> to vector<1x96xf32>
      %c0_20 = arith.constant 0 : index
      %c0_21 = arith.constant 0 : index
      %c0_22 = arith.constant 0 : index
      %21 = vector.load %arg8[%c0_20, %c0_21, %c0_22] : memref<1x32x32xf32, #tpu.memory_space<vmem>>, vector<1x32x32xf32>
      %22 = vector.shape_cast %21 : vector<1x32x32xf32> to vector<32x32xf32>
      %c0_23 = arith.constant 0 : index
      %c0_24 = arith.constant 0 : index
      %c0_25 = arith.constant 0 : index
      %23 = vector.load %arg9[%c0_23, %c0_24, %c0_25] : memref<1x1x32xf32, #tpu.memory_space<vmem>>, vector<1x1x32xf32>
      %24 = vector.shape_cast %23 : vector<1x1x32xf32> to vector<1x32xf32>
      %cst = arith.constant dense<0.000000e+00> : vector<16x96xf32>
      %25 = tpu.matmul %16, %18, %cst {dimension_numbers = #tpu.dot_dimension_numbers<[1], [0], [0], [1], [0, 0, 1, 1], [], []>} : vector<16x32xf32>, vector<32x96xf32>, vector<16x96xf32> -> vector<16x96xf32>
      %26 = vector.broadcast %20 : vector<1x96xf32> to vector<16x96xf32>
      %27 = arith.addf %25, %26 : vector<16x96xf32>
      %28 = vector.extract_strided_slice %27 {offsets = [0, 0], sizes = [16, 32], strides = [1, 1]} : vector<16x96xf32> to vector<16x32xf32>
      %29 = vector.extract_strided_slice %27 {offsets = [0, 32], sizes = [16, 32], strides = [1, 1]} : vector<16x96xf32> to vector<16x32xf32>
      %30 = vector.extract_strided_slice %27 {offsets = [0, 64], sizes = [16, 32], strides = [1, 1]} : vector<16x96xf32> to vector<16x32xf32>
      %cst_26 = arith.constant dense<0.000000e+00> : vector<32x128xf32>
      %31 = tpu.matmul %29, %0, %cst_26 {dimension_numbers = #tpu.dot_dimension_numbers<[0], [0], [1], [1], [0, 1, 1, 1], [], []>} : vector<16x32xf32>, vector<16x128xf32>, vector<32x128xf32> -> vector<32x128xf32>
      %32 = arith.mulf %31, %1 : vector<32x128xf32>
      %cst_27 = arith.constant dense<0.000000e+00> : vector<16x128xf32>
      %33 = tpu.matmul %28, %32, %cst_27 {dimension_numbers = #tpu.dot_dimension_numbers<[1], [0], [0], [1], [0, 0, 1, 1], [], []>} : vector<16x32xf32>, vector<32x128xf32>, vector<16x128xf32> -> vector<16x128xf32>
      %cst_28 = arith.constant 5.000000e-01 : f32
      %34 = vector.broadcast %cst_28 : f32 to vector<16x128xf32>
      %35 = arith.mulf %33, %34 : vector<16x128xf32>
      %36 = arith.addf %35, %3 : vector<16x128xf32>
      %cst_29 = arith.constant dense<0xFF800000> : vector<16xf32>
      %37 = vector.multi_reduction <maximumf>, %36, %cst_29 [1] : vector<16x128xf32> to vector<16xf32>
      %38 = vector.shape_cast %37 : vector<16xf32> to vector<16x1xf32>
      %39 = vector.broadcast %38 : vector<16x1xf32> to vector<16x128xf32>
      %40 = arith.subf %36, %39 : vector<16x128xf32>
      %41 = math.exp %40 : vector<16x128xf32>
      %42 = tpu.concatenate %30, %30, %30, %30, %30, %30, %30, %30 in 0 : vector<16x32xf32>, vector<16x32xf32>, vector<16x32xf32>, vector<16x32xf32>, vector<16x32xf32>, vector<16x32xf32>, vector<16x32xf32>, vector<16x32xf32> -> vector<128x32xf32>
      %43 = arith.mulf %42, %2 : vector<128x32xf32>
      %cst_30 = arith.constant dense<0.000000e+00> : vector<16x32xf32>
      %44 = tpu.matmul %41, %43, %cst_30 {dimension_numbers = #tpu.dot_dimension_numbers<[1], [0], [0], [1], [0, 0, 1, 1], [], []>} : vector<16x128xf32>, vector<128x32xf32>, vector<16x32xf32> -> vector<16x32xf32>
      %cst_31 = arith.constant dense<0.000000e+00> : vector<16x32xf32>
      %45 = tpu.matmul %41, %2, %cst_31 {dimension_numbers = #tpu.dot_dimension_numbers<[1], [0], [0], [1], [0, 0, 1, 1], [], []>} : vector<16x128xf32>, vector<128x32xf32>, vector<16x32xf32> -> vector<16x32xf32>
      %46 = tpu.reciprocal %45 {approx = true} : vector<16x32xf32> -> vector<16x32xf32>
      %47 = arith.mulf %44, %46 : vector<16x32xf32>
      %cst_32 = arith.constant dense<0.000000e+00> : vector<16x32xf32>
      %48 = tpu.matmul %47, %22, %cst_32 {dimension_numbers = #tpu.dot_dimension_numbers<[1], [0], [0], [1], [0, 0, 1, 1], [], []>} : vector<16x32xf32>, vector<32x32xf32>, vector<16x32xf32> -> vector<16x32xf32>
      %49 = vector.broadcast %24 : vector<1x32xf32> to vector<16x32xf32>
      %50 = arith.addf %48, %49 : vector<16x32xf32>
      %51 = arith.addf %16, %50 : vector<16x32xf32>
      %c0_33 = arith.constant 0 : index
      %c0_34 = arith.constant 0 : index
      %c0_35 = arith.constant 0 : index
      %52 = vector.load %arg10[%c0_33, %c0_34, %c0_35] : memref<1x1x32xf32, #tpu.memory_space<vmem>>, vector<1x1x32xf32>
      %53 = vector.shape_cast %52 : vector<1x1x32xf32> to vector<1x32xf32>
      %c0_36 = arith.constant 0 : index
      %c0_37 = arith.constant 0 : index
      %c0_38 = arith.constant 0 : index
      %54 = vector.load %arg11[%c0_36, %c0_37, %c0_38] : memref<1x1x32xf32, #tpu.memory_space<vmem>>, vector<1x1x32xf32>
      %55 = vector.shape_cast %54 : vector<1x1x32xf32> to vector<1x32xf32>
      %cst_39 = arith.constant dense<0.000000e+00> : vector<16xf32>
      %56 = vector.multi_reduction <add>, %51, %cst_39 [1] : vector<16x32xf32> to vector<16xf32>
      %57 = vector.shape_cast %56 : vector<16xf32> to vector<16x1xf32>
      %cst_40 = arith.constant 3.200000e+01 : f32
      %58 = vector.broadcast %cst_40 : f32 to vector<16x1xf32>
      %59 = arith.divf %57, %58 : vector<16x1xf32>
      %60 = vector.broadcast %59 : vector<16x1xf32> to vector<16x32xf32>
      %61 = arith.subf %51, %60 : vector<16x32xf32>
      %62 = arith.mulf %61, %61 : vector<16x32xf32>
      %cst_41 = arith.constant dense<0.000000e+00> : vector<16xf32>
      %63 = vector.multi_reduction <add>, %62, %cst_41 [1] : vector<16x32xf32> to vector<16xf32>
      %64 = vector.shape_cast %63 : vector<16xf32> to vector<16x1xf32>
      %cst_42 = arith.constant 3.200000e+01 : f32
      %65 = vector.broadcast %cst_42 : f32 to vector<16x1xf32>
      %66 = arith.divf %64, %65 : vector<16x1xf32>
      %cst_43 = arith.constant 9.99999974E-6 : f32
      %67 = vector.broadcast %cst_43 : f32 to vector<16x1xf32>
      %68 = arith.addf %66, %67 : vector<16x1xf32>
      %69 = math.rsqrt %68 : vector<16x1xf32>
      %70 = vector.broadcast %69 : vector<16x1xf32> to vector<16x32xf32>
      %71 = arith.mulf %61, %70 : vector<16x32xf32>
      %72 = vector.broadcast %53 : vector<1x32xf32> to vector<16x32xf32>
      %73 = arith.mulf %71, %72 : vector<16x32xf32>
      %74 = vector.broadcast %55 : vector<1x32xf32> to vector<16x32xf32>
      %75 = arith.addf %73, %74 : vector<16x32xf32>
      %76 = arith.truncf %75 : vector<16x32xf32> to vector<16x32xbf16>
      %cst_44 = arith.constant 0.000000e+00 : f32
      %77 = vector.broadcast %cst_44 : f32 to vector<16x32xf32>
      %c0_45 = arith.constant 0 : index
      %c0_46 = arith.constant 0 : index
      %c0_47 = arith.constant 0 : index
      %78 = vector.load %arg14[%c0_45, %c0_46, %c0_47] : memref<1x32x2048xbf16, #tpu.memory_space<vmem>>, vector<1x32x512xbf16>
      %79 = vector.shape_cast %78 : vector<1x32x512xbf16> to vector<32x512xbf16>
      %cst_48 = arith.constant dense<0.000000e+00> : vector<16x512xf32>
      %80 = tpu.matmul %76, %79, %cst_48 {dimension_numbers = #tpu.dot_dimension_numbers<[1], [0], [0], [1], [0, 0, 1, 1], [], []>} : vector<16x32xbf16>, vector<32x512xbf16>, vector<16x512xf32> -> vector<16x512xf32>
      %c0_49 = arith.constant 0 : index
      %c0_50 = arith.constant 0 : index
      %c0_51 = arith.constant 0 : index
      %81 = vector.load %arg15[%c0_49, %c0_50, %c0_51] : memref<1x1x2048xf32, #tpu.memory_space<vmem>>, vector<1x1x512xf32>
      %82 = vector.shape_cast %81 : vector<1x1x512xf32> to vector<1x512xf32>
      %83 = vector.broadcast %82 : vector<1x512xf32> to vector<16x512xf32>
      %84 = arith.addf %80, %83 : vector<16x512xf32>
      %cst_52 = arith.constant 0.000000e+00 : f32
      %85 = vector.broadcast %cst_52 : f32 to vector<16x512xf32>
      %86 = arith.maximumf %84, %85 : vector<16x512xf32>
      %87 = arith.truncf %86 : vector<16x512xf32> to vector<16x512xbf16>
      %c0_53 = arith.constant 0 : index
      %c0_54 = arith.constant 0 : index
      %c0_55 = arith.constant 0 : index
      %88 = vector.load %arg16[%c0_53, %c0_54, %c0_55] : memref<1x32x2048xbf16, #tpu.memory_space<vmem>>, vector<1x32x512xbf16>
      %89 = vector.shape_cast %88 : vector<1x32x512xbf16> to vector<32x512xbf16>
      %cst_56 = arith.constant dense<0.000000e+00> : vector<16x32xf32>
      %90 = tpu.matmul %87, %89, %cst_56 {dimension_numbers = #tpu.dot_dimension_numbers<[1], [1], [0], [0], [0, 0, 1, 0], [], []>} : vector<16x512xbf16>, vector<32x512xbf16>, vector<16x32xf32> -> vector<16x32xf32>
      %91 = arith.addf %77, %90 : vector<16x32xf32>
      %c0_57 = arith.constant 0 : index
      %c0_58 = arith.constant 0 : index
      %c512 = arith.constant 512 : index
      %92 = vector.load %arg14[%c0_57, %c0_58, %c512] : memref<1x32x2048xbf16, #tpu.memory_space<vmem>>, vector<1x32x512xbf16>
      %93 = vector.shape_cast %92 : vector<1x32x512xbf16> to vector<32x512xbf16>
      %cst_59 = arith.constant dense<0.000000e+00> : vector<16x512xf32>
      %94 = tpu.matmul %76, %93, %cst_59 {dimension_numbers = #tpu.dot_dimension_numbers<[1], [0], [0], [1], [0, 0, 1, 1], [], []>} : vector<16x32xbf16>, vector<32x512xbf16>, vector<16x512xf32> -> vector<16x512xf32>
      %c0_60 = arith.constant 0 : index
      %c0_61 = arith.constant 0 : index
      %c512_62 = arith.constant 512 : index
      %95 = vector.load %arg15[%c0_60, %c0_61, %c512_62] : memref<1x1x2048xf32, #tpu.memory_space<vmem>>, vector<1x1x512xf32>
      %96 = vector.shape_cast %95 : vector<1x1x512xf32> to vector<1x512xf32>
      %97 = vector.broadcast %96 : vector<1x512xf32> to vector<16x512xf32>
      %98 = arith.addf %94, %97 : vector<16x512xf32>
      %cst_63 = arith.constant 0.000000e+00 : f32
      %99 = vector.broadcast %cst_63 : f32 to vector<16x512xf32>
      %100 = arith.maximumf %98, %99 : vector<16x512xf32>
      %101 = arith.truncf %100 : vector<16x512xf32> to vector<16x512xbf16>
      %c0_64 = arith.constant 0 : index
      %c0_65 = arith.constant 0 : index
      %c512_66 = arith.constant 512 : index
      %102 = vector.load %arg16[%c0_64, %c0_65, %c512_66] : memref<1x32x2048xbf16, #tpu.memory_space<vmem>>, vector<1x32x512xbf16>
      %103 = vector.shape_cast %102 : vector<1x32x512xbf16> to vector<32x512xbf16>
      %cst_67 = arith.constant dense<0.000000e+00> : vector<16x32xf32>
      %104 = tpu.matmul %101, %103, %cst_67 {dimension_numbers = #tpu.dot_dimension_numbers<[1], [1], [0], [0], [0, 0, 1, 0], [], []>} : vector<16x512xbf16>, vector<32x512xbf16>, vector<16x32xf32> -> vector<16x32xf32>
      %105 = arith.addf %91, %104 : vector<16x32xf32>
      %c0_68 = arith.constant 0 : index
      %c0_69 = arith.constant 0 : index
      %c1024 = arith.constant 1024 : index
      %106 = vector.load %arg14[%c0_68, %c0_69, %c1024] : memref<1x32x2048xbf16, #tpu.memory_space<vmem>>, vector<1x32x512xbf16>
      %107 = vector.shape_cast %106 : vector<1x32x512xbf16> to vector<32x512xbf16>
      %cst_70 = arith.constant dense<0.000000e+00> : vector<16x512xf32>
      %108 = tpu.matmul %76, %107, %cst_70 {dimension_numbers = #tpu.dot_dimension_numbers<[1], [0], [0], [1], [0, 0, 1, 1], [], []>} : vector<16x32xbf16>, vector<32x512xbf16>, vector<16x512xf32> -> vector<16x512xf32>
      %c0_71 = arith.constant 0 : index
      %c0_72 = arith.constant 0 : index
      %c1024_73 = arith.constant 1024 : index
      %109 = vector.load %arg15[%c0_71, %c0_72, %c1024_73] : memref<1x1x2048xf32, #tpu.memory_space<vmem>>, vector<1x1x512xf32>
      %110 = vector.shape_cast %109 : vector<1x1x512xf32> to vector<1x512xf32>
      %111 = vector.broadcast %110 : vector<1x512xf32> to vector<16x512xf32>
      %112 = arith.addf %108, %111 : vector<16x512xf32>
      %cst_74 = arith.constant 0.000000e+00 : f32
      %113 = vector.broadcast %cst_74 : f32 to vector<16x512xf32>
      %114 = arith.maximumf %112, %113 : vector<16x512xf32>
      %115 = arith.truncf %114 : vector<16x512xf32> to vector<16x512xbf16>
      %c0_75 = arith.constant 0 : index
      %c0_76 = arith.constant 0 : index
      %c1024_77 = arith.constant 1024 : index
      %116 = vector.load %arg16[%c0_75, %c0_76, %c1024_77] : memref<1x32x2048xbf16, #tpu.memory_space<vmem>>, vector<1x32x512xbf16>
      %117 = vector.shape_cast %116 : vector<1x32x512xbf16> to vector<32x512xbf16>
      %cst_78 = arith.constant dense<0.000000e+00> : vector<16x32xf32>
      %118 = tpu.matmul %115, %117, %cst_78 {dimension_numbers = #tpu.dot_dimension_numbers<[1], [1], [0], [0], [0, 0, 1, 0], [], []>} : vector<16x512xbf16>, vector<32x512xbf16>, vector<16x32xf32> -> vector<16x32xf32>
      %119 = arith.addf %105, %118 : vector<16x32xf32>
      %c0_79 = arith.constant 0 : index
      %c0_80 = arith.constant 0 : index
      %c1536 = arith.constant 1536 : index
      %120 = vector.load %arg14[%c0_79, %c0_80, %c1536] : memref<1x32x2048xbf16, #tpu.memory_space<vmem>>, vector<1x32x512xbf16>
      %121 = vector.shape_cast %120 : vector<1x32x512xbf16> to vector<32x512xbf16>
      %cst_81 = arith.constant dense<0.000000e+00> : vector<16x512xf32>
      %122 = tpu.matmul %76, %121, %cst_81 {dimension_numbers = #tpu.dot_dimension_numbers<[1], [0], [0], [1], [0, 0, 1, 1], [], []>} : vector<16x32xbf16>, vector<32x512xbf16>, vector<16x512xf32> -> vector<16x512xf32>
      %c0_82 = arith.constant 0 : index
      %c0_83 = arith.constant 0 : index
      %c1536_84 = arith.constant 1536 : index
      %123 = vector.load %arg15[%c0_82, %c0_83, %c1536_84] : memref<1x1x2048xf32, #tpu.memory_space<vmem>>, vector<1x1x512xf32>
      %124 = vector.shape_cast %123 : vector<1x1x512xf32> to vector<1x512xf32>
      %125 = vector.broadcast %124 : vector<1x512xf32> to vector<16x512xf32>
      %126 = arith.addf %122, %125 : vector<16x512xf32>
      %cst_85 = arith.constant 0.000000e+00 : f32
      %127 = vector.broadcast %cst_85 : f32 to vector<16x512xf32>
      %128 = arith.maximumf %126, %127 : vector<16x512xf32>
      %129 = arith.truncf %128 : vector<16x512xf32> to vector<16x512xbf16>
      %c0_86 = arith.constant 0 : index
      %c0_87 = arith.constant 0 : index
      %c1536_88 = arith.constant 1536 : index
      %130 = vector.load %arg16[%c0_86, %c0_87, %c1536_88] : memref<1x32x2048xbf16, #tpu.memory_space<vmem>>, vector<1x32x512xbf16>
      %131 = vector.shape_cast %130 : vector<1x32x512xbf16> to vector<32x512xbf16>
      %cst_89 = arith.constant dense<0.000000e+00> : vector<16x32xf32>
      %132 = tpu.matmul %129, %131, %cst_89 {dimension_numbers = #tpu.dot_dimension_numbers<[1], [1], [0], [0], [0, 0, 1, 0], [], []>} : vector<16x512xbf16>, vector<32x512xbf16>, vector<16x32xf32> -> vector<16x32xf32>
      %133 = arith.addf %119, %132 : vector<16x32xf32>
      %c0_90 = arith.constant 0 : index
      %c0_91 = arith.constant 0 : index
      %c0_92 = arith.constant 0 : index
      %134 = vector.load %arg17[%c0_90, %c0_91, %c0_92] : memref<1x1x32xf32, #tpu.memory_space<vmem>>, vector<1x1x32xf32>
      %135 = vector.shape_cast %134 : vector<1x1x32xf32> to vector<1x32xf32>
      %136 = vector.broadcast %135 : vector<1x32xf32> to vector<16x32xf32>
      %137 = arith.addf %133, %136 : vector<16x32xf32>
      %138 = arith.addf %75, %137 : vector<16x32xf32>
      %c0_93 = arith.constant 0 : index
      %c0_94 = arith.constant 0 : index
      %c0_95 = arith.constant 0 : index
      %139 = vector.load %arg12[%c0_93, %c0_94, %c0_95] : memref<1x1x32xf32, #tpu.memory_space<vmem>>, vector<1x1x32xf32>
      %140 = vector.shape_cast %139 : vector<1x1x32xf32> to vector<1x32xf32>
      %c0_96 = arith.constant 0 : index
      %c0_97 = arith.constant 0 : index
      %c0_98 = arith.constant 0 : index
      %141 = vector.load %arg13[%c0_96, %c0_97, %c0_98] : memref<1x1x32xf32, #tpu.memory_space<vmem>>, vector<1x1x32xf32>
      %142 = vector.shape_cast %141 : vector<1x1x32xf32> to vector<1x32xf32>
      %cst_99 = arith.constant dense<0.000000e+00> : vector<16xf32>
      %143 = vector.multi_reduction <add>, %138, %cst_99 [1] : vector<16x32xf32> to vector<16xf32>
      %144 = vector.shape_cast %143 : vector<16xf32> to vector<16x1xf32>
      %cst_100 = arith.constant 3.200000e+01 : f32
      %145 = vector.broadcast %cst_100 : f32 to vector<16x1xf32>
      %146 = arith.divf %144, %145 : vector<16x1xf32>
      %147 = vector.broadcast %146 : vector<16x1xf32> to vector<16x32xf32>
      %148 = arith.subf %138, %147 : vector<16x32xf32>
      %149 = arith.mulf %148, %148 : vector<16x32xf32>
      %cst_101 = arith.constant dense<0.000000e+00> : vector<16xf32>
      %150 = vector.multi_reduction <add>, %149, %cst_101 [1] : vector<16x32xf32> to vector<16xf32>
      %151 = vector.shape_cast %150 : vector<16xf32> to vector<16x1xf32>
      %cst_102 = arith.constant 3.200000e+01 : f32
      %152 = vector.broadcast %cst_102 : f32 to vector<16x1xf32>
      %153 = arith.divf %151, %152 : vector<16x1xf32>
      %cst_103 = arith.constant 9.99999974E-6 : f32
      %154 = vector.broadcast %cst_103 : f32 to vector<16x1xf32>
      %155 = arith.addf %153, %154 : vector<16x1xf32>
      %156 = math.rsqrt %155 : vector<16x1xf32>
      %157 = vector.broadcast %156 : vector<16x1xf32> to vector<16x32xf32>
      %158 = arith.mulf %148, %157 : vector<16x32xf32>
      %159 = vector.broadcast %140 : vector<1x32xf32> to vector<16x32xf32>
      %160 = arith.mulf %158, %159 : vector<16x32xf32>
      %161 = vector.broadcast %142 : vector<1x32xf32> to vector<16x32xf32>
      %162 = arith.addf %160, %161 : vector<16x32xf32>
      %c0_104 = arith.constant 0 : index
      %c0_105 = arith.constant 0 : index
      %163 = vector.load %arg45[%c0_104, %c0_105] : memref<16x32xf32, #tpu.memory_space<vmem>>, vector<16x32xf32>
      tpu.vector_store %arg45[%c0_104, %c0_105], %162 {strides = array<i32>} : memref<16x32xf32, #tpu.memory_space<vmem>>, vector<16x32xf32>,
    } else {
    }
    %c1_i32 = arith.constant 1 : i32
    %10 = arith.cmpi eq, %arg0, %c1_i32 : i32
    %11 = arith.extui %10 : i1 to i32
    %c0_i32_9 = arith.constant 0 : i32
    %12 = arith.cmpi ne, %11, %c0_i32_9 : i32
    scf.if %12 {
      %c0_12 = arith.constant 0 : index
      %c0_13 = arith.constant 0 : index
      %16 = vector.load %arg45[%c0_12, %c0_13] : memref<16x32xf32, #tpu.memory_space<vmem>>, vector<16x32xf32>
      %c0_14 = arith.constant 0 : index
      %c0_15 = arith.constant 0 : index
      %17 = vector.load %arg18[%c0_14, %c0_15] : memref<1x32xf32, #tpu.memory_space<vmem>>, vector<1x32xf32>
      %c0_16 = arith.constant 0 : index
      %c0_17 = arith.constant 0 : index
      %18 = vector.load %arg19[%c0_16, %c0_17] : memref<1x32xf32, #tpu.memory_space<vmem>>, vector<1x32xf32>
      %cst = arith.constant dense<0.000000e+00> : vector<16xf32>
      %19 = vector.multi_reduction <add>, %16, %cst [1] : vector<16x32xf32> to vector<16xf32>
      %20 = vector.shape_cast %19 : vector<16xf32> to vector<16x1xf32>
      %cst_18 = arith.constant 3.200000e+01 : f32
      %21 = vector.broadcast %cst_18 : f32 to vector<16x1xf32>
      %22 = arith.divf %20, %21 : vector<16x1xf32>
      %23 = vector.broadcast %22 : vector<16x1xf32> to vector<16x32xf32>
      %24 = arith.subf %16, %23 : vector<16x32xf32>
      %25 = arith.mulf %24, %24 : vector<16x32xf32>
      %cst_19 = arith.constant dense<0.000000e+00> : vector<16xf32>
      %26 = vector.multi_reduction <add>, %25, %cst_19 [1] : vector<16x32xf32> to vector<16xf32>
      %27 = vector.shape_cast %26 : vector<16xf32> to vector<16x1xf32>
      %cst_20 = arith.constant 3.200000e+01 : f32
      %28 = vector.broadcast %cst_20 : f32 to vector<16x1xf32>
      %29 = arith.divf %27, %28 : vector<16x1xf32>
      %cst_21 = arith.constant 9.99999974E-6 : f32
      %30 = vector.broadcast %cst_21 : f32 to vector<16x1xf32>
      %31 = arith.addf %29, %30 : vector<16x1xf32>
      %32 = math.rsqrt %31 : vector<16x1xf32>
      %33 = vector.broadcast %32 : vector<16x1xf32> to vector<16x32xf32>
      %34 = arith.mulf %24, %33 : vector<16x32xf32>
      %35 = vector.broadcast %17 : vector<1x32xf32> to vector<16x32xf32>
      %36 = arith.mulf %34, %35 : vector<16x32xf32>
      %37 = vector.broadcast %18 : vector<1x32xf32> to vector<16x32xf32>
      %38 = arith.addf %36, %37 : vector<16x32xf32>
      %c0_22 = arith.constant 0 : index
      %c0_23 = arith.constant 0 : index
      %39 = vector.load %arg20[%c0_22, %c0_23] : memref<32x384xf32, #tpu.memory_space<vmem>>, vector<32x384xf32>
      %cst_24 = arith.constant dense<0.000000e+00> : vector<16x384xf32>
      %40 = tpu.matmul %38, %39, %cst_24 {dimension_numbers = #tpu.dot_dimension_numbers<[1], [0], [0], [1], [0, 0, 1, 1], [], []>} : vector<16x32xf32>, vector<32x384xf32>, vector<16x384xf32> -> vector<16x384xf32>
      %c0_25 = arith.constant 0 : index
      %c0_26 = arith.constant 0 : index
      %41 = vector.load %arg21[%c0_25, %c0_26] : memref<1x384xf32, #tpu.memory_space<vmem>>, vector<1x384xf32>
      %42 = vector.broadcast %41 : vector<1x384xf32> to vector<16x384xf32>
      %43 = arith.addf %40, %42 : vector<16x384xf32>
      %44 = vector.extract_strided_slice %43 {offsets = [0, 0], sizes = [16, 64], strides = [1, 1]} : vector<16x384xf32> to vector<16x64xf32>
      %c0_27 = arith.constant 0 : index
      %c0_28 = arith.constant 0 : index
      %c0_29 = arith.constant 0 : index
      %45 = vector.load %arg46[%c0_27, %c0_28, %c0_29] : memref<6x16x64xf32, #tpu.memory_space<vmem>>, vector<1x16x64xf32>
      %46 = vector.shape_cast %45 : vector<1x16x64xf32> to vector<16x64xf32>
      %47 = vector.shape_cast %44 : vector<16x64xf32> to vector<1x16x64xf32>
      tpu.vector_store %arg46[%c0_27, %c0_28, %c0_29], %47 {strides = array<i32>} : memref<6x16x64xf32, #tpu.memory_space<vmem>>, vector<1x16x64xf32>,
      %48 = vector.extract_strided_slice %43 {offsets = [0, 64], sizes = [16, 64], strides = [1, 1]} : vector<16x384xf32> to vector<16x64xf32>
      %c1 = arith.constant 1 : index
      %c0_30 = arith.constant 0 : index
      %c0_31 = arith.constant 0 : index
      %49 = vector.load %arg46[%c1, %c0_30, %c0_31] : memref<6x16x64xf32, #tpu.memory_space<vmem>>, vector<1x16x64xf32>
      %50 = vector.shape_cast %49 : vector<1x16x64xf32> to vector<16x64xf32>
      %51 = vector.shape_cast %48 : vector<16x64xf32> to vector<1x16x64xf32>
      tpu.vector_store %arg46[%c1, %c0_30, %c0_31], %51 {strides = array<i32>} : memref<6x16x64xf32, #tpu.memory_space<vmem>>, vector<1x16x64xf32>,
      %52 = vector.extract_strided_slice %43 {offsets = [0, 128], sizes = [16, 64], strides = [1, 1]} : vector<16x384xf32> to vector<16x64xf32>
      %c2 = arith.constant 2 : index
      %c0_32 = arith.constant 0 : index
      %c0_33 = arith.constant 0 : index
      %53 = vector.load %arg46[%c2, %c0_32, %c0_33] : memref<6x16x64xf32, #tpu.memory_space<vmem>>, vector<1x16x64xf32>
      %54 = vector.shape_cast %53 : vector<1x16x64xf32> to vector<16x64xf32>
      %55 = vector.shape_cast %52 : vector<16x64xf32> to vector<1x16x64xf32>
      tpu.vector_store %arg46[%c2, %c0_32, %c0_33], %55 {strides = array<i32>} : memref<6x16x64xf32, #tpu.memory_space<vmem>>, vector<1x16x64xf32>,
      %56 = vector.extract_strided_slice %43 {offsets = [0, 192], sizes = [16, 64], strides = [1, 1]} : vector<16x384xf32> to vector<16x64xf32>
      %c3 = arith.constant 3 : index
      %c0_34 = arith.constant 0 : index
      %c0_35 = arith.constant 0 : index
      %57 = vector.load %arg46[%c3, %c0_34, %c0_35] : memref<6x16x64xf32, #tpu.memory_space<vmem>>, vector<1x16x64xf32>
      %58 = vector.shape_cast %57 : vector<1x16x64xf32> to vector<16x64xf32>
      %59 = vector.shape_cast %56 : vector<16x64xf32> to vector<1x16x64xf32>
      tpu.vector_store %arg46[%c3, %c0_34, %c0_35], %59 {strides = array<i32>} : memref<6x16x64xf32, #tpu.memory_space<vmem>>, vector<1x16x64xf32>,
      %60 = vector.extract_strided_slice %43 {offsets = [0, 256], sizes = [16, 64], strides = [1, 1]} : vector<16x384xf32> to vector<16x64xf32>
      %c4 = arith.constant 4 : index
      %c0_36 = arith.constant 0 : index
      %c0_37 = arith.constant 0 : index
      %61 = vector.load %arg46[%c4, %c0_36, %c0_37] : memref<6x16x64xf32, #tpu.memory_space<vmem>>, vector<1x16x64xf32>
      %62 = vector.shape_cast %61 : vector<1x16x64xf32> to vector<16x64xf32>
      %63 = vector.shape_cast %60 : vector<16x64xf32> to vector<1x16x64xf32>
      tpu.vector_store %arg46[%c4, %c0_36, %c0_37], %63 {strides = array<i32>} : memref<6x16x64xf32, #tpu.memory_space<vmem>>, vector<1x16x64xf32>,
      %64 = vector.extract_strided_slice %43 {offsets = [0, 320], sizes = [16, 64], strides = [1, 1]} : vector<16x384xf32> to vector<16x64xf32>
      %c5 = arith.constant 5 : index
      %c0_38 = arith.constant 0 : index
      %c0_39 = arith.constant 0 : index
      %65 = vector.load %arg46[%c5, %c0_38, %c0_39] : memref<6x16x64xf32, #tpu.memory_space<vmem>>, vector<1x16x64xf32>
      %66 = vector.shape_cast %65 : vector<1x16x64xf32> to vector<16x64xf32>
      %67 = vector.shape_cast %64 : vector<16x64xf32> to vector<1x16x64xf32>
      tpu.vector_store %arg46[%c5, %c0_38, %c0_39], %67 {strides = array<i32>} : memref<6x16x64xf32, #tpu.memory_space<vmem>>, vector<1x16x64xf32>,
      %c0_40 = arith.constant 0 : index
      %c0_41 = arith.constant 0 : index
      %68 = vector.load %arg1[%c0_40, %c0_41] : memref<16x32xf32, #tpu.memory_space<vmem>>, vector<16x32xf32>
      %c0_42 = arith.constant 0 : index
      %c0_43 = arith.constant 0 : index
      %69 = vector.load %arg45[%c0_42, %c0_43] : memref<16x32xf32, #tpu.memory_space<vmem>>, vector<16x32xf32>
      tpu.vector_store %arg45[%c0_42, %c0_43], %68 {strides = array<i32>} : memref<16x32xf32, #tpu.memory_space<vmem>>, vector<16x32xf32>,
    } else {
    }
    %c2_i32_10 = arith.constant 2 : i32
    %13 = arith.cmpi sge, %arg0, %c2_i32_10 : i32
    %14 = arith.extui %13 : i1 to i32
    %c0_i32_11 = arith.constant 0 : i32
    %15 = arith.cmpi ne, %14, %c0_i32_11 : i32
    scf.if %15 {
      %c0_12 = arith.constant 0 : index
      %c0_13 = arith.constant 0 : index
      %16 = vector.load %arg45[%c0_12, %c0_13] : memref<16x32xf32, #tpu.memory_space<vmem>>, vector<16x32xf32>
      %c0_14 = arith.constant 0 : index
      %c0_15 = arith.constant 0 : index
      %c0_16 = arith.constant 0 : index
      %17 = vector.load %arg22[%c0_14, %c0_15, %c0_16] : memref<1x32x96xf32, #tpu.memory_space<vmem>>, vector<1x32x96xf32>
      %18 = vector.shape_cast %17 : vector<1x32x96xf32> to vector<32x96xf32>
      %c0_17 = arith.constant 0 : index
      %c0_18 = arith.constant 0 : index
      %c0_19 = arith.constant 0 : index
      %19 = vector.load %arg23[%c0_17, %c0_18, %c0_19] : memref<1x1x96xf32, #tpu.memory_space<vmem>>, vector<1x1x96xf32>
      %20 = vector.shape_cast %19 : vector<1x1x96xf32> to vector<1x96xf32>
      %c0_20 = arith.constant 0 : index
      %c0_21 = arith.constant 0 : index
      %c0_22 = arith.constant 0 : index
      %21 = vector.load %arg24[%c0_20, %c0_21, %c0_22] : memref<1x32x32xf32, #tpu.memory_space<vmem>>, vector<1x32x32xf32>
      %22 = vector.shape_cast %21 : vector<1x32x32xf32> to vector<32x32xf32>
      %c0_23 = arith.constant 0 : index
      %c0_24 = arith.constant 0 : index
      %c0_25 = arith.constant 0 : index
      %23 = vector.load %arg25[%c0_23, %c0_24, %c0_25] : memref<1x1x32xf32, #tpu.memory_space<vmem>>, vector<1x1x32xf32>
      %24 = vector.shape_cast %23 : vector<1x1x32xf32> to vector<1x32xf32>
      %cst = arith.constant dense<0.000000e+00> : vector<16x96xf32>
      %25 = tpu.matmul %16, %18, %cst {dimension_numbers = #tpu.dot_dimension_numbers<[1], [0], [0], [1], [0, 0, 1, 1], [], []>} : vector<16x32xf32>, vector<32x96xf32>, vector<16x96xf32> -> vector<16x96xf32>
      %26 = vector.broadcast %20 : vector<1x96xf32> to vector<16x96xf32>
      %27 = arith.addf %25, %26 : vector<16x96xf32>
      %28 = vector.extract_strided_slice %27 {offsets = [0, 0], sizes = [16, 32], strides = [1, 1]} : vector<16x96xf32> to vector<16x32xf32>
      %29 = vector.extract_strided_slice %27 {offsets = [0, 32], sizes = [16, 32], strides = [1, 1]} : vector<16x96xf32> to vector<16x32xf32>
      %30 = vector.extract_strided_slice %27 {offsets = [0, 64], sizes = [16, 32], strides = [1, 1]} : vector<16x96xf32> to vector<16x32xf32>
      %cst_26 = arith.constant dense<0.000000e+00> : vector<32x128xf32>
      %31 = tpu.matmul %29, %0, %cst_26 {dimension_numbers = #tpu.dot_dimension_numbers<[0], [0], [1], [1], [0, 1, 1, 1], [], []>} : vector<16x32xf32>, vector<16x128xf32>, vector<32x128xf32> -> vector<32x128xf32>
      %32 = arith.mulf %31, %1 : vector<32x128xf32>
      %cst_27 = arith.constant dense<0.000000e+00> : vector<16x128xf32>
      %33 = tpu.matmul %28, %32, %cst_27 {dimension_numbers = #tpu.dot_dimension_numbers<[1], [0], [0], [1], [0, 0, 1, 1], [], []>} : vector<16x32xf32>, vector<32x128xf32>, vector<16x128xf32> -> vector<16x128xf32>
      %cst_28 = arith.constant 5.000000e-01 : f32
      %34 = vector.broadcast %cst_28 : f32 to vector<16x128xf32>
      %35 = arith.mulf %33, %34 : vector<16x128xf32>
      %36 = arith.addf %35, %3 : vector<16x128xf32>
      %cst_29 = arith.constant dense<0xFF800000> : vector<16xf32>
      %37 = vector.multi_reduction <maximumf>, %36, %cst_29 [1] : vector<16x128xf32> to vector<16xf32>
      %38 = vector.shape_cast %37 : vector<16xf32> to vector<16x1xf32>
      %39 = vector.broadcast %38 : vector<16x1xf32> to vector<16x128xf32>
      %40 = arith.subf %36, %39 : vector<16x128xf32>
      %41 = math.exp %40 : vector<16x128xf32>
      %42 = tpu.concatenate %30, %30, %30, %30, %30, %30, %30, %30 in 0 : vector<16x32xf32>, vector<16x32xf32>, vector<16x32xf32>, vector<16x32xf32>, vector<16x32xf32>, vector<16x32xf32>, vector<16x32xf32>, vector<16x32xf32> -> vector<128x32xf32>
      %43 = arith.mulf %42, %2 : vector<128x32xf32>
      %cst_30 = arith.constant dense<0.000000e+00> : vector<16x32xf32>
      %44 = tpu.matmul %41, %43, %cst_30 {dimension_numbers = #tpu.dot_dimension_numbers<[1], [0], [0], [1], [0, 0, 1, 1], [], []>} : vector<16x128xf32>, vector<128x32xf32>, vector<16x32xf32> -> vector<16x32xf32>
      %cst_31 = arith.constant dense<0.000000e+00> : vector<16x32xf32>
      %45 = tpu.matmul %41, %2, %cst_31 {dimension_numbers = #tpu.dot_dimension_numbers<[1], [0], [0], [1], [0, 0, 1, 1], [], []>} : vector<16x128xf32>, vector<128x32xf32>, vector<16x32xf32> -> vector<16x32xf32>
      %46 = tpu.reciprocal %45 {approx = true} : vector<16x32xf32> -> vector<16x32xf32>
      %47 = arith.mulf %44, %46 : vector<16x32xf32>
      %cst_32 = arith.constant dense<0.000000e+00> : vector<16x32xf32>
      %48 = tpu.matmul %47, %22, %cst_32 {dimension_numbers = #tpu.dot_dimension_numbers<[1], [0], [0], [1], [0, 0, 1, 1], [], []>} : vector<16x32xf32>, vector<32x32xf32>, vector<16x32xf32> -> vector<16x32xf32>
      %49 = vector.broadcast %24 : vector<1x32xf32> to vector<16x32xf32>
      %50 = arith.addf %48, %49 : vector<16x32xf32>
      %51 = arith.addf %16, %50 : vector<16x32xf32>
      %c0_33 = arith.constant 0 : index
      %c0_34 = arith.constant 0 : index
      %c0_35 = arith.constant 0 : index
      %52 = vector.load %arg30[%c0_33, %c0_34, %c0_35] : memref<1x1x32xf32, #tpu.memory_space<vmem>>, vector<1x1x32xf32>
      %53 = vector.shape_cast %52 : vector<1x1x32xf32> to vector<1x32xf32>
      %c0_36 = arith.constant 0 : index
      %c0_37 = arith.constant 0 : index
      %c0_38 = arith.constant 0 : index
      %54 = vector.load %arg31[%c0_36, %c0_37, %c0_38] : memref<1x1x32xf32, #tpu.memory_space<vmem>>, vector<1x1x32xf32>
      %55 = vector.shape_cast %54 : vector<1x1x32xf32> to vector<1x32xf32>
      %cst_39 = arith.constant dense<0.000000e+00> : vector<16xf32>
      %56 = vector.multi_reduction <add>, %51, %cst_39 [1] : vector<16x32xf32> to vector<16xf32>
      %57 = vector.shape_cast %56 : vector<16xf32> to vector<16x1xf32>
      %cst_40 = arith.constant 3.200000e+01 : f32
      %58 = vector.broadcast %cst_40 : f32 to vector<16x1xf32>
      %59 = arith.divf %57, %58 : vector<16x1xf32>
      %60 = vector.broadcast %59 : vector<16x1xf32> to vector<16x32xf32>
      %61 = arith.subf %51, %60 : vector<16x32xf32>
      %62 = arith.mulf %61, %61 : vector<16x32xf32>
      %cst_41 = arith.constant dense<0.000000e+00> : vector<16xf32>
      %63 = vector.multi_reduction <add>, %62, %cst_41 [1] : vector<16x32xf32> to vector<16xf32>
      %64 = vector.shape_cast %63 : vector<16xf32> to vector<16x1xf32>
      %cst_42 = arith.constant 3.200000e+01 : f32
      %65 = vector.broadcast %cst_42 : f32 to vector<16x1xf32>
      %66 = arith.divf %64, %65 : vector<16x1xf32>
      %cst_43 = arith.constant 9.99999974E-6 : f32
      %67 = vector.broadcast %cst_43 : f32 to vector<16x1xf32>
      %68 = arith.addf %66, %67 : vector<16x1xf32>
      %69 = math.rsqrt %68 : vector<16x1xf32>
      %70 = vector.broadcast %69 : vector<16x1xf32> to vector<16x32xf32>
      %71 = arith.mulf %61, %70 : vector<16x32xf32>
      %72 = vector.broadcast %53 : vector<1x32xf32> to vector<16x32xf32>
      %73 = arith.mulf %71, %72 : vector<16x32xf32>
      %74 = vector.broadcast %55 : vector<1x32xf32> to vector<16x32xf32>
      %75 = arith.addf %73, %74 : vector<16x32xf32>
      %c0_44 = arith.constant 0 : index
      %c0_45 = arith.constant 0 : index
      %c0_46 = arith.constant 0 : index
      %76 = vector.load %arg26[%c0_44, %c0_45, %c0_46] : memref<1x32x32xf32, #tpu.memory_space<vmem>>, vector<1x32x32xf32>
      %77 = vector.shape_cast %76 : vector<1x32x32xf32> to vector<32x32xf32>
      %cst_47 = arith.constant dense<0.000000e+00> : vector<16x32xf32>
      %78 = tpu.matmul %75, %77, %cst_47 {dimension_numbers = #tpu.dot_dimension_numbers<[1], [0], [0], [1], [0, 0, 1, 1], [], []>} : vector<16x32xf32>, vector<32x32xf32>, vector<16x32xf32> -> vector<16x32xf32>
      %c0_48 = arith.constant 0 : index
      %c0_49 = arith.constant 0 : index
      %c0_50 = arith.constant 0 : index
      %79 = vector.load %arg27[%c0_48, %c0_49, %c0_50] : memref<1x1x32xf32, #tpu.memory_space<vmem>>, vector<1x1x32xf32>
      %80 = vector.shape_cast %79 : vector<1x1x32xf32> to vector<1x32xf32>
      %81 = vector.broadcast %80 : vector<1x32xf32> to vector<16x32xf32>
      %82 = arith.addf %78, %81 : vector<16x32xf32>
      %c2_i32_51 = arith.constant 2 : i32
      %83 = arith.subi %arg0, %c2_i32_51 : i32
      %84 = arith.index_cast %83 : i32 to index
      %c0_52 = arith.constant 0 : index
      %c0_53 = arith.constant 0 : index
      %85 = vector.load %arg46[%84, %c0_52, %c0_53] : memref<6x16x64xf32, #tpu.memory_space<vmem>>, vector<1x16x64xf32>
      %86 = vector.shape_cast %85 : vector<1x16x64xf32> to vector<16x64xf32>
      %87 = vector.extract_strided_slice %86 {offsets = [0, 0], sizes = [16, 32], strides = [1, 1]} : vector<16x64xf32> to vector<16x32xf32>
      %88 = vector.extract_strided_slice %86 {offsets = [0, 32], sizes = [16, 32], strides = [1, 1]} : vector<16x64xf32> to vector<16x32xf32>
      %cst_54 = arith.constant dense<0.000000e+00> : vector<32x128xf32>
      %89 = tpu.matmul %87, %0, %cst_54 {dimension_numbers = #tpu.dot_dimension_numbers<[0], [0], [1], [1], [0, 1, 1, 1], [], []>} : vector<16x32xf32>, vector<16x128xf32>, vector<32x128xf32> -> vector<32x128xf32>
      %90 = arith.mulf %89, %1 : vector<32x128xf32>
      %cst_55 = arith.constant dense<0.000000e+00> : vector<16x128xf32>
      %91 = tpu.matmul %82, %90, %cst_55 {dimension_numbers = #tpu.dot_dimension_numbers<[1], [0], [0], [1], [0, 0, 1, 1], [], []>} : vector<16x32xf32>, vector<32x128xf32>, vector<16x128xf32> -> vector<16x128xf32>
      %cst_56 = arith.constant 5.000000e-01 : f32
      %92 = vector.broadcast %cst_56 : f32 to vector<16x128xf32>
      %93 = arith.mulf %91, %92 : vector<16x128xf32>
      %94 = arith.addf %93, %3 : vector<16x128xf32>
      %cst_57 = arith.constant dense<0xFF800000> : vector<16xf32>
      %95 = vector.multi_reduction <maximumf>, %94, %cst_57 [1] : vector<16x128xf32> to vector<16xf32>
      %96 = vector.shape_cast %95 : vector<16xf32> to vector<16x1xf32>
      %97 = vector.broadcast %96 : vector<16x1xf32> to vector<16x128xf32>
      %98 = arith.subf %94, %97 : vector<16x128xf32>
      %99 = math.exp %98 : vector<16x128xf32>
      %100 = tpu.concatenate %88, %88, %88, %88, %88, %88, %88, %88 in 0 : vector<16x32xf32>, vector<16x32xf32>, vector<16x32xf32>, vector<16x32xf32>, vector<16x32xf32>, vector<16x32xf32>, vector<16x32xf32>, vector<16x32xf32> -> vector<128x32xf32>
      %101 = arith.mulf %100, %2 : vector<128x32xf32>
      %cst_58 = arith.constant dense<0.000000e+00> : vector<16x32xf32>
      %102 = tpu.matmul %99, %101, %cst_58 {dimension_numbers = #tpu.dot_dimension_numbers<[1], [0], [0], [1], [0, 0, 1, 1], [], []>} : vector<16x128xf32>, vector<128x32xf32>, vector<16x32xf32> -> vector<16x32xf32>
      %cst_59 = arith.constant dense<0.000000e+00> : vector<16x32xf32>
      %103 = tpu.matmul %99, %2, %cst_59 {dimension_numbers = #tpu.dot_dimension_numbers<[1], [0], [0], [1], [0, 0, 1, 1], [], []>} : vector<16x128xf32>, vector<128x32xf32>, vector<16x32xf32> -> vector<16x32xf32>
      %104 = tpu.reciprocal %103 {approx = true} : vector<16x32xf32> -> vector<16x32xf32>
      %105 = arith.mulf %102, %104 : vector<16x32xf32>
      %c0_60 = arith.constant 0 : index
      %c0_61 = arith.constant 0 : index
      %c0_62 = arith.constant 0 : index
      %106 = vector.load %arg28[%c0_60, %c0_61, %c0_62] : memref<1x32x32xf32, #tpu.memory_space<vmem>>, vector<1x32x32xf32>
      %107 = vector.shape_cast %106 : vector<1x32x32xf32> to vector<32x32xf32>
      %cst_63 = arith.constant dense<0.000000e+00> : vector<16x32xf32>
      %108 = tpu.matmul %105, %107, %cst_63 {dimension_numbers = #tpu.dot_dimension_numbers<[1], [0], [0], [1], [0, 0, 1, 1], [], []>} : vector<16x32xf32>, vector<32x32xf32>, vector<16x32xf32> -> vector<16x32xf32>
      %c0_64 = arith.constant 0 : index
      %c0_65 = arith.constant 0 : index
      %c0_66 = arith.constant 0 : index
      %109 = vector.load %arg29[%c0_64, %c0_65, %c0_66] : memref<1x1x32xf32, #tpu.memory_space<vmem>>, vector<1x1x32xf32>
      %110 = vector.shape_cast %109 : vector<1x1x32xf32> to vector<1x32xf32>
      %111 = vector.broadcast %110 : vector<1x32xf32> to vector<16x32xf32>
      %112 = arith.addf %108, %111 : vector<16x32xf32>
      %113 = arith.addf %75, %112 : vector<16x32xf32>
      %c0_67 = arith.constant 0 : index
      %c0_68 = arith.constant 0 : index
      %c0_69 = arith.constant 0 : index
      %114 = vector.load %arg32[%c0_67, %c0_68, %c0_69] : memref<1x1x32xf32, #tpu.memory_space<vmem>>, vector<1x1x32xf32>
      %115 = vector.shape_cast %114 : vector<1x1x32xf32> to vector<1x32xf32>
      %c0_70 = arith.constant 0 : index
      %c0_71 = arith.constant 0 : index
      %c0_72 = arith.constant 0 : index
      %116 = vector.load %arg33[%c0_70, %c0_71, %c0_72] : memref<1x1x32xf32, #tpu.memory_space<vmem>>, vector<1x1x32xf32>
      %117 = vector.shape_cast %116 : vector<1x1x32xf32> to vector<1x32xf32>
      %cst_73 = arith.constant dense<0.000000e+00> : vector<16xf32>
      %118 = vector.multi_reduction <add>, %113, %cst_73 [1] : vector<16x32xf32> to vector<16xf32>
      %119 = vector.shape_cast %118 : vector<16xf32> to vector<16x1xf32>
      %cst_74 = arith.constant 3.200000e+01 : f32
      %120 = vector.broadcast %cst_74 : f32 to vector<16x1xf32>
      %121 = arith.divf %119, %120 : vector<16x1xf32>
      %122 = vector.broadcast %121 : vector<16x1xf32> to vector<16x32xf32>
      %123 = arith.subf %113, %122 : vector<16x32xf32>
      %124 = arith.mulf %123, %123 : vector<16x32xf32>
      %cst_75 = arith.constant dense<0.000000e+00> : vector<16xf32>
      %125 = vector.multi_reduction <add>, %124, %cst_75 [1] : vector<16x32xf32> to vector<16xf32>
      %126 = vector.shape_cast %125 : vector<16xf32> to vector<16x1xf32>
      %cst_76 = arith.constant 3.200000e+01 : f32
      %127 = vector.broadcast %cst_76 : f32 to vector<16x1xf32>
      %128 = arith.divf %126, %127 : vector<16x1xf32>
      %cst_77 = arith.constant 9.99999974E-6 : f32
      %129 = vector.broadcast %cst_77 : f32 to vector<16x1xf32>
      %130 = arith.addf %128, %129 : vector<16x1xf32>
      %131 = math.rsqrt %130 : vector<16x1xf32>
      %132 = vector.broadcast %131 : vector<16x1xf32> to vector<16x32xf32>
      %133 = arith.mulf %123, %132 : vector<16x32xf32>
      %134 = vector.broadcast %115 : vector<1x32xf32> to vector<16x32xf32>
      %135 = arith.mulf %133, %134 : vector<16x32xf32>
      %136 = vector.broadcast %117 : vector<1x32xf32> to vector<16x32xf32>
      %137 = arith.addf %135, %136 : vector<16x32xf32>
      %138 = arith.truncf %137 : vector<16x32xf32> to vector<16x32xbf16>
      %cst_78 = arith.constant 0.000000e+00 : f32
      %139 = vector.broadcast %cst_78 : f32 to vector<16x32xf32>
      %c0_79 = arith.constant 0 : index
      %c0_80 = arith.constant 0 : index
      %c0_81 = arith.constant 0 : index
      %140 = vector.load %arg36[%c0_79, %c0_80, %c0_81] : memref<1x32x2048xbf16, #tpu.memory_space<vmem>>, vector<1x32x512xbf16>
      %141 = vector.shape_cast %140 : vector<1x32x512xbf16> to vector<32x512xbf16>
      %cst_82 = arith.constant dense<0.000000e+00> : vector<16x512xf32>
      %142 = tpu.matmul %138, %141, %cst_82 {dimension_numbers = #tpu.dot_dimension_numbers<[1], [0], [0], [1], [0, 0, 1, 1], [], []>} : vector<16x32xbf16>, vector<32x512xbf16>, vector<16x512xf32> -> vector<16x512xf32>
      %c0_83 = arith.constant 0 : index
      %c0_84 = arith.constant 0 : index
      %c0_85 = arith.constant 0 : index
      %143 = vector.load %arg37[%c0_83, %c0_84, %c0_85] : memref<1x1x2048xf32, #tpu.memory_space<vmem>>, vector<1x1x512xf32>
      %144 = vector.shape_cast %143 : vector<1x1x512xf32> to vector<1x512xf32>
      %145 = vector.broadcast %144 : vector<1x512xf32> to vector<16x512xf32>
      %146 = arith.addf %142, %145 : vector<16x512xf32>
      %cst_86 = arith.constant 0.000000e+00 : f32
      %147 = vector.broadcast %cst_86 : f32 to vector<16x512xf32>
      %148 = arith.maximumf %146, %147 : vector<16x512xf32>
      %149 = arith.truncf %148 : vector<16x512xf32> to vector<16x512xbf16>
      %c0_87 = arith.constant 0 : index
      %c0_88 = arith.constant 0 : index
      %c0_89 = arith.constant 0 : index
      %150 = vector.load %arg38[%c0_87, %c0_88, %c0_89] : memref<1x32x2048xbf16, #tpu.memory_space<vmem>>, vector<1x32x512xbf16>
      %151 = vector.shape_cast %150 : vector<1x32x512xbf16> to vector<32x512xbf16>
      %cst_90 = arith.constant dense<0.000000e+00> : vector<16x32xf32>
      %152 = tpu.matmul %149, %151, %cst_90 {dimension_numbers = #tpu.dot_dimension_numbers<[1], [1], [0], [0], [0, 0, 1, 0], [], []>} : vector<16x512xbf16>, vector<32x512xbf16>, vector<16x32xf32> -> vector<16x32xf32>
      %153 = arith.addf %139, %152 : vector<16x32xf32>
      %c0_91 = arith.constant 0 : index
      %c0_92 = arith.constant 0 : index
      %c512 = arith.constant 512 : index
      %154 = vector.load %arg36[%c0_91, %c0_92, %c512] : memref<1x32x2048xbf16, #tpu.memory_space<vmem>>, vector<1x32x512xbf16>
      %155 = vector.shape_cast %154 : vector<1x32x512xbf16> to vector<32x512xbf16>
      %cst_93 = arith.constant dense<0.000000e+00> : vector<16x512xf32>
      %156 = tpu.matmul %138, %155, %cst_93 {dimension_numbers = #tpu.dot_dimension_numbers<[1], [0], [0], [1], [0, 0, 1, 1], [], []>} : vector<16x32xbf16>, vector<32x512xbf16>, vector<16x512xf32> -> vector<16x512xf32>
      %c0_94 = arith.constant 0 : index
      %c0_95 = arith.constant 0 : index
      %c512_96 = arith.constant 512 : index
      %157 = vector.load %arg37[%c0_94, %c0_95, %c512_96] : memref<1x1x2048xf32, #tpu.memory_space<vmem>>, vector<1x1x512xf32>
      %158 = vector.shape_cast %157 : vector<1x1x512xf32> to vector<1x512xf32>
      %159 = vector.broadcast %158 : vector<1x512xf32> to vector<16x512xf32>
      %160 = arith.addf %156, %159 : vector<16x512xf32>
      %cst_97 = arith.constant 0.000000e+00 : f32
      %161 = vector.broadcast %cst_97 : f32 to vector<16x512xf32>
      %162 = arith.maximumf %160, %161 : vector<16x512xf32>
      %163 = arith.truncf %162 : vector<16x512xf32> to vector<16x512xbf16>
      %c0_98 = arith.constant 0 : index
      %c0_99 = arith.constant 0 : index
      %c512_100 = arith.constant 512 : index
      %164 = vector.load %arg38[%c0_98, %c0_99, %c512_100] : memref<1x32x2048xbf16, #tpu.memory_space<vmem>>, vector<1x32x512xbf16>
      %165 = vector.shape_cast %164 : vector<1x32x512xbf16> to vector<32x512xbf16>
      %cst_101 = arith.constant dense<0.000000e+00> : vector<16x32xf32>
      %166 = tpu.matmul %163, %165, %cst_101 {dimension_numbers = #tpu.dot_dimension_numbers<[1], [1], [0], [0], [0, 0, 1, 0], [], []>} : vector<16x512xbf16>, vector<32x512xbf16>, vector<16x32xf32> -> vector<16x32xf32>
      %167 = arith.addf %153, %166 : vector<16x32xf32>
      %c0_102 = arith.constant 0 : index
      %c0_103 = arith.constant 0 : index
      %c1024 = arith.constant 1024 : index
      %168 = vector.load %arg36[%c0_102, %c0_103, %c1024] : memref<1x32x2048xbf16, #tpu.memory_space<vmem>>, vector<1x32x512xbf16>
      %169 = vector.shape_cast %168 : vector<1x32x512xbf16> to vector<32x512xbf16>
      %cst_104 = arith.constant dense<0.000000e+00> : vector<16x512xf32>
      %170 = tpu.matmul %138, %169, %cst_104 {dimension_numbers = #tpu.dot_dimension_numbers<[1], [0], [0], [1], [0, 0, 1, 1], [], []>} : vector<16x32xbf16>, vector<32x512xbf16>, vector<16x512xf32> -> vector<16x512xf32>
      %c0_105 = arith.constant 0 : index
      %c0_106 = arith.constant 0 : index
      %c1024_107 = arith.constant 1024 : index
      %171 = vector.load %arg37[%c0_105, %c0_106, %c1024_107] : memref<1x1x2048xf32, #tpu.memory_space<vmem>>, vector<1x1x512xf32>
      %172 = vector.shape_cast %171 : vector<1x1x512xf32> to vector<1x512xf32>
      %173 = vector.broadcast %172 : vector<1x512xf32> to vector<16x512xf32>
      %174 = arith.addf %170, %173 : vector<16x512xf32>
      %cst_108 = arith.constant 0.000000e+00 : f32
      %175 = vector.broadcast %cst_108 : f32 to vector<16x512xf32>
      %176 = arith.maximumf %174, %175 : vector<16x512xf32>
      %177 = arith.truncf %176 : vector<16x512xf32> to vector<16x512xbf16>
      %c0_109 = arith.constant 0 : index
      %c0_110 = arith.constant 0 : index
      %c1024_111 = arith.constant 1024 : index
      %178 = vector.load %arg38[%c0_109, %c0_110, %c1024_111] : memref<1x32x2048xbf16, #tpu.memory_space<vmem>>, vector<1x32x512xbf16>
      %179 = vector.shape_cast %178 : vector<1x32x512xbf16> to vector<32x512xbf16>
      %cst_112 = arith.constant dense<0.000000e+00> : vector<16x32xf32>
      %180 = tpu.matmul %177, %179, %cst_112 {dimension_numbers = #tpu.dot_dimension_numbers<[1], [1], [0], [0], [0, 0, 1, 0], [], []>} : vector<16x512xbf16>, vector<32x512xbf16>, vector<16x32xf32> -> vector<16x32xf32>
      %181 = arith.addf %167, %180 : vector<16x32xf32>
      %c0_113 = arith.constant 0 : index
      %c0_114 = arith.constant 0 : index
      %c1536 = arith.constant 1536 : index
      %182 = vector.load %arg36[%c0_113, %c0_114, %c1536] : memref<1x32x2048xbf16, #tpu.memory_space<vmem>>, vector<1x32x512xbf16>
      %183 = vector.shape_cast %182 : vector<1x32x512xbf16> to vector<32x512xbf16>
      %cst_115 = arith.constant dense<0.000000e+00> : vector<16x512xf32>
      %184 = tpu.matmul %138, %183, %cst_115 {dimension_numbers = #tpu.dot_dimension_numbers<[1], [0], [0], [1], [0, 0, 1, 1], [], []>} : vector<16x32xbf16>, vector<32x512xbf16>, vector<16x512xf32> -> vector<16x512xf32>
      %c0_116 = arith.constant 0 : index
      %c0_117 = arith.constant 0 : index
      %c1536_118 = arith.constant 1536 : index
      %185 = vector.load %arg37[%c0_116, %c0_117, %c1536_118] : memref<1x1x2048xf32, #tpu.memory_space<vmem>>, vector<1x1x512xf32>
      %186 = vector.shape_cast %185 : vector<1x1x512xf32> to vector<1x512xf32>
      %187 = vector.broadcast %186 : vector<1x512xf32> to vector<16x512xf32>
      %188 = arith.addf %184, %187 : vector<16x512xf32>
      %cst_119 = arith.constant 0.000000e+00 : f32
      %189 = vector.broadcast %cst_119 : f32 to vector<16x512xf32>
      %190 = arith.maximumf %188, %189 : vector<16x512xf32>
      %191 = arith.truncf %190 : vector<16x512xf32> to vector<16x512xbf16>
      %c0_120 = arith.constant 0 : index
      %c0_121 = arith.constant 0 : index
      %c1536_122 = arith.constant 1536 : index
      %192 = vector.load %arg38[%c0_120, %c0_121, %c1536_122] : memref<1x32x2048xbf16, #tpu.memory_space<vmem>>, vector<1x32x512xbf16>
      %193 = vector.shape_cast %192 : vector<1x32x512xbf16> to vector<32x512xbf16>
      %cst_123 = arith.constant dense<0.000000e+00> : vector<16x32xf32>
      %194 = tpu.matmul %191, %193, %cst_123 {dimension_numbers = #tpu.dot_dimension_numbers<[1], [1], [0], [0], [0, 0, 1, 0], [], []>} : vector<16x512xbf16>, vector<32x512xbf16>, vector<16x32xf32> -> vector<16x32xf32>
      %195 = arith.addf %181, %194 : vector<16x32xf32>
      %c0_124 = arith.constant 0 : index
      %c0_125 = arith.constant 0 : index
      %c0_126 = arith.constant 0 : index
      %196 = vector.load %arg39[%c0_124, %c0_125, %c0_126] : memref<1x1x32xf32, #tpu.memory_space<vmem>>, vector<1x1x32xf32>
      %197 = vector.shape_cast %196 : vector<1x1x32xf32> to vector<1x32xf32>
      %198 = vector.broadcast %197 : vector<1x32xf32> to vector<16x32xf32>
      %199 = arith.addf %195, %198 : vector<16x32xf32>
      %200 = arith.addf %137, %199 : vector<16x32xf32>
      %c0_127 = arith.constant 0 : index
      %c0_128 = arith.constant 0 : index
      %c0_129 = arith.constant 0 : index
      %201 = vector.load %arg34[%c0_127, %c0_128, %c0_129] : memref<1x1x32xf32, #tpu.memory_space<vmem>>, vector<1x1x32xf32>
      %202 = vector.shape_cast %201 : vector<1x1x32xf32> to vector<1x32xf32>
      %c0_130 = arith.constant 0 : index
      %c0_131 = arith.constant 0 : index
      %c0_132 = arith.constant 0 : index
      %203 = vector.load %arg35[%c0_130, %c0_131, %c0_132] : memref<1x1x32xf32, #tpu.memory_space<vmem>>, vector<1x1x32xf32>
      %204 = vector.shape_cast %203 : vector<1x1x32xf32> to vector<1x32xf32>
      %cst_133 = arith.constant dense<0.000000e+00> : vector<16xf32>
      %205 = vector.multi_reduction <add>, %200, %cst_133 [1] : vector<16x32xf32> to vector<16xf32>
      %206 = vector.shape_cast %205 : vector<16xf32> to vector<16x1xf32>
      %cst_134 = arith.constant 3.200000e+01 : f32
      %207 = vector.broadcast %cst_134 : f32 to vector<16x1xf32>
      %208 = arith.divf %206, %207 : vector<16x1xf32>
      %209 = vector.broadcast %208 : vector<16x1xf32> to vector<16x32xf32>
      %210 = arith.subf %200, %209 : vector<16x32xf32>
      %211 = arith.mulf %210, %210 : vector<16x32xf32>
      %cst_135 = arith.constant dense<0.000000e+00> : vector<16xf32>
      %212 = vector.multi_reduction <add>, %211, %cst_135 [1] : vector<16x32xf32> to vector<16xf32>
      %213 = vector.shape_cast %212 : vector<16xf32> to vector<16x1xf32>
      %cst_136 = arith.constant 3.200000e+01 : f32
      %214 = vector.broadcast %cst_136 : f32 to vector<16x1xf32>
      %215 = arith.divf %213, %214 : vector<16x1xf32>
      %cst_137 = arith.constant 9.99999974E-6 : f32
      %216 = vector.broadcast %cst_137 : f32 to vector<16x1xf32>
      %217 = arith.addf %215, %216 : vector<16x1xf32>
      %218 = math.rsqrt %217 : vector<16x1xf32>
      %219 = vector.broadcast %218 : vector<16x1xf32> to vector<16x32xf32>
      %220 = arith.mulf %210, %219 : vector<16x32xf32>
      %221 = vector.broadcast %202 : vector<1x32xf32> to vector<16x32xf32>
      %222 = arith.mulf %220, %221 : vector<16x32xf32>
      %223 = vector.broadcast %204 : vector<1x32xf32> to vector<16x32xf32>
      %224 = arith.addf %222, %223 : vector<16x32xf32>
      %c0_138 = arith.constant 0 : index
      %c0_139 = arith.constant 0 : index
      %225 = vector.load %arg45[%c0_138, %c0_139] : memref<16x32xf32, #tpu.memory_space<vmem>>, vector<16x32xf32>
      tpu.vector_store %arg45[%c0_138, %c0_139], %224 {strides = array<i32>} : memref<16x32xf32, #tpu.memory_space<vmem>>, vector<16x32xf32>,
      %c7_i32 = arith.constant 7 : i32
      %226 = arith.cmpi eq, %arg0, %c7_i32 : i32
      %227 = arith.extui %226 : i1 to i32
      %c0_i32_140 = arith.constant 0 : i32
      %228 = arith.cmpi ne, %227, %c0_i32_140 : i32
      scf.if %228 {
        %c0_141 = arith.constant 0 : index
        %c0_142 = arith.constant 0 : index
        %229 = vector.load %arg40[%c0_141, %c0_142] : memref<1x32xf32, #tpu.memory_space<vmem>>, vector<1x32xf32>
        %c0_143 = arith.constant 0 : index
        %c0_144 = arith.constant 0 : index
        %230 = vector.load %arg41[%c0_143, %c0_144] : memref<1x32xf32, #tpu.memory_space<vmem>>, vector<1x32xf32>
        %cst_145 = arith.constant dense<0.000000e+00> : vector<16xf32>
        %231 = vector.multi_reduction <add>, %224, %cst_145 [1] : vector<16x32xf32> to vector<16xf32>
        %232 = vector.shape_cast %231 : vector<16xf32> to vector<16x1xf32>
        %cst_146 = arith.constant 3.200000e+01 : f32
        %233 = vector.broadcast %cst_146 : f32 to vector<16x1xf32>
        %234 = arith.divf %232, %233 : vector<16x1xf32>
        %235 = vector.broadcast %234 : vector<16x1xf32> to vector<16x32xf32>
        %236 = arith.subf %224, %235 : vector<16x32xf32>
        %237 = arith.mulf %236, %236 : vector<16x32xf32>
        %cst_147 = arith.constant dense<0.000000e+00> : vector<16xf32>
        %238 = vector.multi_reduction <add>, %237, %cst_147 [1] : vector<16x32xf32> to vector<16xf32>
        %239 = vector.shape_cast %238 : vector<16xf32> to vector<16x1xf32>
        %cst_148 = arith.constant 3.200000e+01 : f32
        %240 = vector.broadcast %cst_148 : f32 to vector<16x1xf32>
        %241 = arith.divf %239, %240 : vector<16x1xf32>
        %cst_149 = arith.constant 9.99999974E-6 : f32
        %242 = vector.broadcast %cst_149 : f32 to vector<16x1xf32>
        %243 = arith.addf %241, %242 : vector<16x1xf32>
        %244 = math.rsqrt %243 : vector<16x1xf32>
        %245 = vector.broadcast %244 : vector<16x1xf32> to vector<16x32xf32>
        %246 = arith.mulf %236, %245 : vector<16x32xf32>
        %247 = vector.broadcast %229 : vector<1x32xf32> to vector<16x32xf32>
        %248 = arith.mulf %246, %247 : vector<16x32xf32>
        %249 = vector.broadcast %230 : vector<1x32xf32> to vector<16x32xf32>
        %250 = arith.addf %248, %249 : vector<16x32xf32>
        %c0_150 = arith.constant 0 : index
        %c0_151 = arith.constant 0 : index
        %251 = vector.load %arg42[%c0_150, %c0_151] : memref<32x1xf32, #tpu.memory_space<vmem>>, vector<32x1xf32>
        %cst_152 = arith.constant dense<0.000000e+00> : vector<16x1xf32>
        %252 = tpu.matmul %250, %251, %cst_152 {dimension_numbers = #tpu.dot_dimension_numbers<[1], [0], [0], [1], [0, 0, 1, 1], [], []>} : vector<16x32xf32>, vector<32x1xf32>, vector<16x1xf32> -> vector<16x1xf32>
        %c0_153 = arith.constant 0 : index
        %c0_154 = arith.constant 0 : index
        %253 = vector.load %arg43[%c0_153, %c0_154] : memref<1x1xf32, #tpu.memory_space<vmem>>, vector<1x1xf32>
        %254 = vector.broadcast %253 : vector<1x1xf32> to vector<16x1xf32>
        %255 = arith.addf %252, %254 : vector<16x1xf32>
        %c0_155 = arith.constant 0 : index
        %c0_156 = arith.constant 0 : index
        %256 = vector.load %arg44[%c0_155, %c0_156] : memref<16x1xf32, #tpu.memory_space<vmem>>, vector<16x1xf32>
        tpu.vector_store %arg44[%c0_155, %c0_156], %255 {strides = array<i32>} : memref<16x1xf32, #tpu.memory_space<vmem>>, vector<16x1xf32>,
      } else {
      }
    } else {
    }
    return
  }
  func.func @transform_0(%arg0: i32) -> (i32, i32) {
    %c0_i32 = arith.constant 0 : i32
    %c0_i32_0 = arith.constant 0 : i32
    %c0_i32_1 = arith.constant 0 : i32
    return %c0_i32, %c0_i32_0 : i32, i32
  }
  func.func @transform_1(%arg0: i32) -> (i32, i32) {
    %c0_i32 = arith.constant 0 : i32
    %c0_i32_0 = arith.constant 0 : i32
    %c0_i32_1 = arith.constant 0 : i32
    return %c0_i32, %c0_i32_0 : i32, i32
  }
  func.func @transform_2(%arg0: i32) -> (i32, i32) {
    %c0_i32 = arith.constant 0 : i32
    %c0_i32_0 = arith.constant 0 : i32
    %c0_i32_1 = arith.constant 0 : i32
    return %c0_i32, %c0_i32_0 : i32, i32
  }
  func.func @transform_3(%arg0: i32) -> (i32, i32) {
    %c0_i32 = arith.constant 0 : i32
    %c0_i32_0 = arith.constant 0 : i32
    %c0_i32_1 = arith.constant 0 : i32
    return %c0_i32, %c0_i32_0 : i32, i32
  }
  func.func @transform_4(%arg0: i32) -> (i32, i32) {
    %c0_i32 = arith.constant 0 : i32
    %c0_i32_0 = arith.constant 0 : i32
    %c0_i32_1 = arith.constant 0 : i32
    return %c0_i32, %c0_i32_0 : i32, i32
  }
  func.func @transform_5(%arg0: i32) -> (i32, i32, i32) {
    %c1_i32 = arith.constant 1 : i32
    %0 = arith.minsi %arg0, %c1_i32 : i32
    %c0_i32 = arith.constant 0 : i32
    %c0_i32_0 = arith.constant 0 : i32
    %c0_i32_1 = arith.constant 0 : i32
    return %0, %c0_i32, %c0_i32_0 : i32, i32, i32
  }
  func.func @transform_6(%arg0: i32) -> (i32, i32, i32) {
    %c1_i32 = arith.constant 1 : i32
    %0 = arith.minsi %arg0, %c1_i32 : i32
    %c0_i32 = arith.constant 0 : i32
    %c0_i32_0 = arith.constant 0 : i32
    %c0_i32_1 = arith.constant 0 : i32
    return %0, %c0_i32, %c0_i32_0 : i32, i32, i32
  }
  func.func @transform_7(%arg0: i32) -> (i32, i32, i32) {
    %c1_i32 = arith.constant 1 : i32
    %0 = arith.minsi %arg0, %c1_i32 : i32
    %c0_i32 = arith.constant 0 : i32
    %c0_i32_0 = arith.constant 0 : i32
    %c0_i32_1 = arith.constant 0 : i32
    return %0, %c0_i32, %c0_i32_0 : i32, i32, i32
  }
  func.func @transform_8(%arg0: i32) -> (i32, i32, i32) {
    %c1_i32 = arith.constant 1 : i32
    %0 = arith.minsi %arg0, %c1_i32 : i32
    %c0_i32 = arith.constant 0 : i32
    %c0_i32_0 = arith.constant 0 : i32
    %c0_i32_1 = arith.constant 0 : i32
    return %0, %c0_i32, %c0_i32_0 : i32, i32, i32
  }
  func.func @transform_9(%arg0: i32) -> (i32, i32, i32) {
    %c1_i32 = arith.constant 1 : i32
    %0 = arith.minsi %arg0, %c1_i32 : i32
    %c0_i32 = arith.constant 0 : i32
    %c0_i32_0 = arith.constant 0 : i32
    %c0_i32_1 = arith.constant 0 : i32
    return %0, %c0_i32, %c0_i32_0 : i32, i32, i32
  }
  func.func @transform_10(%arg0: i32) -> (i32, i32, i32) {
    %c1_i32 = arith.constant 1 : i32
    %0 = arith.minsi %arg0, %c1_i32 : i32
    %c0_i32 = arith.constant 0 : i32
    %c0_i32_0 = arith.constant 0 : i32
    %c0_i32_1 = arith.constant 0 : i32
    return %0, %c0_i32, %c0_i32_0 : i32, i32, i32
  }
  func.func @transform_11(%arg0: i32) -> (i32, i32, i32) {
    %c1_i32 = arith.constant 1 : i32
    %0 = arith.minsi %arg0, %c1_i32 : i32
    %c0_i32 = arith.constant 0 : i32
    %c0_i32_0 = arith.constant 0 : i32
    %c0_i32_1 = arith.constant 0 : i32
    return %0, %c0_i32, %c0_i32_0 : i32, i32, i32
  }
  func.func @transform_12(%arg0: i32) -> (i32, i32, i32) {
    %c1_i32 = arith.constant 1 : i32
    %0 = arith.minsi %arg0, %c1_i32 : i32
    %c0_i32 = arith.constant 0 : i32
    %c0_i32_0 = arith.constant 0 : i32
    %c0_i32_1 = arith.constant 0 : i32
    return %0, %c0_i32, %c0_i32_0 : i32, i32, i32
  }
  func.func @transform_13(%arg0: i32) -> (i32, i32, i32) {
    %c1_i32 = arith.constant 1 : i32
    %0 = arith.minsi %arg0, %c1_i32 : i32
    %c0_i32 = arith.constant 0 : i32
    %c0_i32_0 = arith.constant 0 : i32
    %c0_i32_1 = arith.constant 0 : i32
    return %0, %c0_i32, %c0_i32_0 : i32, i32, i32
  }
  func.func @transform_14(%arg0: i32) -> (i32, i32, i32) {
    %c1_i32 = arith.constant 1 : i32
    %0 = arith.minsi %arg0, %c1_i32 : i32
    %c0_i32 = arith.constant 0 : i32
    %c0_i32_0 = arith.constant 0 : i32
    %c0_i32_1 = arith.constant 0 : i32
    return %0, %c0_i32, %c0_i32_0 : i32, i32, i32
  }
  func.func @transform_15(%arg0: i32) -> (i32, i32, i32) {
    %c1_i32 = arith.constant 1 : i32
    %0 = arith.minsi %arg0, %c1_i32 : i32
    %c0_i32 = arith.constant 0 : i32
    %c0_i32_0 = arith.constant 0 : i32
    %c0_i32_1 = arith.constant 0 : i32
    return %0, %c0_i32, %c0_i32_0 : i32, i32, i32
  }
  func.func @transform_16(%arg0: i32) -> (i32, i32, i32) {
    %c1_i32 = arith.constant 1 : i32
    %0 = arith.minsi %arg0, %c1_i32 : i32
    %c0_i32 = arith.constant 0 : i32
    %c0_i32_0 = arith.constant 0 : i32
    %c0_i32_1 = arith.constant 0 : i32
    return %0, %c0_i32, %c0_i32_0 : i32, i32, i32
  }
  func.func @transform_17(%arg0: i32) -> (i32, i32) {
    %c0_i32 = arith.constant 0 : i32
    %c0_i32_0 = arith.constant 0 : i32
    %c0_i32_1 = arith.constant 0 : i32
    return %c0_i32, %c0_i32_0 : i32, i32
  }
  func.func @transform_18(%arg0: i32) -> (i32, i32) {
    %c0_i32 = arith.constant 0 : i32
    %c0_i32_0 = arith.constant 0 : i32
    %c0_i32_1 = arith.constant 0 : i32
    return %c0_i32, %c0_i32_0 : i32, i32
  }
  func.func @transform_19(%arg0: i32) -> (i32, i32) {
    %c0_i32 = arith.constant 0 : i32
    %c0_i32_0 = arith.constant 0 : i32
    %c0_i32_1 = arith.constant 0 : i32
    return %c0_i32, %c0_i32_0 : i32, i32
  }
  func.func @transform_20(%arg0: i32) -> (i32, i32) {
    %c0_i32 = arith.constant 0 : i32
    %c0_i32_0 = arith.constant 0 : i32
    %c0_i32_1 = arith.constant 0 : i32
    return %c0_i32, %c0_i32_0 : i32, i32
  }
  func.func @transform_21(%arg0: i32) -> (i32, i32, i32) {
    %c2_i32 = arith.constant 2 : i32
    %0 = arith.subi %arg0, %c2_i32 : i32
    %c0_i32 = arith.constant 0 : i32
    %1 = arith.maxsi %0, %c0_i32 : i32
    %c0_i32_0 = arith.constant 0 : i32
    %c0_i32_1 = arith.constant 0 : i32
    %c0_i32_2 = arith.constant 0 : i32
    return %1, %c0_i32_0, %c0_i32_1 : i32, i32, i32
  }
  func.func @transform_22(%arg0: i32) -> (i32, i32, i32) {
    %c2_i32 = arith.constant 2 : i32
    %0 = arith.subi %arg0, %c2_i32 : i32
    %c0_i32 = arith.constant 0 : i32
    %1 = arith.maxsi %0, %c0_i32 : i32
    %c0_i32_0 = arith.constant 0 : i32
    %c0_i32_1 = arith.constant 0 : i32
    %c0_i32_2 = arith.constant 0 : i32
    return %1, %c0_i32_0, %c0_i32_1 : i32, i32, i32
  }
  func.func @transform_23(%arg0: i32) -> (i32, i32, i32) {
    %c2_i32 = arith.constant 2 : i32
    %0 = arith.subi %arg0, %c2_i32 : i32
    %c0_i32 = arith.constant 0 : i32
    %1 = arith.maxsi %0, %c0_i32 : i32
    %c0_i32_0 = arith.constant 0 : i32
    %c0_i32_1 = arith.constant 0 : i32
    %c0_i32_2 = arith.constant 0 : i32
    return %1, %c0_i32_0, %c0_i32_1 : i32, i32, i32
  }
  func.func @transform_24(%arg0: i32) -> (i32, i32, i32) {
    %c2_i32 = arith.constant 2 : i32
    %0 = arith.subi %arg0, %c2_i32 : i32
    %c0_i32 = arith.constant 0 : i32
    %1 = arith.maxsi %0, %c0_i32 : i32
    %c0_i32_0 = arith.constant 0 : i32
    %c0_i32_1 = arith.constant 0 : i32
    %c0_i32_2 = arith.constant 0 : i32
    return %1, %c0_i32_0, %c0_i32_1 : i32, i32, i32
  }
  func.func @transform_25(%arg0: i32) -> (i32, i32, i32) {
    %c2_i32 = arith.constant 2 : i32
    %0 = arith.subi %arg0, %c2_i32 : i32
    %c0_i32 = arith.constant 0 : i32
    %1 = arith.maxsi %0, %c0_i32 : i32
    %c0_i32_0 = arith.constant 0 : i32
    %c0_i32_1 = arith.constant 0 : i32
    %c0_i32_2 = arith.constant 0 : i32
    return %1, %c0_i32_0, %c0_i32_1 : i32, i32, i32
  }
  func.func @transform_26(%arg0: i32) -> (i32, i32, i32) {
    %c2_i32 = arith.constant 2 : i32
    %0 = arith.subi %arg0, %c2_i32 : i32
    %c0_i32 = arith.constant 0 : i32
    %1 = arith.maxsi %0, %c0_i32 : i32
    %c0_i32_0 = arith.constant 0 : i32
    %c0_i32_1 = arith.constant 0 : i32
    %c0_i32_2 = arith.constant 0 : i32
    return %1, %c0_i32_0, %c0_i32_1 : i32, i32, i32
  }
  func.func @transform_27(%arg0: i32) -> (i32, i32, i32) {
    %c2_i32 = arith.constant 2 : i32
    %0 = arith.subi %arg0, %c2_i32 : i32
    %c0_i32 = arith.constant 0 : i32
    %1 = arith.maxsi %0, %c0_i32 : i32
    %c0_i32_0 = arith.constant 0 : i32
    %c0_i32_1 = arith.constant 0 : i32
    %c0_i32_2 = arith.constant 0 : i32
    return %1, %c0_i32_0, %c0_i32_1 : i32, i32, i32
  }
  func.func @transform_28(%arg0: i32) -> (i32, i32, i32) {
    %c2_i32 = arith.constant 2 : i32
    %0 = arith.subi %arg0, %c2_i32 : i32
    %c0_i32 = arith.constant 0 : i32
    %1 = arith.maxsi %0, %c0_i32 : i32
    %c0_i32_0 = arith.constant 0 : i32
    %c0_i32_1 = arith.constant 0 : i32
    %c0_i32_2 = arith.constant 0 : i32
    return %1, %c0_i32_0, %c0_i32_1 : i32, i32, i32
  }
  func.func @transform_29(%arg0: i32) -> (i32, i32, i32) {
    %c2_i32 = arith.constant 2 : i32
    %0 = arith.subi %arg0, %c2_i32 : i32
    %c0_i32 = arith.constant 0 : i32
    %1 = arith.maxsi %0, %c0_i32 : i32
    %c0_i32_0 = arith.constant 0 : i32
    %c0_i32_1 = arith.constant 0 : i32
    %c0_i32_2 = arith.constant 0 : i32
    return %1, %c0_i32_0, %c0_i32_1 : i32, i32, i32
  }
  func.func @transform_30(%arg0: i32) -> (i32, i32, i32) {
    %c2_i32 = arith.constant 2 : i32
    %0 = arith.subi %arg0, %c2_i32 : i32
    %c0_i32 = arith.constant 0 : i32
    %1 = arith.maxsi %0, %c0_i32 : i32
    %c0_i32_0 = arith.constant 0 : i32
    %c0_i32_1 = arith.constant 0 : i32
    %c0_i32_2 = arith.constant 0 : i32
    return %1, %c0_i32_0, %c0_i32_1 : i32, i32, i32
  }
  func.func @transform_31(%arg0: i32) -> (i32, i32, i32) {
    %c2_i32 = arith.constant 2 : i32
    %0 = arith.subi %arg0, %c2_i32 : i32
    %c0_i32 = arith.constant 0 : i32
    %1 = arith.maxsi %0, %c0_i32 : i32
    %c0_i32_0 = arith.constant 0 : i32
    %c0_i32_1 = arith.constant 0 : i32
    %c0_i32_2 = arith.constant 0 : i32
    return %1, %c0_i32_0, %c0_i32_1 : i32, i32, i32
  }
  func.func @transform_32(%arg0: i32) -> (i32, i32, i32) {
    %c2_i32 = arith.constant 2 : i32
    %0 = arith.subi %arg0, %c2_i32 : i32
    %c0_i32 = arith.constant 0 : i32
    %1 = arith.maxsi %0, %c0_i32 : i32
    %c0_i32_0 = arith.constant 0 : i32
    %c0_i32_1 = arith.constant 0 : i32
    %c0_i32_2 = arith.constant 0 : i32
    return %1, %c0_i32_0, %c0_i32_1 : i32, i32, i32
  }
  func.func @transform_33(%arg0: i32) -> (i32, i32, i32) {
    %c2_i32 = arith.constant 2 : i32
    %0 = arith.subi %arg0, %c2_i32 : i32
    %c0_i32 = arith.constant 0 : i32
    %1 = arith.maxsi %0, %c0_i32 : i32
    %c0_i32_0 = arith.constant 0 : i32
    %c0_i32_1 = arith.constant 0 : i32
    %c0_i32_2 = arith.constant 0 : i32
    return %1, %c0_i32_0, %c0_i32_1 : i32, i32, i32
  }
  func.func @transform_34(%arg0: i32) -> (i32, i32, i32) {
    %c2_i32 = arith.constant 2 : i32
    %0 = arith.subi %arg0, %c2_i32 : i32
    %c0_i32 = arith.constant 0 : i32
    %1 = arith.maxsi %0, %c0_i32 : i32
    %c0_i32_0 = arith.constant 0 : i32
    %c0_i32_1 = arith.constant 0 : i32
    %c0_i32_2 = arith.constant 0 : i32
    return %1, %c0_i32_0, %c0_i32_1 : i32, i32, i32
  }
  func.func @transform_35(%arg0: i32) -> (i32, i32, i32) {
    %c2_i32 = arith.constant 2 : i32
    %0 = arith.subi %arg0, %c2_i32 : i32
    %c0_i32 = arith.constant 0 : i32
    %1 = arith.maxsi %0, %c0_i32 : i32
    %c0_i32_0 = arith.constant 0 : i32
    %c0_i32_1 = arith.constant 0 : i32
    %c0_i32_2 = arith.constant 0 : i32
    return %1, %c0_i32_0, %c0_i32_1 : i32, i32, i32
  }
  func.func @transform_36(%arg0: i32) -> (i32, i32, i32) {
    %c2_i32 = arith.constant 2 : i32
    %0 = arith.subi %arg0, %c2_i32 : i32
    %c0_i32 = arith.constant 0 : i32
    %1 = arith.maxsi %0, %c0_i32 : i32
    %c0_i32_0 = arith.constant 0 : i32
    %c0_i32_1 = arith.constant 0 : i32
    %c0_i32_2 = arith.constant 0 : i32
    return %1, %c0_i32_0, %c0_i32_1 : i32, i32, i32
  }
  func.func @transform_37(%arg0: i32) -> (i32, i32, i32) {
    %c2_i32 = arith.constant 2 : i32
    %0 = arith.subi %arg0, %c2_i32 : i32
    %c0_i32 = arith.constant 0 : i32
    %1 = arith.maxsi %0, %c0_i32 : i32
    %c0_i32_0 = arith.constant 0 : i32
    %c0_i32_1 = arith.constant 0 : i32
    %c0_i32_2 = arith.constant 0 : i32
    return %1, %c0_i32_0, %c0_i32_1 : i32, i32, i32
  }
  func.func @transform_38(%arg0: i32) -> (i32, i32, i32) {
    %c2_i32 = arith.constant 2 : i32
    %0 = arith.subi %arg0, %c2_i32 : i32
    %c0_i32 = arith.constant 0 : i32
    %1 = arith.maxsi %0, %c0_i32 : i32
    %c0_i32_0 = arith.constant 0 : i32
    %c0_i32_1 = arith.constant 0 : i32
    %c0_i32_2 = arith.constant 0 : i32
    return %1, %c0_i32_0, %c0_i32_1 : i32, i32, i32
  }
  func.func @transform_39(%arg0: i32) -> (i32, i32) {
    %c0_i32 = arith.constant 0 : i32
    %c0_i32_0 = arith.constant 0 : i32
    %c0_i32_1 = arith.constant 0 : i32
    return %c0_i32, %c0_i32_0 : i32, i32
  }
  func.func @transform_40(%arg0: i32) -> (i32, i32) {
    %c0_i32 = arith.constant 0 : i32
    %c0_i32_0 = arith.constant 0 : i32
    %c0_i32_1 = arith.constant 0 : i32
    return %c0_i32, %c0_i32_0 : i32, i32
  }
  func.func @transform_41(%arg0: i32) -> (i32, i32) {
    %c0_i32 = arith.constant 0 : i32
    %c0_i32_0 = arith.constant 0 : i32
    %c0_i32_1 = arith.constant 0 : i32
    return %c0_i32, %c0_i32_0 : i32, i32
  }
  func.func @transform_42(%arg0: i32) -> (i32, i32) {
    %c0_i32 = arith.constant 0 : i32
    %c0_i32_0 = arith.constant 0 : i32
    %c0_i32_1 = arith.constant 0 : i32
    return %c0_i32, %c0_i32_0 : i32, i32
  }
  func.func @transform_43(%arg0: i32) -> (i32, i32) {
    %c0_i32 = arith.constant 0 : i32
    %c0_i32_0 = arith.constant 0 : i32
    %c0_i32_1 = arith.constant 0 : i32
    return %c0_i32, %c0_i32_0 : i32, i32
  }
}

</mosaic_0001>

<llo_original>
// kernel: bird_forecasting_forward.1
$region0: #{bird_forecasting_forward.1}
  #allocation0 [shape = 'u32[]', space=smem, size = 0x4, offset = 0x4, fixed_abs, tag = 'smem constant byte address 0x4 - core index']
  #allocation1 [shape = 'u32[72,128]{1,0:T(1,128)}', space=vmem, size = 0x9000, scoped, tag = 'internal scratch']
  #allocation2 [shape = 'f32[16,32]{1,0:T(8,128)}', space=vmem, size = 0x2000, scoped, tag = 'scratch operand']
  #allocation3 [shape = 'f32[6,16,64]{2,1,0:T(8,128)}', space=vmem, size = 0xc000, scoped, tag = 'scratch operand']
  #allocation4 [shape = 'f32[1,1]{1,0:T(1,128)S(1)}', space=vmem, size = 0x200, scoped, tag = 'scoped memory for bird_forecasting_forward.1']
  %s0 = inlined_call_operand.smem [shape: u32[44], index: -1, kind: input, shape index: {}]
  %s1 = sld [smem:[%s0]]
  %s2 = scalar_lea.smem %s0, 1
  %s3 = sld [smem:[%s2]]
  %s4 = scalar_lea.smem %s0, 2
  %s5 = sld [smem:[%s4]]
  %s6 = scalar_lea.smem %s0, 3
  %s7 = sld [smem:[%s6]]
  %s8 = scalar_lea.smem %s0, 4
  %s9 = sld [smem:[%s8]]
  %s10 = scalar_lea.smem %s0, 5
  %s11 = sld [smem:[%s10]]
  %s12 = scalar_lea.smem %s0, 6
  %s13 = sld [smem:[%s12]]
  %s14 = scalar_lea.smem %s0, 7
  %s15 = sld [smem:[%s14]]
  %s16 = scalar_lea.smem %s0, 8
  %s17 = sld [smem:[%s16]]
  %s18 = scalar_lea.smem %s0, 9
  %s19 = sld [smem:[%s18]]
  %s20 = scalar_lea.smem %s0, 10
  %s21 = sld [smem:[%s20]]
  %s22 = scalar_lea.smem %s0, 11
  %s23 = sld [smem:[%s22]]
  %s24 = scalar_lea.smem %s0, 12
  %s25 = sld [smem:[%s24]]
  %s26 = scalar_lea.smem %s0, 13
  %s27 = sld [smem:[%s26]]
  %s28 = scalar_lea.smem %s0, 14
  %s29 = sld [smem:[%s28]]
  %s30 = scalar_lea.smem %s0, 15
  %s31 = sld [smem:[%s30]]
  %s32 = scalar_lea.smem %s0, 16
  %s33 = sld [smem:[%s32]]
  %s34 = scalar_lea.smem %s0, 17
  %s35 = sld [smem:[%s34]]
  %s36 = scalar_lea.smem %s0, 18
  %s37 = sld [smem:[%s36]]
  %s38 = scalar_lea.smem %s0, 19
  %s39 = sld [smem:[%s38]]
  %s40 = scalar_lea.smem %s0, 20
  %s41 = sld [smem:[%s40]]
  %s42 = scalar_lea.smem %s0, 21
  %s43 = sld [smem:[%s42]]
  %s44 = scalar_lea.smem %s0, 22
  %s45 = sld [smem:[%s44]]
  %s46 = scalar_lea.smem %s0, 23
  %s47 = sld [smem:[%s46]]
  %s48 = scalar_lea.smem %s0, 24
  %s49 = sld [smem:[%s48]]
  %s50 = scalar_lea.smem %s0, 25
  %s51 = sld [smem:[%s50]]
  %s52 = scalar_lea.smem %s0, 26
  %s53 = sld [smem:[%s52]]
  %s54 = scalar_lea.smem %s0, 27
  %s55 = sld [smem:[%s54]]
  %s56 = scalar_lea.smem %s0, 28
  %s57 = sld [smem:[%s56]]
  %s58 = scalar_lea.smem %s0, 29
  %s59 = sld [smem:[%s58]]
  %s60 = scalar_lea.smem %s0, 30
  %s61 = sld [smem:[%s60]]
  %s62 = scalar_lea.smem %s0, 31
  %s63 = sld [smem:[%s62]]
  %s64 = scalar_lea.smem %s0, 32
  %s65 = sld [smem:[%s64]]
  %s66 = scalar_lea.smem %s0, 33
  %s67 = sld [smem:[%s66]]
  %s68 = scalar_lea.smem %s0, 34
  %s69 = sld [smem:[%s68]]
  %s70 = scalar_lea.smem %s0, 35
  %s71 = sld [smem:[%s70]]
  %s72 = scalar_lea.smem %s0, 36
  %s73 = sld [smem:[%s72]]
  %s74 = scalar_lea.smem %s0, 37
  %s75 = sld [smem:[%s74]]
  %s76 = scalar_lea.smem %s0, 38
  %s77 = sld [smem:[%s76]]
  %s78 = scalar_lea.smem %s0, 39
  %s79 = sld [smem:[%s78]]
  %s80 = scalar_lea.smem %s0, 40
  %s81 = sld [smem:[%s80]]
  %s82 = scalar_lea.smem %s0, 41
  %s83 = sld [smem:[%s82]]
  %s84 = scalar_lea.smem %s0, 42
  %s85 = sld [smem:[%s84]]
  %s86 = scalar_lea.smem %s0, 43
  %s87 = sld [smem:[%s86]]
  %s88 = sld [smem:[#allocation0]]
  $region325: #{bird_forecasting_forward.1} parent=0
    _
  %s90 = ssub.s32 1, %s88
  %s91 = scalar_select 0, %s90, %s88
  %v92 = vstv %s85
  %93 = vst [vmem:[#allocation4] sm:$0x1] %v92
  $region1: #{bird_forecasting_forward.1} parent=0
    #allocation5 [shape = 'u8[1024]{0}', space=vmem, size = 0x400, scoped, tag = 'input window, operand 6']
    #allocation6 [shape = 's32[2]{0}', space=sflag, size = 0x8, scoped, tag = 'scoped memory for bird_forecasting_forward.1']
    #allocation7 [shape = 'u8[32768]{0}', space=vmem, size = 0x8000, scoped, tag = 'input window, operand 7']
    #allocation8 [shape = 's32[2]{0}', space=sflag, size = 0x8, scoped, tag = 'scoped memory for bird_forecasting_forward.1']
    #allocation9 [shape = 'u8[1024]{0}', space=vmem, size = 0x400, scoped, tag = 'input window, operand 8']
    #allocation10 [shape = 'u8[1024]{0}', space=vmem, size = 0x400, scoped, tag = 'input window, operand 9']
    #allocation11 [shape = 's32[2]{0}', space=sflag, size = 0x8, scoped, tag = 'scoped memory for bird_forecasting_forward.1']
    #allocation12 [shape = 'u8[1024]{0}', space=vmem, size = 0x400, scoped, tag = 'input window, operand 10']
    #allocation13 [shape = 'u8[1024]{0}', space=vmem, size = 0x400, scoped, tag = 'input window, operand 11']
    #allocation14 [shape = 's32[2]{0}', space=sflag, size = 0x8, scoped, tag = 'scoped memory for bird_forecasting_forward.1']
    #allocation15 [shape = 'u8[1024]{0}', space=vmem, size = 0x400, scoped, tag = 'input window, operand 12']
    #allocation16 [shape = 'u8[262144]{0}', space=vmem, size = 0x40000, scoped, tag = 'input window, operand 15']
    #allocation17 [shape = 's32[2]{0}', space=sflag, size = 0x8, scoped, tag = 'scoped memory for bird_forecasting_forward.1']
    #allocation18 [shape = 'u8[1024]{0}', space=vmem, size = 0x400, scoped, tag = 'input window, operand 16']
    #allocation19 [shape = 'u8[512]{0}', space=vmem, size = 0x400, scoped, tag = 'input window, operand 17, single buffered']
    #allocation20 [shape = 's32[1]{0}', space=sflag, size = 0x4, scoped, tag = 'scoped memory for bird_forecasting_forward.1']
    #allocation21 [shape = 'u8[512]{0}', space=vmem, size = 0x400, scoped, tag = 'input window, operand 18, single buffered']
    #allocation22 [shape = 'u8[32768]{0}', space=vmem, size = 0x8000, scoped, tag = 'input window, operand 23']
    #allocation23 [shape = 's32[2]{0}', space=sflag, size = 0x8, scoped, tag = 'scoped memory for bird_forecasting_forward.1']
    #allocation24 [shape = 'u8[32768]{0}', space=vmem, size = 0x8000, scoped, tag = 'input window, operand 25']
    #allocation25 [shape = 'u8[32768]{0}', space=vmem, size = 0x8000, scoped, tag = 'input window, operand 27']
    #allocation26 [shape = 's32[2]{0}', space=sflag, size = 0x8, scoped, tag = 'scoped memory for bird_forecasting_forward.1']
    #allocation27 [shape = 'u8[1024]{0}', space=vmem, size = 0x400, scoped, tag = 'input window, operand 29']
    #allocation28 [shape = 'u8[1024]{0}', space=vmem, size = 0x400, scoped, tag = 'input window, operand 30']
    #allocation29 [shape = 's32[2]{0}', space=sflag, size = 0x8, scoped, tag = 'scoped memory for bird_forecasting_forward.1']
    #allocation30 [shape = 'u8[1024]{0}', space=vmem, size = 0x400, scoped, tag = 'input window, operand 31']
    #allocation31 [shape = 'u8[1024]{0}', space=vmem, size = 0x400, scoped, tag = 'input window, operand 32']
    #allocation32 [shape = 's32[2]{0}', space=sflag, size = 0x8, scoped, tag = 'scoped memory for bird_forecasting_forward.1']
    #allocation33 [shape = 'u8[1024]{0}', space=vmem, size = 0x400, scoped, tag = 'input window, operand 33']
    #allocation34 [shape = 'u8[1024]{0}', space=vmem, size = 0x400, scoped, tag = 'input window, operand 34']
    #allocation35 [shape = 's32[2]{0}', space=sflag, size = 0x8, scoped, tag = 'scoped memory for bird_forecasting_forward.1']
    #allocation36 [shape = 'u8[262144]{0}', space=vmem, size = 0x40000, scoped, tag = 'input window, operand 35']
    #allocation37 [shape = 'u8[262144]{0}', space=vmem, size = 0x40000, scoped, tag = 'input window, operand 37']
    #allocation38 [shape = 's32[2]{0}', space=sflag, size = 0x8, scoped, tag = 'scoped memory for bird_forecasting_forward.1']
    #allocation39 [shape = 'u8[1024]{0}', space=vmem, size = 0x400, scoped, tag = 'input window, operand 38']
    #allocation40 [shape = 'u8[512]{0}', space=vmem, size = 0x400, scoped, tag = 'input window, operand 39, single buffered']
    #allocation41 [shape = 's32[1]{0}', space=sflag, size = 0x4, scoped, tag = 'scoped memory for bird_forecasting_forward.1']
    #allocation42 [shape = 'u8[512]{0}', space=vmem, size = 0x400, scoped, tag = 'input window, operand 40, single buffered']
    %94 = vsyncpa [#allocation6], 0
    %s95 = scalar_lea.sflag [#allocation6], 1
    %96 = vsyncpa %s95, 0
    %97 = vsyncpa [#allocation8], 0
    %s98 = scalar_lea.sflag [#allocation8], 1
    %99 = vsyncpa %s98, 0
    %100 = vsyncpa [#allocation11], 0
    %s101 = scalar_lea.sflag [#allocation11], 1
    %102 = vsyncpa %s101, 0
    %103 = vsyncpa [#allocation14], 0
    %s104 = scalar_lea.sflag [#allocation14], 1
    %105 = vsyncpa %s104, 0
    %106 = vsyncpa [#allocation17], 0
    %s107 = scalar_lea.sflag [#allocation17], 1
    %108 = vsyncpa %s107, 0
    %109 = vsyncpa [#allocation20], 0
    %110 = vsyncpa [#allocation23], 0
    %s111 = scalar_lea.sflag [#allocation23], 1
    %112 = vsyncpa %s111, 0
    %113 = vsyncpa [#allocation26], 0
    %s114 = scalar_lea.sflag [#allocation26], 1
    %115 = vsyncpa %s114, 0
    %116 = vsyncpa [#allocation29], 0
    %s117 = scalar_lea.sflag [#allocation29], 1
    %118 = vsyncpa %s117, 0
    %119 = vsyncpa [#allocation32], 0
    %s120 = scalar_lea.sflag [#allocation32], 1
    %121 = vsyncpa %s120, 0
    %122 = vsyncpa [#allocation35], 0
    %s123 = scalar_lea.sflag [#allocation35], 1
    %124 = vsyncpa %s123, 0
    %125 = vsyncpa [#allocation38], 0
    %s126 = scalar_lea.sflag [#allocation38], 1
    %127 = vsyncpa %s126, 0
    %128 = vsyncpa [#allocation41], 0
    loop: start=0, step=1, limit=10
    $region2: #{bird_forecasting_forward.1} parent=1 // loop_pre_header
      _
    $region3: #{bird_forecasting_forward.1} parent=1 // loop_header
      %s130 = sphi 0, %s134
      %p131 = scmp.ge.s32.totalorder %s130, 10
      %s138 = sphi 0, %s138
      %s140 = sphi 0, %s138
      %s141 = sphi 0, %s140
      %s155 = sphi 0, %s141
      %s159 = sphi 0, %s159
      %s161 = sphi 0, %s159
      %s162 = sphi 0, %s161
      %s176 = sphi 0, %s162
      %s180 = sphi 0, %s180
      %s182 = sphi 0, %s180
      %s183 = sphi 0, %s182
      %s197 = sphi 0, %s183
      %s201 = sphi 0, %s201
      %s203 = sphi 0, %s201
      %s204 = sphi 0, %s203
      %s218 = sphi 0, %s204
      %s222 = sphi 0, %s222
      %s224 = sphi 0, %s222
      %s225 = sphi 0, %s224
      %s239 = sphi 0, %s225
      %s249 = sphi 0, %s251
      %s252 = sphi 0, %s249
      %s253 = sphi 0, %s252
      %s269 = sphi 0, %s253
      %s279 = sphi 0, %s281
      %s282 = sphi 0, %s279
      %s283 = sphi 0, %s282
      %s299 = sphi 0, %s283
      %s309 = sphi 0, %s311
      %s312 = sphi 0, %s309
      %s313 = sphi 0, %s312
      %s329 = sphi 0, %s313
      %s339 = sphi 0, %s341
      %s342 = sphi 0, %s339
      %s343 = sphi 0, %s342
      %s359 = sphi 0, %s343
      %s369 = sphi 0, %s371
      %s372 = sphi 0, %s369
      %s373 = sphi 0, %s372
      %s389 = sphi 0, %s373
      %s399 = sphi 0, %s401
      %s402 = sphi 0, %s399
      %s403 = sphi 0, %s402
      %s419 = sphi 0, %s403
      %s429 = sphi 0, %s431
      %s432 = sphi 0, %s429
      %s433 = sphi 0, %s432
      %s449 = sphi 0, %s433
      %s459 = sphi 0, %s461
      %s462 = sphi 0, %s459
      %s463 = sphi 0, %s462
      %s479 = sphi 0, %s463
      %s489 = sphi 0, %s491
      %s492 = sphi 0, %s489
      %s493 = sphi 0, %s492
      %s509 = sphi 0, %s493
      %s519 = sphi 0, %s521
      %s522 = sphi 0, %s519
      %s523 = sphi 0, %s522
      %s539 = sphi 0, %s523
      %s549 = sphi 0, %s551
      %s552 = sphi 0, %s549
      %s553 = sphi 0, %s552
      %s569 = sphi 0, %s553
      %s579 = sphi 0, %s581
      %s582 = sphi 0, %s579
      %s583 = sphi 0, %s582
      %s599 = sphi 0, %s583
      %s603 = sphi 0, %s603
      %s605 = sphi 0, %s603
      %s606 = sphi 0, %s605
      %s620 = sphi 0, %s606
      %s624 = sphi 0, %s624
      %s626 = sphi 0, %s624
      %s627 = sphi 0, %s626
      %s641 = sphi 0, %s627
      %s645 = sphi 0, %s645
      %s647 = sphi 0, %s645
      %s648 = sphi 0, %s647
      %s662 = sphi 0, %s648
      %s666 = sphi 0, %s666
      %s668 = sphi 0, %s666
      %s669 = sphi 0, %s668
      %s683 = sphi 0, %s669
      %s695 = sphi 0, %s697
      %s698 = sphi 0, %s695
      %s699 = sphi 0, %s698
      %s715 = sphi 0, %s699
      %s727 = sphi 0, %s729
      %s730 = sphi 0, %s727
      %s731 = sphi 0, %s730
      %s747 = sphi 0, %s731
      %s759 = sphi 0, %s761
      %s762 = sphi 0, %s759
      %s763 = sphi 0, %s762
      %s779 = sphi 0, %s763
      %s791 = sphi 0, %s793
      %s794 = sphi 0, %s791
      %s795 = sphi 0, %s794
      %s811 = sphi 0, %s795
      %s823 = sphi 0, %s825
      %s826 = sphi 0, %s823
      %s827 = sphi 0, %s826
      %s843 = sphi 0, %s827
      %s855 = sphi 0, %s857
      %s858 = sphi 0, %s855
      %s859 = sphi 0, %s858
      %s875 = sphi 0, %s859
      %s887 = sphi 0, %s889
      %s890 = sphi 0, %s887
      %s891 = sphi 0, %s890
      %s907 = sphi 0, %s891
      %s919 = sphi 0, %s921
      %s922 = sphi 0, %s919
      %s923 = sphi 0, %s922
      %s939 = sphi 0, %s923
      %s951 = sphi 0, %s953
      %s954 = sphi 0, %s951
      %s955 = sphi 0, %s954
      %s971 = sphi 0, %s955
      %s983 = sphi 0, %s985
      %s986 = sphi 0, %s983
      %s987 = sphi 0, %s986
      %s1003 = sphi 0, %s987
      %s1015 = sphi 0, %s1017
      %s1018 = sphi 0, %s1015
      %s1019 = sphi 0, %s1018
      %s1035 = sphi 0, %s1019
      %s1047 = sphi 0, %s1049
      %s1050 = sphi 0, %s1047
      %s1051 = sphi 0, %s1050
      %s1067 = sphi 0, %s1051
      %s1079 = sphi 0, %s1081
      %s1082 = sphi 0, %s1079
      %s1083 = sphi 0, %s1082
      %s1099 = sphi 0, %s1083
      %s1111 = sphi 0, %s1113
      %s1114 = sphi 0, %s1111
      %s1115 = sphi 0, %s1114
      %s1131 = sphi 0, %s1115
      %s1143 = sphi 0, %s1145
      %s1146 = sphi 0, %s1143
      %s1147 = sphi 0, %s1146
      %s1163 = sphi 0, %s1147
      %s1175 = sphi 0, %s1177
      %s1178 = sphi 0, %s1175
      %s1179 = sphi 0, %s1178
      %s1195 = sphi 0, %s1179
      %s1207 = sphi 0, %s1209
      %s1210 = sphi 0, %s1207
      %s1211 = sphi 0, %s1210
      %s1227 = sphi 0, %s1211
      %s1239 = sphi 0, %s1241
      %s1242 = sphi 0, %s1239
      %s1243 = sphi 0, %s1242
      %s1259 = sphi 0, %s1243
      %s1263 = sphi 0, %s1263
      %s1265 = sphi 0, %s1263
      %s1266 = sphi 0, %s1265
      %s1280 = sphi 0, %s1266
      %s1284 = sphi 0, %s1284
      %s1286 = sphi 0, %s1284
      %s1287 = sphi 0, %s1286
      %s1301 = sphi 0, %s1287
      %s1305 = sphi 0, %s1305
      %s1307 = sphi 0, %s1305
      %s1308 = sphi 0, %s1307
      %s1322 = sphi 0, %s1308
      %s1326 = sphi 0, %s1326
      %s1328 = sphi 0, %s1326
      %s1329 = sphi 0, %s1328
      %s1343 = sphi 0, %s1329
      %s1347 = sphi 0, %s1347
      %s1349 = sphi 0, %s1347
      %s1350 = sphi 0, %s1349
      %s1364 = sphi 0, %s1350
    $region4: #{bird_forecasting_forward.1} parent=1 // loop_header_branch
      %133 = sbr.rel (%p131) target = $region8
    $region5: #{bird_forecasting_forward.1} parent=1 // loop_body
      %s135 = ssub.s32 %s130, 1
      %s136 = ssub.s32 %s130, 2
      %s137 = sadd.s32 %s130, 1
      %s139 = sadd.s32 %s138, 1
      %p142 = scmp.eq.s32.totalorder %s130, 7
      %p143 = scmp.ne.s32.totalorder %s138, %s140
      %p144 = scmp.eq.s32.totalorder %s130, 0
      %p145 = por %p143, %p144
      %p146 = scmp.ne.s32.totalorder %s138, %s140
      %p147 = scmp.eq.s32.totalorder %s135, 7
      %p148 = por %p146, %p147
      %p149 = scmp.ne.s32.totalorder %s140, %s141
      %p150 = scmp.eq.s32.totalorder %s135, 0
      %p151 = por %p149, %p150
      %p152 = scmp.ne.s32.totalorder %s140, %s141
      %p153 = scmp.eq.s32.totalorder %s136, 7
      %p154 = por %p152, %p153
      %p156 = scmp.ne.s32.totalorder %s141, %s155
      %p157 = scmp.eq.s32.totalorder %s136, 0
      %p158 = por %p156, %p157
      %s160 = sadd.s32 %s159, 1
      %p163 = scmp.eq.s32.totalorder %s130, 7
      %p164 = scmp.ne.s32.totalorder %s159, %s161
      %p165 = scmp.eq.s32.totalorder %s130, 0
      %p166 = por %p164, %p165
      %p167 = scmp.ne.s32.totalorder %s159, %s161
      %p168 = scmp.eq.s32.totalorder %s135, 7
      %p169 = por %p167, %p168
      %p170 = scmp.ne.s32.totalorder %s161, %s162
      %p171 = scmp.eq.s32.totalorder %s135, 0
      %p172 = por %p170, %p171
      %p173 = scmp.ne.s32.totalorder %s161, %s162
      %p174 = scmp.eq.s32.totalorder %s136, 7
      %p175 = por %p173, %p174
      %p177 = scmp.ne.s32.totalorder %s162, %s176
      %p178 = scmp.eq.s32.totalorder %s136, 0
      %p179 = por %p177, %p178
      %s181 = sadd.s32 %s180, 1
      %p184 = scmp.eq.s32.totalorder %s130, 7
      %p185 = scmp.ne.s32.totalorder %s180, %s182
      %p186 = scmp.eq.s32.totalorder %s130, 0
      %p187 = por %p185, %p186
      %p188 = scmp.ne.s32.totalorder %s180, %s182
      %p189 = scmp.eq.s32.totalorder %s135, 7
      %p190 = por %p188, %p189
      %p191 = scmp.ne.s32.totalorder %s182, %s183
      %p192 = scmp.eq.s32.totalorder %s135, 0
      %p193 = por %p191, %p192
      %p194 = scmp.ne.s32.totalorder %s182, %s183
      %p195 = scmp.eq.s32.totalorder %s136, 7
      %p196 = por %p194, %p195
      %p198 = scmp.ne.s32.totalorder %s183, %s197
      %p199 = scmp.eq.s32.totalorder %s136, 0
      %p200 = por %p198, %p199
      %s202 = sadd.s32 %s201, 1
      %p205 = scmp.eq.s32.totalorder %s130, 7
      %p206 = scmp.ne.s32.totalorder %s201, %s203
      %p207 = scmp.eq.s32.totalorder %s130, 0
      %p208 = por %p206, %p207
      %p209 = scmp.ne.s32.totalorder %s201, %s203
      %p210 = scmp.eq.s32.totalorder %s135, 7
      %p211 = por %p209, %p210
      %p212 = scmp.ne.s32.totalorder %s203, %s204
      %p213 = scmp.eq.s32.totalorder %s135, 0
      %p214 = por %p212, %p213
      %p215 = scmp.ne.s32.totalorder %s203, %s204
      %p216 = scmp.eq.s32.totalorder %s136, 7
      %p217 = por %p215, %p216
      %p219 = scmp.ne.s32.totalorder %s204, %s218
      %p220 = scmp.eq.s32.totalorder %s136, 0
      %p221 = por %p219, %p220
      %s223 = sadd.s32 %s222, 1
      %p226 = scmp.eq.s32.totalorder %s130, 7
      %p227 = scmp.ne.s32.totalorder %s222, %s224
      %p228 = scmp.eq.s32.totalorder %s130, 0
      %p229 = por %p227, %p228
      %p230 = scmp.ne.s32.totalorder %s222, %s224
      %p231 = scmp.eq.s32.totalorder %s135, 7
      %p232 = por %p230, %p231
      %p233 = scmp.ne.s32.totalorder %s224, %s225
      %p234 = scmp.eq.s32.totalorder %s135, 0
      %p235 = por %p233, %p234
      %p236 = scmp.ne.s32.totalorder %s224, %s225
      %p237 = scmp.eq.s32.totalorder %s136, 7
      %p238 = por %p236, %p237
      %p240 = scmp.ne.s32.totalorder %s225, %s239
      %p241 = scmp.eq.s32.totalorder %s136, 0
      %p242 = por %p240, %p241
      %p243 = scmp.lt.s32.totalorder %s130, 1
      %s244 = scalar_select %p243, %s130, 1
      %p245 = scmp.lt.s32.totalorder %s137, 1
      %s246 = scalar_select %p245, %s137, 1
      %s247 = ssub.s32 %s244, %s246
      %p248 = scmp.eq.s32.totalorder %s247, 0
      %s250 = sadd.s32 %s249, 1
      %s251 = scalar_select %p248, %s249, %s250
      %p254 = pneg %p248
      %p255 = scmp.eq.s32.totalorder %s130, 7
      %p256 = por %p254, %p255
      %p257 = scmp.ne.s32.totalorder %s249, %s252
      %p258 = scmp.eq.s32.totalorder %s130, 0
      %p259 = por %p257, %p258
      %p260 = scmp.ne.s32.totalorder %s249, %s252
      %p261 = scmp.eq.s32.totalorder %s135, 7
      %p262 = por %p260, %p261
      %p263 = scmp.ne.s32.totalorder %s252, %s253
      %p264 = scmp.eq.s32.totalorder %s135, 0
      %p265 = por %p263, %p264
      %p266 = scmp.ne.s32.totalorder %s252, %s253
      %p267 = scmp.eq.s32.totalorder %s136, 7
      %p268 = por %p266, %p267
      %p270 = scmp.ne.s32.totalorder %s253, %s269
      %p271 = scmp.eq.s32.totalorder %s136, 0
      %p272 = por %p270, %p271
      %p273 = scmp.lt.s32.totalorder %s130, 1
      %s274 = scalar_select %p273, %s130, 1
      %p275 = scmp.lt.s32.totalorder %s137, 1
      %s276 = scalar_select %p275, %s137, 1
      %s277 = ssub.s32 %s274, %s276
      %p278 = scmp.eq.s32.totalorder %s277, 0
      %s280 = sadd.s32 %s279, 1
      %s281 = scalar_select %p278, %s279, %s280
      %p284 = pneg %p278
      %p285 = scmp.eq.s32.totalorder %s130, 7
      %p286 = por %p284, %p285
      %p287 = scmp.ne.s32.totalorder %s279, %s282
      %p288 = scmp.eq.s32.totalorder %s130, 0
      %p289 = por %p287, %p288
      %p290 = scmp.ne.s32.totalorder %s279, %s282
      %p291 = scmp.eq.s32.totalorder %s135, 7
      %p292 = por %p290, %p291
      %p293 = scmp.ne.s32.totalorder %s282, %s283
      %p294 = scmp.eq.s32.totalorder %s135, 0
      %p295 = por %p293, %p294
      %p296 = scmp.ne.s32.totalorder %s282, %s283
      %p297 = scmp.eq.s32.totalorder %s136, 7
      %p298 = por %p296, %p297
      %p300 = scmp.ne.s32.totalorder %s283, %s299
      %p301 = scmp.eq.s32.totalorder %s136, 0
      %p302 = por %p300, %p301
      %p303 = scmp.lt.s32.totalorder %s130, 1
      %s304 = scalar_select %p303, %s130, 1
      %p305 = scmp.lt.s32.totalorder %s137, 1
      %s306 = scalar_select %p305, %s137, 1
      %s307 = ssub.s32 %s304, %s306
      %p308 = scmp.eq.s32.totalorder %s307, 0
      %s310 = sadd.s32 %s309, 1
      %s311 = scalar_select %p308, %s309, %s310
      %p314 = pneg %p308
      %p315 = scmp.eq.s32.totalorder %s130, 7
      %p316 = por %p314, %p315
      %p317 = scmp.ne.s32.totalorder %s309, %s312
      %p318 = scmp.eq.s32.totalorder %s130, 0
      %p319 = por %p317, %p318
      %p320 = scmp.ne.s32.totalorder %s309, %s312
      %p321 = scmp.eq.s32.totalorder %s135, 7
      %p322 = por %p320, %p321
      %p323 = scmp.ne.s32.totalorder %s312, %s313
      %p324 = scmp.eq.s32.totalorder %s135, 0
      %p325 = por %p323, %p324
      %p326 = scmp.ne.s32.totalorder %s312, %s313
      %p327 = scmp.eq.s32.totalorder %s136, 7
      %p328 = por %p326, %p327
      %p330 = scmp.ne.s32.totalorder %s313, %s329
      %p331 = scmp.eq.s32.totalorder %s136, 0
      %p332 = por %p330, %p331
      %p333 = scmp.lt.s32.totalorder %s130, 1
      %s334 = scalar_select %p333, %s130, 1
      %p335 = scmp.lt.s32.totalorder %s137, 1
      %s336 = scalar_select %p335, %s137, 1
      %s337 = ssub.s32 %s334, %s336
      %p338 = scmp.eq.s32.totalorder %s337, 0
      %s340 = sadd.s32 %s339, 1
      %s341 = scalar_select %p338, %s339, %s340
      %p344 = pneg %p338
      %p345 = scmp.eq.s32.totalorder %s130, 7
      %p346 = por %p344, %p345
      %p347 = scmp.ne.s32.totalorder %s339, %s342
      %p348 = scmp.eq.s32.totalorder %s130, 0
      %p349 = por %p347, %p348
      %p350 = scmp.ne.s32.totalorder %s339, %s342
      %p351 = scmp.eq.s32.totalorder %s135, 7
      %p352 = por %p350, %p351
      %p353 = scmp.ne.s32.totalorder %s342, %s343
      %p354 = scmp.eq.s32.totalorder %s135, 0
      %p355 = por %p353, %p354
      %p356 = scmp.ne.s32.totalorder %s342, %s343
      %p357 = scmp.eq.s32.totalorder %s136, 7
      %p358 = por %p356, %p357
      %p360 = scmp.ne.s32.totalorder %s343, %s359
      %p361 = scmp.eq.s32.totalorder %s136, 0
      %p362 = por %p360, %p361
      %p363 = scmp.lt.s32.totalorder %s130, 1
      %s364 = scalar_select %p363, %s130, 1
      %p365 = scmp.lt.s32.totalorder %s137, 1
      %s366 = scalar_select %p365, %s137, 1
      %s367 = ssub.s32 %s364, %s366
      %p368 = scmp.eq.s32.totalorder %s367, 0
      %s370 = sadd.s32 %s369, 1
      %s371 = scalar_select %p368, %s369, %s370
      %p374 = pneg %p368
      %p375 = scmp.eq.s32.totalorder %s130, 7
      %p376 = por %p374, %p375
      %p377 = scmp.ne.s32.totalorder %s369, %s372
      %p378 = scmp.eq.s32.totalorder %s130, 0
      %p379 = por %p377, %p378
      %p380 = scmp.ne.s32.totalorder %s369, %s372
      %p381 = scmp.eq.s32.totalorder %s135, 7
      %p382 = por %p380, %p381
      %p383 = scmp.ne.s32.totalorder %s372, %s373
      %p384 = scmp.eq.s32.totalorder %s135, 0
      %p385 = por %p383, %p384
      %p386 = scmp.ne.s32.totalorder %s372, %s373
      %p387 = scmp.eq.s32.totalorder %s136, 7
      %p388 = por %p386, %p387
      %p390 = scmp.ne.s32.totalorder %s373, %s389
      %p391 = scmp.eq.s32.totalorder %s136, 0
      %p392 = por %p390, %p391
      %p393 = scmp.lt.s32.totalorder %s130, 1
      %s394 = scalar_select %p393, %s130, 1
      %p395 = scmp.lt.s32.totalorder %s137, 1
      %s396 = scalar_select %p395, %s137, 1
      %s397 = ssub.s32 %s394, %s396
      %p398 = scmp.eq.s32.totalorder %s397, 0
      %s400 = sadd.s32 %s399, 1
      %s401 = scalar_select %p398, %s399, %s400
      %p404 = pneg %p398
      %p405 = scmp.eq.s32.totalorder %s130, 7
      %p406 = por %p404, %p405
      %p407 = scmp.ne.s32.totalorder %s399, %s402
      %p408 = scmp.eq.s32.totalorder %s130, 0
      %p409 = por %p407, %p408
      %p410 = scmp.ne.s32.totalorder %s399, %s402
      %p411 = scmp.eq.s32.totalorder %s135, 7
      %p412 = por %p410, %p411
      %p413 = scmp.ne.s32.totalorder %s402, %s403
      %p414 = scmp.eq.s32.totalorder %s135, 0
      %p415 = por %p413, %p414
      %p416 = scmp.ne.s32.totalorder %s402, %s403
      %p417 = scmp.eq.s32.totalorder %s136, 7
      %p418 = por %p416, %p417
      %p420 = scmp.ne.s32.totalorder %s403, %s419
      %p421 = scmp.eq.s32.totalorder %s136, 0
      %p422 = por %p420, %p421
      %p423 = scmp.lt.s32.totalorder %s130, 1
      %s424 = scalar_select %p423, %s130, 1
      %p425 = scmp.lt.s32.totalorder %s137, 1
      %s426 = scalar_select %p425, %s137, 1
      %s427 = ssub.s32 %s424, %s426
      %p428 = scmp.eq.s32.totalorder %s427, 0
      %s430 = sadd.s32 %s429, 1
      %s431 = scalar_select %p428, %s429, %s430
      %p434 = pneg %p428
      %p435 = scmp.eq.s32.totalorder %s130, 7
      %p436 = por %p434, %p435
      %p437 = scmp.ne.s32.totalorder %s429, %s432
      %p438 = scmp.eq.s32.totalorder %s130, 0
      %p439 = por %p437, %p438
      %p440 = scmp.ne.s32.totalorder %s429, %s432
      %p441 = scmp.eq.s32.totalorder %s135, 7
      %p442 = por %p440, %p441
      %p443 = scmp.ne.s32.totalorder %s432, %s433
      %p444 = scmp.eq.s32.totalorder %s135, 0
      %p445 = por %p443, %p444
      %p446 = scmp.ne.s32.totalorder %s432, %s433
      %p447 = scmp.eq.s32.totalorder %s136, 7
      %p448 = por %p446, %p447
      %p450 = scmp.ne.s32.totalorder %s433, %s449
      %p451 = scmp.eq.s32.totalorder %s136, 0
      %p452 = por %p450, %p451
      %p453 = scmp.lt.s32.totalorder %s130, 1
      %s454 = scalar_select %p453, %s130, 1
      %p455 = scmp.lt.s32.totalorder %s137, 1
      %s456 = scalar_select %p455, %s137, 1
      %s457 = ssub.s32 %s454, %s456
      %p458 = scmp.eq.s32.totalorder %s457, 0
      %s460 = sadd.s32 %s459, 1
      %s461 = scalar_select %p458, %s459, %s460
      %p464 = pneg %p458
      %p465 = scmp.eq.s32.totalorder %s130, 7
      %p466 = por %p464, %p465
      %p467 = scmp.ne.s32.totalorder %s459, %s462
      %p468 = scmp.eq.s32.totalorder %s130, 0
      %p469 = por %p467, %p468
      %p470 = scmp.ne.s32.totalorder %s459, %s462
      %p471 = scmp.eq.s32.totalorder %s135, 7
      %p472 = por %p470, %p471
      %p473 = scmp.ne.s32.totalorder %s462, %s463
      %p474 = scmp.eq.s32.totalorder %s135, 0
      %p475 = por %p473, %p474
      %p476 = scmp.ne.s32.totalorder %s462, %s463
      %p477 = scmp.eq.s32.totalorder %s136, 7
      %p478 = por %p476, %p477
      %p480 = scmp.ne.s32.totalorder %s463, %s479
      %p481 = scmp.eq.s32.totalorder %s136, 0
      %p482 = por %p480, %p481
      %p483 = scmp.lt.s32.totalorder %s130, 1
      %s484 = scalar_select %p483, %s130, 1
      %p485 = scmp.lt.s32.totalorder %s137, 1
      %s486 = scalar_select %p485, %s137, 1
      %s487 = ssub.s32 %s484, %s486
      %p488 = scmp.eq.s32.totalorder %s487, 0
      %s490 = sadd.s32 %s489, 1
      %s491 = scalar_select %p488, %s489, %s490
      %p494 = pneg %p488
      %p495 = scmp.eq.s32.totalorder %s130, 7
      %p496 = por %p494, %p495
      %p497 = scmp.ne.s32.totalorder %s489, %s492
      %p498 = scmp.eq.s32.totalorder %s130, 0
      %p499 = por %p497, %p498
      %p500 = scmp.ne.s32.totalorder %s489, %s492
      %p501 = scmp.eq.s32.totalorder %s135, 7
      %p502 = por %p500, %p501
      %p503 = scmp.ne.s32.totalorder %s492, %s493
      %p504 = scmp.eq.s32.totalorder %s135, 0
      %p505 = por %p503, %p504
      %p506 = scmp.ne.s32.totalorder %s492, %s493
      %p507 = scmp.eq.s32.totalorder %s136, 7
      %p508 = por %p506, %p507
      %p510 = scmp.ne.s32.totalorder %s493, %s509
      %p511 = scmp.eq.s32.totalorder %s136, 0
      %p512 = por %p510, %p511
      %p513 = scmp.lt.s32.totalorder %s130, 1
      %s514 = scalar_select %p513, %s130, 1
      %p515 = scmp.lt.s32.totalorder %s137, 1
      %s516 = scalar_select %p515, %s137, 1
      %s517 = ssub.s32 %s514, %s516
      %p518 = scmp.eq.s32.totalorder %s517, 0
      %s520 = sadd.s32 %s519, 1
      %s521 = scalar_select %p518, %s519, %s520
      %p524 = pneg %p518
      %p525 = scmp.eq.s32.totalorder %s130, 7
      %p526 = por %p524, %p525
      %p527 = scmp.ne.s32.totalorder %s519, %s522
      %p528 = scmp.eq.s32.totalorder %s130, 0
      %p529 = por %p527, %p528
      %p530 = scmp.ne.s32.totalorder %s519, %s522
      %p531 = scmp.eq.s32.totalorder %s135, 7
      %p532 = por %p530, %p531
      %p533 = scmp.ne.s32.totalorder %s522, %s523
      %p534 = scmp.eq.s32.totalorder %s135, 0
      %p535 = por %p533, %p534
      %p536 = scmp.ne.s32.totalorder %s522, %s523
      %p537 = scmp.eq.s32.totalorder %s136, 7
      %p538 = por %p536, %p537
      %p540 = scmp.ne.s32.totalorder %s523, %s539
      %p541 = scmp.eq.s32.totalorder %s136, 0
      %p542 = por %p540, %p541
      %p543 = scmp.lt.s32.totalorder %s130, 1
      %s544 = scalar_select %p543, %s130, 1
      %p545 = scmp.lt.s32.totalorder %s137, 1
      %s546 = scalar_select %p545, %s137, 1
      %s547 = ssub.s32 %s544, %s546
      %p548 = scmp.eq.s32.totalorder %s547, 0
      %s550 = sadd.s32 %s549, 1
      %s551 = scalar_select %p548, %s549, %s550
      %p554 = pneg %p548
      %p555 = scmp.eq.s32.totalorder %s130, 7
      %p556 = por %p554, %p555
      %p557 = scmp.ne.s32.totalorder %s549, %s552
      %p558 = scmp.eq.s32.totalorder %s130, 0
      %p559 = por %p557, %p558
      %p560 = scmp.ne.s32.totalorder %s549, %s552
      %p561 = scmp.eq.s32.totalorder %s135, 7
      %p562 = por %p560, %p561
      %p563 = scmp.ne.s32.totalorder %s552, %s553
      %p564 = scmp.eq.s32.totalorder %s135, 0
      %p565 = por %p563, %p564
      %p566 = scmp.ne.s32.totalorder %s552, %s553
      %p567 = scmp.eq.s32.totalorder %s136, 7
      %p568 = por %p566, %p567
      %p570 = scmp.ne.s32.totalorder %s553, %s569
      %p571 = scmp.eq.s32.totalorder %s136, 0
      %p572 = por %p570, %p571
      %p573 = scmp.lt.s32.totalorder %s130, 1
      %s574 = scalar_select %p573, %s130, 1
      %p575 = scmp.lt.s32.totalorder %s137, 1
      %s576 = scalar_select %p575, %s137, 1
      %s577 = ssub.s32 %s574, %s576
      %p578 = scmp.eq.s32.totalorder %s577, 0
      %s580 = sadd.s32 %s579, 1
      %s581 = scalar_select %p578, %s579, %s580
      %p584 = pneg %p578
      %p585 = scmp.eq.s32.totalorder %s130, 7
      %p586 = por %p584, %p585
      %p587 = scmp.ne.s32.totalorder %s579, %s582
      %p588 = scmp.eq.s32.totalorder %s130, 0
      %p589 = por %p587, %p588
      %p590 = scmp.ne.s32.totalorder %s579, %s582
      %p591 = scmp.eq.s32.totalorder %s135, 7
      %p592 = por %p590, %p591
      %p593 = scmp.ne.s32.totalorder %s582, %s583
      %p594 = scmp.eq.s32.totalorder %s135, 0
      %p595 = por %p593, %p594
      %p596 = scmp.ne.s32.totalorder %s582, %s583
      %p597 = scmp.eq.s32.totalorder %s136, 7
      %p598 = por %p596, %p597
      %p600 = scmp.ne.s32.totalorder %s583, %s599
      %p601 = scmp.eq.s32.totalorder %s136, 0
      %p602 = por %p600, %p601
      %s604 = sadd.s32 %s603, 1
      %p607 = scmp.eq.s32.totalorder %s130, 7
      %p608 = scmp.ne.s32.totalorder %s603, %s605
      %p609 = scmp.eq.s32.totalorder %s130, 0
      %p610 = por %p608, %p609
      %p611 = scmp.ne.s32.totalorder %s603, %s605
      %p612 = scmp.eq.s32.totalorder %s135, 7
      %p613 = por %p611, %p612
      %p614 = scmp.ne.s32.totalorder %s605, %s606
      %p615 = scmp.eq.s32.totalorder %s135, 0
      %p616 = por %p614, %p615
      %p617 = scmp.ne.s32.totalorder %s605, %s606
      %p618 = scmp.eq.s32.totalorder %s136, 7
      %p619 = por %p617, %p618
      %p621 = scmp.ne.s32.totalorder %s606, %s620
      %p622 = scmp.eq.s32.totalorder %s136, 0
      %p623 = por %p621, %p622
      %s625 = sadd.s32 %s624, 1
      %p628 = scmp.eq.s32.totalorder %s130, 7
      %p629 = scmp.ne.s32.totalorder %s624, %s626
      %p630 = scmp.eq.s32.totalorder %s130, 0
      %p631 = por %p629, %p630
      %p632 = scmp.ne.s32.totalorder %s624, %s626
      %p633 = scmp.eq.s32.totalorder %s135, 7
      %p634 = por %p632, %p633
      %p635 = scmp.ne.s32.totalorder %s626, %s627
      %p636 = scmp.eq.s32.totalorder %s135, 0
      %p637 = por %p635, %p636
      %p638 = scmp.ne.s32.totalorder %s626, %s627
      %p639 = scmp.eq.s32.totalorder %s136, 7
      %p640 = por %p638, %p639
      %p642 = scmp.ne.s32.totalorder %s627, %s641
      %p643 = scmp.eq.s32.totalorder %s136, 0
      %p644 = por %p642, %p643
      %s646 = sadd.s32 %s645, 1
      %p649 = scmp.eq.s32.totalorder %s130, 7
      %p650 = scmp.ne.s32.totalorder %s645, %s647
      %p651 = scmp.eq.s32.totalorder %s130, 0
      %p652 = por %p650, %p651
      %p653 = scmp.ne.s32.totalorder %s645, %s647
      %p654 = scmp.eq.s32.totalorder %s135, 7
      %p655 = por %p653, %p654
      %p656 = scmp.ne.s32.totalorder %s647, %s648
      %p657 = scmp.eq.s32.totalorder %s135, 0
      %p658 = por %p656, %p657
      %p659 = scmp.ne.s32.totalorder %s647, %s648
      %p660 = scmp.eq.s32.totalorder %s136, 7
      %p661 = por %p659, %p660
      %p663 = scmp.ne.s32.totalorder %s648, %s662
      %p664 = scmp.eq.s32.totalorder %s136, 0
      %p665 = por %p663, %p664
      %s667 = sadd.s32 %s666, 1
      %p670 = scmp.eq.s32.totalorder %s130, 7
      %p671 = scmp.ne.s32.totalorder %s666, %s668
      %p672 = scmp.eq.s32.totalorder %s130, 0
      %p673 = por %p671, %p672
      %p674 = scmp.ne.s32.totalorder %s666, %s668
      %p675 = scmp.eq.s32.totalorder %s135, 7
      %p676 = por %p674, %p675
      %p677 = scmp.ne.s32.totalorder %s668, %s669
      %p678 = scmp.eq.s32.totalorder %s135, 0
      %p679 = por %p677, %p678
      %p680 = scmp.ne.s32.totalorder %s668, %s669
      %p681 = scmp.eq.s32.totalorder %s136, 7
      %p682 = por %p680, %p681
      %p684 = scmp.ne.s32.totalorder %s669, %s683
      %p685 = scmp.eq.s32.totalorder %s136, 0
      %p686 = por %p684, %p685
      %s687 = ssub.s32 %s130, 2
      %p688 = scmp.gt.s32.totalorder %s687, 0
      %s689 = scalar_select %p688, %s687, 0
      %s690 = ssub.s32 %s137, 2
      %p691 = scmp.gt.s32.totalorder %s690, 0
      %s692 = scalar_select %p691, %s690, 0
      %s693 = ssub.s32 %s689, %s692
      %p694 = scmp.eq.s32.totalorder %s693, 0
      %s696 = sadd.s32 %s695, 1
      %s697 = scalar_select %p694, %s695, %s696
      %p700 = pneg %p694
      %p701 = scmp.eq.s32.totalorder %s130, 7
      %p702 = por %p700, %p701
      %p703 = scmp.ne.s32.totalorder %s695, %s698
      %p704 = scmp.eq.s32.totalorder %s130, 0
      %p705 = por %p703, %p704
      %p706 = scmp.ne.s32.totalorder %s695, %s698
      %p707 = scmp.eq.s32.totalorder %s135, 7
      %p708 = por %p706, %p707
      %p709 = scmp.ne.s32.totalorder %s698, %s699
      %p710 = scmp.eq.s32.totalorder %s135, 0
      %p711 = por %p709, %p710
      %p712 = scmp.ne.s32.totalorder %s698, %s699
      %p713 = scmp.eq.s32.totalorder %s136, 7
      %p714 = por %p712, %p713
      %p716 = scmp.ne.s32.totalorder %s699, %s715
      %p717 = scmp.eq.s32.totalorder %s136, 0
      %p718 = por %p716, %p717
      %s719 = ssub.s32 %s130, 2
      %p720 = scmp.gt.s32.totalorder %s719, 0
      %s721 = scalar_select %p720, %s719, 0
      %s722 = ssub.s32 %s137, 2
      %p723 = scmp.gt.s32.totalorder %s722, 0
      %s724 = scalar_select %p723, %s722, 0
      %s725 = ssub.s32 %s721, %s724
      %p726 = scmp.eq.s32.totalorder %s725, 0
      %s728 = sadd.s32 %s727, 1
      %s729 = scalar_select %p726, %s727, %s728
      %p732 = pneg %p726
      %p733 = scmp.eq.s32.totalorder %s130, 7
      %p734 = por %p732, %p733
      %p735 = scmp.ne.s32.totalorder %s727, %s730
      %p736 = scmp.eq.s32.totalorder %s130, 0
      %p737 = por %p735, %p736
      %p738 = scmp.ne.s32.totalorder %s727, %s730
      %p739 = scmp.eq.s32.totalorder %s135, 7
      %p740 = por %p738, %p739
      %p741 = scmp.ne.s32.totalorder %s730, %s731
      %p742 = scmp.eq.s32.totalorder %s135, 0
      %p743 = por %p741, %p742
      %p744 = scmp.ne.s32.totalorder %s730, %s731
      %p745 = scmp.eq.s32.totalorder %s136, 7
      %p746 = por %p744, %p745
      %p748 = scmp.ne.s32.totalorder %s731, %s747
      %p749 = scmp.eq.s32.totalorder %s136, 0
      %p750 = por %p748, %p749
      %s751 = ssub.s32 %s130, 2
      %p752 = scmp.gt.s32.totalorder %s751, 0
      %s753 = scalar_select %p752, %s751, 0
      %s754 = ssub.s32 %s137, 2
      %p755 = scmp.gt.s32.totalorder %s754, 0
      %s756 = scalar_select %p755, %s754, 0
      %s757 = ssub.s32 %s753, %s756
      %p758 = scmp.eq.s32.totalorder %s757, 0
      %s760 = sadd.s32 %s759, 1
      %s761 = scalar_select %p758, %s759, %s760
      %p764 = pneg %p758
      %p765 = scmp.eq.s32.totalorder %s130, 7
      %p766 = por %p764, %p765
      %p767 = scmp.ne.s32.totalorder %s759, %s762
      %p768 = scmp.eq.s32.totalorder %s130, 0
      %p769 = por %p767, %p768
      %p770 = scmp.ne.s32.totalorder %s759, %s762
      %p771 = scmp.eq.s32.totalorder %s135, 7
      %p772 = por %p770, %p771
      %p773 = scmp.ne.s32.totalorder %s762, %s763
      %p774 = scmp.eq.s32.totalorder %s135, 0
      %p775 = por %p773, %p774
      %p776 = scmp.ne.s32.totalorder %s762, %s763
      %p777 = scmp.eq.s32.totalorder %s136, 7
      %p778 = por %p776, %p777
      %p780 = scmp.ne.s32.totalorder %s763, %s779
      %p781 = scmp.eq.s32.totalorder %s136, 0
      %p782 = por %p780, %p781
      %s783 = ssub.s32 %s130, 2
      %p784 = scmp.gt.s32.totalorder %s783, 0
      %s785 = scalar_select %p784, %s783, 0
      %s786 = ssub.s32 %s137, 2
      %p787 = scmp.gt.s32.totalorder %s786, 0
      %s788 = scalar_select %p787, %s786, 0
      %s789 = ssub.s32 %s785, %s788
      %p790 = scmp.eq.s32.totalorder %s789, 0
      %s792 = sadd.s32 %s791, 1
      %s793 = scalar_select %p790, %s791, %s792
      %p796 = pneg %p790
      %p797 = scmp.eq.s32.totalorder %s130, 7
      %p798 = por %p796, %p797
      %p799 = scmp.ne.s32.totalorder %s791, %s794
      %p800 = scmp.eq.s32.totalorder %s130, 0
      %p801 = por %p799, %p800
      %p802 = scmp.ne.s32.totalorder %s791, %s794
      %p803 = scmp.eq.s32.totalorder %s135, 7
      %p804 = por %p802, %p803
      %p805 = scmp.ne.s32.totalorder %s794, %s795
      %p806 = scmp.eq.s32.totalorder %s135, 0
      %p807 = por %p805, %p806
      %p808 = scmp.ne.s32.totalorder %s794, %s795
      %p809 = scmp.eq.s32.totalorder %s136, 7
      %p810 = por %p808, %p809
      %p812 = scmp.ne.s32.totalorder %s795, %s811
      %p813 = scmp.eq.s32.totalorder %s136, 0
      %p814 = por %p812, %p813
      %s815 = ssub.s32 %s130, 2
      %p816 = scmp.gt.s32.totalorder %s815, 0
      %s817 = scalar_select %p816, %s815, 0
      %s818 = ssub.s32 %s137, 2
      %p819 = scmp.gt.s32.totalorder %s818, 0
      %s820 = scalar_select %p819, %s818, 0
      %s821 = ssub.s32 %s817, %s820
      %p822 = scmp.eq.s32.totalorder %s821, 0
      %s824 = sadd.s32 %s823, 1
      %s825 = scalar_select %p822, %s823, %s824
      %p828 = pneg %p822
      %p829 = scmp.eq.s32.totalorder %s130, 7
      %p830 = por %p828, %p829
      %p831 = scmp.ne.s32.totalorder %s823, %s826
      %p832 = scmp.eq.s32.totalorder %s130, 0
      %p833 = por %p831, %p832
      %p834 = scmp.ne.s32.totalorder %s823, %s826
      %p835 = scmp.eq.s32.totalorder %s135, 7
      %p836 = por %p834, %p835
      %p837 = scmp.ne.s32.totalorder %s826, %s827
      %p838 = scmp.eq.s32.totalorder %s135, 0
      %p839 = por %p837, %p838
      %p840 = scmp.ne.s32.totalorder %s826, %s827
      %p841 = scmp.eq.s32.totalorder %s136, 7
      %p842 = por %p840, %p841
      %p844 = scmp.ne.s32.totalorder %s827, %s843
      %p845 = scmp.eq.s32.totalorder %s136, 0
      %p846 = por %p844, %p845
      %s847 = ssub.s32 %s130, 2
      %p848 = scmp.gt.s32.totalorder %s847, 0
      %s849 = scalar_select %p848, %s847, 0
      %s850 = ssub.s32 %s137, 2
      %p851 = scmp.gt.s32.totalorder %s850, 0
      %s852 = scalar_select %p851, %s850, 0
      %s853 = ssub.s32 %s849, %s852
      %p854 = scmp.eq.s32.totalorder %s853, 0
      %s856 = sadd.s32 %s855, 1
      %s857 = scalar_select %p854, %s855, %s856
      %p860 = pneg %p854
      %p861 = scmp.eq.s32.totalorder %s130, 7
      %p862 = por %p860, %p861
      %p863 = scmp.ne.s32.totalorder %s855, %s858
      %p864 = scmp.eq.s32.totalorder %s130, 0
      %p865 = por %p863, %p864
      %p866 = scmp.ne.s32.totalorder %s855, %s858
      %p867 = scmp.eq.s32.totalorder %s135, 7
      %p868 = por %p866, %p867
      %p869 = scmp.ne.s32.totalorder %s858, %s859
      %p870 = scmp.eq.s32.totalorder %s135, 0
      %p871 = por %p869, %p870
      %p872 = scmp.ne.s32.totalorder %s858, %s859
      %p873 = scmp.eq.s32.totalorder %s136, 7
      %p874 = por %p872, %p873
      %p876 = scmp.ne.s32.totalorder %s859, %s875
      %p877 = scmp.eq.s32.totalorder %s136, 0
      %p878 = por %p876, %p877
      %s879 = ssub.s32 %s130, 2
      %p880 = scmp.gt.s32.totalorder %s879, 0
      %s881 = scalar_select %p880, %s879, 0
      %s882 = ssub.s32 %s137, 2
      %p883 = scmp.gt.s32.totalorder %s882, 0
      %s884 = scalar_select %p883, %s882, 0
      %s885 = ssub.s32 %s881, %s884
      %p886 = scmp.eq.s32.totalorder %s885, 0
      %s888 = sadd.s32 %s887, 1
      %s889 = scalar_select %p886, %s887, %s888
      %p892 = pneg %p886
      %p893 = scmp.eq.s32.totalorder %s130, 7
      %p894 = por %p892, %p893
      %p895 = scmp.ne.s32.totalorder %s887, %s890
      %p896 = scmp.eq.s32.totalorder %s130, 0
      %p897 = por %p895, %p896
      %p898 = scmp.ne.s32.totalorder %s887, %s890
      %p899 = scmp.eq.s32.totalorder %s135, 7
      %p900 = por %p898, %p899
      %p901 = scmp.ne.s32.totalorder %s890, %s891
      %p902 = scmp.eq.s32.totalorder %s135, 0
      %p903 = por %p901, %p902
      %p904 = scmp.ne.s32.totalorder %s890, %s891
      %p905 = scmp.eq.s32.totalorder %s136, 7
      %p906 = por %p904, %p905
      %p908 = scmp.ne.s32.totalorder %s891, %s907
      %p909 = scmp.eq.s32.totalorder %s136, 0
      %p910 = por %p908, %p909
      %s911 = ssub.s32 %s130, 2
      %p912 = scmp.gt.s32.totalorder %s911, 0
      %s913 = scalar_select %p912, %s911, 0
      %s914 = ssub.s32 %s137, 2
      %p915 = scmp.gt.s32.totalorder %s914, 0
      %s916 = scalar_select %p915, %s914, 0
      %s917 = ssub.s32 %s913, %s916
      %p918 = scmp.eq.s32.totalorder %s917, 0
      %s920 = sadd.s32 %s919, 1
      %s921 = scalar_select %p918, %s919, %s920
      %p924 = pneg %p918
      %p925 = scmp.eq.s32.totalorder %s130, 7
      %p926 = por %p924, %p925
      %p927 = scmp.ne.s32.totalorder %s919, %s922
      %p928 = scmp.eq.s32.totalorder %s130, 0
      %p929 = por %p927, %p928
      %p930 = scmp.ne.s32.totalorder %s919, %s922
      %p931 = scmp.eq.s32.totalorder %s135, 7
      %p932 = por %p930, %p931
      %p933 = scmp.ne.s32.totalorder %s922, %s923
      %p934 = scmp.eq.s32.totalorder %s135, 0
      %p935 = por %p933, %p934
      %p936 = scmp.ne.s32.totalorder %s922, %s923
      %p937 = scmp.eq.s32.totalorder %s136, 7
      %p938 = por %p936, %p937
      %p940 = scmp.ne.s32.totalorder %s923, %s939
      %p941 = scmp.eq.s32.totalorder %s136, 0
      %p942 = por %p940, %p941
      %s943 = ssub.s32 %s130, 2
      %p944 = scmp.gt.s32.totalorder %s943, 0
      %s945 = scalar_select %p944, %s943, 0
      %s946 = ssub.s32 %s137, 2
      %p947 = scmp.gt.s32.totalorder %s946, 0
      %s948 = scalar_select %p947, %s946, 0
      %s949 = ssub.s32 %s945, %s948
      %p950 = scmp.eq.s32.totalorder %s949, 0
      %s952 = sadd.s32 %s951, 1
      %s953 = scalar_select %p950, %s951, %s952
      %p956 = pneg %p950
      %p957 = scmp.eq.s32.totalorder %s130, 7
      %p958 = por %p956, %p957
      %p959 = scmp.ne.s32.totalorder %s951, %s954
      %p960 = scmp.eq.s32.totalorder %s130, 0
      %p961 = por %p959, %p960
      %p962 = scmp.ne.s32.totalorder %s951, %s954
      %p963 = scmp.eq.s32.totalorder %s135, 7
      %p964 = por %p962, %p963
      %p965 = scmp.ne.s32.totalorder %s954, %s955
      %p966 = scmp.eq.s32.totalorder %s135, 0
      %p967 = por %p965, %p966
      %p968 = scmp.ne.s32.totalorder %s954, %s955
      %p969 = scmp.eq.s32.totalorder %s136, 7
      %p970 = por %p968, %p969
      %p972 = scmp.ne.s32.totalorder %s955, %s971
      %p973 = scmp.eq.s32.totalorder %s136, 0
      %p974 = por %p972, %p973
      %s975 = ssub.s32 %s130, 2
      %p976 = scmp.gt.s32.totalorder %s975, 0
      %s977 = scalar_select %p976, %s975, 0
      %s978 = ssub.s32 %s137, 2
      %p979 = scmp.gt.s32.totalorder %s978, 0
      %s980 = scalar_select %p979, %s978, 0
      %s981 = ssub.s32 %s977, %s980
      %p982 = scmp.eq.s32.totalorder %s981, 0
      %s984 = sadd.s32 %s983, 1
      %s985 = scalar_select %p982, %s983, %s984
      %p988 = pneg %p982
      %p989 = scmp.eq.s32.totalorder %s130, 7
      %p990 = por %p988, %p989
      %p991 = scmp.ne.s32.totalorder %s983, %s986
      %p992 = scmp.eq.s32.totalorder %s130, 0
      %p993 = por %p991, %p992
      %p994 = scmp.ne.s32.totalorder %s983, %s986
      %p995 = scmp.eq.s32.totalorder %s135, 7
      %p996 = por %p994, %p995
      %p997 = scmp.ne.s32.totalorder %s986, %s987
      %p998 = scmp.eq.s32.totalorder %s135, 0
      %p999 = por %p997, %p998
      %p1000 = scmp.ne.s32.totalorder %s986, %s987
      %p1001 = scmp.eq.s32.totalorder %s136, 7
      %p1002 = por %p1000, %p1001
      %p1004 = scmp.ne.s32.totalorder %s987, %s1003
      %p1005 = scmp.eq.s32.totalorder %s136, 0
      %p1006 = por %p1004, %p1005
      %s1007 = ssub.s32 %s130, 2
      %p1008 = scmp.gt.s32.totalorder %s1007, 0
      %s1009 = scalar_select %p1008, %s1007, 0
      %s1010 = ssub.s32 %s137, 2
      %p1011 = scmp.gt.s32.totalorder %s1010, 0
      %s1012 = scalar_select %p1011, %s1010, 0
      %s1013 = ssub.s32 %s1009, %s1012
      %p1014 = scmp.eq.s32.totalorder %s1013, 0
      %s1016 = sadd.s32 %s1015, 1
      %s1017 = scalar_select %p1014, %s1015, %s1016
      %p1020 = pneg %p1014
      %p1021 = scmp.eq.s32.totalorder %s130, 7
      %p1022 = por %p1020, %p1021
      %p1023 = scmp.ne.s32.totalorder %s1015, %s1018
      %p1024 = scmp.eq.s32.totalorder %s130, 0
      %p1025 = por %p1023, %p1024
      %p1026 = scmp.ne.s32.totalorder %s1015, %s1018
      %p1027 = scmp.eq.s32.totalorder %s135, 7
      %p1028 = por %p1026, %p1027
      %p1029 = scmp.ne.s32.totalorder %s1018, %s1019
      %p1030 = scmp.eq.s32.totalorder %s135, 0
      %p1031 = por %p1029, %p1030
      %p1032 = scmp.ne.s32.totalorder %s1018, %s1019
      %p1033 = scmp.eq.s32.totalorder %s136, 7
      %p1034 = por %p1032, %p1033
      %p1036 = scmp.ne.s32.totalorder %s1019, %s1035
      %p1037 = scmp.eq.s32.totalorder %s136, 0
      %p1038 = por %p1036, %p1037
      %s1039 = ssub.s32 %s130, 2
      %p1040 = scmp.gt.s32.totalorder %s1039, 0
      %s1041 = scalar_select %p1040, %s1039, 0
      %s1042 = ssub.s32 %s137, 2
      %p1043 = scmp.gt.s32.totalorder %s1042, 0
      %s1044 = scalar_select %p1043, %s1042, 0
      %s1045 = ssub.s32 %s1041, %s1044
      %p1046 = scmp.eq.s32.totalorder %s1045, 0
      %s1048 = sadd.s32 %s1047, 1
      %s1049 = scalar_select %p1046, %s1047, %s1048
      %p1052 = pneg %p1046
      %p1053 = scmp.eq.s32.totalorder %s130, 7
      %p1054 = por %p1052, %p1053
      %p1055 = scmp.ne.s32.totalorder %s1047, %s1050
      %p1056 = scmp.eq.s32.totalorder %s130, 0
      %p1057 = por %p1055, %p1056
      %p1058 = scmp.ne.s32.totalorder %s1047, %s1050
      %p1059 = scmp.eq.s32.totalorder %s135, 7
      %p1060 = por %p1058, %p1059
      %p1061 = scmp.ne.s32.totalorder %s1050, %s1051
      %p1062 = scmp.eq.s32.totalorder %s135, 0
      %p1063 = por %p1061, %p1062
      %p1064 = scmp.ne.s32.totalorder %s1050, %s1051
      %p1065 = scmp.eq.s32.totalorder %s136, 7
      %p1066 = por %p1064, %p1065
      %p1068 = scmp.ne.s32.totalorder %s1051, %s1067
      %p1069 = scmp.eq.s32.totalorder %s136, 0
      %p1070 = por %p1068, %p1069
      %s1071 = ssub.s32 %s130, 2
      %p1072 = scmp.gt.s32.totalorder %s1071, 0
      %s1073 = scalar_select %p1072, %s1071, 0
      %s1074 = ssub.s32 %s137, 2
      %p1075 = scmp.gt.s32.totalorder %s1074, 0
      %s1076 = scalar_select %p1075, %s1074, 0
      %s1077 = ssub.s32 %s1073, %s1076
      %p1078 = scmp.eq.s32.totalorder %s1077, 0
      %s1080 = sadd.s32 %s1079, 1
      %s1081 = scalar_select %p1078, %s1079, %s1080
      %p1084 = pneg %p1078
      %p1085 = scmp.eq.s32.totalorder %s130, 7
      %p1086 = por %p1084, %p1085
      %p1087 = scmp.ne.s32.totalorder %s1079, %s1082
      %p1088 = scmp.eq.s32.totalorder %s130, 0
      %p1089 = por %p1087, %p1088
      %p1090 = scmp.ne.s32.totalorder %s1079, %s1082
      %p1091 = scmp.eq.s32.totalorder %s135, 7
      %p1092 = por %p1090, %p1091
      %p1093 = scmp.ne.s32.totalorder %s1082, %s1083
      %p1094 = scmp.eq.s32.totalorder %s135, 0
      %p1095 = por %p1093, %p1094
      %p1096 = scmp.ne.s32.totalorder %s1082, %s1083
      %p1097 = scmp.eq.s32.totalorder %s136, 7
      %p1098 = por %p1096, %p1097
      %p1100 = scmp.ne.s32.totalorder %s1083, %s1099
      %p1101 = scmp.eq.s32.totalorder %s136, 0
      %p1102 = por %p1100, %p1101
      %s1103 = ssub.s32 %s130, 2
      %p1104 = scmp.gt.s32.totalorder %s1103, 0
      %s1105 = scalar_select %p1104, %s1103, 0
      %s1106 = ssub.s32 %s137, 2
      %p1107 = scmp.gt.s32.totalorder %s1106, 0
      %s1108 = scalar_select %p1107, %s1106, 0
      %s1109 = ssub.s32 %s1105, %s1108
      %p1110 = scmp.eq.s32.totalorder %s1109, 0
      %s1112 = sadd.s32 %s1111, 1
      %s1113 = scalar_select %p1110, %s1111, %s1112
      %p1116 = pneg %p1110
      %p1117 = scmp.eq.s32.totalorder %s130, 7
      %p1118 = por %p1116, %p1117
      %p1119 = scmp.ne.s32.totalorder %s1111, %s1114
      %p1120 = scmp.eq.s32.totalorder %s130, 0
      %p1121 = por %p1119, %p1120
      %p1122 = scmp.ne.s32.totalorder %s1111, %s1114
      %p1123 = scmp.eq.s32.totalorder %s135, 7
      %p1124 = por %p1122, %p1123
      %p1125 = scmp.ne.s32.totalorder %s1114, %s1115
      %p1126 = scmp.eq.s32.totalorder %s135, 0
      %p1127 = por %p1125, %p1126
      %p1128 = scmp.ne.s32.totalorder %s1114, %s1115
      %p1129 = scmp.eq.s32.totalorder %s136, 7
      %p1130 = por %p1128, %p1129
      %p1132 = scmp.ne.s32.totalorder %s1115, %s1131
      %p1133 = scmp.eq.s32.totalorder %s136, 0
      %p1134 = por %p1132, %p1133
      %s1135 = ssub.s32 %s130, 2
      %p1136 = scmp.gt.s32.totalorder %s1135, 0
      %s1137 = scalar_select %p1136, %s1135, 0
      %s1138 = ssub.s32 %s137, 2
      %p1139 = scmp.gt.s32.totalorder %s1138, 0
      %s1140 = scalar_select %p1139, %s1138, 0
      %s1141 = ssub.s32 %s1137, %s1140
      %p1142 = scmp.eq.s32.totalorder %s1141, 0
      %s1144 = sadd.s32 %s1143, 1
      %s1145 = scalar_select %p1142, %s1143, %s1144
      %p1148 = pneg %p1142
      %p1149 = scmp.eq.s32.totalorder %s130, 7
      %p1150 = por %p1148, %p1149
      %p1151 = scmp.ne.s32.totalorder %s1143, %s1146
      %p1152 = scmp.eq.s32.totalorder %s130, 0
      %p1153 = por %p1151, %p1152
      %p1154 = scmp.ne.s32.totalorder %s1143, %s1146
      %p1155 = scmp.eq.s32.totalorder %s135, 7
      %p1156 = por %p1154, %p1155
      %p1157 = scmp.ne.s32.totalorder %s1146, %s1147
      %p1158 = scmp.eq.s32.totalorder %s135, 0
      %p1159 = por %p1157, %p1158
      %p1160 = scmp.ne.s32.totalorder %s1146, %s1147
      %p1161 = scmp.eq.s32.totalorder %s136, 7
      %p1162 = por %p1160, %p1161
      %p1164 = scmp.ne.s32.totalorder %s1147, %s1163
      %p1165 = scmp.eq.s32.totalorder %s136, 0
      %p1166 = por %p1164, %p1165
      %s1167 = ssub.s32 %s130, 2
      %p1168 = scmp.gt.s32.totalorder %s1167, 0
      %s1169 = scalar_select %p1168, %s1167, 0
      %s1170 = ssub.s32 %s137, 2
      %p1171 = scmp.gt.s32.totalorder %s1170, 0
      %s1172 = scalar_select %p1171, %s1170, 0
      %s1173 = ssub.s32 %s1169, %s1172
      %p1174 = scmp.eq.s32.totalorder %s1173, 0
      %s1176 = sadd.s32 %s1175, 1
      %s1177 = scalar_select %p1174, %s1175, %s1176
      %p1180 = pneg %p1174
      %p1181 = scmp.eq.s32.totalorder %s130, 7
      %p1182 = por %p1180, %p1181
      %p1183 = scmp.ne.s32.totalorder %s1175, %s1178
      %p1184 = scmp.eq.s32.totalorder %s130, 0
      %p1185 = por %p1183, %p1184
      %p1186 = scmp.ne.s32.totalorder %s1175, %s1178
      %p1187 = scmp.eq.s32.totalorder %s135, 7
      %p1188 = por %p1186, %p1187
      %p1189 = scmp.ne.s32.totalorder %s1178, %s1179
      %p1190 = scmp.eq.s32.totalorder %s135, 0
      %p1191 = por %p1189, %p1190
      %p1192 = scmp.ne.s32.totalorder %s1178, %s1179
      %p1193 = scmp.eq.s32.totalorder %s136, 7
      %p1194 = por %p1192, %p1193
      %p1196 = scmp.ne.s32.totalorder %s1179, %s1195
      %p1197 = scmp.eq.s32.totalorder %s136, 0
      %p1198 = por %p1196, %p1197
      %s1199 = ssub.s32 %s130, 2
      %p1200 = scmp.gt.s32.totalorder %s1199, 0
      %s1201 = scalar_select %p1200, %s1199, 0
      %s1202 = ssub.s32 %s137, 2
      %p1203 = scmp.gt.s32.totalorder %s1202, 0
      %s1204 = scalar_select %p1203, %s1202, 0
      %s1205 = ssub.s32 %s1201, %s1204
      %p1206 = scmp.eq.s32.totalorder %s1205, 0
      %s1208 = sadd.s32 %s1207, 1
      %s1209 = scalar_select %p1206, %s1207, %s1208
      %p1212 = pneg %p1206
      %p1213 = scmp.eq.s32.totalorder %s130, 7
      %p1214 = por %p1212, %p1213
      %p1215 = scmp.ne.s32.totalorder %s1207, %s1210
      %p1216 = scmp.eq.s32.totalorder %s130, 0
      %p1217 = por %p1215, %p1216
      %p1218 = scmp.ne.s32.totalorder %s1207, %s1210
      %p1219 = scmp.eq.s32.totalorder %s135, 7
      %p1220 = por %p1218, %p1219
      %p1221 = scmp.ne.s32.totalorder %s1210, %s1211
      %p1222 = scmp.eq.s32.totalorder %s135, 0
      %p1223 = por %p1221, %p1222
      %p1224 = scmp.ne.s32.totalorder %s1210, %s1211
      %p1225 = scmp.eq.s32.totalorder %s136, 7
      %p1226 = por %p1224, %p1225
      %p1228 = scmp.ne.s32.totalorder %s1211, %s1227
      %p1229 = scmp.eq.s32.totalorder %s136, 0
      %p1230 = por %p1228, %p1229
      %s1231 = ssub.s32 %s130, 2
      %p1232 = scmp.gt.s32.totalorder %s1231, 0
      %s1233 = scalar_select %p1232, %s1231, 0
      %s1234 = ssub.s32 %s137, 2
      %p1235 = scmp.gt.s32.totalorder %s1234, 0
      %s1236 = scalar_select %p1235, %s1234, 0
      %s1237 = ssub.s32 %s1233, %s1236
      %p1238 = scmp.eq.s32.totalorder %s1237, 0
      %s1240 = sadd.s32 %s1239, 1
      %s1241 = scalar_select %p1238, %s1239, %s1240
      %p1244 = pneg %p1238
      %p1245 = scmp.eq.s32.totalorder %s130, 7
      %p1246 = por %p1244, %p1245
      %p1247 = scmp.ne.s32.totalorder %s1239, %s1242
      %p1248 = scmp.eq.s32.totalorder %s130, 0
      %p1249 = por %p1247, %p1248
      %p1250 = scmp.ne.s32.totalorder %s1239, %s1242
      %p1251 = scmp.eq.s32.totalorder %s135, 7
      %p1252 = por %p1250, %p1251
      %p1253 = scmp.ne.s32.totalorder %s1242, %s1243
      %p1254 = scmp.eq.s32.totalorder %s135, 0
      %p1255 = por %p1253, %p1254
      %p1256 = scmp.ne.s32.totalorder %s1242, %s1243
      %p1257 = scmp.eq.s32.totalorder %s136, 7
      %p1258 = por %p1256, %p1257
      %p1260 = scmp.ne.s32.totalorder %s1243, %s1259
      %p1261 = scmp.eq.s32.totalorder %s136, 0
      %p1262 = por %p1260, %p1261
      %s1264 = sadd.s32 %s1263, 1
      %p1267 = scmp.eq.s32.totalorder %s130, 7
      %p1268 = scmp.ne.s32.totalorder %s1263, %s1265
      %p1269 = scmp.eq.s32.totalorder %s130, 0
      %p1270 = por %p1268, %p1269
      %p1271 = scmp.ne.s32.totalorder %s1263, %s1265
      %p1272 = scmp.eq.s32.totalorder %s135, 7
      %p1273 = por %p1271, %p1272
      %p1274 = scmp.ne.s32.totalorder %s1265, %s1266
      %p1275 = scmp.eq.s32.totalorder %s135, 0
      %p1276 = por %p1274, %p1275
      %p1277 = scmp.ne.s32.totalorder %s1265, %s1266
      %p1278 = scmp.eq.s32.totalorder %s136, 7
      %p1279 = por %p1277, %p1278
      %p1281 = scmp.ne.s32.totalorder %s1266, %s1280
      %p1282 = scmp.eq.s32.totalorder %s136, 0
      %p1283 = por %p1281, %p1282
      %s1285 = sadd.s32 %s1284, 1
      %p1288 = scmp.eq.s32.totalorder %s130, 7
      %p1289 = scmp.ne.s32.totalorder %s1284, %s1286
      %p1290 = scmp.eq.s32.totalorder %s130, 0
      %p1291 = por %p1289, %p1290
      %p1292 = scmp.ne.s32.totalorder %s1284, %s1286
      %p1293 = scmp.eq.s32.totalorder %s135, 7
      %p1294 = por %p1292, %p1293
      %p1295 = scmp.ne.s32.totalorder %s1286, %s1287
      %p1296 = scmp.eq.s32.totalorder %s135, 0
      %p1297 = por %p1295, %p1296
      %p1298 = scmp.ne.s32.totalorder %s1286, %s1287
      %p1299 = scmp.eq.s32.totalorder %s136, 7
      %p1300 = por %p1298, %p1299
      %p1302 = scmp.ne.s32.totalorder %s1287, %s1301
      %p1303 = scmp.eq.s32.totalorder %s136, 0
      %p1304 = por %p1302, %p1303
      %s1306 = sadd.s32 %s1305, 1
      %p1309 = scmp.eq.s32.totalorder %s130, 7
      %p1310 = scmp.ne.s32.totalorder %s1305, %s1307
      %p1311 = scmp.eq.s32.totalorder %s130, 0
      %p1312 = por %p1310, %p1311
      %p1313 = scmp.ne.s32.totalorder %s1305, %s1307
      %p1314 = scmp.eq.s32.totalorder %s135, 7
      %p1315 = por %p1313, %p1314
      %p1316 = scmp.ne.s32.totalorder %s1307, %s1308
      %p1317 = scmp.eq.s32.totalorder %s135, 0
      %p1318 = por %p1316, %p1317
      %p1319 = scmp.ne.s32.totalorder %s1307, %s1308
      %p1320 = scmp.eq.s32.totalorder %s136, 7
      %p1321 = por %p1319, %p1320
      %p1323 = scmp.ne.s32.totalorder %s1308, %s1322
      %p1324 = scmp.eq.s32.totalorder %s136, 0
      %p1325 = por %p1323, %p1324
      %s1327 = sadd.s32 %s1326, 1
      %p1330 = scmp.eq.s32.totalorder %s130, 7
      %p1331 = scmp.ne.s32.totalorder %s1326, %s1328
      %p1332 = scmp.eq.s32.totalorder %s130, 0
      %p1333 = por %p1331, %p1332
      %p1334 = scmp.ne.s32.totalorder %s1326, %s1328
      %p1335 = scmp.eq.s32.totalorder %s135, 7
      %p1336 = por %p1334, %p1335
      %p1337 = scmp.ne.s32.totalorder %s1328, %s1329
      %p1338 = scmp.eq.s32.totalorder %s135, 0
      %p1339 = por %p1337, %p1338
      %p1340 = scmp.ne.s32.totalorder %s1328, %s1329
      %p1341 = scmp.eq.s32.totalorder %s136, 7
      %p1342 = por %p1340, %p1341
      %p1344 = scmp.ne.s32.totalorder %s1329, %s1343
      %p1345 = scmp.eq.s32.totalorder %s136, 0
      %p1346 = por %p1344, %p1345
      %s1348 = sadd.s32 %s1347, 1
      %p1351 = scmp.eq.s32.totalorder %s130, 7
      %p1352 = scmp.ne.s32.totalorder %s1347, %s1349
      %p1353 = scmp.eq.s32.totalorder %s130, 0
      %p1354 = por %p1352, %p1353
      %p1355 = scmp.ne.s32.totalorder %s1347, %s1349
      %p1356 = scmp.eq.s32.totalorder %s135, 7
      %p1357 = por %p1355, %p1356
      %p1358 = scmp.ne.s32.totalorder %s1349, %s1350
      %p1359 = scmp.eq.s32.totalorder %s135, 0
      %p1360 = por %p1358, %p1359
      %p1361 = scmp.ne.s32.totalorder %s1349, %s1350
      %p1362 = scmp.eq.s32.totalorder %s136, 7
      %p1363 = por %p1361, %p1362
      %p1365 = scmp.ne.s32.totalorder %s1350, %s1364
      %p1366 = scmp.eq.s32.totalorder %s136, 0
      %p1367 = por %p1365, %p1366
      %p1368 = scmp.le.s32.totalorder 1, %s130
      %p1369 = scmp.lt.s32.totalorder %s130, 9
      %p1370 = pnand %p1368, %p1369
      %p1371 = pneg %p1370
      // Predicated region
      $region9: #{bird_forecasting_forward.1} parent=5 // pred_check
        _
      $region10: #{bird_forecasting_forward.1} parent=5 // pred_check_branch
        %1373 = sbr.rel (%p1370) target = $region12
      $region11: #{bird_forecasting_forward.1} parent=5 // pred_region
        %s1374 = ssub.s32 %s130, 1
        // Predicated region
        $region13: #{bird_forecasting_forward.1} parent=11 // pred_check
          %p1375 = pneg %p151
        $region14: #{bird_forecasting_forward.1} parent=11 // pred_check_branch
          %1377 = sbr.rel (%p1375) target = $region16
        $region15: #{bird_forecasting_forward.1} parent=11 // pred_region
          _
        $region16: #{bird_forecasting_forward.1} parent=11 // pred_fallthru
          _
        // Predicated region
        $region17: #{bird_forecasting_forward.1} parent=11 // pred_check
          %p1378 = pneg %p172
        $region18: #{bird_forecasting_forward.1} parent=11 // pred_check_branch
          %1380 = sbr.rel (%p1378) target = $region20
        $region19: #{bird_forecasting_forward.1} parent=11 // pred_region
          _
        $region20: #{bird_forecasting_forward.1} parent=11 // pred_fallthru
          _
        // Predicated region
        $region21: #{bird_forecasting_forward.1} parent=11 // pred_check
          %p1381 = pneg %p193
        $region22: #{bird_forecasting_forward.1} parent=11 // pred_check_branch
          %1383 = sbr.rel (%p1381) target = $region24
        $region23: #{bird_forecasting_forward.1} parent=11 // pred_region
          _
        $region24: #{bird_forecasting_forward.1} parent=11 // pred_fallthru
          _
        // Predicated region
        $region25: #{bird_forecasting_forward.1} parent=11 // pred_check
          %p1384 = pneg %p214
        $region26: #{bird_forecasting_forward.1} parent=11 // pred_check_branch
          %1386 = sbr.rel (%p1384) target = $region28
        $region27: #{bird_forecasting_forward.1} parent=11 // pred_region
          _
        $region28: #{bird_forecasting_forward.1} parent=11 // pred_fallthru
          _
        // Predicated region
        $region29: #{bird_forecasting_forward.1} parent=11 // pred_check
          %p1387 = pneg %p235
        $region30: #{bird_forecasting_forward.1} parent=11 // pred_check_branch
          %1389 = sbr.rel (%p1387) target = $region32
        $region31: #{bird_forecasting_forward.1} parent=11 // pred_region
          _
        $region32: #{bird_forecasting_forward.1} parent=11 // pred_fallthru
          _
        // Predicated region
        $region33: #{bird_forecasting_forward.1} parent=11 // pred_check
          %p1390 = pneg %p616
        $region34: #{bird_forecasting_forward.1} parent=11 // pred_check_branch
          %1392 = sbr.rel (%p1390) target = $region36
        $region35: #{bird_forecasting_forward.1} parent=11 // pred_region
          %1394 = vsyncadd [#allocation20], 0
          %s1396 = sshll.u32 %s35, 4
          %s1397 = int_to_ptr.hbm [resolvable:$true] %s1396
          %s1398 = sshll.u32 [#allocation19], 4
          %s1399 = int_to_ptr.vmem [resolvable:$true] %s1398
          %1401 = dma.hbm_to_vmem [thread:$0]  %s1397, 16, %s1399, [#allocation20]
        $region36: #{bird_forecasting_forward.1} parent=11 // pred_fallthru
          _
        // Predicated region
        $region37: #{bird_forecasting_forward.1} parent=11 // pred_check
          %p1402 = pneg %p637
        $region38: #{bird_forecasting_forward.1} parent=11 // pred_check_branch
          %1404 = sbr.rel (%p1402) target = $region40
        $region39: #{bird_forecasting_forward.1} parent=11 // pred_region
          %1406 = vsyncadd [#allocation20], 0
          %s1408 = sshll.u32 %s37, 4
          %s1409 = int_to_ptr.hbm [resolvable:$true] %s1408
          %s1410 = sshll.u32 [#allocation21], 4
          %s1411 = int_to_ptr.vmem [resolvable:$true] %s1410
          %1413 = dma.hbm_to_vmem [thread:$0]  %s1409, 16, %s1411, [#allocation20]
        $region40: #{bird_forecasting_forward.1} parent=11 // pred_fallthru
          _
        // Predicated region
        $region41: #{bird_forecasting_forward.1} parent=11 // pred_check
          %p1414 = pneg %p658
        $region42: #{bird_forecasting_forward.1} parent=11 // pred_check_branch
          %1416 = sbr.rel (%p1414) target = $region44
        $region43: #{bird_forecasting_forward.1} parent=11 // pred_region
          _
        $region44: #{bird_forecasting_forward.1} parent=11 // pred_fallthru
          _
        // Predicated region
        $region45: #{bird_forecasting_forward.1} parent=11 // pred_check
          %p1417 = pneg %p679
        $region46: #{bird_forecasting_forward.1} parent=11 // pred_check_branch
          %1419 = sbr.rel (%p1417) target = $region48
        $region47: #{bird_forecasting_forward.1} parent=11 // pred_region
          _
        $region48: #{bird_forecasting_forward.1} parent=11 // pred_fallthru
          _
        // Predicated region
        $region49: #{bird_forecasting_forward.1} parent=11 // pred_check
          %p1420 = pneg %p1276
        $region50: #{bird_forecasting_forward.1} parent=11 // pred_check_branch
          %1422 = sbr.rel (%p1420) target = $region52
        $region51: #{bird_forecasting_forward.1} parent=11 // pred_region
          %1424 = vsyncadd [#allocation41], 0
          %s1426 = sshll.u32 %s79, 4
          %s1427 = int_to_ptr.hbm [resolvable:$true] %s1426
          %s1428 = sshll.u32 [#allocation40], 4
          %s1429 = int_to_ptr.vmem [resolvable:$true] %s1428
          %1431 = dma.hbm_to_vmem [thread:$0]  %s1427, 16, %s1429, [#allocation41]
        $region52: #{bird_forecasting_forward.1} parent=11 // pred_fallthru
          _
        // Predicated region
        $region53: #{bird_forecasting_forward.1} parent=11 // pred_check
          %p1432 = pneg %p1297
        $region54: #{bird_forecasting_forward.1} parent=11 // pred_check_branch
          %1434 = sbr.rel (%p1432) target = $region56
        $region55: #{bird_forecasting_forward.1} parent=11 // pred_region
          %1436 = vsyncadd [#allocation41], 0
          %s1438 = sshll.u32 %s81, 4
          %s1439 = int_to_ptr.hbm [resolvable:$true] %s1438
          %s1440 = sshll.u32 [#allocation42], 4
          %s1441 = int_to_ptr.vmem [resolvable:$true] %s1440
          %1443 = dma.hbm_to_vmem [thread:$0]  %s1439, 16, %s1441, [#allocation41]
        $region56: #{bird_forecasting_forward.1} parent=11 // pred_fallthru
          _
        // Predicated region
        $region57: #{bird_forecasting_forward.1} parent=11 // pred_check
          %p1444 = pneg %p1318
        $region58: #{bird_forecasting_forward.1} parent=11 // pred_check_branch
          %1446 = sbr.rel (%p1444) target = $region60
        $region59: #{bird_forecasting_forward.1} parent=11 // pred_region
          _
        $region60: #{bird_forecasting_forward.1} parent=11 // pred_fallthru
          _
        // Predicated region
        $region61: #{bird_forecasting_forward.1} parent=11 // pred_check
          %p1447 = pneg %p1339
        $region62: #{bird_forecasting_forward.1} parent=11 // pred_check_branch
          %1449 = sbr.rel (%p1447) target = $region64
        $region63: #{bird_forecasting_forward.1} parent=11 // pred_region
          _
        $region64: #{bird_forecasting_forward.1} parent=11 // pred_fallthru
          _
      $region12: #{bird_forecasting_forward.1} parent=5 // pred_fallthru
        _
      %p1450 = scmp.lt.s32.totalorder %s130, 8
      // Predicated region
      $region65: #{bird_forecasting_forward.1} parent=5 // pred_check
        %p1451 = pneg %p1450
      $region66: #{bird_forecasting_forward.1} parent=5 // pred_check_branch
        %1453 = sbr.rel (%p1451) target = $region68
      $region67: #{bird_forecasting_forward.1} parent=5 // pred_region
        // Predicated region
        $region69: #{bird_forecasting_forward.1} parent=67 // pred_check
          %p1454 = pneg %p259
        $region70: #{bird_forecasting_forward.1} parent=67 // pred_check_branch
          %1456 = sbr.rel (%p1454) target = $region72
        $region71: #{bird_forecasting_forward.1} parent=67 // pred_region
          %p1457 = scmp.lt.s32.totalorder %s130, 1
          %s1458 = scalar_select %p1457, %s130, 1
          %p1459 = scmp.lt.s32.totalorder %s1458, 1
          %s1460 = scalar_select %p1459, %s1458, 1
          %s1461 = smul.addr %s1460, 4
          %s1462 = smul.addr %s1461, 8
          %s1463 = scalar_lea.vmem %s11, %s1462
          %p1464 = scmp.lt.s32.totalorder %s130, 1
          %s1465 = scalar_select %p1464, %s130, 1
        $region72: #{bird_forecasting_forward.1} parent=67 // pred_fallthru
          _
        // Predicated region
        $region73: #{bird_forecasting_forward.1} parent=67 // pred_check
          %p1466 = pneg %p289
        $region74: #{bird_forecasting_forward.1} parent=67 // pred_check_branch
          %1468 = sbr.rel (%p1466) target = $region76
        $region75: #{bird_forecasting_forward.1} parent=67 // pred_region
          %s1469 = sand.u32 %s279, 1
          %s1470 = scalar_lea.sflag [#allocation6], %s1469
          %s1471 = sand.u32 %s279, 1
          %s1472 = scalar_lea.vmem [#allocation5], %s1471
          %p1473 = scmp.lt.s32.totalorder %s130, 1
          %s1474 = scalar_select %p1473, %s130, 1
          %1476 = vsyncadd %s1470, 0
          %s1477 = scalar_lea.hbm %s13, %s1474
          %s1479 = sshll.u32 %s1477, 4
          %s1480 = int_to_ptr.hbm [resolvable:$true] %s1479
          %s1481 = sshll.u32 %s1472, 4
          %s1482 = int_to_ptr.vmem [resolvable:$true] %s1481
          %1484 = dma.hbm_to_vmem [thread:$0]  %s1480, 16, %s1482, %s1470
        $region76: #{bird_forecasting_forward.1} parent=67 // pred_fallthru
          _
        // Predicated region
        $region77: #{bird_forecasting_forward.1} parent=67 // pred_check
          %p1485 = pneg %p319
        $region78: #{bird_forecasting_forward.1} parent=67 // pred_check_branch
          %1487 = sbr.rel (%p1485) target = $region80
        $region79: #{bird_forecasting_forward.1} parent=67 // pred_region
          %s1488 = sand.u32 %s130, 1
          %s1489 = scalar_lea.sflag [#allocation8], %s1488
          %s1490 = sand.u32 %s309, 1
          %s1491 = smul.addr %s1490, 32
          %s1492 = scalar_lea.vmem [#allocation7], %s1491
          %p1493 = scmp.lt.s32.totalorder %s130, 1
          %s1494 = scalar_select %p1493, %s130, 1
          %1496 = vsyncadd %s1489, 0
          %s1497 = smul.addr %s1494, 4
          %s1498 = smul.addr %s1497, 8
          %s1499 = scalar_lea.hbm %s15, %s1498
          %s1500 = sshll.u32 %s1499, 4
          %s1501 = int_to_ptr.hbm [resolvable:$true] %s1500
          %s1502 = sshll.u32 %s1492, 4
          %s1503 = int_to_ptr.vmem [resolvable:$true] %s1502
          %1508 = dma.hbm_to_vmem [thread:$0]  %s1501, 512, %s1503, %s1489, 128, 128, 8
        $region80: #{bird_forecasting_forward.1} parent=67 // pred_fallthru
          _
        // Predicated region
        $region81: #{bird_forecasting_forward.1} parent=67 // pred_check
          %p1509 = pneg %p349
        $region82: #{bird_forecasting_forward.1} parent=67 // pred_check_branch
          %1511 = sbr.rel (%p1509) target = $region84
        $region83: #{bird_forecasting_forward.1} parent=67 // pred_region
          %s1512 = sand.u32 %s130, 1
          %s1513 = scalar_lea.sflag [#allocation8], %s1512
          %s1514 = sand.u32 %s339, 1
          %s1515 = scalar_lea.vmem [#allocation9], %s1514
          %p1516 = scmp.lt.s32.totalorder %s130, 1
          %s1517 = scalar_select %p1516, %s130, 1
          %1519 = vsyncadd %s1513, 0
          %s1520 = scalar_lea.hbm %s17, %s1517
          %s1522 = sshll.u32 %s1520, 4
          %s1523 = int_to_ptr.hbm [resolvable:$true] %s1522
          %s1524 = sshll.u32 %s1515, 4
          %s1525 = int_to_ptr.vmem [resolvable:$true] %s1524
          %1527 = dma.hbm_to_vmem [thread:$0]  %s1523, 16, %s1525, %s1513
        $region84: #{bird_forecasting_forward.1} parent=67 // pred_fallthru
          _
        // Predicated region
        $region85: #{bird_forecasting_forward.1} parent=67 // pred_check
          %p1528 = pneg %p379
        $region86: #{bird_forecasting_forward.1} parent=67 // pred_check_branch
          %1530 = sbr.rel (%p1528) target = $region88
        $region87: #{bird_forecasting_forward.1} parent=67 // pred_region
          %s1531 = sand.u32 %s130, 1
          %s1532 = scalar_lea.sflag [#allocation11], %s1531
          %s1533 = sand.u32 %s369, 1
          %s1534 = scalar_lea.vmem [#allocation10], %s1533
          %p1535 = scmp.lt.s32.totalorder %s130, 1
          %s1536 = scalar_select %p1535, %s130, 1
          %1538 = vsyncadd %s1532, 0
          %s1539 = scalar_lea.hbm %s19, %s1536
          %s1541 = sshll.u32 %s1539, 4
          %s1542 = int_to_ptr.hbm [resolvable:$true] %s1541
          %s1543 = sshll.u32 %s1534, 4
          %s1544 = int_to_ptr.vmem [resolvable:$true] %s1543
          %1546 = dma.hbm_to_vmem [thread:$0]  %s1542, 16, %s1544, %s1532
        $region88: #{bird_forecasting_forward.1} parent=67 // pred_fallthru
          _
        // Predicated region
        $region89: #{bird_forecasting_forward.1} parent=67 // pred_check
          %p1547 = pneg %p409
        $region90: #{bird_forecasting_forward.1} parent=67 // pred_check_branch
          %1549 = sbr.rel (%p1547) target = $region92
        $region91: #{bird_forecasting_forward.1} parent=67 // pred_region
          %s1550 = sand.u32 %s130, 1
          %s1551 = scalar_lea.sflag [#allocation11], %s1550
          %s1552 = sand.u32 %s399, 1
          %s1553 = scalar_lea.vmem [#allocation12], %s1552
          %p1554 = scmp.lt.s32.totalorder %s130, 1
          %s1555 = scalar_select %p1554, %s130, 1
          %1557 = vsyncadd %s1551, 0
          %s1558 = scalar_lea.hbm %s21, %s1555
          %s1560 = sshll.u32 %s1558, 4
          %s1561 = int_to_ptr.hbm [resolvable:$true] %s1560
          %s1562 = sshll.u32 %s1553, 4
          %s1563 = int_to_ptr.vmem [resolvable:$true] %s1562
          %1565 = dma.hbm_to_vmem [thread:$0]  %s1561, 16, %s1563, %s1551
        $region92: #{bird_forecasting_forward.1} parent=67 // pred_fallthru
          _
        // Predicated region
        $region93: #{bird_forecasting_forward.1} parent=67 // pred_check
          %p1566 = pneg %p439
        $region94: #{bird_forecasting_forward.1} parent=67 // pred_check_branch
          %1568 = sbr.rel (%p1566) target = $region96
        $region95: #{bird_forecasting_forward.1} parent=67 // pred_region
          %s1569 = sand.u32 %s130, 1
          %s1570 = scalar_lea.sflag [#allocation14], %s1569
          %s1571 = sand.u32 %s429, 1
          %s1572 = scalar_lea.vmem [#allocation13], %s1571
          %p1573 = scmp.lt.s32.totalorder %s130, 1
          %s1574 = scalar_select %p1573, %s130, 1
          %1576 = vsyncadd %s1570, 0
          %s1577 = scalar_lea.hbm %s23, %s1574
          %s1579 = sshll.u32 %s1577, 4
          %s1580 = int_to_ptr.hbm [resolvable:$true] %s1579
          %s1581 = sshll.u32 %s1572, 4
          %s1582 = int_to_ptr.vmem [resolvable:$true] %s1581
          %1584 = dma.hbm_to_vmem [thread:$0]  %s1580, 16, %s1582, %s1570
        $region96: #{bird_forecasting_forward.1} parent=67 // pred_fallthru
          _
        // Predicated region
        $region97: #{bird_forecasting_forward.1} parent=67 // pred_check
          %p1585 = pneg %p469
        $region98: #{bird_forecasting_forward.1} parent=67 // pred_check_branch
          %1587 = sbr.rel (%p1585) target = $region100
        $region99: #{bird_forecasting_forward.1} parent=67 // pred_region
          %s1588 = sand.u32 %s130, 1
          %s1589 = scalar_lea.sflag [#allocation14], %s1588
          %s1590 = sand.u32 %s459, 1
          %s1591 = scalar_lea.vmem [#allocation15], %s1590
          %p1592 = scmp.lt.s32.totalorder %s130, 1
          %s1593 = scalar_select %p1592, %s130, 1
          %1595 = vsyncadd %s1589, 0
          %s1596 = scalar_lea.hbm %s25, %s1593
          %s1598 = sshll.u32 %s1596, 4
          %s1599 = int_to_ptr.hbm [resolvable:$true] %s1598
          %s1600 = sshll.u32 %s1591, 4
          %s1601 = int_to_ptr.vmem [resolvable:$true] %s1600
          %1603 = dma.hbm_to_vmem [thread:$0]  %s1599, 16, %s1601, %s1589
        $region100: #{bird_forecasting_forward.1} parent=67 // pred_fallthru
          _
        // Predicated region
        $region101: #{bird_forecasting_forward.1} parent=67 // pred_check
          %p1604 = pneg %p499
        $region102: #{bird_forecasting_forward.1} parent=67 // pred_check_branch
          %1606 = sbr.rel (%p1604) target = $region104
        $region103: #{bird_forecasting_forward.1} parent=67 // pred_region
          %p1607 = scmp.lt.s32.totalorder %s130, 1
          %s1608 = scalar_select %p1607, %s130, 1
          %p1609 = scmp.lt.s32.totalorder %s1608, 1
          %s1610 = scalar_select %p1609, %s1608, 1
          %s1611 = smul.addr %s1610, 64
          %s1612 = smul.addr %s1611, 4
          %s1613 = scalar_lea.vmem %s27, %s1612
          %p1614 = scmp.lt.s32.totalorder %s130, 1
          %s1615 = scalar_select %p1614, %s130, 1
        $region104: #{bird_forecasting_forward.1} parent=67 // pred_fallthru
          _
        // Predicated region
        $region105: #{bird_forecasting_forward.1} parent=67 // pred_check
          %p1616 = pneg %p529
        $region106: #{bird_forecasting_forward.1} parent=67 // pred_check_branch
          %1618 = sbr.rel (%p1616) target = $region108
        $region107: #{bird_forecasting_forward.1} parent=67 // pred_region
          %p1619 = scmp.lt.s32.totalorder %s130, 1
          %s1620 = scalar_select %p1619, %s130, 1
          %p1621 = scmp.lt.s32.totalorder %s1620, 1
          %s1622 = scalar_select %p1621, %s1620, 1
          %s1623 = smul.addr %s1622, 16
          %s1624 = scalar_lea.vmem %s29, %s1623
          %p1625 = scmp.lt.s32.totalorder %s130, 1
          %s1626 = scalar_select %p1625, %s130, 1
        $region108: #{bird_forecasting_forward.1} parent=67 // pred_fallthru
          _
        // Predicated region
        $region109: #{bird_forecasting_forward.1} parent=67 // pred_check
          %p1627 = pneg %p559
        $region110: #{bird_forecasting_forward.1} parent=67 // pred_check_branch
          %1629 = sbr.rel (%p1627) target = $region112
        $region111: #{bird_forecasting_forward.1} parent=67 // pred_region
          %s1630 = sand.u32 %s130, 1
          %s1631 = scalar_lea.sflag [#allocation17], %s1630
          %s1632 = sand.u32 %s549, 1
          %s1633 = smul.addr %s1632, 256
          %s1634 = scalar_lea.vmem [#allocation16], %s1633
          %p1635 = scmp.lt.s32.totalorder %s130, 1
          %s1636 = scalar_select %p1635, %s130, 1
          %1638 = vsyncadd %s1631, 0
          %s1639 = smul.addr %s1636, 64
          %s1640 = smul.addr %s1639, 4
          %s1641 = scalar_lea.hbm %s31, %s1640
          %s1642 = sshll.u32 %s1641, 4
          %s1643 = int_to_ptr.hbm [resolvable:$true] %s1642
          %s1644 = sshll.u32 %s1634, 4
          %s1645 = int_to_ptr.vmem [resolvable:$true] %s1644
          %1650 = dma.hbm_to_vmem [thread:$0]  %s1643, 4096, %s1645, %s1631, 1024, 1024, 64
        $region112: #{bird_forecasting_forward.1} parent=67 // pred_fallthru
          _
        // Predicated region
        $region113: #{bird_forecasting_forward.1} parent=67 // pred_check
          %p1651 = pneg %p589
        $region114: #{bird_forecasting_forward.1} parent=67 // pred_check_branch
          %1653 = sbr.rel (%p1651) target = $region116
        $region115: #{bird_forecasting_forward.1} parent=67 // pred_region
          %s1654 = sand.u32 %s130, 1
          %s1655 = scalar_lea.sflag [#allocation17], %s1654
          %s1656 = sand.u32 %s579, 1
          %s1657 = scalar_lea.vmem [#allocation18], %s1656
          %p1658 = scmp.lt.s32.totalorder %s130, 1
          %s1659 = scalar_select %p1658, %s130, 1
          %1661 = vsyncadd %s1655, 0
          %s1662 = scalar_lea.hbm %s33, %s1659
          %s1664 = sshll.u32 %s1662, 4
          %s1665 = int_to_ptr.hbm [resolvable:$true] %s1664
          %s1666 = sshll.u32 %s1657, 4
          %s1667 = int_to_ptr.vmem [resolvable:$true] %s1666
          %1669 = dma.hbm_to_vmem [thread:$0]  %s1665, 16, %s1667, %s1655
        $region116: #{bird_forecasting_forward.1} parent=67 // pred_fallthru
          _
        // Predicated region
        $region117: #{bird_forecasting_forward.1} parent=67 // pred_check
          %p1670 = pneg %p705
        $region118: #{bird_forecasting_forward.1} parent=67 // pred_check_branch
          %1672 = sbr.rel (%p1670) target = $region120
        $region119: #{bird_forecasting_forward.1} parent=67 // pred_region
          %s1673 = ssub.s32 %s130, 2
          %p1674 = scmp.gt.s32.totalorder %s1673, 0
          %s1675 = scalar_select %p1674, %s1673, 0
          %p1676 = scmp.lt.s32.totalorder %s1675, 5
          %s1677 = scalar_select %p1676, %s1675, 5
          %s1678 = smul.addr %s1677, 4
          %s1679 = smul.addr %s1678, 8
          %s1680 = scalar_lea.vmem %s43, %s1679
          %s1681 = ssub.s32 %s130, 2
          %p1682 = scmp.gt.s32.totalorder %s1681, 0
          %s1683 = scalar_select %p1682, %s1681, 0
        $region120: #{bird_forecasting_forward.1} parent=67 // pred_fallthru
          _
        // Predicated region
        $region121: #{bird_forecasting_forward.1} parent=67 // pred_check
          %p1684 = pneg %p737
        $region122: #{bird_forecasting_forward.1} parent=67 // pred_check_branch
          %1686 = sbr.rel (%p1684) target = $region124
        $region123: #{bird_forecasting_forward.1} parent=67 // pred_region
          %s1687 = ssub.s32 %s130, 2
          %p1688 = scmp.gt.s32.totalorder %s1687, 0
          %s1689 = scalar_select %p1688, %s1687, 0
          %p1690 = scmp.lt.s32.totalorder %s1689, 5
          %s1691 = scalar_select %p1690, %s1689, 5
          %s1692 = scalar_lea.vmem %s45, %s1691
          %s1693 = ssub.s32 %s130, 2
          %p1694 = scmp.gt.s32.totalorder %s1693, 0
          %s1695 = scalar_select %p1694, %s1693, 0
        $region124: #{bird_forecasting_forward.1} parent=67 // pred_fallthru
          _
        // Predicated region
        $region125: #{bird_forecasting_forward.1} parent=67 // pred_check
          %p1696 = pneg %p769
        $region126: #{bird_forecasting_forward.1} parent=67 // pred_check_branch
          %1698 = sbr.rel (%p1696) target = $region128
        $region127: #{bird_forecasting_forward.1} parent=67 // pred_region
          %s1699 = sand.u32 %s130, 1
          %s1700 = scalar_lea.sflag [#allocation23], %s1699
          %s1701 = sand.u32 %s759, 1
          %s1702 = smul.addr %s1701, 32
          %s1703 = scalar_lea.vmem [#allocation22], %s1702
          %s1704 = ssub.s32 %s130, 2
          %p1705 = scmp.gt.s32.totalorder %s1704, 0
          %s1706 = scalar_select %p1705, %s1704, 0
          %1708 = vsyncadd %s1700, 0
          %s1709 = smul.addr %s1706, 4
          %s1710 = smul.addr %s1709, 8
          %s1711 = scalar_lea.hbm %s47, %s1710
          %s1712 = sshll.u32 %s1711, 4
          %s1713 = int_to_ptr.hbm [resolvable:$true] %s1712
          %s1714 = sshll.u32 %s1703, 4
          %s1715 = int_to_ptr.vmem [resolvable:$true] %s1714
          %1720 = dma.hbm_to_vmem [thread:$0]  %s1713, 512, %s1715, %s1700, 128, 128, 8
        $region128: #{bird_forecasting_forward.1} parent=67 // pred_fallthru
          _
        // Predicated region
        $region129: #{bird_forecasting_forward.1} parent=67 // pred_check
          %p1721 = pneg %p801
        $region130: #{bird_forecasting_forward.1} parent=67 // pred_check_branch
          %1723 = sbr.rel (%p1721) target = $region132
        $region131: #{bird_forecasting_forward.1} parent=67 // pred_region
          %s1724 = ssub.s32 %s130, 2
          %p1725 = scmp.gt.s32.totalorder %s1724, 0
          %s1726 = scalar_select %p1725, %s1724, 0
          %p1727 = scmp.lt.s32.totalorder %s1726, 5
          %s1728 = scalar_select %p1727, %s1726, 5
          %s1729 = scalar_lea.vmem %s49, %s1728
          %s1730 = ssub.s32 %s130, 2
          %p1731 = scmp.gt.s32.totalorder %s1730, 0
          %s1732 = scalar_select %p1731, %s1730, 0
        $region132: #{bird_forecasting_forward.1} parent=67 // pred_fallthru
          _
        // Predicated region
        $region133: #{bird_forecasting_forward.1} parent=67 // pred_check
          %p1733 = pneg %p833
        $region134: #{bird_forecasting_forward.1} parent=67 // pred_check_branch
          %1735 = sbr.rel (%p1733) target = $region136
        $region135: #{bird_forecasting_forward.1} parent=67 // pred_region
          %s1736 = sand.u32 %s130, 1
          %s1737 = scalar_lea.sflag [#allocation23], %s1736
          %s1738 = sand.u32 %s823, 1
          %s1739 = smul.addr %s1738, 32
          %s1740 = scalar_lea.vmem [#allocation24], %s1739
          %s1741 = ssub.s32 %s130, 2
          %p1742 = scmp.gt.s32.totalorder %s1741, 0
          %s1743 = scalar_select %p1742, %s1741, 0
          %1745 = vsyncadd %s1737, 0
          %s1746 = smul.addr %s1743, 4
          %s1747 = smul.addr %s1746, 8
          %s1748 = scalar_lea.hbm %s51, %s1747
          %s1749 = sshll.u32 %s1748, 4
          %s1750 = int_to_ptr.hbm [resolvable:$true] %s1749
          %s1751 = sshll.u32 %s1740, 4
          %s1752 = int_to_ptr.vmem [resolvable:$true] %s1751
          %1757 = dma.hbm_to_vmem [thread:$0]  %s1750, 512, %s1752, %s1737, 128, 128, 8
        $region136: #{bird_forecasting_forward.1} parent=67 // pred_fallthru
          _
        // Predicated region
        $region137: #{bird_forecasting_forward.1} parent=67 // pred_check
          %p1758 = pneg %p865
        $region138: #{bird_forecasting_forward.1} parent=67 // pred_check_branch
          %1760 = sbr.rel (%p1758) target = $region140
        $region139: #{bird_forecasting_forward.1} parent=67 // pred_region
          %s1761 = ssub.s32 %s130, 2
          %p1762 = scmp.gt.s32.totalorder %s1761, 0
          %s1763 = scalar_select %p1762, %s1761, 0
          %p1764 = scmp.lt.s32.totalorder %s1763, 5
          %s1765 = scalar_select %p1764, %s1763, 5
          %s1766 = scalar_lea.vmem %s53, %s1765
          %s1767 = ssub.s32 %s130, 2
          %p1768 = scmp.gt.s32.totalorder %s1767, 0
          %s1769 = scalar_select %p1768, %s1767, 0
        $region140: #{bird_forecasting_forward.1} parent=67 // pred_fallthru
          _
        // Predicated region
        $region141: #{bird_forecasting_forward.1} parent=67 // pred_check
          %p1770 = pneg %p897
        $region142: #{bird_forecasting_forward.1} parent=67 // pred_check_branch
          %1772 = sbr.rel (%p1770) target = $region144
        $region143: #{bird_forecasting_forward.1} parent=67 // pred_region
          %s1773 = sand.u32 %s130, 1
          %s1774 = scalar_lea.sflag [#allocation26], %s1773
          %s1775 = sand.u32 %s887, 1
          %s1776 = smul.addr %s1775, 32
          %s1777 = scalar_lea.vmem [#allocation25], %s1776
          %s1778 = ssub.s32 %s130, 2
          %p1779 = scmp.gt.s32.totalorder %s1778, 0
          %s1780 = scalar_select %p1779, %s1778, 0
          %1782 = vsyncadd %s1774, 0
          %s1783 = smul.addr %s1780, 4
          %s1784 = smul.addr %s1783, 8
          %s1785 = scalar_lea.hbm %s55, %s1784
          %s1786 = sshll.u32 %s1785, 4
          %s1787 = int_to_ptr.hbm [resolvable:$true] %s1786
          %s1788 = sshll.u32 %s1777, 4
          %s1789 = int_to_ptr.vmem [resolvable:$true] %s1788
          %1794 = dma.hbm_to_vmem [thread:$0]  %s1787, 512, %s1789, %s1774, 128, 128, 8
        $region144: #{bird_forecasting_forward.1} parent=67 // pred_fallthru
          _
        // Predicated region
        $region145: #{bird_forecasting_forward.1} parent=67 // pred_check
          %p1795 = pneg %p929
        $region146: #{bird_forecasting_forward.1} parent=67 // pred_check_branch
          %1797 = sbr.rel (%p1795) target = $region148
        $region147: #{bird_forecasting_forward.1} parent=67 // pred_region
          %s1798 = ssub.s32 %s130, 2
          %p1799 = scmp.gt.s32.totalorder %s1798, 0
          %s1800 = scalar_select %p1799, %s1798, 0
          %p1801 = scmp.lt.s32.totalorder %s1800, 5
          %s1802 = scalar_select %p1801, %s1800, 5
          %s1803 = scalar_lea.vmem %s57, %s1802
          %s1804 = ssub.s32 %s130, 2
          %p1805 = scmp.gt.s32.totalorder %s1804, 0
          %s1806 = scalar_select %p1805, %s1804, 0
        $region148: #{bird_forecasting_forward.1} parent=67 // pred_fallthru
          _
        // Predicated region
        $region149: #{bird_forecasting_forward.1} parent=67 // pred_check
          %p1807 = pneg %p961
        $region150: #{bird_forecasting_forward.1} parent=67 // pred_check_branch
          %1809 = sbr.rel (%p1807) target = $region152
        $region151: #{bird_forecasting_forward.1} parent=67 // pred_region
          %s1810 = sand.u32 %s130, 1
          %s1811 = scalar_lea.sflag [#allocation26], %s1810
          %s1812 = sand.u32 %s951, 1
          %s1813 = scalar_lea.vmem [#allocation27], %s1812
          %s1814 = ssub.s32 %s130, 2
          %p1815 = scmp.gt.s32.totalorder %s1814, 0
          %s1816 = scalar_select %p1815, %s1814, 0
          %1818 = vsyncadd %s1811, 0
          %s1819 = scalar_lea.hbm %s59, %s1816
          %s1821 = sshll.u32 %s1819, 4
          %s1822 = int_to_ptr.hbm [resolvable:$true] %s1821
          %s1823 = sshll.u32 %s1813, 4
          %s1824 = int_to_ptr.vmem [resolvable:$true] %s1823
          %1826 = dma.hbm_to_vmem [thread:$0]  %s1822, 16, %s1824, %s1811
        $region152: #{bird_forecasting_forward.1} parent=67 // pred_fallthru
          _
        // Predicated region
        $region153: #{bird_forecasting_forward.1} parent=67 // pred_check
          %p1827 = pneg %p993
        $region154: #{bird_forecasting_forward.1} parent=67 // pred_check_branch
          %1829 = sbr.rel (%p1827) target = $region156
        $region155: #{bird_forecasting_forward.1} parent=67 // pred_region
          %s1830 = sand.u32 %s130, 1
          %s1831 = scalar_lea.sflag [#allocation29], %s1830
          %s1832 = sand.u32 %s983, 1
          %s1833 = scalar_lea.vmem [#allocation28], %s1832
          %s1834 = ssub.s32 %s130, 2
          %p1835 = scmp.gt.s32.totalorder %s1834, 0
          %s1836 = scalar_select %p1835, %s1834, 0
          %1838 = vsyncadd %s1831, 0
          %s1839 = scalar_lea.hbm %s61, %s1836
          %s1841 = sshll.u32 %s1839, 4
          %s1842 = int_to_ptr.hbm [resolvable:$true] %s1841
          %s1843 = sshll.u32 %s1833, 4
          %s1844 = int_to_ptr.vmem [resolvable:$true] %s1843
          %1846 = dma.hbm_to_vmem [thread:$0]  %s1842, 16, %s1844, %s1831
        $region156: #{bird_forecasting_forward.1} parent=67 // pred_fallthru
          _
        // Predicated region
        $region157: #{bird_forecasting_forward.1} parent=67 // pred_check
          %p1847 = pneg %p1025
        $region158: #{bird_forecasting_forward.1} parent=67 // pred_check_branch
          %1849 = sbr.rel (%p1847) target = $region160
        $region159: #{bird_forecasting_forward.1} parent=67 // pred_region
          %s1850 = sand.u32 %s130, 1
          %s1851 = scalar_lea.sflag [#allocation29], %s1850
          %s1852 = sand.u32 %s1015, 1
          %s1853 = scalar_lea.vmem [#allocation30], %s1852
          %s1854 = ssub.s32 %s130, 2
          %p1855 = scmp.gt.s32.totalorder %s1854, 0
          %s1856 = scalar_select %p1855, %s1854, 0
          %1858 = vsyncadd %s1851, 0
          %s1859 = scalar_lea.hbm %s63, %s1856
          %s1861 = sshll.u32 %s1859, 4
          %s1862 = int_to_ptr.hbm [resolvable:$true] %s1861
          %s1863 = sshll.u32 %s1853, 4
          %s1864 = int_to_ptr.vmem [resolvable:$true] %s1863
          %1866 = dma.hbm_to_vmem [thread:$0]  %s1862, 16, %s1864, %s1851
        $region160: #{bird_forecasting_forward.1} parent=67 // pred_fallthru
          _
        // Predicated region
        $region161: #{bird_forecasting_forward.1} parent=67 // pred_check
          %p1867 = pneg %p1057
        $region162: #{bird_forecasting_forward.1} parent=67 // pred_check_branch
          %1869 = sbr.rel (%p1867) target = $region164
        $region163: #{bird_forecasting_forward.1} parent=67 // pred_region
          %s1870 = sand.u32 %s130, 1
          %s1871 = scalar_lea.sflag [#allocation32], %s1870
          %s1872 = sand.u32 %s1047, 1
          %s1873 = scalar_lea.vmem [#allocation31], %s1872
          %s1874 = ssub.s32 %s130, 2
          %p1875 = scmp.gt.s32.totalorder %s1874, 0
          %s1876 = scalar_select %p1875, %s1874, 0
          %1878 = vsyncadd %s1871, 0
          %s1879 = scalar_lea.hbm %s65, %s1876
          %s1881 = sshll.u32 %s1879, 4
          %s1882 = int_to_ptr.hbm [resolvable:$true] %s1881
          %s1883 = sshll.u32 %s1873, 4
          %s1884 = int_to_ptr.vmem [resolvable:$true] %s1883
          %1886 = dma.hbm_to_vmem [thread:$0]  %s1882, 16, %s1884, %s1871
        $region164: #{bird_forecasting_forward.1} parent=67 // pred_fallthru
          _
        // Predicated region
        $region165: #{bird_forecasting_forward.1} parent=67 // pred_check
          %p1887 = pneg %p1089
        $region166: #{bird_forecasting_forward.1} parent=67 // pred_check_branch
          %1889 = sbr.rel (%p1887) target = $region168
        $region167: #{bird_forecasting_forward.1} parent=67 // pred_region
          %s1890 = sand.u32 %s130, 1
          %s1891 = scalar_lea.sflag [#allocation32], %s1890
          %s1892 = sand.u32 %s1079, 1
          %s1893 = scalar_lea.vmem [#allocation33], %s1892
          %s1894 = ssub.s32 %s130, 2
          %p1895 = scmp.gt.s32.totalorder %s1894, 0
          %s1896 = scalar_select %p1895, %s1894, 0
          %1898 = vsyncadd %s1891, 0
          %s1899 = scalar_lea.hbm %s67, %s1896
          %s1901 = sshll.u32 %s1899, 4
          %s1902 = int_to_ptr.hbm [resolvable:$true] %s1901
          %s1903 = sshll.u32 %s1893, 4
          %s1904 = int_to_ptr.vmem [resolvable:$true] %s1903
          %1906 = dma.hbm_to_vmem [thread:$0]  %s1902, 16, %s1904, %s1891
        $region168: #{bird_forecasting_forward.1} parent=67 // pred_fallthru
          _
        // Predicated region
        $region169: #{bird_forecasting_forward.1} parent=67 // pred_check
          %p1907 = pneg %p1121
        $region170: #{bird_forecasting_forward.1} parent=67 // pred_check_branch
          %1909 = sbr.rel (%p1907) target = $region172
        $region171: #{bird_forecasting_forward.1} parent=67 // pred_region
          %s1910 = sand.u32 %s130, 1
          %s1911 = scalar_lea.sflag [#allocation35], %s1910
          %s1912 = sand.u32 %s1111, 1
          %s1913 = scalar_lea.vmem [#allocation34], %s1912
          %s1914 = ssub.s32 %s130, 2
          %p1915 = scmp.gt.s32.totalorder %s1914, 0
          %s1916 = scalar_select %p1915, %s1914, 0
          %1918 = vsyncadd %s1911, 0
          %s1919 = scalar_lea.hbm %s69, %s1916
          %s1921 = sshll.u32 %s1919, 4
          %s1922 = int_to_ptr.hbm [resolvable:$true] %s1921
          %s1923 = sshll.u32 %s1913, 4
          %s1924 = int_to_ptr.vmem [resolvable:$true] %s1923
          %1926 = dma.hbm_to_vmem [thread:$0]  %s1922, 16, %s1924, %s1911
        $region172: #{bird_forecasting_forward.1} parent=67 // pred_fallthru
          _
        // Predicated region
        $region173: #{bird_forecasting_forward.1} parent=67 // pred_check
          %p1927 = pneg %p1153
        $region174: #{bird_forecasting_forward.1} parent=67 // pred_check_branch
          %1929 = sbr.rel (%p1927) target = $region176
        $region175: #{bird_forecasting_forward.1} parent=67 // pred_region
          %s1930 = sand.u32 %s130, 1
          %s1931 = scalar_lea.sflag [#allocation35], %s1930
          %s1932 = sand.u32 %s1143, 1
          %s1933 = smul.addr %s1932, 256
          %s1934 = scalar_lea.vmem [#allocation36], %s1933
          %s1935 = ssub.s32 %s130, 2
          %p1936 = scmp.gt.s32.totalorder %s1935, 0
          %s1937 = scalar_select %p1936, %s1935, 0
          %1939 = vsyncadd %s1931, 0
          %s1940 = smul.addr %s1937, 64
          %s1941 = smul.addr %s1940, 4
          %s1942 = scalar_lea.hbm %s71, %s1941
          %s1943 = sshll.u32 %s1942, 4
          %s1944 = int_to_ptr.hbm [resolvable:$true] %s1943
          %s1945 = sshll.u32 %s1934, 4
          %s1946 = int_to_ptr.vmem [resolvable:$true] %s1945
          %1951 = dma.hbm_to_vmem [thread:$0]  %s1944, 4096, %s1946, %s1931, 1024, 1024, 64
        $region176: #{bird_forecasting_forward.1} parent=67 // pred_fallthru
          _
        // Predicated region
        $region177: #{bird_forecasting_forward.1} parent=67 // pred_check
          %p1952 = pneg %p1185
        $region178: #{bird_forecasting_forward.1} parent=67 // pred_check_branch
          %1954 = sbr.rel (%p1952) target = $region180
        $region179: #{bird_forecasting_forward.1} parent=67 // pred_region
          %s1955 = ssub.s32 %s130, 2
          %p1956 = scmp.gt.s32.totalorder %s1955, 0
          %s1957 = scalar_select %p1956, %s1955, 0
          %p1958 = scmp.lt.s32.totalorder %s1957, 5
          %s1959 = scalar_select %p1958, %s1957, 5
          %s1960 = smul.addr %s1959, 16
          %s1961 = scalar_lea.vmem %s73, %s1960
          %s1962 = ssub.s32 %s130, 2
          %p1963 = scmp.gt.s32.totalorder %s1962, 0
          %s1964 = scalar_select %p1963, %s1962, 0
        $region180: #{bird_forecasting_forward.1} parent=67 // pred_fallthru
          _
        // Predicated region
        $region181: #{bird_forecasting_forward.1} parent=67 // pred_check
          %p1965 = pneg %p1217
        $region182: #{bird_forecasting_forward.1} parent=67 // pred_check_branch
          %1967 = sbr.rel (%p1965) target = $region184
        $region183: #{bird_forecasting_forward.1} parent=67 // pred_region
          %s1968 = sand.u32 %s130, 1
          %s1969 = scalar_lea.sflag [#allocation38], %s1968
          %s1970 = sand.u32 %s1207, 1
          %s1971 = smul.addr %s1970, 256
          %s1972 = scalar_lea.vmem [#allocation37], %s1971
          %s1973 = ssub.s32 %s130, 2
          %p1974 = scmp.gt.s32.totalorder %s1973, 0
          %s1975 = scalar_select %p1974, %s1973, 0
          %1977 = vsyncadd %s1969, 0
          %s1978 = smul.addr %s1975, 64
          %s1979 = smul.addr %s1978, 4
          %s1980 = scalar_lea.hbm %s75, %s1979
          %s1981 = sshll.u32 %s1980, 4
          %s1982 = int_to_ptr.hbm [resolvable:$true] %s1981
          %s1983 = sshll.u32 %s1972, 4
          %s1984 = int_to_ptr.vmem [resolvable:$true] %s1983
          %1989 = dma.hbm_to_vmem [thread:$0]  %s1982, 4096, %s1984, %s1969, 1024, 1024, 64
        $region184: #{bird_forecasting_forward.1} parent=67 // pred_fallthru
          _
        // Predicated region
        $region185: #{bird_forecasting_forward.1} parent=67 // pred_check
          %p1990 = pneg %p1249
        $region186: #{bird_forecasting_forward.1} parent=67 // pred_check_branch
          %1992 = sbr.rel (%p1990) target = $region188
        $region187: #{bird_forecasting_forward.1} parent=67 // pred_region
          %s1993 = sand.u32 %s130, 1
          %s1994 = scalar_lea.sflag [#allocation38], %s1993
          %s1995 = sand.u32 %s1239, 1
          %s1996 = scalar_lea.vmem [#allocation39], %s1995
          %s1997 = ssub.s32 %s130, 2
          %p1998 = scmp.gt.s32.totalorder %s1997, 0
          %s1999 = scalar_select %p1998, %s1997, 0
          %2001 = vsyncadd %s1994, 0
          %s2002 = scalar_lea.hbm %s77, %s1999
          %s2004 = sshll.u32 %s2002, 4
          %s2005 = int_to_ptr.hbm [resolvable:$true] %s2004
          %s2006 = sshll.u32 %s1996, 4
          %s2007 = int_to_ptr.vmem [resolvable:$true] %s2006
          %2009 = dma.hbm_to_vmem [thread:$0]  %s2005, 16, %s2007, %s1994
        $region188: #{bird_forecasting_forward.1} parent=67 // pred_fallthru
          _
      $region68: #{bird_forecasting_forward.1} parent=5 // pred_fallthru
        _
      %p2010 = scmp.le.s32.totalorder 1, %s130
      %p2011 = scmp.lt.s32.totalorder %s130, 9
      %p2012 = pnand %p2010, %p2011
      %p2013 = pneg %p2012
      // Predicated region
      $region189: #{bird_forecasting_forward.1} parent=5 // pred_check
        _
      $region190: #{bird_forecasting_forward.1} parent=5 // pred_check_branch
        %2015 = sbr.rel (%p2012) target = $region192
      $region191: #{bird_forecasting_forward.1} parent=5 // pred_region
        %s2016 = ssub.s32 %s130, 1
        %s2017 = sand.u32 %s282, 1
        %s2018 = scalar_lea.sflag [#allocation6], %s2017
        %s2019 = sand.u32 %s282, 1
        %s2020 = scalar_lea.vmem [#allocation5], %s2019
        // Predicated region
        $region193: #{bird_forecasting_forward.1} parent=191 // pred_check
          %p2021 = pneg %p295
        $region194: #{bird_forecasting_forward.1} parent=191 // pred_check_branch
          %2023 = sbr.rel (%p2021) target = $region196
        $region195: #{bird_forecasting_forward.1} parent=191 // pred_region
          %2025 = dma.done %s2018, 16
        $region196: #{bird_forecasting_forward.1} parent=191 // pred_fallthru
          _
        %s2026 = sand.u32 %s135, 1
        %s2027 = scalar_lea.sflag [#allocation8], %s2026
        %s2028 = sand.u32 %s312, 1
        %s2029 = smul.addr %s2028, 32
        %s2030 = scalar_lea.vmem [#allocation7], %s2029
        // Predicated region
        $region197: #{bird_forecasting_forward.1} parent=191 // pred_check
          %p2031 = pneg %p325
        $region198: #{bird_forecasting_forward.1} parent=191 // pred_check_branch
          %2033 = sbr.rel (%p2031) target = $region200
        $region199: #{bird_forecasting_forward.1} parent=191 // pred_region
          %2035 = dma.done %s2027, 512
        $region200: #{bird_forecasting_forward.1} parent=191 // pred_fallthru
          _
        %s2036 = sand.u32 %s135, 1
        %s2037 = scalar_lea.sflag [#allocation8], %s2036
        %s2038 = sand.u32 %s342, 1
        %s2039 = scalar_lea.vmem [#allocation9], %s2038
        // Predicated region
        $region201: #{bird_forecasting_forward.1} parent=191 // pred_check
          %p2040 = pneg %p355
        $region202: #{bird_forecasting_forward.1} parent=191 // pred_check_branch
          %2042 = sbr.rel (%p2040) target = $region204
        $region203: #{bird_forecasting_forward.1} parent=191 // pred_region
          %2044 = dma.done %s2037, 16
        $region204: #{bird_forecasting_forward.1} parent=191 // pred_fallthru
          _
        %s2045 = sand.u32 %s135, 1
        %s2046 = scalar_lea.sflag [#allocation11], %s2045
        %s2047 = sand.u32 %s372, 1
        %s2048 = scalar_lea.vmem [#allocation10], %s2047
        // Predicated region
        $region205: #{bird_forecasting_forward.1} parent=191 // pred_check
          %p2049 = pneg %p385
        $region206: #{bird_forecasting_forward.1} parent=191 // pred_check_branch
          %2051 = sbr.rel (%p2049) target = $region208
        $region207: #{bird_forecasting_forward.1} parent=191 // pred_region
          %2053 = dma.done %s2046, 16
        $region208: #{bird_forecasting_forward.1} parent=191 // pred_fallthru
          _
        %s2054 = sand.u32 %s135, 1
        %s2055 = scalar_lea.sflag [#allocation11], %s2054
        %s2056 = sand.u32 %s402, 1
        %s2057 = scalar_lea.vmem [#allocation12], %s2056
        // Predicated region
        $region209: #{bird_forecasting_forward.1} parent=191 // pred_check
          %p2058 = pneg %p415
        $region210: #{bird_forecasting_forward.1} parent=191 // pred_check_branch
          %2060 = sbr.rel (%p2058) target = $region212
        $region211: #{bird_forecasting_forward.1} parent=191 // pred_region
          %2062 = dma.done %s2055, 16
        $region212: #{bird_forecasting_forward.1} parent=191 // pred_fallthru
          _
        %s2063 = sand.u32 %s135, 1
        %s2064 = scalar_lea.sflag [#allocation14], %s2063
        %s2065 = sand.u32 %s432, 1
        %s2066 = scalar_lea.vmem [#allocation13], %s2065
        // Predicated region
        $region213: #{bird_forecasting_forward.1} parent=191 // pred_check
          %p2067 = pneg %p445
        $region214: #{bird_forecasting_forward.1} parent=191 // pred_check_branch
          %2069 = sbr.rel (%p2067) target = $region216
        $region215: #{bird_forecasting_forward.1} parent=191 // pred_region
          %2071 = dma.done %s2064, 16
        $region216: #{bird_forecasting_forward.1} parent=191 // pred_fallthru
          _
        %s2072 = sand.u32 %s135, 1
        %s2073 = scalar_lea.sflag [#allocation14], %s2072
        %s2074 = sand.u32 %s462, 1
        %s2075 = scalar_lea.vmem [#allocation15], %s2074
        // Predicated region
        $region217: #{bird_forecasting_forward.1} parent=191 // pred_check
          %p2076 = pneg %p475
        $region218: #{bird_forecasting_forward.1} parent=191 // pred_check_branch
          %2078 = sbr.rel (%p2076) target = $region220
        $region219: #{bird_forecasting_forward.1} parent=191 // pred_region
          %2080 = dma.done %s2073, 16
        $region220: #{bird_forecasting_forward.1} parent=191 // pred_fallthru
          _
        %s2081 = sand.u32 %s135, 1
        %s2082 = scalar_lea.sflag [#allocation17], %s2081
        %s2083 = sand.u32 %s552, 1
        %s2084 = smul.addr %s2083, 256
        %s2085 = scalar_lea.vmem [#allocation16], %s2084
        // Predicated region
        $region221: #{bird_forecasting_forward.1} parent=191 // pred_check
          %p2086 = pneg %p565
        $region222: #{bird_forecasting_forward.1} parent=191 // pred_check_branch
          %2088 = sbr.rel (%p2086) target = $region224
        $region223: #{bird_forecasting_forward.1} parent=191 // pred_region
          %2090 = dma.done %s2082, 4096
        $region224: #{bird_forecasting_forward.1} parent=191 // pred_fallthru
          _
        %s2091 = sand.u32 %s135, 1
        %s2092 = scalar_lea.sflag [#allocation17], %s2091
        %s2093 = sand.u32 %s582, 1
        %s2094 = scalar_lea.vmem [#allocation18], %s2093
        // Predicated region
        $region225: #{bird_forecasting_forward.1} parent=191 // pred_check
          %p2095 = pneg %p595
        $region226: #{bird_forecasting_forward.1} parent=191 // pred_check_branch
          %2097 = sbr.rel (%p2095) target = $region228
        $region227: #{bird_forecasting_forward.1} parent=191 // pred_region
          %2099 = dma.done %s2092, 16
        $region228: #{bird_forecasting_forward.1} parent=191 // pred_fallthru
          _
        // Predicated region
        $region229: #{bird_forecasting_forward.1} parent=191 // pred_check
          %p2100 = pneg %p616
        $region230: #{bird_forecasting_forward.1} parent=191 // pred_check_branch
          %2102 = sbr.rel (%p2100) target = $region232
        $region231: #{bird_forecasting_forward.1} parent=191 // pred_region
          %2104 = dma.done [#allocation20], 16
        $region232: #{bird_forecasting_forward.1} parent=191 // pred_fallthru
          _
        // Predicated region
        $region233: #{bird_forecasting_forward.1} parent=191 // pred_check
          %p2105 = pneg %p637
        $region234: #{bird_forecasting_forward.1} parent=191 // pred_check_branch
          %2107 = sbr.rel (%p2105) target = $region236
        $region235: #{bird_forecasting_forward.1} parent=191 // pred_region
          %2109 = dma.done [#allocation20], 16
        $region236: #{bird_forecasting_forward.1} parent=191 // pred_fallthru
          _
        %s2110 = sand.u32 %s135, 1
        %s2111 = scalar_lea.sflag [#allocation23], %s2110
        %s2112 = sand.u32 %s762, 1
        %s2113 = smul.addr %s2112, 32
        %s2114 = scalar_lea.vmem [#allocation22], %s2113
        // Predicated region
        $region237: #{bird_forecasting_forward.1} parent=191 // pred_check
          %p2115 = pneg %p775
        $region238: #{bird_forecasting_forward.1} parent=191 // pred_check_branch
          %2117 = sbr.rel (%p2115) target = $region240
        $region239: #{bird_forecasting_forward.1} parent=191 // pred_region
          %2119 = dma.done %s2111, 512
        $region240: #{bird_forecasting_forward.1} parent=191 // pred_fallthru
          _
        %s2120 = sand.u32 %s135, 1
        %s2121 = scalar_lea.sflag [#allocation23], %s2120
        %s2122 = sand.u32 %s826, 1
        %s2123 = smul.addr %s2122, 32
        %s2124 = scalar_lea.vmem [#allocation24], %s2123
        // Predicated region
        $region241: #{bird_forecasting_forward.1} parent=191 // pred_check
          %p2125 = pneg %p839
        $region242: #{bird_forecasting_forward.1} parent=191 // pred_check_branch
          %2127 = sbr.rel (%p2125) target = $region244
        $region243: #{bird_forecasting_forward.1} parent=191 // pred_region
          %2129 = dma.done %s2121, 512
        $region244: #{bird_forecasting_forward.1} parent=191 // pred_fallthru
          _
        %s2130 = sand.u32 %s135, 1
        %s2131 = scalar_lea.sflag [#allocation26], %s2130
        %s2132 = sand.u32 %s890, 1
        %s2133 = smul.addr %s2132, 32
        %s2134 = scalar_lea.vmem [#allocation25], %s2133
        // Predicated region
        $region245: #{bird_forecasting_forward.1} parent=191 // pred_check
          %p2135 = pneg %p903
        $region246: #{bird_forecasting_forward.1} parent=191 // pred_check_branch
          %2137 = sbr.rel (%p2135) target = $region248
        $region247: #{bird_forecasting_forward.1} parent=191 // pred_region
          %2139 = dma.done %s2131, 512
        $region248: #{bird_forecasting_forward.1} parent=191 // pred_fallthru
          _
        %s2140 = sand.u32 %s135, 1
        %s2141 = scalar_lea.sflag [#allocation26], %s2140
        %s2142 = sand.u32 %s954, 1
        %s2143 = scalar_lea.vmem [#allocation27], %s2142
        // Predicated region
        $region249: #{bird_forecasting_forward.1} parent=191 // pred_check
          %p2144 = pneg %p967
        $region250: #{bird_forecasting_forward.1} parent=191 // pred_check_branch
          %2146 = sbr.rel (%p2144) target = $region252
        $region251: #{bird_forecasting_forward.1} parent=191 // pred_region
          %2148 = dma.done %s2141, 16
        $region252: #{bird_forecasting_forward.1} parent=191 // pred_fallthru
          _
        %s2149 = sand.u32 %s135, 1
        %s2150 = scalar_lea.sflag [#allocation29], %s2149
        %s2151 = sand.u32 %s986, 1
        %s2152 = scalar_lea.vmem [#allocation28], %s2151
        // Predicated region
        $region253: #{bird_forecasting_forward.1} parent=191 // pred_check
          %p2153 = pneg %p999
        $region254: #{bird_forecasting_forward.1} parent=191 // pred_check_branch
          %2155 = sbr.rel (%p2153) target = $region256
        $region255: #{bird_forecasting_forward.1} parent=191 // pred_region
          %2157 = dma.done %s2150, 16
        $region256: #{bird_forecasting_forward.1} parent=191 // pred_fallthru
          _
        %s2158 = sand.u32 %s135, 1
        %s2159 = scalar_lea.sflag [#allocation29], %s2158
        %s2160 = sand.u32 %s1018, 1
        %s2161 = scalar_lea.vmem [#allocation30], %s2160
        // Predicated region
        $region257: #{bird_forecasting_forward.1} parent=191 // pred_check
          %p2162 = pneg %p1031
        $region258: #{bird_forecasting_forward.1} parent=191 // pred_check_branch
          %2164 = sbr.rel (%p2162) target = $region260
        $region259: #{bird_forecasting_forward.1} parent=191 // pred_region
          %2166 = dma.done %s2159, 16
        $region260: #{bird_forecasting_forward.1} parent=191 // pred_fallthru
          _
        %s2167 = sand.u32 %s135, 1
        %s2168 = scalar_lea.sflag [#allocation32], %s2167
        %s2169 = sand.u32 %s1050, 1
        %s2170 = scalar_lea.vmem [#allocation31], %s2169
        // Predicated region
        $region261: #{bird_forecasting_forward.1} parent=191 // pred_check
          %p2171 = pneg %p1063
        $region262: #{bird_forecasting_forward.1} parent=191 // pred_check_branch
          %2173 = sbr.rel (%p2171) target = $region264
        $region263: #{bird_forecasting_forward.1} parent=191 // pred_region
          %2175 = dma.done %s2168, 16
        $region264: #{bird_forecasting_forward.1} parent=191 // pred_fallthru
          _
        %s2176 = sand.u32 %s135, 1
        %s2177 = scalar_lea.sflag [#allocation32], %s2176
        %s2178 = sand.u32 %s1082, 1
        %s2179 = scalar_lea.vmem [#allocation33], %s2178
        // Predicated region
        $region265: #{bird_forecasting_forward.1} parent=191 // pred_check
          %p2180 = pneg %p1095
        $region266: #{bird_forecasting_forward.1} parent=191 // pred_check_branch
          %2182 = sbr.rel (%p2180) target = $region268
        $region267: #{bird_forecasting_forward.1} parent=191 // pred_region
          %2184 = dma.done %s2177, 16
        $region268: #{bird_forecasting_forward.1} parent=191 // pred_fallthru
          _
        %s2185 = sand.u32 %s135, 1
        %s2186 = scalar_lea.sflag [#allocation35], %s2185
        %s2187 = sand.u32 %s1114, 1
        %s2188 = scalar_lea.vmem [#allocation34], %s2187
        // Predicated region
        $region269: #{bird_forecasting_forward.1} parent=191 // pred_check
          %p2189 = pneg %p1127
        $region270: #{bird_forecasting_forward.1} parent=191 // pred_check_branch
          %2191 = sbr.rel (%p2189) target = $region272
        $region271: #{bird_forecasting_forward.1} parent=191 // pred_region
          %2193 = dma.done %s2186, 16
        $region272: #{bird_forecasting_forward.1} parent=191 // pred_fallthru
          _
        %s2194 = sand.u32 %s135, 1
        %s2195 = scalar_lea.sflag [#allocation35], %s2194
        %s2196 = sand.u32 %s1146, 1
        %s2197 = smul.addr %s2196, 256
        %s2198 = scalar_lea.vmem [#allocation36], %s2197
        // Predicated region
        $region273: #{bird_forecasting_forward.1} parent=191 // pred_check
          %p2199 = pneg %p1159
        $region274: #{bird_forecasting_forward.1} parent=191 // pred_check_branch
          %2201 = sbr.rel (%p2199) target = $region276
        $region275: #{bird_forecasting_forward.1} parent=191 // pred_region
          %2203 = dma.done %s2195, 4096
        $region276: #{bird_forecasting_forward.1} parent=191 // pred_fallthru
          _
        %s2204 = sand.u32 %s135, 1
        %s2205 = scalar_lea.sflag [#allocation38], %s2204
        %s2206 = sand.u32 %s1210, 1
        %s2207 = smul.addr %s2206, 256
        %s2208 = scalar_lea.vmem [#allocation37], %s2207
        // Predicated region
        $region277: #{bird_forecasting_forward.1} parent=191 // pred_check
          %p2209 = pneg %p1223
        $region278: #{bird_forecasting_forward.1} parent=191 // pred_check_branch
          %2211 = sbr.rel (%p2209) target = $region280
        $region279: #{bird_forecasting_forward.1} parent=191 // pred_region
          %2213 = dma.done %s2205, 4096
        $region280: #{bird_forecasting_forward.1} parent=191 // pred_fallthru
          _
        %s2214 = sand.u32 %s135, 1
        %s2215 = scalar_lea.sflag [#allocation38], %s2214
        %s2216 = sand.u32 %s1242, 1
        %s2217 = scalar_lea.vmem [#allocation39], %s2216
        // Predicated region
        $region281: #{bird_forecasting_forward.1} parent=191 // pred_check
          %p2218 = pneg %p1255
        $region282: #{bird_forecasting_forward.1} parent=191 // pred_check_branch
          %2220 = sbr.rel (%p2218) target = $region284
        $region283: #{bird_forecasting_forward.1} parent=191 // pred_region
          %2222 = dma.done %s2215, 16
        $region284: #{bird_forecasting_forward.1} parent=191 // pred_fallthru
          _
        // Predicated region
        $region285: #{bird_forecasting_forward.1} parent=191 // pred_check
          %p2223 = pneg %p1276
        $region286: #{bird_forecasting_forward.1} parent=191 // pred_check_branch
          %2225 = sbr.rel (%p2223) target = $region288
        $region287: #{bird_forecasting_forward.1} parent=191 // pred_region
          %2227 = dma.done [#allocation41], 16
        $region288: #{bird_forecasting_forward.1} parent=191 // pred_fallthru
          _
        // Predicated region
        $region289: #{bird_forecasting_forward.1} parent=191 // pred_check
          %p2228 = pneg %p1297
        $region290: #{bird_forecasting_forward.1} parent=191 // pred_check_branch
          %2230 = sbr.rel (%p2228) target = $region292
        $region291: #{bird_forecasting_forward.1} parent=191 // pred_region
          %2232 = dma.done [#allocation41], 16
        $region292: #{bird_forecasting_forward.1} parent=191 // pred_fallthru
          _
        %p2233 = pneg %p151
        %p2234 = pneg %p148
        %p2235 = pneg %p172
        %p2236 = pneg %p169
        %p2237 = pneg %p193
        %p2238 = pneg %p190
        %p2239 = pneg %p214
        %p2240 = pneg %p211
        %p2241 = pneg %p235
        %p2242 = pneg %p232
        %p2243 = scmp.lt.s32.totalorder %s135, 1
        %s2244 = scalar_select %p2243, %s135, 1
        %p2245 = scmp.lt.s32.totalorder %s2244, 1
        %s2246 = scalar_select %p2245, %s2244, 1
        %s2247 = smul.addr %s2246, 4
        %s2248 = smul.addr %s2247, 8
        %s2249 = scalar_lea.vmem %s11, %s2248
        %p2250 = pneg %p265
        %p2251 = pneg %p262
        %s2252 = sand.u32 %s282, 1
        %s2253 = scalar_lea.sflag [#allocation6], %s2252
        %s2254 = sand.u32 %s282, 1
        %s2255 = scalar_lea.vmem [#allocation5], %s2254
        %p2256 = pneg %p295
        %p2257 = pneg %p292
        %s2258 = sand.u32 %s135, 1
        %s2259 = scalar_lea.sflag [#allocation8], %s2258
        %s2260 = sand.u32 %s312, 1
        %s2261 = smul.addr %s2260, 32
        %s2262 = scalar_lea.vmem [#allocation7], %s2261
        %p2263 = pneg %p325
        %p2264 = pneg %p322
        %s2265 = sand.u32 %s135, 1
        %s2266 = scalar_lea.sflag [#allocation8], %s2265
        %s2267 = sand.u32 %s342, 1
        %s2268 = scalar_lea.vmem [#allocation9], %s2267
        %p2269 = pneg %p355
        %p2270 = pneg %p352
        %s2271 = sand.u32 %s135, 1
        %s2272 = scalar_lea.sflag [#allocation11], %s2271
        %s2273 = sand.u32 %s372, 1
        %s2274 = scalar_lea.vmem [#allocation10], %s2273
        %p2275 = pneg %p385
        %p2276 = pneg %p382
        %s2277 = sand.u32 %s135, 1
        %s2278 = scalar_lea.sflag [#allocation11], %s2277
        %s2279 = sand.u32 %s402, 1
        %s2280 = scalar_lea.vmem [#allocation12], %s2279
        %p2281 = pneg %p415
        %p2282 = pneg %p412
        %s2283 = sand.u32 %s135, 1
        %s2284 = scalar_lea.sflag [#allocation14], %s2283
        %s2285 = sand.u32 %s432, 1
        %s2286 = scalar_lea.vmem [#allocation13], %s2285
        %p2287 = pneg %p445
        %p2288 = pneg %p442
        %s2289 = sand.u32 %s135, 1
        %s2290 = scalar_lea.sflag [#allocation14], %s2289
        %s2291 = sand.u32 %s462, 1
        %s2292 = scalar_lea.vmem [#allocation15], %s2291
        %p2293 = pneg %p475
        %p2294 = pneg %p472
        %p2295 = scmp.lt.s32.totalorder %s135, 1
        %s2296 = scalar_select %p2295, %s135, 1
        %p2297 = scmp.lt.s32.totalorder %s2296, 1
        %s2298 = scalar_select %p2297, %s2296, 1
        %s2299 = smul.addr %s2298, 64
        %s2300 = smul.addr %s2299, 4
        %s2301 = scalar_lea.vmem %s27, %s2300
        %p2302 = pneg %p505
        %p2303 = pneg %p502
        %p2304 = scmp.lt.s32.totalorder %s135, 1
        %s2305 = scalar_select %p2304, %s135, 1
        %p2306 = scmp.lt.s32.totalorder %s2305, 1
        %s2307 = scalar_select %p2306, %s2305, 1
        %s2308 = smul.addr %s2307, 16
        %s2309 = scalar_lea.vmem %s29, %s2308
        %p2310 = pneg %p535
        %p2311 = pneg %p532
        %s2312 = sand.u32 %s135, 1
        %s2313 = scalar_lea.sflag [#allocation17], %s2312
        %s2314 = sand.u32 %s552, 1
        %s2315 = smul.addr %s2314, 256
        %s2316 = scalar_lea.vmem [#allocation16], %s2315
        %p2317 = pneg %p565
        %p2318 = pneg %p562
        %s2319 = sand.u32 %s135, 1
        %s2320 = scalar_lea.sflag [#allocation17], %s2319
        %s2321 = sand.u32 %s582, 1
        %s2322 = scalar_lea.vmem [#allocation18], %s2321
        %p2323 = pneg %p595
        %p2324 = pneg %p592
        %p2325 = pneg %p616
        %p2326 = pneg %p613
        %p2327 = pneg %p637
        %p2328 = pneg %p634
        %p2329 = pneg %p658
        %p2330 = pneg %p655
        %p2331 = pneg %p679
        %p2332 = pneg %p676
        %s2333 = ssub.s32 %s135, 2
        %p2334 = scmp.gt.s32.totalorder %s2333, 0
        %s2335 = scalar_select %p2334, %s2333, 0
        %p2336 = scmp.lt.s32.totalorder %s2335, 5
        %s2337 = scalar_select %p2336, %s2335, 5
        %s2338 = smul.addr %s2337, 4
        %s2339 = smul.addr %s2338, 8
        %s2340 = scalar_lea.vmem %s43, %s2339
        %p2341 = pneg %p711
        %p2342 = pneg %p708
        %s2343 = ssub.s32 %s135, 2
        %p2344 = scmp.gt.s32.totalorder %s2343, 0
        %s2345 = scalar_select %p2344, %s2343, 0
        %p2346 = scmp.lt.s32.totalorder %s2345, 5
        %s2347 = scalar_select %p2346, %s2345, 5
        %s2348 = scalar_lea.vmem %s45, %s2347
        %p2349 = pneg %p743
        %p2350 = pneg %p740
        %s2351 = sand.u32 %s135, 1
        %s2352 = scalar_lea.sflag [#allocation23], %s2351
        %s2353 = sand.u32 %s762, 1
        %s2354 = smul.addr %s2353, 32
        %s2355 = scalar_lea.vmem [#allocation22], %s2354
        %p2356 = pneg %p775
        %p2357 = pneg %p772
        %s2358 = ssub.s32 %s135, 2
        %p2359 = scmp.gt.s32.totalorder %s2358, 0
        %s2360 = scalar_select %p2359, %s2358, 0
        %p2361 = scmp.lt.s32.totalorder %s2360, 5
        %s2362 = scalar_select %p2361, %s2360, 5
        %s2363 = scalar_lea.vmem %s49, %s2362
        %p2364 = pneg %p807
        %p2365 = pneg %p804
        %s2366 = sand.u32 %s135, 1
        %s2367 = scalar_lea.sflag [#allocation23], %s2366
        %s2368 = sand.u32 %s826, 1
        %s2369 = smul.addr %s2368, 32
        %s2370 = scalar_lea.vmem [#allocation24], %s2369
        %p2371 = pneg %p839
        %p2372 = pneg %p836
        %s2373 = ssub.s32 %s135, 2
        %p2374 = scmp.gt.s32.totalorder %s2373, 0
        %s2375 = scalar_select %p2374, %s2373, 0
        %p2376 = scmp.lt.s32.totalorder %s2375, 5
        %s2377 = scalar_select %p2376, %s2375, 5
        %s2378 = scalar_lea.vmem %s53, %s2377
        %p2379 = pneg %p871
        %p2380 = pneg %p868
        %s2381 = sand.u32 %s135, 1
        %s2382 = scalar_lea.sflag [#allocation26], %s2381
        %s2383 = sand.u32 %s890, 1
        %s2384 = smul.addr %s2383, 32
        %s2385 = scalar_lea.vmem [#allocation25], %s2384
        %p2386 = pneg %p903
        %p2387 = pneg %p900
        %s2388 = ssub.s32 %s135, 2
        %p2389 = scmp.gt.s32.totalorder %s2388, 0
        %s2390 = scalar_select %p2389, %s2388, 0
        %p2391 = scmp.lt.s32.totalorder %s2390, 5
        %s2392 = scalar_select %p2391, %s2390, 5
        %s2393 = scalar_lea.vmem %s57, %s2392
        %p2394 = pneg %p935
        %p2395 = pneg %p932
        %s2396 = sand.u32 %s135, 1
        %s2397 = scalar_lea.sflag [#allocation26], %s2396
        %s2398 = sand.u32 %s954, 1
        %s2399 = scalar_lea.vmem [#allocation27], %s2398
        %p2400 = pneg %p967
        %p2401 = pneg %p964
        %s2402 = sand.u32 %s135, 1
        %s2403 = scalar_lea.sflag [#allocation29], %s2402
        %s2404 = sand.u32 %s986, 1
        %s2405 = scalar_lea.vmem [#allocation28], %s2404
        %p2406 = pneg %p999
        %p2407 = pneg %p996
        %s2408 = sand.u32 %s135, 1
        %s2409 = scalar_lea.sflag [#allocation29], %s2408
        %s2410 = sand.u32 %s1018, 1
        %s2411 = scalar_lea.vmem [#allocation30], %s2410
        %p2412 = pneg %p1031
        %p2413 = pneg %p1028
        %s2414 = sand.u32 %s135, 1
        %s2415 = scalar_lea.sflag [#allocation32], %s2414
        %s2416 = sand.u32 %s1050, 1
        %s2417 = scalar_lea.vmem [#allocation31], %s2416
        %p2418 = pneg %p1063
        %p2419 = pneg %p1060
        %s2420 = sand.u32 %s135, 1
        %s2421 = scalar_lea.sflag [#allocation32], %s2420
        %s2422 = sand.u32 %s1082, 1
        %s2423 = scalar_lea.vmem [#allocation33], %s2422
        %p2424 = pneg %p1095
        %p2425 = pneg %p1092
        %s2426 = sand.u32 %s135, 1
        %s2427 = scalar_lea.sflag [#allocation35], %s2426
        %s2428 = sand.u32 %s1114, 1
        %s2429 = scalar_lea.vmem [#allocation34], %s2428
        %p2430 = pneg %p1127
        %p2431 = pneg %p1124
        %s2432 = sand.u32 %s135, 1
        %s2433 = scalar_lea.sflag [#allocation35], %s2432
        %s2434 = sand.u32 %s1146, 1
        %s2435 = smul.addr %s2434, 256
        %s2436 = scalar_lea.vmem [#allocation36], %s2435
        %p2437 = pneg %p1159
        %p2438 = pneg %p1156
        %s2439 = ssub.s32 %s135, 2
        %p2440 = scmp.gt.s32.totalorder %s2439, 0
        %s2441 = scalar_select %p2440, %s2439, 0
        %p2442 = scmp.lt.s32.totalorder %s2441, 5
        %s2443 = scalar_select %p2442, %s2441, 5
        %s2444 = smul.addr %s2443, 16
        %s2445 = scalar_lea.vmem %s73, %s2444
        %p2446 = pneg %p1191
        %p2447 = pneg %p1188
        %s2448 = sand.u32 %s135, 1
        %s2449 = scalar_lea.sflag [#allocation38], %s2448
        %s2450 = sand.u32 %s1210, 1
        %s2451 = smul.addr %s2450, 256
        %s2452 = scalar_lea.vmem [#allocation37], %s2451
        %p2453 = pneg %p1223
        %p2454 = pneg %p1220
        %s2455 = sand.u32 %s135, 1
        %s2456 = scalar_lea.sflag [#allocation38], %s2455
        %s2457 = sand.u32 %s1242, 1
        %s2458 = scalar_lea.vmem [#allocation39], %s2457
        %p2459 = pneg %p1255
        %p2460 = pneg %p1252
        %p2461 = pneg %p1276
        %p2462 = pneg %p1273
        %p2463 = pneg %p1297
        %p2464 = pneg %p1294
        %p2465 = pneg %p1318
        %p2466 = pneg %p1315
        %p2467 = pneg %p1339
        %p2468 = pneg %p1336
        %p2469 = pneg %p1360
        %p2470 = pneg %p1357
        %p2471 = scmp.lt.s32.totalorder %s135, 1
        %s2472 = scalar_select %p2471, %s135, 1
        %p2473 = scmp.lt.s32.totalorder %s2472, 1
        %s2474 = scalar_select %p2473, %s2472, 1
        %s2475 = smul.addr %s2474, 4
        %s2476 = smul.addr %s2475, 8
        %s2477 = scalar_lea.vmem %s11, %s2476
        %p2478 = scmp.lt.s32.totalorder %s135, 1
        %s2479 = scalar_select %p2478, %s135, 1
        %p2480 = scmp.lt.s32.totalorder %s135, 1
        %s2481 = scalar_select %p2480, %s135, 1
        %p2482 = scmp.lt.s32.totalorder %s135, 1
        %s2483 = scalar_select %p2482, %s135, 1
        %p2484 = scmp.lt.s32.totalorder %s135, 1
        %s2485 = scalar_select %p2484, %s135, 1
        %p2486 = scmp.lt.s32.totalorder %s135, 1
        %s2487 = scalar_select %p2486, %s135, 1
        %p2488 = scmp.lt.s32.totalorder %s135, 1
        %s2489 = scalar_select %p2488, %s135, 1
        %p2490 = scmp.lt.s32.totalorder %s135, 1
        %s2491 = scalar_select %p2490, %s135, 1
        %p2492 = scmp.lt.s32.totalorder %s135, 1
        %s2493 = scalar_select %p2492, %s135, 1
        %p2494 = scmp.lt.s32.totalorder %s135, 1
        %s2495 = scalar_select %p2494, %s135, 1
        %p2496 = scmp.lt.s32.totalorder %s2495, 1
        %s2497 = scalar_select %p2496, %s2495, 1
        %s2498 = smul.addr %s2497, 64
        %s2499 = smul.addr %s2498, 4
        %s2500 = scalar_lea.vmem %s27, %s2499
        %p2501 = scmp.lt.s32.totalorder %s135, 1
        %s2502 = scalar_select %p2501, %s135, 1
        %p2503 = scmp.lt.s32.totalorder %s135, 1
        %s2504 = scalar_select %p2503, %s135, 1
        %p2505 = scmp.lt.s32.totalorder %s2504, 1
        %s2506 = scalar_select %p2505, %s2504, 1
        %s2507 = smul.addr %s2506, 16
        %s2508 = scalar_lea.vmem %s29, %s2507
        %p2509 = scmp.lt.s32.totalorder %s135, 1
        %s2510 = scalar_select %p2509, %s135, 1
        %p2511 = scmp.lt.s32.totalorder %s135, 1
        %s2512 = scalar_select %p2511, %s135, 1
        %p2513 = scmp.lt.s32.totalorder %s135, 1
        %s2514 = scalar_select %p2513, %s135, 1
        %s2515 = ssub.s32 %s135, 2
        %p2516 = scmp.gt.s32.totalorder %s2515, 0
        %s2517 = scalar_select %p2516, %s2515, 0
        %p2518 = scmp.lt.s32.totalorder %s2517, 5
        %s2519 = scalar_select %p2518, %s2517, 5
        %s2520 = smul.addr %s2519, 4
        %s2521 = smul.addr %s2520, 8
        %s2522 = scalar_lea.vmem %s43, %s2521
        %s2523 = ssub.s32 %s135, 2
        %p2524 = scmp.gt.s32.totalorder %s2523, 0
        %s2525 = scalar_select %p2524, %s2523, 0
        %s2526 = ssub.s32 %s135, 2
        %p2527 = scmp.gt.s32.totalorder %s2526, 0
        %s2528 = scalar_select %p2527, %s2526, 0
        %p2529 = scmp.lt.s32.totalorder %s2528, 5
        %s2530 = scalar_select %p2529, %s2528, 5
        %s2531 = scalar_lea.vmem %s45, %s2530
        %s2532 = ssub.s32 %s135, 2
        %p2533 = scmp.gt.s32.totalorder %s2532, 0
        %s2534 = scalar_select %p2533, %s2532, 0
        %s2535 = ssub.s32 %s135, 2
        %p2536 = scmp.gt.s32.totalorder %s2535, 0
        %s2537 = scalar_select %p2536, %s2535, 0
        %s2538 = ssub.s32 %s135, 2
        %p2539 = scmp.gt.s32.totalorder %s2538, 0
        %s2540 = scalar_select %p2539, %s2538, 0
        %p2541 = scmp.lt.s32.totalorder %s2540, 5
        %s2542 = scalar_select %p2541, %s2540, 5
        %s2543 = scalar_lea.vmem %s49, %s2542
        %s2544 = ssub.s32 %s135, 2
        %p2545 = scmp.gt.s32.totalorder %s2544, 0
        %s2546 = scalar_select %p2545, %s2544, 0
        %s2547 = ssub.s32 %s135, 2
        %p2548 = scmp.gt.s32.totalorder %s2547, 0
        %s2549 = scalar_select %p2548, %s2547, 0
        %s2550 = ssub.s32 %s135, 2
        %p2551 = scmp.gt.s32.totalorder %s2550, 0
        %s2552 = scalar_select %p2551, %s2550, 0
        %p2553 = scmp.lt.s32.totalorder %s2552, 5
        %s2554 = scalar_select %p2553, %s2552, 5
        %s2555 = scalar_lea.vmem %s53, %s2554
        %s2556 = ssub.s32 %s135, 2
        %p2557 = scmp.gt.s32.totalorder %s2556, 0
        %s2558 = scalar_select %p2557, %s2556, 0
        %s2559 = ssub.s32 %s135, 2
        %p2560 = scmp.gt.s32.totalorder %s2559, 0
        %s2561 = scalar_select %p2560, %s2559, 0
        %s2562 = ssub.s32 %s135, 2
        %p2563 = scmp.gt.s32.totalorder %s2562, 0
        %s2564 = scalar_select %p2563, %s2562, 0
        %p2565 = scmp.lt.s32.totalorder %s2564, 5
        %s2566 = scalar_select %p2565, %s2564, 5
        %s2567 = scalar_lea.vmem %s57, %s2566
        %s2568 = ssub.s32 %s135, 2
        %p2569 = scmp.gt.s32.totalorder %s2568, 0
        %s2570 = scalar_select %p2569, %s2568, 0
        %s2571 = ssub.s32 %s135, 2
        %p2572 = scmp.gt.s32.totalorder %s2571, 0
        %s2573 = scalar_select %p2572, %s2571, 0
        %s2574 = ssub.s32 %s135, 2
        %p2575 = scmp.gt.s32.totalorder %s2574, 0
        %s2576 = scalar_select %p2575, %s2574, 0
        %s2577 = ssub.s32 %s135, 2
        %p2578 = scmp.gt.s32.totalorder %s2577, 0
        %s2579 = scalar_select %p2578, %s2577, 0
        %s2580 = ssub.s32 %s135, 2
        %p2581 = scmp.gt.s32.totalorder %s2580, 0
        %s2582 = scalar_select %p2581, %s2580, 0
        %s2583 = ssub.s32 %s135, 2
        %p2584 = scmp.gt.s32.totalorder %s2583, 0
        %s2585 = scalar_select %p2584, %s2583, 0
        %s2586 = ssub.s32 %s135, 2
        %p2587 = scmp.gt.s32.totalorder %s2586, 0
        %s2588 = scalar_select %p2587, %s2586, 0
        %s2589 = ssub.s32 %s135, 2
        %p2590 = scmp.gt.s32.totalorder %s2589, 0
        %s2591 = scalar_select %p2590, %s2589, 0
        %s2592 = ssub.s32 %s135, 2
        %p2593 = scmp.gt.s32.totalorder %s2592, 0
        %s2594 = scalar_select %p2593, %s2592, 0
        %p2595 = scmp.lt.s32.totalorder %s2594, 5
        %s2596 = scalar_select %p2595, %s2594, 5
        %s2597 = smul.addr %s2596, 16
        %s2598 = scalar_lea.vmem %s73, %s2597
        %s2599 = ssub.s32 %s135, 2
        %p2600 = scmp.gt.s32.totalorder %s2599, 0
        %s2601 = scalar_select %p2600, %s2599, 0
        %s2602 = ssub.s32 %s135, 2
        %p2603 = scmp.gt.s32.totalorder %s2602, 0
        %s2604 = scalar_select %p2603, %s2602, 0
        %s2605 = ssub.s32 %s135, 2
        %p2606 = scmp.gt.s32.totalorder %s2605, 0
        %s2607 = scalar_select %p2606, %s2605, 0
        %v2609 = vld [vmem:[%s3] sm:$0xff]
        %v2610 = vld [vmem:[%s3 + $0x8] sm:$0xff]
        %v2611 = vld [vmem:[%s5] sm:$0xff]
        %v2612 = vld [vmem:[%s5 + $0x8] sm:$0xff]
        %v2613 = vld [vmem:[%s5 + $0x10] sm:$0xff]
        %v2614 = vld [vmem:[%s5 + $0x18] sm:$0xff]
        %v2615 = vld [vmem:[%s7] sm:$0xff]
        %v2616 = vld [vmem:[%s7 + $0x8] sm:$0xff]
        %v2617 = vld [vmem:[%s7 + $0x10] sm:$0xff]
        %v2618 = vld [vmem:[%s7 + $0x18] sm:$0xff]
        %v2619 = vld [vmem:[%s7 + $0x20] sm:$0xff]
        %v2620 = vld [vmem:[%s7 + $0x28] sm:$0xff]
        %v2621 = vld [vmem:[%s7 + $0x30] sm:$0xff]
        %v2622 = vld [vmem:[%s7 + $0x38] sm:$0xff]
        %v2623 = vld [vmem:[%s7 + $0x40] sm:$0xff]
        %v2624 = vld [vmem:[%s7 + $0x48] sm:$0xff]
        %v2625 = vld [vmem:[%s7 + $0x50] sm:$0xff]
        %v2626 = vld [vmem:[%s7 + $0x58] sm:$0xff]
        %v2627 = vld [vmem:[%s7 + $0x60] sm:$0xff]
        %v2628 = vld [vmem:[%s7 + $0x68] sm:$0xff]
        %v2629 = vld [vmem:[%s7 + $0x70] sm:$0xff]
        %v2630 = vld [vmem:[%s7 + $0x78] sm:$0xff]
        %v2631 = vld [vmem:[%s9] sm:$0xff]
        %v2632 = vld [vmem:[%s9 + $0x8] sm:$0xff]
        %p2633 = scmp.eq.s32.totalorder %s135, 0
        // Predicated region
        $region293: #{bird_forecasting_forward.1} parent=191 // pred_check
          %p2634 = pneg %p2633
        $region294: #{bird_forecasting_forward.1} parent=191 // pred_check_branch
          %2636 = sbr.rel (%p2634) target = $region296
        $region295: #{bird_forecasting_forward.1} parent=191 // pred_region
          %v2637 = vld [vmem:[%s1] sm:$0xff]
          %v2638 = vld [vmem:[%s1 + $0x8] sm:$0xff]
          %vm2639 = vcmask 261120
          %2640 = vst.msk [vmem:[#allocation2] sm:$0xff] %vm2639, %v2637
          %2641 = vst.msk [vmem:[#allocation2 + $0x8] sm:$0xff] %vm2639, %v2638
        $region296: #{bird_forecasting_forward.1} parent=191 // pred_fallthru
          _
        %p2642 = scmp.lt.s32.totalorder %s135, 2
        // Predicated region
        $region297: #{bird_forecasting_forward.1} parent=191 // pred_check
          %p2643 = pneg %p2642
        $region298: #{bird_forecasting_forward.1} parent=191 // pred_check_branch
          %2645 = sbr.rel (%p2643) target = $region300
        $region299: #{bird_forecasting_forward.1} parent=191 // pred_region
          %v2646 = vld [vmem:[#allocation2] sm:$0xff]
          %v2647 = vld [vmem:[#allocation2 + $0x8] sm:$0xff]
          %v2648 = vld [vmem:[%s2477] sm:$0xff]
          %v2649 = vld [vmem:[%s2477 + $0x8] sm:$0xff]
          %v2650 = vld [vmem:[%s2477 + $0x10] sm:$0xff]
          %v2651 = vld [vmem:[%s2477 + $0x18] sm:$0xff]
          %v2652 = vld [vmem:[%s2020] sm:$0x1]
          %v2653 = vld [vmem:[%s2030] sm:$0xff]
          %v2654 = vld [vmem:[%s2030 + $0x8] sm:$0xff]
          %v2655 = vld [vmem:[%s2030 + $0x10] sm:$0xff]
          %v2656 = vld [vmem:[%s2030 + $0x18] sm:$0xff]
          %v2657 = vld [vmem:[%s2039] sm:$0x1]
          %v2659 = vperm.slane %v2652, 0
          %vm2661 = vcmask 261120
          %v2663 = vsel %vm2661, %v2646, 0
          %v2666 = vsel %vm2661, %v2647, 0
          %2668 = vmatpush.msra.mxu0 0.0
          %2669 = vmatpush.msra.mxu0 0.0
          %2670 = vmatpush.msra.mxu0 0.0
          %2671 = vmatpush.msra.mxu0 0.0
          %2672 = vmatpush.msra.mxu0 0.0
          %2673 = vmatpush.msra.mxu0 0.0
          %2674 = vmatpush.msra.mxu0 0.0
          %2675 = vmatpush.msra.mxu0 0.0
          %2676 = vmatpush.msra.mxu0 0.0
          %2677 = vmatpush.msra.mxu0 0.0
          %2678 = vmatpush.msra.mxu0 0.0
          %2679 = vmatpush.msra.mxu0 0.0
          %2680 = vmatpush.msra.mxu0 %v2651
          %2681 = vmatpush.msra.mxu0 %v2650
          %2682 = vmatpush.msra.mxu0 %v2649
          %2683 = vmatpush.msra.mxu0 %v2648
          %2684 = vmatmul.f32.gmra.mxu0 %v2663
          %v2685 = vpop.f32.mrf.mxu0
          %v2686 = vadd.f32 %v2659, %v2685
          %2687 = vmatmul.f32.gmra.mxu0 %v2666
          %v2688 = vpop.f32.mrf.mxu0
          %v2689 = vadd.f32 %v2659, %v2688
          %2690 = vdwg.mxu0
          %2693 = vrot.lane.b32.xlu0 %v2686, 96
          %v2694 = vpop.permute.xlu0 %2693
          %2695 = vrot.lane.b32.xlu0 %v2689, 96
          %v2696 = vpop.permute.xlu0 %2695
          %2699 = vxpose.xlu0.b32.start [1/16] %v2694, 128
          %2700 = vxpose.xlu0.b32.cont [2/16] %v2696, 128
          %2701 = vxpose.xlu0.b32.cont [3/16] 0.0, 128
          %2702 = vxpose.xlu0.b32.cont [4/16] 0.0, 128
          %2703 = vxpose.xlu0.b32.cont [5/16] 0.0, 128
          %2704 = vxpose.xlu0.b32.cont [6/16] 0.0, 128
          %2705 = vxpose.xlu0.b32.cont [7/16] 0.0, 128
          %2706 = vxpose.xlu0.b32.cont [8/16] 0.0, 128
          %2707 = vxpose.xlu0.b32.cont [9/16] 0.0, 128
          %2708 = vxpose.xlu0.b32.cont [10/16] 0.0, 128
          %2709 = vxpose.xlu0.b32.cont [11/16] 0.0, 128
          %2710 = vxpose.xlu0.b32.cont [12/16] 0.0, 128
          %2711 = vxpose.xlu0.b32.cont [13/16] 0.0, 128
          %2712 = vxpose.xlu0.b32.cont [14/16] 0.0, 128
          %2713 = vxpose.xlu0.b32.cont [15/16] 0.0, 128
          %2714 = vxpose.xlu0.b32.end [16/16] 0.0, 128
          %v2715 = vpop.trf.xlu0
          %v2716 = vpop.trf.xlu0
          %v2717 = vpop.trf.xlu0
          %v2718 = vpop.trf.xlu0
          %v2719 = vpop.trf.xlu0
          %v2720 = vpop.trf.xlu0
          %v2721 = vpop.trf.xlu0
          %v2722 = vpop.trf.xlu0
          %v2723 = vpop.trf.xlu0
          %v2724 = vpop.trf.xlu0
          %v2725 = vpop.trf.xlu0
          %v2726 = vpop.trf.xlu0
          %v2727 = vpop.trf.xlu0
          %v2728 = vpop.trf.xlu0
          %v2729 = vpop.trf.xlu0
          %v2730 = vpop.trf.xlu0
          %vm2731 = vcmask 130048
          %v2733 = vsel %vm2731, %v2715, 0
          %v2736 = vsel %vm2731, %v2716, 0
          %v2739 = vsel %vm2731, %v2717, 0
          %v2742 = vsel %vm2731, %v2718, 0
          %2744 = vmatpush.msra.mxu0 0.0
          %2745 = vmatpush.msra.mxu0 0.0
          %2746 = vmatpush.msra.mxu0 0.0
          %2747 = vmatpush.msra.mxu0 0.0
          %2748 = vmatpush.msra.mxu0 0.0
          %2749 = vmatpush.msra.mxu0 0.0
          %2750 = vmatpush.msra.mxu0 0.0
          %2751 = vmatpush.msra.mxu0 0.0
          %2752 = vmatpush.msra.mxu0 0.0
          %2753 = vmatpush.msra.mxu0 0.0
          %2754 = vmatpush.msra.mxu0 0.0
          %2755 = vmatpush.msra.mxu0 0.0
          %2756 = vmatpush.msra.mxu0 0.0
          %2757 = vmatpush.msra.mxu0 0.0
          %2758 = vmatpush.msra.mxu0 %v2610
          %2759 = vmatpush.msra.mxu0 %v2609
          %2760 = vmatmul.f32.gmra.mxu0 %v2733
          %v2761 = vpop.f32.mrf.mxu0
          %v2762 = vadd.f32 0.0, %v2761
          %2763 = vmatmul.f32.gmra.mxu0 %v2736
          %v2764 = vpop.f32.mrf.mxu0
          %v2765 = vadd.f32 0.0, %v2764
          %2766 = vmatmul.f32.gmra.mxu0 %v2739
          %v2767 = vpop.f32.mrf.mxu0
          %v2768 = vadd.f32 0.0, %v2767
          %2769 = vmatmul.f32.gmra.mxu0 %v2742
          %v2770 = vpop.f32.mrf.mxu0
          %v2771 = vadd.f32 0.0, %v2770
          %2772 = vdwg.mxu0
          %v2773 = vmul.f32 %v2762, %v2611
          %v2774 = vmul.f32 %v2765, %v2612
          %v2775 = vmul.f32 %v2768, %v2613
          %v2776 = vmul.f32 %v2771, %v2614
          %v2777 = vsel %vm2661, %v2686, 0
          %v2779 = vsel %vm2661, %v2689, 0
          %2781 = vmatpush.msra.mxu0 0.0
          %2782 = vmatpush.msra.mxu0 0.0
          %2783 = vmatpush.msra.mxu0 0.0
          %2784 = vmatpush.msra.mxu0 0.0
          %2785 = vmatpush.msra.mxu0 0.0
          %2786 = vmatpush.msra.mxu0 0.0
          %2787 = vmatpush.msra.mxu0 0.0
          %2788 = vmatpush.msra.mxu0 0.0
          %2789 = vmatpush.msra.mxu0 0.0
          %2790 = vmatpush.msra.mxu0 0.0
          %2791 = vmatpush.msra.mxu0 0.0
          %2792 = vmatpush.msra.mxu0 0.0
          %2793 = vmatpush.msra.mxu0 %v2776
          %2794 = vmatpush.msra.mxu0 %v2775
          %2795 = vmatpush.msra.mxu0 %v2774
          %2796 = vmatpush.msra.mxu0 %v2773
          %2797 = vmatmul.f32.gmra.mxu0 %v2777
          %v2798 = vpop.f32.mrf.mxu0
          %v2799 = vadd.f32 0.0, %v2798
          %2800 = vmatmul.f32.gmra.mxu0 %v2779
          %v2801 = vpop.f32.mrf.mxu0
          %v2802 = vadd.f32 0.0, %v2801
          %2803 = vdwg.mxu0
          %v2804 = vmul.f32 %v2799, 0.5
          %v2805 = vmul.f32 %v2802, 0.5
          %v2806 = vadd.f32 %v2804, %v2631
          %v2807 = vadd.f32 %v2805, %v2632
          %2808 = vmax.xlane.f32.xlu0 %v2806
          %v2809 = vpop.xlane.xlu0 %2808
          %2810 = vmax.xlane.f32.xlu0 %v2807
          %v2811 = vpop.xlane.xlu0 %2810
          %v2812 = vsub.f32 %v2806, %v2809
          %v2813 = vsub.f32 %v2807, %v2811
          %v2814 = vmul.f32 %v2812, 1.442695
          %v2815 = vpow.pop %v2814
          %v2816 = vmul.f32 %v2813, 1.442695
          %v2817 = vpow.pop %v2816
          %2834 = vrot.lane.b32.xlu0 %v2615, 64
          %v2835 = vpop.permute.xlu0 %2834
          %2836 = vrot.lane.b32.xlu0 %v2616, 64
          %v2837 = vpop.permute.xlu0 %2836
          %2838 = vrot.lane.b32.xlu0 %v2617, 64
          %v2839 = vpop.permute.xlu0 %2838
          %2840 = vrot.lane.b32.xlu0 %v2618, 64
          %v2841 = vpop.permute.xlu0 %2840
          %2842 = vrot.lane.b32.xlu0 %v2619, 64
          %v2843 = vpop.permute.xlu0 %2842
          %2844 = vrot.lane.b32.xlu0 %v2620, 64
          %v2845 = vpop.permute.xlu0 %2844
          %2846 = vrot.lane.b32.xlu0 %v2621, 64
          %v2847 = vpop.permute.xlu0 %2846
          %2848 = vrot.lane.b32.xlu0 %v2622, 64
          %v2849 = vpop.permute.xlu0 %2848
          %2850 = vrot.lane.b32.xlu0 %v2623, 64
          %v2851 = vpop.permute.xlu0 %2850
          %2852 = vrot.lane.b32.xlu0 %v2624, 64
          %v2853 = vpop.permute.xlu0 %2852
          %2854 = vrot.lane.b32.xlu0 %v2625, 64
          %v2855 = vpop.permute.xlu0 %2854
          %2856 = vrot.lane.b32.xlu0 %v2626, 64
          %v2857 = vpop.permute.xlu0 %2856
          %2858 = vrot.lane.b32.xlu0 %v2627, 64
          %v2859 = vpop.permute.xlu0 %2858
          %2860 = vrot.lane.b32.xlu0 %v2628, 64
          %v2861 = vpop.permute.xlu0 %2860
          %2862 = vrot.lane.b32.xlu0 %v2629, 64
          %v2863 = vpop.permute.xlu0 %2862
          %2864 = vrot.lane.b32.xlu0 %v2630, 64
          %v2865 = vpop.permute.xlu0 %2864
          %v2882 = vmul.f32 %v2686, %v2835
          %v2883 = vmul.f32 %v2689, %v2837
          %v2884 = vmul.f32 %v2686, %v2839
          %v2885 = vmul.f32 %v2689, %v2841
          %v2886 = vmul.f32 %v2686, %v2843
          %v2887 = vmul.f32 %v2689, %v2845
          %v2888 = vmul.f32 %v2686, %v2847
          %v2889 = vmul.f32 %v2689, %v2849
          %v2890 = vmul.f32 %v2686, %v2851
          %v2891 = vmul.f32 %v2689, %v2853
          %v2892 = vmul.f32 %v2686, %v2855
          %v2893 = vmul.f32 %v2689, %v2857
          %v2894 = vmul.f32 %v2686, %v2859
          %v2895 = vmul.f32 %v2689, %v2861
          %v2896 = vmul.f32 %v2686, %v2863
          %v2897 = vmul.f32 %v2689, %v2865
          %2914 = vrot.lane.b32.xlu0 %v2882, 64
          %v2915 = vpop.permute.xlu0 %2914
          %2916 = vrot.lane.b32.xlu0 %v2883, 64
          %v2917 = vpop.permute.xlu0 %2916
          %2918 = vrot.lane.b32.xlu0 %v2884, 64
          %v2919 = vpop.permute.xlu0 %2918
          %2920 = vrot.lane.b32.xlu0 %v2885, 64
          %v2921 = vpop.permute.xlu0 %2920
          %2922 = vrot.lane.b32.xlu0 %v2886, 64
          %v2923 = vpop.permute.xlu0 %2922
          %2924 = vrot.lane.b32.xlu0 %v2887, 64
          %v2925 = vpop.permute.xlu0 %2924
          %2926 = vrot.lane.b32.xlu0 %v2888, 64
          %v2927 = vpop.permute.xlu0 %2926
          %2928 = vrot.lane.b32.xlu0 %v2889, 64
          %v2929 = vpop.permute.xlu0 %2928
          %2930 = vrot.lane.b32.xlu0 %v2890, 64
          %v2931 = vpop.permute.xlu0 %2930
          %2932 = vrot.lane.b32.xlu0 %v2891, 64
          %v2933 = vpop.permute.xlu0 %2932
          %2934 = vrot.lane.b32.xlu0 %v2892, 64
          %v2935 = vpop.permute.xlu0 %2934
          %2936 = vrot.lane.b32.xlu0 %v2893, 64
          %v2937 = vpop.permute.xlu0 %2936
          %2938 = vrot.lane.b32.xlu0 %v2894, 64
          %v2939 = vpop.permute.xlu0 %2938
          %2940 = vrot.lane.b32.xlu0 %v2895, 64
          %v2941 = vpop.permute.xlu0 %2940
          %2942 = vrot.lane.b32.xlu0 %v2896, 64
          %v2943 = vpop.permute.xlu0 %2942
          %2944 = vrot.lane.b32.xlu0 %v2897, 64
          %v2945 = vpop.permute.xlu0 %2944
          %2962 = vmatpush.msra.mxu0 %v2945
          %2963 = vmatpush.msra.mxu0 %v2943
          %2964 = vmatpush.msra.mxu0 %v2941
          %2965 = vmatpush.msra.mxu0 %v2939
          %2966 = vmatpush.msra.mxu0 %v2937
          %2967 = vmatpush.msra.mxu0 %v2935
          %2968 = vmatpush.msra.mxu0 %v2933
          %2969 = vmatpush.msra.mxu0 %v2931
          %2970 = vmatpush.msra.mxu0 %v2929
          %2971 = vmatpush.msra.mxu0 %v2927
          %2972 = vmatpush.msra.mxu0 %v2925
          %2973 = vmatpush.msra.mxu0 %v2923
          %2974 = vmatpush.msra.mxu0 %v2921
          %2975 = vmatpush.msra.mxu0 %v2919
          %2976 = vmatpush.msra.mxu0 %v2917
          %2977 = vmatpush.msra.mxu0 %v2915
          %2978 = vmatmul.f32.gmra.mxu0 %v2815
          %v2979 = vpop.f32.mrf.mxu0
          %v2980 = vadd.f32 0.0, %v2979
          %2981 = vmatmul.f32.gmra.mxu0 %v2817
          %v2982 = vpop.f32.mrf.mxu0
          %v2983 = vadd.f32 0.0, %v2982
          %2984 = vdwg.mxu0
          %2985 = vmatpush.msra.mxu0 %v2630
          %2986 = vmatpush.msra.mxu0 %v2629
          %2987 = vmatpush.msra.mxu0 %v2628
          %2988 = vmatpush.msra.mxu0 %v2627
          %2989 = vmatpush.msra.mxu0 %v2626
          %2990 = vmatpush.msra.mxu0 %v2625
          %2991 = vmatpush.msra.mxu0 %v2624
          %2992 = vmatpush.msra.mxu0 %v2623
          %2993 = vmatpush.msra.mxu0 %v2622
          %2994 = vmatpush.msra.mxu0 %v2621
          %2995 = vmatpush.msra.mxu0 %v2620
          %2996 = vmatpush.msra.mxu0 %v2619
          %2997 = vmatpush.msra.mxu0 %v2618
          %2998 = vmatpush.msra.mxu0 %v2617
          %2999 = vmatpush.msra.mxu0 %v2616
          %3000 = vmatpush.msra.mxu0 %v2615
          %3001 = vmatmul.f32.gmra.mxu0 %v2815
          %v3002 = vpop.f32.mrf.mxu0
          %v3003 = vadd.f32 0.0, %v3002
          %3004 = vmatmul.f32.gmra.mxu0 %v2817
          %v3005 = vpop.f32.mrf.mxu0
          %v3006 = vadd.f32 0.0, %v3005
          %3007 = vdwg.mxu0
          %v3008 = vrcp.pop %v3003
          %v3009 = vrcp.pop %v3006
          %v3010 = vmul.f32 %v2980, %v3008
          %v3011 = vmul.f32 %v2983, %v3009
          %v3013 = vperm.slane %v2657, 0
          %v3016 = vsel %vm2661, %v3010, 0
          %v3019 = vsel %vm2661, %v3011, 0
          %3021 = vmatpush.msra.mxu0 0.0
          %3022 = vmatpush.msra.mxu0 0.0
          %3023 = vmatpush.msra.mxu0 0.0
          %3024 = vmatpush.msra.mxu0 0.0
          %3025 = vmatpush.msra.mxu0 0.0
          %3026 = vmatpush.msra.mxu0 0.0
          %3027 = vmatpush.msra.mxu0 0.0
          %3028 = vmatpush.msra.mxu0 0.0
          %3029 = vmatpush.msra.mxu0 0.0
          %3030 = vmatpush.msra.mxu0 0.0
          %3031 = vmatpush.msra.mxu0 0.0
          %3032 = vmatpush.msra.mxu0 0.0
          %3033 = vmatpush.msra.mxu0 %v2656
          %3034 = vmatpush.msra.mxu0 %v2655
          %3035 = vmatpush.msra.mxu0 %v2654
          %3036 = vmatpush.msra.mxu0 %v2653
          %3037 = vmatmul.f32.gmra.mxu0 %v3016
          %v3038 = vpop.f32.mrf.mxu0
          %v3039 = vadd.f32 %v3013, %v3038
          %3040 = vmatmul.f32.gmra.mxu0 %v3019
          %v3041 = vpop.f32.mrf.mxu0
          %v3042 = vadd.f32 %v3013, %v3041
          %3043 = vdwg.mxu0
          %v3044 = vadd.f32 %v2646, %v3039
          %v3045 = vadd.f32 %v2647, %v3042
          %v3046 = vld [vmem:[%s2048] sm:$0x1]
          %v3047 = vld [vmem:[%s2057] sm:$0x1]
          %v3048 = vsel %vm2661, %v3044, 0.0
          %3049 = vadd.xlane.f32.xlu0 %v3048
          %v3050 = vpop.xlane.xlu0 %3049
          %v3051 = vsel %vm2661, %v3045, 0.0
          %3052 = vadd.xlane.f32.xlu0 %v3051
          %v3053 = vpop.xlane.xlu0 %3052
          %v3054 = vrcp.pop 32.0
          %v3055 = vmul.f32 32.0, %v3054
          %v3056 = vsub.f32 1.0, %v3055
          %v3057 = vmul.f32 %v3054, %v3056
          %v3058 = vadd.f32 %v3054, %v3057
          %vm3059 = vweird.f32 %v3054
          %v3060 = vsel %vm3059, %v3054, %v3058
          %v3061 = vmul.f32 %v3050, %v3060
          %v3062 = vmul.f32 %v3053, %v3060
          %v3063 = vsub.f32 %v3044, %v3061
          %v3064 = vsub.f32 %v3045, %v3062
          %v3065 = vmul.f32 %v3063, %v3063
          %v3066 = vmul.f32 %v3064, %v3064
          %v3067 = vsel %vm2661, %v3065, 0.0
          %3068 = vadd.xlane.f32.xlu0 %v3067
          %v3069 = vpop.xlane.xlu0 %3068
          %v3070 = vsel %vm2661, %v3066, 0.0
          %3071 = vadd.xlane.f32.xlu0 %v3070
          %v3072 = vpop.xlane.xlu0 %3071
          %v3073 = vmul.f32 %v3069, %v3060
          %v3074 = vmul.f32 %v3072, %v3060
          %v3075 = vadd.f32 %v3073, 1e-05
          %v3076 = vadd.f32 %v3074, 1e-05
          %v3077 = vrsqrt.pop %v3075
          %v3078 = vmul.f32 %v3077, %v3075
          %v3079 = vmul.f32 %v3078, %v3077
          %v3080 = vmul.f32 0.5, %v3079
          %v3081 = vsub.f32 1.5, %v3080
          %v3082 = vmul.f32 %v3077, %v3081
          %vm3083 = vweird.f32 %v3075
          %vm3084 = vweird.f32 %v3077
          %vm3085 = vmor %vm3083, %vm3084
          %v3086 = vsel %vm3085, %v3077, %v3082
          %v3087 = vrsqrt.pop %v3076
          %v3088 = vmul.f32 %v3087, %v3076
          %v3089 = vmul.f32 %v3088, %v3087
          %v3090 = vmul.f32 0.5, %v3089
          %v3091 = vsub.f32 1.5, %v3090
          %v3092 = vmul.f32 %v3087, %v3091
          %vm3093 = vweird.f32 %v3076
          %vm3094 = vweird.f32 %v3087
          %vm3095 = vmor %vm3093, %vm3094
          %v3096 = vsel %vm3095, %v3087, %v3092
          %v3097 = vmul.f32 %v3063, %v3086
          %v3098 = vmul.f32 %v3064, %v3096
          %v3100 = vperm.slane %v3046, 0
          %v3102 = vmul.f32 %v3097, %v3100
          %v3103 = vmul.f32 %v3098, %v3100
          %v3105 = vperm.slane %v3047, 0
          %v3107 = vadd.f32 %v3102, %v3105
          %v3108 = vadd.f32 %v3103, %v3105
          %v3109 = vpack.c.bf16 %v3108, %v3107
          %v3110 = vld [vmem:[%s2500] sm:$0xff]
          %v3111 = vld [vmem:[%s2500 + $0x8] sm:$0xff]
          %v3112 = vld [vmem:[%s2500 + $0x40] sm:$0xff]
          %v3113 = vld [vmem:[%s2500 + $0x48] sm:$0xff]
          %v3114 = vld [vmem:[%s2500 + $0x80] sm:$0xff]
          %v3115 = vld [vmem:[%s2500 + $0x88] sm:$0xff]
          %v3116 = vld [vmem:[%s2500 + $0xc0] sm:$0xff]
          %v3117 = vld [vmem:[%s2500 + $0xc8] sm:$0xff]
          %v3118 = vld [vmem:[%s2508] sm:$0xf]
          %v3120 = vperm.slane %v3118, 0
          %v3121 = vperm.slane %v3118, 1
          %v3122 = vperm.slane %v3118, 2
          %v3123 = vperm.slane %v3118, 3
          %v3136 = vunpack.c.l.b16 %v3110
          %v3137 = vunpack.c.h.b16 %v3110
          %v3138 = vunpack.c.l.b16 %v3111
          %v3139 = vunpack.c.h.b16 %v3111
          %v3140 = vunpack.c.l.b16 %v3112
          %v3141 = vunpack.c.h.b16 %v3112
          %v3142 = vunpack.c.l.b16 %v3113
          %v3143 = vunpack.c.h.b16 %v3113
          %v3144 = vunpack.c.l.b16 %v3114
          %v3145 = vunpack.c.h.b16 %v3114
          %v3146 = vunpack.c.l.b16 %v3115
          %v3147 = vunpack.c.h.b16 %v3115
          %v3148 = vunpack.c.l.b16 %v3116
          %v3149 = vunpack.c.h.b16 %v3116
          %v3150 = vunpack.c.l.b16 %v3117
          %v3151 = vunpack.c.h.b16 %v3117
          %v3152 = vpack.c.b16 %v3140, %v3136
          %v3153 = vpack.c.b16 %v3141, %v3137
          %v3154 = vpack.c.b16 %v3142, %v3138
          %v3155 = vpack.c.b16 %v3143, %v3139
          %v3156 = vpack.c.b16 %v3148, %v3144
          %v3157 = vpack.c.b16 %v3149, %v3145
          %v3158 = vpack.c.b16 %v3150, %v3146
          %v3159 = vpack.c.b16 %v3151, %v3147
          %v3169 = vsel %vm2661, %v3109, 0
          %3171 = vmatpush.bf16.msra.mxu0 0
          %3172 = vmatpush.bf16.msra.mxu0 0
          %3173 = vmatpush.bf16.msra.mxu0 0
          %3174 = vmatpush.bf16.msra.mxu0 0
          %3175 = vmatpush.bf16.msra.mxu0 0
          %3176 = vmatpush.bf16.msra.mxu0 0
          %3177 = vmatpush.bf16.msra.mxu0 %v3156
          %3178 = vmatpush.bf16.msra.mxu0 %v3152
          %3179 = vmatmul.bf16.gmra.mxu0 %v3169
          %v3180 = vpop.f32.mrf.mxu0
          %v3181 = vadd.f32 %v3120, %v3180
          %v3182 = vpop.f32.mrf.mxu0
          %v3183 = vadd.f32 %v3120, %v3182
          %3184 = vdwg.mxu0
          %3185 = vmatpush.bf16.msra.mxu0 0
          %3186 = vmatpush.bf16.msra.mxu0 0
          %3187 = vmatpush.bf16.msra.mxu0 0
          %3188 = vmatpush.bf16.msra.mxu0 0
          %3189 = vmatpush.bf16.msra.mxu0 0
          %3190 = vmatpush.bf16.msra.mxu0 0
          %3191 = vmatpush.bf16.msra.mxu0 %v3157
          %3192 = vmatpush.bf16.msra.mxu0 %v3153
          %3193 = vmatmul.bf16.gmra.mxu0 %v3169
          %v3194 = vpop.f32.mrf.mxu0
          %v3195 = vadd.f32 %v3121, %v3194
          %v3196 = vpop.f32.mrf.mxu0
          %v3197 = vadd.f32 %v3121, %v3196
          %3198 = vdwg.mxu0
          %3199 = vmatpush.bf16.msra.mxu0 0
          %3200 = vmatpush.bf16.msra.mxu0 0
          %3201 = vmatpush.bf16.msra.mxu0 0
          %3202 = vmatpush.bf16.msra.mxu0 0
          %3203 = vmatpush.bf16.msra.mxu0 0
          %3204 = vmatpush.bf16.msra.mxu0 0
          %3205 = vmatpush.bf16.msra.mxu0 %v3158
          %3206 = vmatpush.bf16.msra.mxu0 %v3154
          %3207 = vmatmul.bf16.gmra.mxu0 %v3169
          %v3208 = vpop.f32.mrf.mxu0
          %v3209 = vadd.f32 %v3122, %v3208
          %v3210 = vpop.f32.mrf.mxu0
          %v3211 = vadd.f32 %v3122, %v3210
          %3212 = vdwg.mxu0
          %3213 = vmatpush.bf16.msra.mxu0 0
          %3214 = vmatpush.bf16.msra.mxu0 0
          %3215 = vmatpush.bf16.msra.mxu0 0
          %3216 = vmatpush.bf16.msra.mxu0 0
          %3217 = vmatpush.bf16.msra.mxu0 0
          %3218 = vmatpush.bf16.msra.mxu0 0
          %3219 = vmatpush.bf16.msra.mxu0 %v3159
          %3220 = vmatpush.bf16.msra.mxu0 %v3155
          %3221 = vmatmul.bf16.gmra.mxu0 %v3169
          %v3222 = vpop.f32.mrf.mxu0
          %v3223 = vadd.f32 %v3123, %v3222
          %v3224 = vpop.f32.mrf.mxu0
          %v3225 = vadd.f32 %v3123, %v3224
          %3226 = vdwg.mxu0
          %v3227 = vmax.f32 %v3181, 0.0
          %v3228 = vmax.f32 %v3195, 0.0
          %v3229 = vmax.f32 %v3209, 0.0
          %v3230 = vmax.f32 %v3223, 0.0
          %v3231 = vmax.f32 %v3183, 0.0
          %v3232 = vmax.f32 %v3197, 0.0
          %v3233 = vmax.f32 %v3211, 0.0
          %v3234 = vmax.f32 %v3225, 0.0
          %v3235 = vpack.c.bf16 %v3231, %v3227
          %v3236 = vpack.c.bf16 %v3232, %v3228
          %v3237 = vpack.c.bf16 %v3233, %v3229
          %v3238 = vpack.c.bf16 %v3234, %v3230
          %v3239 = vld [vmem:[%s2085] sm:$0xff]
          %v3240 = vld [vmem:[%s2085 + $0x8] sm:$0xff]
          %v3241 = vld [vmem:[%s2085 + $0x40] sm:$0xff]
          %v3242 = vld [vmem:[%s2085 + $0x48] sm:$0xff]
          %v3243 = vld [vmem:[%s2085 + $0x80] sm:$0xff]
          %v3244 = vld [vmem:[%s2085 + $0x88] sm:$0xff]
          %v3245 = vld [vmem:[%s2085 + $0xc0] sm:$0xff]
          %v3246 = vld [vmem:[%s2085 + $0xc8] sm:$0xff]
          %v3247 = vld [vmem:[%s2500 + $0x10] sm:$0xff]
          %v3248 = vld [vmem:[%s2500 + $0x18] sm:$0xff]
          %v3249 = vld [vmem:[%s2500 + $0x50] sm:$0xff]
          %v3250 = vld [vmem:[%s2500 + $0x58] sm:$0xff]
          %v3251 = vld [vmem:[%s2500 + $0x90] sm:$0xff]
          %v3252 = vld [vmem:[%s2500 + $0x98] sm:$0xff]
          %v3253 = vld [vmem:[%s2500 + $0xd0] sm:$0xff]
          %v3254 = vld [vmem:[%s2500 + $0xd8] sm:$0xff]
          %v3255 = vld [vmem:[%s2508 + $0x4] sm:$0xf]
          %v3257 = vperm.slane %v3255, 0
          %v3258 = vperm.slane %v3255, 1
          %v3259 = vperm.slane %v3255, 2
          %v3260 = vperm.slane %v3255, 3
          %v3273 = vunpack.c.l.b16 %v3247
          %v3274 = vunpack.c.h.b16 %v3247
          %v3275 = vunpack.c.l.b16 %v3248
          %v3276 = vunpack.c.h.b16 %v3248
          %v3277 = vunpack.c.l.b16 %v3249
          %v3278 = vunpack.c.h.b16 %v3249
          %v3279 = vunpack.c.l.b16 %v3250
          %v3280 = vunpack.c.h.b16 %v3250
          %v3281 = vunpack.c.l.b16 %v3251
          %v3282 = vunpack.c.h.b16 %v3251
          %v3283 = vunpack.c.l.b16 %v3252
          %v3284 = vunpack.c.h.b16 %v3252
          %v3285 = vunpack.c.l.b16 %v3253
          %v3286 = vunpack.c.h.b16 %v3253
          %v3287 = vunpack.c.l.b16 %v3254
          %v3288 = vunpack.c.h.b16 %v3254
          %v3289 = vpack.c.b16 %v3277, %v3273
          %v3290 = vpack.c.b16 %v3278, %v3274
          %v3291 = vpack.c.b16 %v3279, %v3275
          %v3292 = vpack.c.b16 %v3280, %v3276
          %v3293 = vpack.c.b16 %v3285, %v3281
          %v3294 = vpack.c.b16 %v3286, %v3282
          %v3295 = vpack.c.b16 %v3287, %v3283
          %v3296 = vpack.c.b16 %v3288, %v3284
          %3305 = vmatpush.bf16.msra.mxu0 0
          %3306 = vmatpush.bf16.msra.mxu0 0
          %3307 = vmatpush.bf16.msra.mxu0 0
          %3308 = vmatpush.bf16.msra.mxu0 0
          %3309 = vmatpush.bf16.msra.mxu0 0
          %3310 = vmatpush.bf16.msra.mxu0 0
          %3311 = vmatpush.bf16.msra.mxu0 %v3293
          %3312 = vmatpush.bf16.msra.mxu0 %v3289
          %3313 = vmatmul.bf16.gmra.mxu0 %v3169
          %v3314 = vpop.f32.mrf.mxu0
          %v3315 = vadd.f32 %v3257, %v3314
          %v3316 = vpop.f32.mrf.mxu0
          %v3317 = vadd.f32 %v3257, %v3316
          %3318 = vdwg.mxu0
          %3319 = vmatpush.bf16.msra.mxu0 0
          %3320 = vmatpush.bf16.msra.mxu0 0
          %3321 = vmatpush.bf16.msra.mxu0 0
          %3322 = vmatpush.bf16.msra.mxu0 0
          %3323 = vmatpush.bf16.msra.mxu0 0
          %3324 = vmatpush.bf16.msra.mxu0 0
          %3325 = vmatpush.bf16.msra.mxu0 %v3294
          %3326 = vmatpush.bf16.msra.mxu0 %v3290
          %3327 = vmatmul.bf16.gmra.mxu0 %v3169
          %v3328 = vpop.f32.mrf.mxu0
          %v3329 = vadd.f32 %v3258, %v3328
          %v3330 = vpop.f32.mrf.mxu0
          %v3331 = vadd.f32 %v3258, %v3330
          %3332 = vdwg.mxu0
          %3333 = vmatpush.bf16.msra.mxu0 0
          %3334 = vmatpush.bf16.msra.mxu0 0
          %3335 = vmatpush.bf16.msra.mxu0 0
          %3336 = vmatpush.bf16.msra.mxu0 0
          %3337 = vmatpush.bf16.msra.mxu0 0
          %3338 = vmatpush.bf16.msra.mxu0 0
          %3339 = vmatpush.bf16.msra.mxu0 %v3295
          %3340 = vmatpush.bf16.msra.mxu0 %v3291
          %3341 = vmatmul.bf16.gmra.mxu0 %v3169
          %v3342 = vpop.f32.mrf.mxu0
          %v3343 = vadd.f32 %v3259, %v3342
          %v3344 = vpop.f32.mrf.mxu0
          %v3345 = vadd.f32 %v3259, %v3344
          %3346 = vdwg.mxu0
          %3347 = vmatpush.bf16.msra.mxu0 0
          %3348 = vmatpush.bf16.msra.mxu0 0
          %3349 = vmatpush.bf16.msra.mxu0 0
          %3350 = vmatpush.bf16.msra.mxu0 0
          %3351 = vmatpush.bf16.msra.mxu0 0
          %3352 = vmatpush.bf16.msra.mxu0 0
          %3353 = vmatpush.bf16.msra.mxu0 %v3296
          %3354 = vmatpush.bf16.msra.mxu0 %v3292
          %3355 = vmatmul.bf16.gmra.mxu0 %v3169
          %v3356 = vpop.f32.mrf.mxu0
          %v3357 = vadd.f32 %v3260, %v3356
          %v3358 = vpop.f32.mrf.mxu0
          %v3359 = vadd.f32 %v3260, %v3358
          %3360 = vdwg.mxu0
          %v3361 = vmax.f32 %v3315, 0.0
          %v3362 = vmax.f32 %v3329, 0.0
          %v3363 = vmax.f32 %v3343, 0.0
          %v3364 = vmax.f32 %v3357, 0.0
          %v3365 = vmax.f32 %v3317, 0.0
          %v3366 = vmax.f32 %v3331, 0.0
          %v3367 = vmax.f32 %v3345, 0.0
          %v3368 = vmax.f32 %v3359, 0.0
          %v3369 = vpack.c.bf16 %v3365, %v3361
          %v3370 = vpack.c.bf16 %v3366, %v3362
          %v3371 = vpack.c.bf16 %v3367, %v3363
          %v3372 = vpack.c.bf16 %v3368, %v3364
          %v3373 = vld [vmem:[%s2085 + $0x10] sm:$0xff]
          %v3374 = vld [vmem:[%s2085 + $0x18] sm:$0xff]
          %v3375 = vld [vmem:[%s2085 + $0x50] sm:$0xff]
          %v3376 = vld [vmem:[%s2085 + $0x58] sm:$0xff]
          %v3377 = vld [vmem:[%s2085 + $0x90] sm:$0xff]
          %v3378 = vld [vmem:[%s2085 + $0x98] sm:$0xff]
          %v3379 = vld [vmem:[%s2085 + $0xd0] sm:$0xff]
          %v3380 = vld [vmem:[%s2085 + $0xd8] sm:$0xff]
          %v3389 = vunpack.c.l.b16 %v3373
          %v3390 = vunpack.c.h.b16 %v3373
          %v3391 = vunpack.c.l.b16 %v3374
          %v3392 = vunpack.c.h.b16 %v3374
          %v3393 = vunpack.c.l.b16 %v3375
          %v3394 = vunpack.c.h.b16 %v3375
          %v3395 = vunpack.c.l.b16 %v3376
          %v3396 = vunpack.c.h.b16 %v3376
          %v3397 = vunpack.c.l.b16 %v3377
          %v3398 = vunpack.c.h.b16 %v3377
          %v3399 = vunpack.c.l.b16 %v3378
          %v3400 = vunpack.c.h.b16 %v3378
          %v3401 = vunpack.c.l.b16 %v3379
          %v3402 = vunpack.c.h.b16 %v3379
          %v3403 = vunpack.c.l.b16 %v3380
          %v3404 = vunpack.c.h.b16 %v3380
          %v3405 = vpack.c.b16 %v3393, %v3389
          %v3406 = vpack.c.b16 %v3394, %v3390
          %v3407 = vpack.c.b16 %v3395, %v3391
          %v3408 = vpack.c.b16 %v3396, %v3392
          %v3409 = vpack.c.b16 %v3401, %v3397
          %v3410 = vpack.c.b16 %v3402, %v3398
          %v3411 = vpack.c.b16 %v3403, %v3399
          %v3412 = vpack.c.b16 %v3404, %v3400
          %3421 = vmatpush.bf16.xpose.msra.mxu0 0
          %3422 = vmatpush.bf16.xpose.msra.mxu0 0
          %3423 = vmatpush.bf16.xpose.msra.mxu0 0
          %3424 = vmatpush.bf16.xpose.msra.mxu0 0
          %3425 = vmatpush.bf16.xpose.msra.mxu0 0
          %3426 = vmatpush.bf16.xpose.msra.mxu0 0
          %3427 = vmatpush.bf16.xpose.msra.mxu0 %v3409
          %3428 = vmatpush.bf16.xpose.msra.mxu0 %v3405
          %3429 = vmatmul.bf16.gmra.mxu0 %v3369
          %v3430 = vpop.f32.mrf.mxu0
          %v3431 = vadd.f32 0.0, %v3430
          %v3432 = vpop.f32.mrf.mxu0
          %v3433 = vadd.f32 0.0, %v3432
          %3434 = vdwg.mxu0
          %3435 = vmatpush.bf16.xpose.msra.mxu0 0
          %3436 = vmatpush.bf16.xpose.msra.mxu0 0
          %3437 = vmatpush.bf16.xpose.msra.mxu0 0
          %3438 = vmatpush.bf16.xpose.msra.mxu0 0
          %3439 = vmatpush.bf16.xpose.msra.mxu0 0
          %3440 = vmatpush.bf16.xpose.msra.mxu0 0
          %3441 = vmatpush.bf16.xpose.msra.mxu0 %v3410
          %3442 = vmatpush.bf16.xpose.msra.mxu0 %v3406
          %3443 = vmatmul.bf16.gmra.mxu0 %v3370
          %v3444 = vpop.f32.mrf.mxu0
          %v3445 = vadd.f32 %v3431, %v3444
          %v3446 = vpop.f32.mrf.mxu0
          %v3447 = vadd.f32 %v3433, %v3446
          %3448 = vdwg.mxu0
          %3449 = vmatpush.bf16.xpose.msra.mxu0 0
          %3450 = vmatpush.bf16.xpose.msra.mxu0 0
          %3451 = vmatpush.bf16.xpose.msra.mxu0 0
          %3452 = vmatpush.bf16.xpose.msra.mxu0 0
          %3453 = vmatpush.bf16.xpose.msra.mxu0 0
          %3454 = vmatpush.bf16.xpose.msra.mxu0 0
          %3455 = vmatpush.bf16.xpose.msra.mxu0 %v3411
          %3456 = vmatpush.bf16.xpose.msra.mxu0 %v3407
          %3457 = vmatmul.bf16.gmra.mxu0 %v3371
          %v3458 = vpop.f32.mrf.mxu0
          %v3459 = vadd.f32 %v3445, %v3458
          %v3460 = vpop.f32.mrf.mxu0
          %v3461 = vadd.f32 %v3447, %v3460
          %3462 = vdwg.mxu0
          %3463 = vmatpush.bf16.xpose.msra.mxu0 0
          %3464 = vmatpush.bf16.xpose.msra.mxu0 0
          %3465 = vmatpush.bf16.xpose.msra.mxu0 0
          %3466 = vmatpush.bf16.xpose.msra.mxu0 0
          %3467 = vmatpush.bf16.xpose.msra.mxu0 0
          %3468 = vmatpush.bf16.xpose.msra.mxu0 0
          %3469 = vmatpush.bf16.xpose.msra.mxu0 %v3412
          %3470 = vmatpush.bf16.xpose.msra.mxu0 %v3408
          %3471 = vmatmul.bf16.gmra.mxu0 %v3372
          %v3472 = vpop.f32.mrf.mxu0
          %v3473 = vadd.f32 %v3459, %v3472
          %v3474 = vpop.f32.mrf.mxu0
          %v3475 = vadd.f32 %v3461, %v3474
          %3476 = vdwg.mxu0
          %v3485 = vunpack.c.l.b16 %v3239
          %v3486 = vunpack.c.h.b16 %v3239
          %v3487 = vunpack.c.l.b16 %v3240
          %v3488 = vunpack.c.h.b16 %v3240
          %v3489 = vunpack.c.l.b16 %v3241
          %v3490 = vunpack.c.h.b16 %v3241
          %v3491 = vunpack.c.l.b16 %v3242
          %v3492 = vunpack.c.h.b16 %v3242
          %v3493 = vunpack.c.l.b16 %v3243
          %v3494 = vunpack.c.h.b16 %v3243
          %v3495 = vunpack.c.l.b16 %v3244
          %v3496 = vunpack.c.h.b16 %v3244
          %v3497 = vunpack.c.l.b16 %v3245
          %v3498 = vunpack.c.h.b16 %v3245
          %v3499 = vunpack.c.l.b16 %v3246
          %v3500 = vunpack.c.h.b16 %v3246
          %v3501 = vpack.c.b16 %v3489, %v3485
          %v3502 = vpack.c.b16 %v3490, %v3486
          %v3503 = vpack.c.b16 %v3491, %v3487
          %v3504 = vpack.c.b16 %v3492, %v3488
          %v3505 = vpack.c.b16 %v3497, %v3493
          %v3506 = vpack.c.b16 %v3498, %v3494
          %v3507 = vpack.c.b16 %v3499, %v3495
          %v3508 = vpack.c.b16 %v3500, %v3496
          %3517 = vmatpush.bf16.xpose.msra.mxu0 0
          %3518 = vmatpush.bf16.xpose.msra.mxu0 0
          %3519 = vmatpush.bf16.xpose.msra.mxu0 0
          %3520 = vmatpush.bf16.xpose.msra.mxu0 0
          %3521 = vmatpush.bf16.xpose.msra.mxu0 0
          %3522 = vmatpush.bf16.xpose.msra.mxu0 0
          %3523 = vmatpush.bf16.xpose.msra.mxu0 %v3505
          %3524 = vmatpush.bf16.xpose.msra.mxu0 %v3501
          %3525 = vmatmul.bf16.gmra.mxu0 %v3235
          %v3526 = vpop.f32.mrf.mxu0
          %v3527 = vadd.f32 %v3473, %v3526
          %v3528 = vpop.f32.mrf.mxu0
          %v3529 = vadd.f32 %v3475, %v3528
          %3530 = vdwg.mxu0
          %3531 = vmatpush.bf16.xpose.msra.mxu0 0
          %3532 = vmatpush.bf16.xpose.msra.mxu0 0
          %3533 = vmatpush.bf16.xpose.msra.mxu0 0
          %3534 = vmatpush.bf16.xpose.msra.mxu0 0
          %3535 = vmatpush.bf16.xpose.msra.mxu0 0
          %3536 = vmatpush.bf16.xpose.msra.mxu0 0
          %3537 = vmatpush.bf16.xpose.msra.mxu0 %v3506
          %3538 = vmatpush.bf16.xpose.msra.mxu0 %v3502
          %3539 = vmatmul.bf16.gmra.mxu0 %v3236
          %v3540 = vpop.f32.mrf.mxu0
          %v3541 = vadd.f32 %v3527, %v3540
          %v3542 = vpop.f32.mrf.mxu0
          %v3543 = vadd.f32 %v3529, %v3542
          %3544 = vdwg.mxu0
          %3545 = vmatpush.bf16.xpose.msra.mxu0 0
          %3546 = vmatpush.bf16.xpose.msra.mxu0 0
          %3547 = vmatpush.bf16.xpose.msra.mxu0 0
          %3548 = vmatpush.bf16.xpose.msra.mxu0 0
          %3549 = vmatpush.bf16.xpose.msra.mxu0 0
          %3550 = vmatpush.bf16.xpose.msra.mxu0 0
          %3551 = vmatpush.bf16.xpose.msra.mxu0 %v3507
          %3552 = vmatpush.bf16.xpose.msra.mxu0 %v3503
          %3553 = vmatmul.bf16.gmra.mxu0 %v3237
          %v3554 = vpop.f32.mrf.mxu0
          %v3555 = vadd.f32 %v3541, %v3554
          %v3556 = vpop.f32.mrf.mxu0
          %v3557 = vadd.f32 %v3543, %v3556
          %3558 = vdwg.mxu0
          %3559 = vmatpush.bf16.xpose.msra.mxu0 0
          %3560 = vmatpush.bf16.xpose.msra.mxu0 0
          %3561 = vmatpush.bf16.xpose.msra.mxu0 0
          %3562 = vmatpush.bf16.xpose.msra.mxu0 0
          %3563 = vmatpush.bf16.xpose.msra.mxu0 0
          %3564 = vmatpush.bf16.xpose.msra.mxu0 0
          %3565 = vmatpush.bf16.xpose.msra.mxu0 %v3508
          %3566 = vmatpush.bf16.xpose.msra.mxu0 %v3504
          %3567 = vmatmul.bf16.gmra.mxu0 %v3238
          %v3568 = vpop.f32.mrf.mxu0
          %v3569 = vadd.f32 %v3555, %v3568
          %v3570 = vpop.f32.mrf.mxu0
          %v3571 = vadd.f32 %v3557, %v3570
          %3572 = vdwg.mxu0
          %v3573 = vld [vmem:[%s2500 + $0x20] sm:$0xff]
          %v3574 = vld [vmem:[%s2500 + $0x28] sm:$0xff]
          %v3575 = vld [vmem:[%s2500 + $0x60] sm:$0xff]
          %v3576 = vld [vmem:[%s2500 + $0x68] sm:$0xff]
          %v3577 = vld [vmem:[%s2500 + $0xa0] sm:$0xff]
          %v3578 = vld [vmem:[%s2500 + $0xa8] sm:$0xff]
          %v3579 = vld [vmem:[%s2500 + $0xe0] sm:$0xff]
          %v3580 = vld [vmem:[%s2500 + $0xe8] sm:$0xff]
          %v3581 = vld [vmem:[%s2508 + $0x8] sm:$0xf]
          %v3583 = vperm.slane %v3581, 0
          %v3584 = vperm.slane %v3581, 1
          %v3585 = vperm.slane %v3581, 2
          %v3586 = vperm.slane %v3581, 3
          %v3599 = vunpack.c.l.b16 %v3573
          %v3600 = vunpack.c.h.b16 %v3573
          %v3601 = vunpack.c.l.b16 %v3574
          %v3602 = vunpack.c.h.b16 %v3574
          %v3603 = vunpack.c.l.b16 %v3575
          %v3604 = vunpack.c.h.b16 %v3575
          %v3605 = vunpack.c.l.b16 %v3576
          %v3606 = vunpack.c.h.b16 %v3576
          %v3607 = vunpack.c.l.b16 %v3577
          %v3608 = vunpack.c.h.b16 %v3577
          %v3609 = vunpack.c.l.b16 %v3578
          %v3610 = vunpack.c.h.b16 %v3578
          %v3611 = vunpack.c.l.b16 %v3579
          %v3612 = vunpack.c.h.b16 %v3579
          %v3613 = vunpack.c.l.b16 %v3580
          %v3614 = vunpack.c.h.b16 %v3580
          %v3615 = vpack.c.b16 %v3603, %v3599
          %v3616 = vpack.c.b16 %v3604, %v3600
          %v3617 = vpack.c.b16 %v3605, %v3601
          %v3618 = vpack.c.b16 %v3606, %v3602
          %v3619 = vpack.c.b16 %v3611, %v3607
          %v3620 = vpack.c.b16 %v3612, %v3608
          %v3621 = vpack.c.b16 %v3613, %v3609
          %v3622 = vpack.c.b16 %v3614, %v3610
          %3631 = vmatpush.bf16.msra.mxu0 0
          %3632 = vmatpush.bf16.msra.mxu0 0
          %3633 = vmatpush.bf16.msra.mxu0 0
          %3634 = vmatpush.bf16.msra.mxu0 0
          %3635 = vmatpush.bf16.msra.mxu0 0
          %3636 = vmatpush.bf16.msra.mxu0 0
          %3637 = vmatpush.bf16.msra.mxu0 %v3619
          %3638 = vmatpush.bf16.msra.mxu0 %v3615
          %3639 = vmatmul.bf16.gmra.mxu0 %v3169
          %v3640 = vpop.f32.mrf.mxu0
          %v3641 = vadd.f32 %v3583, %v3640
          %v3642 = vpop.f32.mrf.mxu0
          %v3643 = vadd.f32 %v3583, %v3642
          %3644 = vdwg.mxu0
          %3645 = vmatpush.bf16.msra.mxu0 0
          %3646 = vmatpush.bf16.msra.mxu0 0
          %3647 = vmatpush.bf16.msra.mxu0 0
          %3648 = vmatpush.bf16.msra.mxu0 0
          %3649 = vmatpush.bf16.msra.mxu0 0
          %3650 = vmatpush.bf16.msra.mxu0 0
          %3651 = vmatpush.bf16.msra.mxu0 %v3620
          %3652 = vmatpush.bf16.msra.mxu0 %v3616
          %3653 = vmatmul.bf16.gmra.mxu0 %v3169
          %v3654 = vpop.f32.mrf.mxu0
          %v3655 = vadd.f32 %v3584, %v3654
          %v3656 = vpop.f32.mrf.mxu0
          %v3657 = vadd.f32 %v3584, %v3656
          %3658 = vdwg.mxu0
          %3659 = vmatpush.bf16.msra.mxu0 0
          %3660 = vmatpush.bf16.msra.mxu0 0
          %3661 = vmatpush.bf16.msra.mxu0 0
          %3662 = vmatpush.bf16.msra.mxu0 0
          %3663 = vmatpush.bf16.msra.mxu0 0
          %3664 = vmatpush.bf16.msra.mxu0 0
          %3665 = vmatpush.bf16.msra.mxu0 %v3621
          %3666 = vmatpush.bf16.msra.mxu0 %v3617
          %3667 = vmatmul.bf16.gmra.mxu0 %v3169
          %v3668 = vpop.f32.mrf.mxu0
          %v3669 = vadd.f32 %v3585, %v3668
          %v3670 = vpop.f32.mrf.mxu0
          %v3671 = vadd.f32 %v3585, %v3670
          %3672 = vdwg.mxu0
          %3673 = vmatpush.bf16.msra.mxu0 0
          %3674 = vmatpush.bf16.msra.mxu0 0
          %3675 = vmatpush.bf16.msra.mxu0 0
          %3676 = vmatpush.bf16.msra.mxu0 0
          %3677 = vmatpush.bf16.msra.mxu0 0
          %3678 = vmatpush.bf16.msra.mxu0 0
          %3679 = vmatpush.bf16.msra.mxu0 %v3622
          %3680 = vmatpush.bf16.msra.mxu0 %v3618
          %3681 = vmatmul.bf16.gmra.mxu0 %v3169
          %v3682 = vpop.f32.mrf.mxu0
          %v3683 = vadd.f32 %v3586, %v3682
          %v3684 = vpop.f32.mrf.mxu0
          %v3685 = vadd.f32 %v3586, %v3684
          %3686 = vdwg.mxu0
          %v3687 = vmax.f32 %v3641, 0.0
          %v3688 = vmax.f32 %v3655, 0.0
          %v3689 = vmax.f32 %v3669, 0.0
          %v3690 = vmax.f32 %v3683, 0.0
          %v3691 = vmax.f32 %v3643, 0.0
          %v3692 = vmax.f32 %v3657, 0.0
          %v3693 = vmax.f32 %v3671, 0.0
          %v3694 = vmax.f32 %v3685, 0.0
          %v3695 = vpack.c.bf16 %v3691, %v3687
          %v3696 = vpack.c.bf16 %v3692, %v3688
          %v3697 = vpack.c.bf16 %v3693, %v3689
          %v3698 = vpack.c.bf16 %v3694, %v3690
          %v3699 = vld [vmem:[%s2085 + $0x20] sm:$0xff]
          %v3700 = vld [vmem:[%s2085 + $0x28] sm:$0xff]
          %v3701 = vld [vmem:[%s2085 + $0x60] sm:$0xff]
          %v3702 = vld [vmem:[%s2085 + $0x68] sm:$0xff]
          %v3703 = vld [vmem:[%s2085 + $0xa0] sm:$0xff]
          %v3704 = vld [vmem:[%s2085 + $0xa8] sm:$0xff]
          %v3705 = vld [vmem:[%s2085 + $0xe0] sm:$0xff]
          %v3706 = vld [vmem:[%s2085 + $0xe8] sm:$0xff]
          %v3715 = vunpack.c.l.b16 %v3699
          %v3716 = vunpack.c.h.b16 %v3699
          %v3717 = vunpack.c.l.b16 %v3700
          %v3718 = vunpack.c.h.b16 %v3700
          %v3719 = vunpack.c.l.b16 %v3701
          %v3720 = vunpack.c.h.b16 %v3701
          %v3721 = vunpack.c.l.b16 %v3702
          %v3722 = vunpack.c.h.b16 %v3702
          %v3723 = vunpack.c.l.b16 %v3703
          %v3724 = vunpack.c.h.b16 %v3703
          %v3725 = vunpack.c.l.b16 %v3704
          %v3726 = vunpack.c.h.b16 %v3704
          %v3727 = vunpack.c.l.b16 %v3705
          %v3728 = vunpack.c.h.b16 %v3705
          %v3729 = vunpack.c.l.b16 %v3706
          %v3730 = vunpack.c.h.b16 %v3706
          %v3731 = vpack.c.b16 %v3719, %v3715
          %v3732 = vpack.c.b16 %v3720, %v3716
          %v3733 = vpack.c.b16 %v3721, %v3717
          %v3734 = vpack.c.b16 %v3722, %v3718
          %v3735 = vpack.c.b16 %v3727, %v3723
          %v3736 = vpack.c.b16 %v3728, %v3724
          %v3737 = vpack.c.b16 %v3729, %v3725
          %v3738 = vpack.c.b16 %v3730, %v3726
          %3747 = vmatpush.bf16.xpose.msra.mxu0 0
          %3748 = vmatpush.bf16.xpose.msra.mxu0 0
          %3749 = vmatpush.bf16.xpose.msra.mxu0 0
          %3750 = vmatpush.bf16.xpose.msra.mxu0 0
          %3751 = vmatpush.bf16.xpose.msra.mxu0 0
          %3752 = vmatpush.bf16.xpose.msra.mxu0 0
          %3753 = vmatpush.bf16.xpose.msra.mxu0 %v3735
          %3754 = vmatpush.bf16.xpose.msra.mxu0 %v3731
          %3755 = vmatmul.bf16.gmra.mxu0 %v3695
          %v3756 = vpop.f32.mrf.mxu0
          %v3757 = vadd.f32 0.0, %v3756
          %v3758 = vpop.f32.mrf.mxu0
          %v3759 = vadd.f32 0.0, %v3758
          %3760 = vdwg.mxu0
          %3761 = vmatpush.bf16.xpose.msra.mxu0 0
          %3762 = vmatpush.bf16.xpose.msra.mxu0 0
          %3763 = vmatpush.bf16.xpose.msra.mxu0 0
          %3764 = vmatpush.bf16.xpose.msra.mxu0 0
          %3765 = vmatpush.bf16.xpose.msra.mxu0 0
          %3766 = vmatpush.bf16.xpose.msra.mxu0 0
          %3767 = vmatpush.bf16.xpose.msra.mxu0 %v3736
          %3768 = vmatpush.bf16.xpose.msra.mxu0 %v3732
          %3769 = vmatmul.bf16.gmra.mxu0 %v3696
          %v3770 = vpop.f32.mrf.mxu0
          %v3771 = vadd.f32 %v3757, %v3770
          %v3772 = vpop.f32.mrf.mxu0
          %v3773 = vadd.f32 %v3759, %v3772
          %3774 = vdwg.mxu0
          %3775 = vmatpush.bf16.xpose.msra.mxu0 0
          %3776 = vmatpush.bf16.xpose.msra.mxu0 0
          %3777 = vmatpush.bf16.xpose.msra.mxu0 0
          %3778 = vmatpush.bf16.xpose.msra.mxu0 0
          %3779 = vmatpush.bf16.xpose.msra.mxu0 0
          %3780 = vmatpush.bf16.xpose.msra.mxu0 0
          %3781 = vmatpush.bf16.xpose.msra.mxu0 %v3737
          %3782 = vmatpush.bf16.xpose.msra.mxu0 %v3733
          %3783 = vmatmul.bf16.gmra.mxu0 %v3697
          %v3784 = vpop.f32.mrf.mxu0
          %v3785 = vadd.f32 %v3771, %v3784
          %v3786 = vpop.f32.mrf.mxu0
          %v3787 = vadd.f32 %v3773, %v3786
          %3788 = vdwg.mxu0
          %3789 = vmatpush.bf16.xpose.msra.mxu0 0
          %3790 = vmatpush.bf16.xpose.msra.mxu0 0
          %3791 = vmatpush.bf16.xpose.msra.mxu0 0
          %3792 = vmatpush.bf16.xpose.msra.mxu0 0
          %3793 = vmatpush.bf16.xpose.msra.mxu0 0
          %3794 = vmatpush.bf16.xpose.msra.mxu0 0
          %3795 = vmatpush.bf16.xpose.msra.mxu0 %v3738
          %3796 = vmatpush.bf16.xpose.msra.mxu0 %v3734
          %3797 = vmatmul.bf16.gmra.mxu0 %v3698
          %v3798 = vpop.f32.mrf.mxu0
          %v3799 = vadd.f32 %v3785, %v3798
          %v3800 = vpop.f32.mrf.mxu0
          %v3801 = vadd.f32 %v3787, %v3800
          %3802 = vdwg.mxu0
          %v3803 = vadd.f32 %v3569, %v3799
          %v3804 = vadd.f32 %v3571, %v3801
          %v3805 = vld [vmem:[%s2500 + $0x30] sm:$0xff]
          %v3806 = vld [vmem:[%s2500 + $0x38] sm:$0xff]
          %v3807 = vld [vmem:[%s2500 + $0x70] sm:$0xff]
          %v3808 = vld [vmem:[%s2500 + $0x78] sm:$0xff]
          %v3809 = vld [vmem:[%s2500 + $0xb0] sm:$0xff]
          %v3810 = vld [vmem:[%s2500 + $0xb8] sm:$0xff]
          %v3811 = vld [vmem:[%s2500 + $0xf0] sm:$0xff]
          %v3812 = vld [vmem:[%s2500 + $0xf8] sm:$0xff]
          %v3813 = vld [vmem:[%s2508 + $0xc] sm:$0xf]
          %v3815 = vperm.slane %v3813, 0
          %v3816 = vperm.slane %v3813, 1
          %v3817 = vperm.slane %v3813, 2
          %v3818 = vperm.slane %v3813, 3
          %v3831 = vunpack.c.l.b16 %v3805
          %v3832 = vunpack.c.h.b16 %v3805
          %v3833 = vunpack.c.l.b16 %v3806
          %v3834 = vunpack.c.h.b16 %v3806
          %v3835 = vunpack.c.l.b16 %v3807
          %v3836 = vunpack.c.h.b16 %v3807
          %v3837 = vunpack.c.l.b16 %v3808
          %v3838 = vunpack.c.h.b16 %v3808
          %v3839 = vunpack.c.l.b16 %v3809
          %v3840 = vunpack.c.h.b16 %v3809
          %v3841 = vunpack.c.l.b16 %v3810
          %v3842 = vunpack.c.h.b16 %v3810
          %v3843 = vunpack.c.l.b16 %v3811
          %v3844 = vunpack.c.h.b16 %v3811
          %v3845 = vunpack.c.l.b16 %v3812
          %v3846 = vunpack.c.h.b16 %v3812
          %v3847 = vpack.c.b16 %v3835, %v3831
          %v3848 = vpack.c.b16 %v3836, %v3832
          %v3849 = vpack.c.b16 %v3837, %v3833
          %v3850 = vpack.c.b16 %v3838, %v3834
          %v3851 = vpack.c.b16 %v3843, %v3839
          %v3852 = vpack.c.b16 %v3844, %v3840
          %v3853 = vpack.c.b16 %v3845, %v3841
          %v3854 = vpack.c.b16 %v3846, %v3842
          %3863 = vmatpush.bf16.msra.mxu0 0
          %3864 = vmatpush.bf16.msra.mxu0 0
          %3865 = vmatpush.bf16.msra.mxu0 0
          %3866 = vmatpush.bf16.msra.mxu0 0
          %3867 = vmatpush.bf16.msra.mxu0 0
          %3868 = vmatpush.bf16.msra.mxu0 0
          %3869 = vmatpush.bf16.msra.mxu0 %v3851
          %3870 = vmatpush.bf16.msra.mxu0 %v3847
          %3871 = vmatmul.bf16.gmra.mxu0 %v3169
          %v3872 = vpop.f32.mrf.mxu0
          %v3873 = vadd.f32 %v3815, %v3872
          %v3874 = vpop.f32.mrf.mxu0
          %v3875 = vadd.f32 %v3815, %v3874
          %3876 = vdwg.mxu0
          %3877 = vmatpush.bf16.msra.mxu0 0
          %3878 = vmatpush.bf16.msra.mxu0 0
          %3879 = vmatpush.bf16.msra.mxu0 0
          %3880 = vmatpush.bf16.msra.mxu0 0
          %3881 = vmatpush.bf16.msra.mxu0 0
          %3882 = vmatpush.bf16.msra.mxu0 0
          %3883 = vmatpush.bf16.msra.mxu0 %v3852
          %3884 = vmatpush.bf16.msra.mxu0 %v3848
          %3885 = vmatmul.bf16.gmra.mxu0 %v3169
          %v3886 = vpop.f32.mrf.mxu0
          %v3887 = vadd.f32 %v3816, %v3886
          %v3888 = vpop.f32.mrf.mxu0
          %v3889 = vadd.f32 %v3816, %v3888
          %3890 = vdwg.mxu0
          %3891 = vmatpush.bf16.msra.mxu0 0
          %3892 = vmatpush.bf16.msra.mxu0 0
          %3893 = vmatpush.bf16.msra.mxu0 0
          %3894 = vmatpush.bf16.msra.mxu0 0
          %3895 = vmatpush.bf16.msra.mxu0 0
          %3896 = vmatpush.bf16.msra.mxu0 0
          %3897 = vmatpush.bf16.msra.mxu0 %v3853
          %3898 = vmatpush.bf16.msra.mxu0 %v3849
          %3899 = vmatmul.bf16.gmra.mxu0 %v3169
          %v3900 = vpop.f32.mrf.mxu0
          %v3901 = vadd.f32 %v3817, %v3900
          %v3902 = vpop.f32.mrf.mxu0
          %v3903 = vadd.f32 %v3817, %v3902
          %3904 = vdwg.mxu0
          %3905 = vmatpush.bf16.msra.mxu0 0
          %3906 = vmatpush.bf16.msra.mxu0 0
          %3907 = vmatpush.bf16.msra.mxu0 0
          %3908 = vmatpush.bf16.msra.mxu0 0
          %3909 = vmatpush.bf16.msra.mxu0 0
          %3910 = vmatpush.bf16.msra.mxu0 0
          %3911 = vmatpush.bf16.msra.mxu0 %v3854
          %3912 = vmatpush.bf16.msra.mxu0 %v3850
          %3913 = vmatmul.bf16.gmra.mxu0 %v3169
          %v3914 = vpop.f32.mrf.mxu0
          %v3915 = vadd.f32 %v3818, %v3914
          %v3916 = vpop.f32.mrf.mxu0
          %v3917 = vadd.f32 %v3818, %v3916
          %3918 = vdwg.mxu0
          %v3919 = vmax.f32 %v3873, 0.0
          %v3920 = vmax.f32 %v3887, 0.0
          %v3921 = vmax.f32 %v3901, 0.0
          %v3922 = vmax.f32 %v3915, 0.0
          %v3923 = vmax.f32 %v3875, 0.0
          %v3924 = vmax.f32 %v3889, 0.0
          %v3925 = vmax.f32 %v3903, 0.0
          %v3926 = vmax.f32 %v3917, 0.0
          %v3927 = vpack.c.bf16 %v3923, %v3919
          %v3928 = vpack.c.bf16 %v3924, %v3920
          %v3929 = vpack.c.bf16 %v3925, %v3921
          %v3930 = vpack.c.bf16 %v3926, %v3922
          %v3931 = vld [vmem:[%s2085 + $0x30] sm:$0xff]
          %v3932 = vld [vmem:[%s2085 + $0x38] sm:$0xff]
          %v3933 = vld [vmem:[%s2085 + $0x70] sm:$0xff]
          %v3934 = vld [vmem:[%s2085 + $0x78] sm:$0xff]
          %v3935 = vld [vmem:[%s2085 + $0xb0] sm:$0xff]
          %v3936 = vld [vmem:[%s2085 + $0xb8] sm:$0xff]
          %v3937 = vld [vmem:[%s2085 + $0xf0] sm:$0xff]
          %v3938 = vld [vmem:[%s2085 + $0xf8] sm:$0xff]
          %v3947 = vunpack.c.l.b16 %v3931
          %v3948 = vunpack.c.h.b16 %v3931
          %v3949 = vunpack.c.l.b16 %v3932
          %v3950 = vunpack.c.h.b16 %v3932
          %v3951 = vunpack.c.l.b16 %v3933
          %v3952 = vunpack.c.h.b16 %v3933
          %v3953 = vunpack.c.l.b16 %v3934
          %v3954 = vunpack.c.h.b16 %v3934
          %v3955 = vunpack.c.l.b16 %v3935
          %v3956 = vunpack.c.h.b16 %v3935
          %v3957 = vunpack.c.l.b16 %v3936
          %v3958 = vunpack.c.h.b16 %v3936
          %v3959 = vunpack.c.l.b16 %v3937
          %v3960 = vunpack.c.h.b16 %v3937
          %v3961 = vunpack.c.l.b16 %v3938
          %v3962 = vunpack.c.h.b16 %v3938
          %v3963 = vpack.c.b16 %v3951, %v3947
          %v3964 = vpack.c.b16 %v3952, %v3948
          %v3965 = vpack.c.b16 %v3953, %v3949
          %v3966 = vpack.c.b16 %v3954, %v3950
          %v3967 = vpack.c.b16 %v3959, %v3955
          %v3968 = vpack.c.b16 %v3960, %v3956
          %v3969 = vpack.c.b16 %v3961, %v3957
          %v3970 = vpack.c.b16 %v3962, %v3958
          %3979 = vmatpush.bf16.xpose.msra.mxu0 0
          %3980 = vmatpush.bf16.xpose.msra.mxu0 0
          %3981 = vmatpush.bf16.xpose.msra.mxu0 0
          %3982 = vmatpush.bf16.xpose.msra.mxu0 0
          %3983 = vmatpush.bf16.xpose.msra.mxu0 0
          %3984 = vmatpush.bf16.xpose.msra.mxu0 0
          %3985 = vmatpush.bf16.xpose.msra.mxu0 %v3967
          %3986 = vmatpush.bf16.xpose.msra.mxu0 %v3963
          %3987 = vmatmul.bf16.gmra.mxu0 %v3927
          %v3988 = vpop.f32.mrf.mxu0
          %v3989 = vadd.f32 0.0, %v3988
          %v3990 = vpop.f32.mrf.mxu0
          %v3991 = vadd.f32 0.0, %v3990
          %3992 = vdwg.mxu0
          %3993 = vmatpush.bf16.xpose.msra.mxu0 0
          %3994 = vmatpush.bf16.xpose.msra.mxu0 0
          %3995 = vmatpush.bf16.xpose.msra.mxu0 0
          %3996 = vmatpush.bf16.xpose.msra.mxu0 0
          %3997 = vmatpush.bf16.xpose.msra.mxu0 0
          %3998 = vmatpush.bf16.xpose.msra.mxu0 0
          %3999 = vmatpush.bf16.xpose.msra.mxu0 %v3968
          %4000 = vmatpush.bf16.xpose.msra.mxu0 %v3964
          %4001 = vmatmul.bf16.gmra.mxu0 %v3928
          %v4002 = vpop.f32.mrf.mxu0
          %v4003 = vadd.f32 %v3989, %v4002
          %v4004 = vpop.f32.mrf.mxu0
          %v4005 = vadd.f32 %v3991, %v4004
          %4006 = vdwg.mxu0
          %4007 = vmatpush.bf16.xpose.msra.mxu0 0
          %4008 = vmatpush.bf16.xpose.msra.mxu0 0
          %4009 = vmatpush.bf16.xpose.msra.mxu0 0
          %4010 = vmatpush.bf16.xpose.msra.mxu0 0
          %4011 = vmatpush.bf16.xpose.msra.mxu0 0
          %4012 = vmatpush.bf16.xpose.msra.mxu0 0
          %4013 = vmatpush.bf16.xpose.msra.mxu0 %v3969
          %4014 = vmatpush.bf16.xpose.msra.mxu0 %v3965
          %4015 = vmatmul.bf16.gmra.mxu0 %v3929
          %v4016 = vpop.f32.mrf.mxu0
          %v4017 = vadd.f32 %v4003, %v4016
          %v4018 = vpop.f32.mrf.mxu0
          %v4019 = vadd.f32 %v4005, %v4018
          %4020 = vdwg.mxu0
          %4021 = vmatpush.bf16.xpose.msra.mxu0 0
          %4022 = vmatpush.bf16.xpose.msra.mxu0 0
          %4023 = vmatpush.bf16.xpose.msra.mxu0 0
          %4024 = vmatpush.bf16.xpose.msra.mxu0 0
          %4025 = vmatpush.bf16.xpose.msra.mxu0 0
          %4026 = vmatpush.bf16.xpose.msra.mxu0 0
          %4027 = vmatpush.bf16.xpose.msra.mxu0 %v3970
          %4028 = vmatpush.bf16.xpose.msra.mxu0 %v3966
          %4029 = vmatmul.bf16.gmra.mxu0 %v3930
          %v4030 = vpop.f32.mrf.mxu0
          %v4031 = vadd.f32 %v4017, %v4030
          %v4032 = vpop.f32.mrf.mxu0
          %v4033 = vadd.f32 %v4019, %v4032
          %4034 = vdwg.mxu0
          %v4035 = vadd.f32 %v3803, %v4031
          %v4036 = vadd.f32 %v3804, %v4033
          %v4037 = vld [vmem:[%s2094] sm:$0x1]
          %v4039 = vperm.slane %v4037, 0
          %v4041 = vadd.f32 %v4035, %v4039
          %v4042 = vadd.f32 %v4036, %v4039
          %v4043 = vadd.f32 %v3107, %v4041
          %v4044 = vadd.f32 %v3108, %v4042
          %v4045 = vld [vmem:[%s2066] sm:$0x1]
          %v4046 = vld [vmem:[%s2075] sm:$0x1]
          %v4047 = vsel %vm2661, %v4043, 0.0
          %4048 = vadd.xlane.f32.xlu0 %v4047
          %v4049 = vpop.xlane.xlu0 %4048
          %v4050 = vsel %vm2661, %v4044, 0.0
          %4051 = vadd.xlane.f32.xlu0 %v4050
          %v4052 = vpop.xlane.xlu0 %4051
          %v4053 = vmul.f32 %v4049, %v3060
          %v4054 = vmul.f32 %v4052, %v3060
          %v4055 = vsub.f32 %v4043, %v4053
          %v4056 = vsub.f32 %v4044, %v4054
          %v4057 = vmul.f32 %v4055, %v4055
          %v4058 = vmul.f32 %v4056, %v4056
          %v4059 = vsel %vm2661, %v4057, 0.0
          %4060 = vadd.xlane.f32.xlu0 %v4059
          %v4061 = vpop.xlane.xlu0 %4060
          %v4062 = vsel %vm2661, %v4058, 0.0
          %4063 = vadd.xlane.f32.xlu0 %v4062
          %v4064 = vpop.xlane.xlu0 %4063
          %v4065 = vmul.f32 %v4061, %v3060
          %v4066 = vmul.f32 %v4064, %v3060
          %v4067 = vadd.f32 %v4065, 1e-05
          %v4068 = vadd.f32 %v4066, 1e-05
          %v4069 = vrsqrt.pop %v4067
          %v4070 = vmul.f32 %v4069, %v4067
          %v4071 = vmul.f32 %v4070, %v4069
          %v4072 = vmul.f32 0.5, %v4071
          %v4073 = vsub.f32 1.5, %v4072
          %v4074 = vmul.f32 %v4069, %v4073
          %vm4075 = vweird.f32 %v4067
          %vm4076 = vweird.f32 %v4069
          %vm4077 = vmor %vm4075, %vm4076
          %v4078 = vsel %vm4077, %v4069, %v4074
          %v4079 = vrsqrt.pop %v4068
          %v4080 = vmul.f32 %v4079, %v4068
          %v4081 = vmul.f32 %v4080, %v4079
          %v4082 = vmul.f32 0.5, %v4081
          %v4083 = vsub.f32 1.5, %v4082
          %v4084 = vmul.f32 %v4079, %v4083
          %vm4085 = vweird.f32 %v4068
          %vm4086 = vweird.f32 %v4079
          %vm4087 = vmor %vm4085, %vm4086
          %v4088 = vsel %vm4087, %v4079, %v4084
          %v4089 = vmul.f32 %v4055, %v4078
          %v4090 = vmul.f32 %v4056, %v4088
          %v4092 = vperm.slane %v4045, 0
          %v4094 = vmul.f32 %v4089, %v4092
          %v4095 = vmul.f32 %v4090, %v4092
          %v4097 = vperm.slane %v4046, 0
          %v4099 = vadd.f32 %v4094, %v4097
          %v4100 = vadd.f32 %v4095, %v4097
          %4101 = vst.msk [vmem:[#allocation2] sm:$0xff] %vm2661, %v4099
          %4102 = vst.msk [vmem:[#allocation2 + $0x8] sm:$0xff] %vm2661, %v4100
        $region300: #{bird_forecasting_forward.1} parent=191 // pred_fallthru
          _
        %p4103 = scmp.eq.s32.totalorder %s135, 1
        // Predicated region
        $region301: #{bird_forecasting_forward.1} parent=191 // pred_check
          %p4104 = pneg %p4103
        $region302: #{bird_forecasting_forward.1} parent=191 // pred_check_branch
          %4106 = sbr.rel (%p4104) target = $region304
        $region303: #{bird_forecasting_forward.1} parent=191 // pred_region
          %v4107 = vld [vmem:[#allocation2] sm:$0xff]
          %v4108 = vld [vmem:[#allocation2 + $0x8] sm:$0xff]
          %v4109 = vld [vmem:[#allocation19] sm:$0x1]
          %v4110 = vld [vmem:[#allocation21] sm:$0x1]
          %vm4111 = vcmask 261120
          %v4112 = vsel %vm4111, %v4107, 0.0
          %4113 = vadd.xlane.f32.xlu0 %v4112
          %v4114 = vpop.xlane.xlu0 %4113
          %v4115 = vsel %vm4111, %v4108, 0.0
          %4116 = vadd.xlane.f32.xlu0 %v4115
          %v4117 = vpop.xlane.xlu0 %4116
          %v4118 = vrcp.pop 32.0
          %v4119 = vmul.f32 32.0, %v4118
          %v4120 = vsub.f32 1.0, %v4119
          %v4121 = vmul.f32 %v4118, %v4120
          %v4122 = vadd.f32 %v4118, %v4121
          %vm4123 = vweird.f32 %v4118
          %v4124 = vsel %vm4123, %v4118, %v4122
          %v4125 = vmul.f32 %v4114, %v4124
          %v4126 = vmul.f32 %v4117, %v4124
          %v4127 = vsub.f32 %v4107, %v4125
          %v4128 = vsub.f32 %v4108, %v4126
          %v4129 = vmul.f32 %v4127, %v4127
          %v4130 = vmul.f32 %v4128, %v4128
          %v4131 = vsel %vm4111, %v4129, 0.0
          %4132 = vadd.xlane.f32.xlu0 %v4131
          %v4133 = vpop.xlane.xlu0 %4132
          %v4134 = vsel %vm4111, %v4130, 0.0
          %4135 = vadd.xlane.f32.xlu0 %v4134
          %v4136 = vpop.xlane.xlu0 %4135
          %v4137 = vmul.f32 %v4133, %v4124
          %v4138 = vmul.f32 %v4136, %v4124
          %v4139 = vadd.f32 %v4137, 1e-05
          %v4140 = vadd.f32 %v4138, 1e-05
          %v4141 = vrsqrt.pop %v4139
          %v4142 = vmul.f32 %v4141, %v4139
          %v4143 = vmul.f32 %v4142, %v4141
          %v4144 = vmul.f32 0.5, %v4143
          %v4145 = vsub.f32 1.5, %v4144
          %v4146 = vmul.f32 %v4141, %v4145
          %vm4147 = vweird.f32 %v4139
          %vm4148 = vweird.f32 %v4141
          %vm4149 = vmor %vm4147, %vm4148
          %v4150 = vsel %vm4149, %v4141, %v4146
          %v4151 = vrsqrt.pop %v4140
          %v4152 = vmul.f32 %v4151, %v4140
          %v4153 = vmul.f32 %v4152, %v4151
          %v4154 = vmul.f32 0.5, %v4153
          %v4155 = vsub.f32 1.5, %v4154
          %v4156 = vmul.f32 %v4151, %v4155
          %vm4157 = vweird.f32 %v4140
          %vm4158 = vweird.f32 %v4151
          %vm4159 = vmor %vm4157, %vm4158
          %v4160 = vsel %vm4159, %v4151, %v4156
          %v4161 = vmul.f32 %v4127, %v4150
          %v4162 = vmul.f32 %v4128, %v4160
          %v4164 = vperm.slane %v4109, 0
          %v4166 = vmul.f32 %v4161, %v4164
          %v4167 = vmul.f32 %v4162, %v4164
          %v4169 = vperm.slane %v4110, 0
          %v4171 = vadd.f32 %v4166, %v4169
          %v4172 = vadd.f32 %v4167, %v4169
          %v4173 = vld [vmem:[%s39] sm:$0xff]
          %v4174 = vld [vmem:[%s39 + $0x8] sm:$0xff]
          %v4175 = vld [vmem:[%s39 + $0x10] sm:$0xff]
          %v4176 = vld [vmem:[%s39 + $0x18] sm:$0xff]
          %v4177 = vld [vmem:[%s39 + $0x20] sm:$0xff]
          %v4178 = vld [vmem:[%s39 + $0x28] sm:$0xff]
          %v4179 = vld [vmem:[%s39 + $0x30] sm:$0xff]
          %v4180 = vld [vmem:[%s39 + $0x38] sm:$0xff]
          %v4181 = vld [vmem:[%s39 + $0x40] sm:$0xff]
          %v4182 = vld [vmem:[%s39 + $0x48] sm:$0xff]
          %v4183 = vld [vmem:[%s39 + $0x50] sm:$0xff]
          %v4184 = vld [vmem:[%s39 + $0x58] sm:$0xff]
          %v4185 = vld [vmem:[%s41] sm:$0x7]
          %v4187 = vperm.slane %v4185, 0
          %v4188 = vperm.slane %v4185, 1
          %v4189 = vperm.slane %v4185, 2
          %v4194 = vsel %vm4111, %v4171, 0
          %v4197 = vsel %vm4111, %v4172, 0
          %4199 = vmatpush.msra.mxu0 0.0
          %4200 = vmatpush.msra.mxu0 0.0
          %4201 = vmatpush.msra.mxu0 0.0
          %4202 = vmatpush.msra.mxu0 0.0
          %4203 = vmatpush.msra.mxu0 0.0
          %4204 = vmatpush.msra.mxu0 0.0
          %4205 = vmatpush.msra.mxu0 0.0
          %4206 = vmatpush.msra.mxu0 0.0
          %4207 = vmatpush.msra.mxu0 0.0
          %4208 = vmatpush.msra.mxu0 0.0
          %4209 = vmatpush.msra.mxu0 0.0
          %4210 = vmatpush.msra.mxu0 0.0
          %4211 = vmatpush.msra.mxu0 %v4182
          %4212 = vmatpush.msra.mxu0 %v4179
          %4213 = vmatpush.msra.mxu0 %v4176
          %4214 = vmatpush.msra.mxu0 %v4173
          %4215 = vmatmul.f32.gmra.mxu0 %v4194
          %v4216 = vpop.f32.mrf.mxu0
          %v4217 = vadd.f32 %v4187, %v4216
          %4218 = vmatmul.f32.gmra.mxu0 %v4197
          %v4219 = vpop.f32.mrf.mxu0
          %v4220 = vadd.f32 %v4187, %v4219
          %4221 = vdwg.mxu0
          %4222 = vmatpush.msra.mxu0 0.0
          %4223 = vmatpush.msra.mxu0 0.0
          %4224 = vmatpush.msra.mxu0 0.0
          %4225 = vmatpush.msra.mxu0 0.0
          %4226 = vmatpush.msra.mxu0 0.0
          %4227 = vmatpush.msra.mxu0 0.0
          %4228 = vmatpush.msra.mxu0 0.0
          %4229 = vmatpush.msra.mxu0 0.0
          %4230 = vmatpush.msra.mxu0 0.0
          %4231 = vmatpush.msra.mxu0 0.0
          %4232 = vmatpush.msra.mxu0 0.0
          %4233 = vmatpush.msra.mxu0 0.0
          %4234 = vmatpush.msra.mxu0 %v4183
          %4235 = vmatpush.msra.mxu0 %v4180
          %4236 = vmatpush.msra.mxu0 %v4177
          %4237 = vmatpush.msra.mxu0 %v4174
          %4238 = vmatmul.f32.gmra.mxu0 %v4194
          %v4239 = vpop.f32.mrf.mxu0
          %v4240 = vadd.f32 %v4188, %v4239
          %4241 = vmatmul.f32.gmra.mxu0 %v4197
          %v4242 = vpop.f32.mrf.mxu0
          %v4243 = vadd.f32 %v4188, %v4242
          %4244 = vdwg.mxu0
          %4245 = vmatpush.msra.mxu0 0.0
          %4246 = vmatpush.msra.mxu0 0.0
          %4247 = vmatpush.msra.mxu0 0.0
          %4248 = vmatpush.msra.mxu0 0.0
          %4249 = vmatpush.msra.mxu0 0.0
          %4250 = vmatpush.msra.mxu0 0.0
          %4251 = vmatpush.msra.mxu0 0.0
          %4252 = vmatpush.msra.mxu0 0.0
          %4253 = vmatpush.msra.mxu0 0.0
          %4254 = vmatpush.msra.mxu0 0.0
          %4255 = vmatpush.msra.mxu0 0.0
          %4256 = vmatpush.msra.mxu0 0.0
          %4257 = vmatpush.msra.mxu0 %v4184
          %4258 = vmatpush.msra.mxu0 %v4181
          %4259 = vmatpush.msra.mxu0 %v4178
          %4260 = vmatpush.msra.mxu0 %v4175
          %4261 = vmatmul.f32.gmra.mxu0 %v4194
          %v4262 = vpop.f32.mrf.mxu0
          %v4263 = vadd.f32 %v4189, %v4262
          %4264 = vmatmul.f32.gmra.mxu0 %v4197
          %v4265 = vpop.f32.mrf.mxu0
          %v4266 = vadd.f32 %v4189, %v4265
          %4267 = vdwg.mxu0
          %vm4268 = vcmask 523264
          %4269 = vst.msk [vmem:[#allocation3] sm:$0xff] %vm4268, %v4217
          %4270 = vst.msk [vmem:[#allocation3 + $0x8] sm:$0xff] %vm4268, %v4220
          %4273 = vrot.lane.b32.xlu0 %v4217, 64
          %v4274 = vpop.permute.xlu0 %4273
          %4275 = vrot.lane.b32.xlu0 %v4220, 64
          %v4276 = vpop.permute.xlu0 %4275
          %s4279 = scalar_lea.vmem [#allocation3], 16
          %4280 = vst.msk [vmem:[%s4279] sm:$0xff] %vm4268, %v4274
          %4281 = vst.msk [vmem:[%s4279 + $0x8] sm:$0xff] %vm4268, %v4276
          %s4282 = scalar_lea.vmem [#allocation3], 32
          %4283 = vst.msk [vmem:[%s4282] sm:$0xff] %vm4268, %v4240
          %4284 = vst.msk [vmem:[%s4282 + $0x8] sm:$0xff] %vm4268, %v4243
          %4287 = vrot.lane.b32.xlu0 %v4240, 64
          %v4288 = vpop.permute.xlu0 %4287
          %4289 = vrot.lane.b32.xlu0 %v4243, 64
          %v4290 = vpop.permute.xlu0 %4289
          %s4293 = scalar_lea.vmem [#allocation3], 48
          %4294 = vst.msk [vmem:[%s4293] sm:$0xff] %vm4268, %v4288
          %4295 = vst.msk [vmem:[%s4293 + $0x8] sm:$0xff] %vm4268, %v4290
          %s4296 = scalar_lea.vmem [#allocation3], 64
          %4297 = vst.msk [vmem:[%s4296] sm:$0xff] %vm4268, %v4263
          %4298 = vst.msk [vmem:[%s4296 + $0x8] sm:$0xff] %vm4268, %v4266
          %4301 = vrot.lane.b32.xlu0 %v4263, 64
          %v4302 = vpop.permute.xlu0 %4301
          %4303 = vrot.lane.b32.xlu0 %v4266, 64
          %v4304 = vpop.permute.xlu0 %4303
          %s4307 = scalar_lea.vmem [#allocation3], 80
          %4308 = vst.msk [vmem:[%s4307] sm:$0xff] %vm4268, %v4302
          %4309 = vst.msk [vmem:[%s4307 + $0x8] sm:$0xff] %vm4268, %v4304
          %v4310 = vld [vmem:[%s1] sm:$0xff]
          %v4311 = vld [vmem:[%s1 + $0x8] sm:$0xff]
          %4312 = vst.msk [vmem:[#allocation2] sm:$0xff] %vm4111, %v4310
          %4313 = vst.msk [vmem:[#allocation2 + $0x8] sm:$0xff] %vm4111, %v4311
        $region304: #{bird_forecasting_forward.1} parent=191 // pred_fallthru
          _
        %p4314 = scmp.ge.s32.totalorder %s135, 2
        // Predicated region
        $region305: #{bird_forecasting_forward.1} parent=191 // pred_check
          %p4315 = pneg %p4314
        $region306: #{bird_forecasting_forward.1} parent=191 // pred_check_branch
          %4317 = sbr.rel (%p4315) target = $region308
        $region307: #{bird_forecasting_forward.1} parent=191 // pred_region
          %v4318 = vld [vmem:[#allocation2] sm:$0xff]
          %v4319 = vld [vmem:[#allocation2 + $0x8] sm:$0xff]
          %v4320 = vld [vmem:[%s2522] sm:$0xff]
          %v4321 = vld [vmem:[%s2522 + $0x8] sm:$0xff]
          %v4322 = vld [vmem:[%s2522 + $0x10] sm:$0xff]
          %v4323 = vld [vmem:[%s2522 + $0x18] sm:$0xff]
          %v4324 = vld [vmem:[%s2531] sm:$0x1]
          %v4325 = vld [vmem:[%s2114] sm:$0xff]
          %v4326 = vld [vmem:[%s2114 + $0x8] sm:$0xff]
          %v4327 = vld [vmem:[%s2114 + $0x10] sm:$0xff]
          %v4328 = vld [vmem:[%s2114 + $0x18] sm:$0xff]
          %v4329 = vld [vmem:[%s2543] sm:$0x1]
          %v4331 = vperm.slane %v4324, 0
          %vm4333 = vcmask 261120
          %v4335 = vsel %vm4333, %v4318, 0
          %v4338 = vsel %vm4333, %v4319, 0
          %4340 = vmatpush.msra.mxu0 0.0
          %4341 = vmatpush.msra.mxu0 0.0
          %4342 = vmatpush.msra.mxu0 0.0
          %4343 = vmatpush.msra.mxu0 0.0
          %4344 = vmatpush.msra.mxu0 0.0
          %4345 = vmatpush.msra.mxu0 0.0
          %4346 = vmatpush.msra.mxu0 0.0
          %4347 = vmatpush.msra.mxu0 0.0
          %4348 = vmatpush.msra.mxu0 0.0
          %4349 = vmatpush.msra.mxu0 0.0
          %4350 = vmatpush.msra.mxu0 0.0
          %4351 = vmatpush.msra.mxu0 0.0
          %4352 = vmatpush.msra.mxu0 %v4323
          %4353 = vmatpush.msra.mxu0 %v4322
          %4354 = vmatpush.msra.mxu0 %v4321
          %4355 = vmatpush.msra.mxu0 %v4320
          %4356 = vmatmul.f32.gmra.mxu0 %v4335
          %v4357 = vpop.f32.mrf.mxu0
          %v4358 = vadd.f32 %v4331, %v4357
          %4359 = vmatmul.f32.gmra.mxu0 %v4338
          %v4360 = vpop.f32.mrf.mxu0
          %v4361 = vadd.f32 %v4331, %v4360
          %4362 = vdwg.mxu0
          %4365 = vrot.lane.b32.xlu0 %v4358, 96
          %v4366 = vpop.permute.xlu0 %4365
          %4367 = vrot.lane.b32.xlu0 %v4361, 96
          %v4368 = vpop.permute.xlu0 %4367
          %4371 = vxpose.xlu0.b32.start [1/16] %v4366, 128
          %4372 = vxpose.xlu0.b32.cont [2/16] %v4368, 128
          %4373 = vxpose.xlu0.b32.cont [3/16] 0.0, 128
          %4374 = vxpose.xlu0.b32.cont [4/16] 0.0, 128
          %4375 = vxpose.xlu0.b32.cont [5/16] 0.0, 128
          %4376 = vxpose.xlu0.b32.cont [6/16] 0.0, 128
          %4377 = vxpose.xlu0.b32.cont [7/16] 0.0, 128
          %4378 = vxpose.xlu0.b32.cont [8/16] 0.0, 128
          %4379 = vxpose.xlu0.b32.cont [9/16] 0.0, 128
          %4380 = vxpose.xlu0.b32.cont [10/16] 0.0, 128
          %4381 = vxpose.xlu0.b32.cont [11/16] 0.0, 128
          %4382 = vxpose.xlu0.b32.cont [12/16] 0.0, 128
          %4383 = vxpose.xlu0.b32.cont [13/16] 0.0, 128
          %4384 = vxpose.xlu0.b32.cont [14/16] 0.0, 128
          %4385 = vxpose.xlu0.b32.cont [15/16] 0.0, 128
          %4386 = vxpose.xlu0.b32.end [16/16] 0.0, 128
          %v4387 = vpop.trf.xlu0
          %v4388 = vpop.trf.xlu0
          %v4389 = vpop.trf.xlu0
          %v4390 = vpop.trf.xlu0
          %v4391 = vpop.trf.xlu0
          %v4392 = vpop.trf.xlu0
          %v4393 = vpop.trf.xlu0
          %v4394 = vpop.trf.xlu0
          %v4395 = vpop.trf.xlu0
          %v4396 = vpop.trf.xlu0
          %v4397 = vpop.trf.xlu0
          %v4398 = vpop.trf.xlu0
          %v4399 = vpop.trf.xlu0
          %v4400 = vpop.trf.xlu0
          %v4401 = vpop.trf.xlu0
          %v4402 = vpop.trf.xlu0
          %vm4403 = vcmask 130048
          %v4405 = vsel %vm4403, %v4387, 0
          %v4408 = vsel %vm4403, %v4388, 0
          %v4411 = vsel %vm4403, %v4389, 0
          %v4414 = vsel %vm4403, %v4390, 0
          %4416 = vmatpush.msra.mxu0 0.0
          %4417 = vmatpush.msra.mxu0 0.0
          %4418 = vmatpush.msra.mxu0 0.0
          %4419 = vmatpush.msra.mxu0 0.0
          %4420 = vmatpush.msra.mxu0 0.0
          %4421 = vmatpush.msra.mxu0 0.0
          %4422 = vmatpush.msra.mxu0 0.0
          %4423 = vmatpush.msra.mxu0 0.0
          %4424 = vmatpush.msra.mxu0 0.0
          %4425 = vmatpush.msra.mxu0 0.0
          %4426 = vmatpush.msra.mxu0 0.0
          %4427 = vmatpush.msra.mxu0 0.0
          %4428 = vmatpush.msra.mxu0 0.0
          %4429 = vmatpush.msra.mxu0 0.0
          %4430 = vmatpush.msra.mxu0 %v2610
          %4431 = vmatpush.msra.mxu0 %v2609
          %4432 = vmatmul.f32.gmra.mxu0 %v4405
          %v4433 = vpop.f32.mrf.mxu0
          %v4434 = vadd.f32 0.0, %v4433
          %4435 = vmatmul.f32.gmra.mxu0 %v4408
          %v4436 = vpop.f32.mrf.mxu0
          %v4437 = vadd.f32 0.0, %v4436
          %4438 = vmatmul.f32.gmra.mxu0 %v4411
          %v4439 = vpop.f32.mrf.mxu0
          %v4440 = vadd.f32 0.0, %v4439
          %4441 = vmatmul.f32.gmra.mxu0 %v4414
          %v4442 = vpop.f32.mrf.mxu0
          %v4443 = vadd.f32 0.0, %v4442
          %4444 = vdwg.mxu0
          %v4445 = vmul.f32 %v4434, %v2611
          %v4446 = vmul.f32 %v4437, %v2612
          %v4447 = vmul.f32 %v4440, %v2613
          %v4448 = vmul.f32 %v4443, %v2614
          %v4449 = vsel %vm4333, %v4358, 0
          %v4451 = vsel %vm4333, %v4361, 0
          %4453 = vmatpush.msra.mxu0 0.0
          %4454 = vmatpush.msra.mxu0 0.0
          %4455 = vmatpush.msra.mxu0 0.0
          %4456 = vmatpush.msra.mxu0 0.0
          %4457 = vmatpush.msra.mxu0 0.0
          %4458 = vmatpush.msra.mxu0 0.0
          %4459 = vmatpush.msra.mxu0 0.0
          %4460 = vmatpush.msra.mxu0 0.0
          %4461 = vmatpush.msra.mxu0 0.0
          %4462 = vmatpush.msra.mxu0 0.0
          %4463 = vmatpush.msra.mxu0 0.0
          %4464 = vmatpush.msra.mxu0 0.0
          %4465 = vmatpush.msra.mxu0 %v4448
          %4466 = vmatpush.msra.mxu0 %v4447
          %4467 = vmatpush.msra.mxu0 %v4446
          %4468 = vmatpush.msra.mxu0 %v4445
          %4469 = vmatmul.f32.gmra.mxu0 %v4449
          %v4470 = vpop.f32.mrf.mxu0
          %v4471 = vadd.f32 0.0, %v4470
          %4472 = vmatmul.f32.gmra.mxu0 %v4451
          %v4473 = vpop.f32.mrf.mxu0
          %v4474 = vadd.f32 0.0, %v4473
          %4475 = vdwg.mxu0
          %v4476 = vmul.f32 %v4471, 0.5
          %v4477 = vmul.f32 %v4474, 0.5
          %v4478 = vadd.f32 %v4476, %v2631
          %v4479 = vadd.f32 %v4477, %v2632
          %4480 = vmax.xlane.f32.xlu0 %v4478
          %v4481 = vpop.xlane.xlu0 %4480
          %4482 = vmax.xlane.f32.xlu0 %v4479
          %v4483 = vpop.xlane.xlu0 %4482
          %v4484 = vsub.f32 %v4478, %v4481
          %v4485 = vsub.f32 %v4479, %v4483
          %v4486 = vmul.f32 %v4484, 1.442695
          %v4487 = vpow.pop %v4486
          %v4488 = vmul.f32 %v4485, 1.442695
          %v4489 = vpow.pop %v4488
          %4506 = vrot.lane.b32.xlu0 %v2615, 64
          %v4507 = vpop.permute.xlu0 %4506
          %4508 = vrot.lane.b32.xlu0 %v2616, 64
          %v4509 = vpop.permute.xlu0 %4508
          %4510 = vrot.lane.b32.xlu0 %v2617, 64
          %v4511 = vpop.permute.xlu0 %4510
          %4512 = vrot.lane.b32.xlu0 %v2618, 64
          %v4513 = vpop.permute.xlu0 %4512
          %4514 = vrot.lane.b32.xlu0 %v2619, 64
          %v4515 = vpop.permute.xlu0 %4514
          %4516 = vrot.lane.b32.xlu0 %v2620, 64
          %v4517 = vpop.permute.xlu0 %4516
          %4518 = vrot.lane.b32.xlu0 %v2621, 64
          %v4519 = vpop.permute.xlu0 %4518
          %4520 = vrot.lane.b32.xlu0 %v2622, 64
          %v4521 = vpop.permute.xlu0 %4520
          %4522 = vrot.lane.b32.xlu0 %v2623, 64
          %v4523 = vpop.permute.xlu0 %4522
          %4524 = vrot.lane.b32.xlu0 %v2624, 64
          %v4525 = vpop.permute.xlu0 %4524
          %4526 = vrot.lane.b32.xlu0 %v2625, 64
          %v4527 = vpop.permute.xlu0 %4526
          %4528 = vrot.lane.b32.xlu0 %v2626, 64
          %v4529 = vpop.permute.xlu0 %4528
          %4530 = vrot.lane.b32.xlu0 %v2627, 64
          %v4531 = vpop.permute.xlu0 %4530
          %4532 = vrot.lane.b32.xlu0 %v2628, 64
          %v4533 = vpop.permute.xlu0 %4532
          %4534 = vrot.lane.b32.xlu0 %v2629, 64
          %v4535 = vpop.permute.xlu0 %4534
          %4536 = vrot.lane.b32.xlu0 %v2630, 64
          %v4537 = vpop.permute.xlu0 %4536
          %v4554 = vmul.f32 %v4358, %v4507
          %v4555 = vmul.f32 %v4361, %v4509
          %v4556 = vmul.f32 %v4358, %v4511
          %v4557 = vmul.f32 %v4361, %v4513
          %v4558 = vmul.f32 %v4358, %v4515
          %v4559 = vmul.f32 %v4361, %v4517
          %v4560 = vmul.f32 %v4358, %v4519
          %v4561 = vmul.f32 %v4361, %v4521
          %v4562 = vmul.f32 %v4358, %v4523
          %v4563 = vmul.f32 %v4361, %v4525
          %v4564 = vmul.f32 %v4358, %v4527
          %v4565 = vmul.f32 %v4361, %v4529
          %v4566 = vmul.f32 %v4358, %v4531
          %v4567 = vmul.f32 %v4361, %v4533
          %v4568 = vmul.f32 %v4358, %v4535
          %v4569 = vmul.f32 %v4361, %v4537
          %4586 = vrot.lane.b32.xlu0 %v4554, 64
          %v4587 = vpop.permute.xlu0 %4586
          %4588 = vrot.lane.b32.xlu0 %v4555, 64
          %v4589 = vpop.permute.xlu0 %4588
          %4590 = vrot.lane.b32.xlu0 %v4556, 64
          %v4591 = vpop.permute.xlu0 %4590
          %4592 = vrot.lane.b32.xlu0 %v4557, 64
          %v4593 = vpop.permute.xlu0 %4592
          %4594 = vrot.lane.b32.xlu0 %v4558, 64
          %v4595 = vpop.permute.xlu0 %4594
          %4596 = vrot.lane.b32.xlu0 %v4559, 64
          %v4597 = vpop.permute.xlu0 %4596
          %4598 = vrot.lane.b32.xlu0 %v4560, 64
          %v4599 = vpop.permute.xlu0 %4598
          %4600 = vrot.lane.b32.xlu0 %v4561, 64
          %v4601 = vpop.permute.xlu0 %4600
          %4602 = vrot.lane.b32.xlu0 %v4562, 64
          %v4603 = vpop.permute.xlu0 %4602
          %4604 = vrot.lane.b32.xlu0 %v4563, 64
          %v4605 = vpop.permute.xlu0 %4604
          %4606 = vrot.lane.b32.xlu0 %v4564, 64
          %v4607 = vpop.permute.xlu0 %4606
          %4608 = vrot.lane.b32.xlu0 %v4565, 64
          %v4609 = vpop.permute.xlu0 %4608
          %4610 = vrot.lane.b32.xlu0 %v4566, 64
          %v4611 = vpop.permute.xlu0 %4610
          %4612 = vrot.lane.b32.xlu0 %v4567, 64
          %v4613 = vpop.permute.xlu0 %4612
          %4614 = vrot.lane.b32.xlu0 %v4568, 64
          %v4615 = vpop.permute.xlu0 %4614
          %4616 = vrot.lane.b32.xlu0 %v4569, 64
          %v4617 = vpop.permute.xlu0 %4616
          %4634 = vmatpush.msra.mxu0 %v4617
          %4635 = vmatpush.msra.mxu0 %v4615
          %4636 = vmatpush.msra.mxu0 %v4613
          %4637 = vmatpush.msra.mxu0 %v4611
          %4638 = vmatpush.msra.mxu0 %v4609
          %4639 = vmatpush.msra.mxu0 %v4607
          %4640 = vmatpush.msra.mxu0 %v4605
          %4641 = vmatpush.msra.mxu0 %v4603
          %4642 = vmatpush.msra.mxu0 %v4601
          %4643 = vmatpush.msra.mxu0 %v4599
          %4644 = vmatpush.msra.mxu0 %v4597
          %4645 = vmatpush.msra.mxu0 %v4595
          %4646 = vmatpush.msra.mxu0 %v4593
          %4647 = vmatpush.msra.mxu0 %v4591
          %4648 = vmatpush.msra.mxu0 %v4589
          %4649 = vmatpush.msra.mxu0 %v4587
          %4650 = vmatmul.f32.gmra.mxu0 %v4487
          %v4651 = vpop.f32.mrf.mxu0
          %v4652 = vadd.f32 0.0, %v4651
          %4653 = vmatmul.f32.gmra.mxu0 %v4489
          %v4654 = vpop.f32.mrf.mxu0
          %v4655 = vadd.f32 0.0, %v4654
          %4656 = vdwg.mxu0
          %4657 = vmatpush.msra.mxu0 %v2630
          %4658 = vmatpush.msra.mxu0 %v2629
          %4659 = vmatpush.msra.mxu0 %v2628
          %4660 = vmatpush.msra.mxu0 %v2627
          %4661 = vmatpush.msra.mxu0 %v2626
          %4662 = vmatpush.msra.mxu0 %v2625
          %4663 = vmatpush.msra.mxu0 %v2624
          %4664 = vmatpush.msra.mxu0 %v2623
          %4665 = vmatpush.msra.mxu0 %v2622
          %4666 = vmatpush.msra.mxu0 %v2621
          %4667 = vmatpush.msra.mxu0 %v2620
          %4668 = vmatpush.msra.mxu0 %v2619
          %4669 = vmatpush.msra.mxu0 %v2618
          %4670 = vmatpush.msra.mxu0 %v2617
          %4671 = vmatpush.msra.mxu0 %v2616
          %4672 = vmatpush.msra.mxu0 %v2615
          %4673 = vmatmul.f32.gmra.mxu0 %v4487
          %v4674 = vpop.f32.mrf.mxu0
          %v4675 = vadd.f32 0.0, %v4674
          %4676 = vmatmul.f32.gmra.mxu0 %v4489
          %v4677 = vpop.f32.mrf.mxu0
          %v4678 = vadd.f32 0.0, %v4677
          %4679 = vdwg.mxu0
          %v4680 = vrcp.pop %v4675
          %v4681 = vrcp.pop %v4678
          %v4682 = vmul.f32 %v4652, %v4680
          %v4683 = vmul.f32 %v4655, %v4681
          %v4685 = vperm.slane %v4329, 0
          %v4688 = vsel %vm4333, %v4682, 0
          %v4691 = vsel %vm4333, %v4683, 0
          %4693 = vmatpush.msra.mxu0 0.0
          %4694 = vmatpush.msra.mxu0 0.0
          %4695 = vmatpush.msra.mxu0 0.0
          %4696 = vmatpush.msra.mxu0 0.0
          %4697 = vmatpush.msra.mxu0 0.0
          %4698 = vmatpush.msra.mxu0 0.0
          %4699 = vmatpush.msra.mxu0 0.0
          %4700 = vmatpush.msra.mxu0 0.0
          %4701 = vmatpush.msra.mxu0 0.0
          %4702 = vmatpush.msra.mxu0 0.0
          %4703 = vmatpush.msra.mxu0 0.0
          %4704 = vmatpush.msra.mxu0 0.0
          %4705 = vmatpush.msra.mxu0 %v4328
          %4706 = vmatpush.msra.mxu0 %v4327
          %4707 = vmatpush.msra.mxu0 %v4326
          %4708 = vmatpush.msra.mxu0 %v4325
          %4709 = vmatmul.f32.gmra.mxu0 %v4688
          %v4710 = vpop.f32.mrf.mxu0
          %v4711 = vadd.f32 %v4685, %v4710
          %4712 = vmatmul.f32.gmra.mxu0 %v4691
          %v4713 = vpop.f32.mrf.mxu0
          %v4714 = vadd.f32 %v4685, %v4713
          %4715 = vdwg.mxu0
          %v4716 = vadd.f32 %v4318, %v4711
          %v4717 = vadd.f32 %v4319, %v4714
          %v4718 = vld [vmem:[%s2143] sm:$0x1]
          %v4719 = vld [vmem:[%s2152] sm:$0x1]
          %v4720 = vsel %vm4333, %v4716, 0.0
          %4721 = vadd.xlane.f32.xlu0 %v4720
          %v4722 = vpop.xlane.xlu0 %4721
          %v4723 = vsel %vm4333, %v4717, 0.0
          %4724 = vadd.xlane.f32.xlu0 %v4723
          %v4725 = vpop.xlane.xlu0 %4724
          %v4726 = vrcp.pop 32.0
          %v4727 = vmul.f32 32.0, %v4726
          %v4728 = vsub.f32 1.0, %v4727
          %v4729 = vmul.f32 %v4726, %v4728
          %v4730 = vadd.f32 %v4726, %v4729
          %vm4731 = vweird.f32 %v4726
          %v4732 = vsel %vm4731, %v4726, %v4730
          %v4733 = vmul.f32 %v4722, %v4732
          %v4734 = vmul.f32 %v4725, %v4732
          %v4735 = vsub.f32 %v4716, %v4733
          %v4736 = vsub.f32 %v4717, %v4734
          %v4737 = vmul.f32 %v4735, %v4735
          %v4738 = vmul.f32 %v4736, %v4736
          %v4739 = vsel %vm4333, %v4737, 0.0
          %4740 = vadd.xlane.f32.xlu0 %v4739
          %v4741 = vpop.xlane.xlu0 %4740
          %v4742 = vsel %vm4333, %v4738, 0.0
          %4743 = vadd.xlane.f32.xlu0 %v4742
          %v4744 = vpop.xlane.xlu0 %4743
          %v4745 = vmul.f32 %v4741, %v4732
          %v4746 = vmul.f32 %v4744, %v4732
          %v4747 = vadd.f32 %v4745, 1e-05
          %v4748 = vadd.f32 %v4746, 1e-05
          %v4749 = vrsqrt.pop %v4747
          %v4750 = vmul.f32 %v4749, %v4747
          %v4751 = vmul.f32 %v4750, %v4749
          %v4752 = vmul.f32 0.5, %v4751
          %v4753 = vsub.f32 1.5, %v4752
          %v4754 = vmul.f32 %v4749, %v4753
          %vm4755 = vweird.f32 %v4747
          %vm4756 = vweird.f32 %v4749
          %vm4757 = vmor %vm4755, %vm4756
          %v4758 = vsel %vm4757, %v4749, %v4754
          %v4759 = vrsqrt.pop %v4748
          %v4760 = vmul.f32 %v4759, %v4748
          %v4761 = vmul.f32 %v4760, %v4759
          %v4762 = vmul.f32 0.5, %v4761
          %v4763 = vsub.f32 1.5, %v4762
          %v4764 = vmul.f32 %v4759, %v4763
          %vm4765 = vweird.f32 %v4748
          %vm4766 = vweird.f32 %v4759
          %vm4767 = vmor %vm4765, %vm4766
          %v4768 = vsel %vm4767, %v4759, %v4764
          %v4769 = vmul.f32 %v4735, %v4758
          %v4770 = vmul.f32 %v4736, %v4768
          %v4772 = vperm.slane %v4718, 0
          %v4774 = vmul.f32 %v4769, %v4772
          %v4775 = vmul.f32 %v4770, %v4772
          %v4777 = vperm.slane %v4719, 0
          %v4779 = vadd.f32 %v4774, %v4777
          %v4780 = vadd.f32 %v4775, %v4777
          %v4781 = vld [vmem:[%s2124] sm:$0xff]
          %v4782 = vld [vmem:[%s2124 + $0x8] sm:$0xff]
          %v4783 = vld [vmem:[%s2124 + $0x10] sm:$0xff]
          %v4784 = vld [vmem:[%s2124 + $0x18] sm:$0xff]
          %v4785 = vld [vmem:[%s2555] sm:$0x1]
          %v4787 = vperm.slane %v4785, 0
          %v4790 = vsel %vm4333, %v4779, 0
          %v4793 = vsel %vm4333, %v4780, 0
          %4795 = vmatpush.msra.mxu0 0.0
          %4796 = vmatpush.msra.mxu0 0.0
          %4797 = vmatpush.msra.mxu0 0.0
          %4798 = vmatpush.msra.mxu0 0.0
          %4799 = vmatpush.msra.mxu0 0.0
          %4800 = vmatpush.msra.mxu0 0.0
          %4801 = vmatpush.msra.mxu0 0.0
          %4802 = vmatpush.msra.mxu0 0.0
          %4803 = vmatpush.msra.mxu0 0.0
          %4804 = vmatpush.msra.mxu0 0.0
          %4805 = vmatpush.msra.mxu0 0.0
          %4806 = vmatpush.msra.mxu0 0.0
          %4807 = vmatpush.msra.mxu0 %v4784
          %4808 = vmatpush.msra.mxu0 %v4783
          %4809 = vmatpush.msra.mxu0 %v4782
          %4810 = vmatpush.msra.mxu0 %v4781
          %4811 = vmatmul.f32.gmra.mxu0 %v4790
          %v4812 = vpop.f32.mrf.mxu0
          %v4813 = vadd.f32 %v4787, %v4812
          %4814 = vmatmul.f32.gmra.mxu0 %v4793
          %v4815 = vpop.f32.mrf.mxu0
          %v4816 = vadd.f32 %v4787, %v4815
          %4817 = vdwg.mxu0
          %s4818 = ssub.s32 %s135, 2
          %s4819 = smul.u32 %s4818, 16
          %s4820 = scalar_lea.vmem [#allocation3], %s4819
          %v4821 = vld [vmem:[%s4820] sm:$0xff]
          %v4822 = vld [vmem:[%s4820 + $0x8] sm:$0xff]
          %4823 = vxpose.xlu0.b32.start [1/16] %v4821, 128
          %4824 = vxpose.xlu0.b32.cont [2/16] %v4822, 128
          %4825 = vxpose.xlu0.b32.cont [3/16] 0.0, 128
          %4826 = vxpose.xlu0.b32.cont [4/16] 0.0, 128
          %4827 = vxpose.xlu0.b32.cont [5/16] 0.0, 128
          %4828 = vxpose.xlu0.b32.cont [6/16] 0.0, 128
          %4829 = vxpose.xlu0.b32.cont [7/16] 0.0, 128
          %4830 = vxpose.xlu0.b32.cont [8/16] 0.0, 128
          %4831 = vxpose.xlu0.b32.cont [9/16] 0.0, 128
          %4832 = vxpose.xlu0.b32.cont [10/16] 0.0, 128
          %4833 = vxpose.xlu0.b32.cont [11/16] 0.0, 128
          %4834 = vxpose.xlu0.b32.cont [12/16] 0.0, 128
          %4835 = vxpose.xlu0.b32.cont [13/16] 0.0, 128
          %4836 = vxpose.xlu0.b32.cont [14/16] 0.0, 128
          %4837 = vxpose.xlu0.b32.cont [15/16] 0.0, 128
          %4838 = vxpose.xlu0.b32.end [16/16] 0.0, 128
          %v4839 = vpop.trf.xlu0
          %v4840 = vpop.trf.xlu0
          %v4841 = vpop.trf.xlu0
          %v4842 = vpop.trf.xlu0
          %v4843 = vpop.trf.xlu0
          %v4844 = vpop.trf.xlu0
          %v4845 = vpop.trf.xlu0
          %v4846 = vpop.trf.xlu0
          %v4847 = vpop.trf.xlu0
          %v4848 = vpop.trf.xlu0
          %v4849 = vpop.trf.xlu0
          %v4850 = vpop.trf.xlu0
          %v4851 = vpop.trf.xlu0
          %v4852 = vpop.trf.xlu0
          %v4853 = vpop.trf.xlu0
          %v4854 = vpop.trf.xlu0
          %v4856 = vsel %vm4403, %v4839, 0
          %v4859 = vsel %vm4403, %v4840, 0
          %v4862 = vsel %vm4403, %v4841, 0
          %v4865 = vsel %vm4403, %v4842, 0
          %4867 = vmatpush.msra.mxu0 0.0
          %4868 = vmatpush.msra.mxu0 0.0
          %4869 = vmatpush.msra.mxu0 0.0
          %4870 = vmatpush.msra.mxu0 0.0
          %4871 = vmatpush.msra.mxu0 0.0
          %4872 = vmatpush.msra.mxu0 0.0
          %4873 = vmatpush.msra.mxu0 0.0
          %4874 = vmatpush.msra.mxu0 0.0
          %4875 = vmatpush.msra.mxu0 0.0
          %4876 = vmatpush.msra.mxu0 0.0
          %4877 = vmatpush.msra.mxu0 0.0
          %4878 = vmatpush.msra.mxu0 0.0
          %4879 = vmatpush.msra.mxu0 0.0
          %4880 = vmatpush.msra.mxu0 0.0
          %4881 = vmatpush.msra.mxu0 %v2610
          %4882 = vmatpush.msra.mxu0 %v2609
          %4883 = vmatmul.f32.gmra.mxu0 %v4856
          %v4884 = vpop.f32.mrf.mxu0
          %v4885 = vadd.f32 0.0, %v4884
          %4886 = vmatmul.f32.gmra.mxu0 %v4859
          %v4887 = vpop.f32.mrf.mxu0
          %v4888 = vadd.f32 0.0, %v4887
          %4889 = vmatmul.f32.gmra.mxu0 %v4862
          %v4890 = vpop.f32.mrf.mxu0
          %v4891 = vadd.f32 0.0, %v4890
          %4892 = vmatmul.f32.gmra.mxu0 %v4865
          %v4893 = vpop.f32.mrf.mxu0
          %v4894 = vadd.f32 0.0, %v4893
          %4895 = vdwg.mxu0
          %v4896 = vmul.f32 %v4885, %v2611
          %v4897 = vmul.f32 %v4888, %v2612
          %v4898 = vmul.f32 %v4891, %v2613
          %v4899 = vmul.f32 %v4894, %v2614
          %v4901 = vsel %vm4333, %v4813, 0
          %v4904 = vsel %vm4333, %v4816, 0
          %4906 = vmatpush.msra.mxu0 0.0
          %4907 = vmatpush.msra.mxu0 0.0
          %4908 = vmatpush.msra.mxu0 0.0
          %4909 = vmatpush.msra.mxu0 0.0
          %4910 = vmatpush.msra.mxu0 0.0
          %4911 = vmatpush.msra.mxu0 0.0
          %4912 = vmatpush.msra.mxu0 0.0
          %4913 = vmatpush.msra.mxu0 0.0
          %4914 = vmatpush.msra.mxu0 0.0
          %4915 = vmatpush.msra.mxu0 0.0
          %4916 = vmatpush.msra.mxu0 0.0
          %4917 = vmatpush.msra.mxu0 0.0
          %4918 = vmatpush.msra.mxu0 %v4899
          %4919 = vmatpush.msra.mxu0 %v4898
          %4920 = vmatpush.msra.mxu0 %v4897
          %4921 = vmatpush.msra.mxu0 %v4896
          %4922 = vmatmul.f32.gmra.mxu0 %v4901
          %v4923 = vpop.f32.mrf.mxu0
          %v4924 = vadd.f32 0.0, %v4923
          %4925 = vmatmul.f32.gmra.mxu0 %v4904
          %v4926 = vpop.f32.mrf.mxu0
          %v4927 = vadd.f32 0.0, %v4926
          %4928 = vdwg.mxu0
          %v4929 = vmul.f32 %v4924, 0.5
          %v4930 = vmul.f32 %v4927, 0.5
          %v4931 = vadd.f32 %v4929, %v2631
          %v4932 = vadd.f32 %v4930, %v2632
          %4933 = vmax.xlane.f32.xlu0 %v4931
          %v4934 = vpop.xlane.xlu0 %4933
          %4935 = vmax.xlane.f32.xlu0 %v4932
          %v4936 = vpop.xlane.xlu0 %4935
          %v4937 = vsub.f32 %v4931, %v4934
          %v4938 = vsub.f32 %v4932, %v4936
          %v4939 = vmul.f32 %v4937, 1.442695
          %v4940 = vpow.pop %v4939
          %v4941 = vmul.f32 %v4938, 1.442695
          %v4942 = vpow.pop %v4941
          %4943 = vrot.lane.b32.xlu0 %v2615, 32
          %v4944 = vpop.permute.xlu0 %4943
          %4945 = vrot.lane.b32.xlu0 %v2616, 32
          %v4946 = vpop.permute.xlu0 %4945
          %4947 = vrot.lane.b32.xlu0 %v2617, 32
          %v4948 = vpop.permute.xlu0 %4947
          %4949 = vrot.lane.b32.xlu0 %v2618, 32
          %v4950 = vpop.permute.xlu0 %4949
          %4951 = vrot.lane.b32.xlu0 %v2619, 32
          %v4952 = vpop.permute.xlu0 %4951
          %4953 = vrot.lane.b32.xlu0 %v2620, 32
          %v4954 = vpop.permute.xlu0 %4953
          %4955 = vrot.lane.b32.xlu0 %v2621, 32
          %v4956 = vpop.permute.xlu0 %4955
          %4957 = vrot.lane.b32.xlu0 %v2622, 32
          %v4958 = vpop.permute.xlu0 %4957
          %4959 = vrot.lane.b32.xlu0 %v2623, 32
          %v4960 = vpop.permute.xlu0 %4959
          %4961 = vrot.lane.b32.xlu0 %v2624, 32
          %v4962 = vpop.permute.xlu0 %4961
          %4963 = vrot.lane.b32.xlu0 %v2625, 32
          %v4964 = vpop.permute.xlu0 %4963
          %4965 = vrot.lane.b32.xlu0 %v2626, 32
          %v4966 = vpop.permute.xlu0 %4965
          %4967 = vrot.lane.b32.xlu0 %v2627, 32
          %v4968 = vpop.permute.xlu0 %4967
          %4969 = vrot.lane.b32.xlu0 %v2628, 32
          %v4970 = vpop.permute.xlu0 %4969
          %4971 = vrot.lane.b32.xlu0 %v2629, 32
          %v4972 = vpop.permute.xlu0 %4971
          %4973 = vrot.lane.b32.xlu0 %v2630, 32
          %v4974 = vpop.permute.xlu0 %4973
          %v4991 = vmul.f32 %v4821, %v4944
          %v4992 = vmul.f32 %v4822, %v4946
          %v4993 = vmul.f32 %v4821, %v4948
          %v4994 = vmul.f32 %v4822, %v4950
          %v4995 = vmul.f32 %v4821, %v4952
          %v4996 = vmul.f32 %v4822, %v4954
          %v4997 = vmul.f32 %v4821, %v4956
          %v4998 = vmul.f32 %v4822, %v4958
          %v4999 = vmul.f32 %v4821, %v4960
          %v5000 = vmul.f32 %v4822, %v4962
          %v5001 = vmul.f32 %v4821, %v4964
          %v5002 = vmul.f32 %v4822, %v4966
          %v5003 = vmul.f32 %v4821, %v4968
          %v5004 = vmul.f32 %v4822, %v4970
          %v5005 = vmul.f32 %v4821, %v4972
          %v5006 = vmul.f32 %v4822, %v4974
          %5023 = vrot.lane.b32.xlu0 %v4991, 96
          %v5024 = vpop.permute.xlu0 %5023
          %5025 = vrot.lane.b32.xlu0 %v4992, 96
          %v5026 = vpop.permute.xlu0 %5025
          %5027 = vrot.lane.b32.xlu0 %v4993, 96
          %v5028 = vpop.permute.xlu0 %5027
          %5029 = vrot.lane.b32.xlu0 %v4994, 96
          %v5030 = vpop.permute.xlu0 %5029
          %5031 = vrot.lane.b32.xlu0 %v4995, 96
          %v5032 = vpop.permute.xlu0 %5031
          %5033 = vrot.lane.b32.xlu0 %v4996, 96
          %v5034 = vpop.permute.xlu0 %5033
          %5035 = vrot.lane.b32.xlu0 %v4997, 96
          %v5036 = vpop.permute.xlu0 %5035
          %5037 = vrot.lane.b32.xlu0 %v4998, 96
          %v5038 = vpop.permute.xlu0 %5037
          %5039 = vrot.lane.b32.xlu0 %v4999, 96
          %v5040 = vpop.permute.xlu0 %5039
          %5041 = vrot.lane.b32.xlu0 %v5000, 96
          %v5042 = vpop.permute.xlu0 %5041
          %5043 = vrot.lane.b32.xlu0 %v5001, 96
          %v5044 = vpop.permute.xlu0 %5043
          %5045 = vrot.lane.b32.xlu0 %v5002, 96
          %v5046 = vpop.permute.xlu0 %5045
          %5047 = vrot.lane.b32.xlu0 %v5003, 96
          %v5048 = vpop.permute.xlu0 %5047
          %5049 = vrot.lane.b32.xlu0 %v5004, 96
          %v5050 = vpop.permute.xlu0 %5049
          %5051 = vrot.lane.b32.xlu0 %v5005, 96
          %v5052 = vpop.permute.xlu0 %5051
          %5053 = vrot.lane.b32.xlu0 %v5006, 96
          %v5054 = vpop.permute.xlu0 %5053
          %5071 = vmatpush.msra.mxu0 %v5054
          %5072 = vmatpush.msra.mxu0 %v5052
          %5073 = vmatpush.msra.mxu0 %v5050
          %5074 = vmatpush.msra.mxu0 %v5048
          %5075 = vmatpush.msra.mxu0 %v5046
          %5076 = vmatpush.msra.mxu0 %v5044
          %5077 = vmatpush.msra.mxu0 %v5042
          %5078 = vmatpush.msra.mxu0 %v5040
          %5079 = vmatpush.msra.mxu0 %v5038
          %5080 = vmatpush.msra.mxu0 %v5036
          %5081 = vmatpush.msra.mxu0 %v5034
          %5082 = vmatpush.msra.mxu0 %v5032
          %5083 = vmatpush.msra.mxu0 %v5030
          %5084 = vmatpush.msra.mxu0 %v5028
          %5085 = vmatpush.msra.mxu0 %v5026
          %5086 = vmatpush.msra.mxu0 %v5024
          %5087 = vmatmul.f32.gmra.mxu0 %v4940
          %v5088 = vpop.f32.mrf.mxu0
          %v5089 = vadd.f32 0.0, %v5088
          %5090 = vmatmul.f32.gmra.mxu0 %v4942
          %v5091 = vpop.f32.mrf.mxu0
          %v5092 = vadd.f32 0.0, %v5091
          %5093 = vdwg.mxu0
          %5094 = vmatpush.msra.mxu0 %v2630
          %5095 = vmatpush.msra.mxu0 %v2629
          %5096 = vmatpush.msra.mxu0 %v2628
          %5097 = vmatpush.msra.mxu0 %v2627
          %5098 = vmatpush.msra.mxu0 %v2626
          %5099 = vmatpush.msra.mxu0 %v2625
          %5100 = vmatpush.msra.mxu0 %v2624
          %5101 = vmatpush.msra.mxu0 %v2623
          %5102 = vmatpush.msra.mxu0 %v2622
          %5103 = vmatpush.msra.mxu0 %v2621
          %5104 = vmatpush.msra.mxu0 %v2620
          %5105 = vmatpush.msra.mxu0 %v2619
          %5106 = vmatpush.msra.mxu0 %v2618
          %5107 = vmatpush.msra.mxu0 %v2617
          %5108 = vmatpush.msra.mxu0 %v2616
          %5109 = vmatpush.msra.mxu0 %v2615
          %5110 = vmatmul.f32.gmra.mxu0 %v4940
          %v5111 = vpop.f32.mrf.mxu0
          %v5112 = vadd.f32 0.0, %v5111
          %5113 = vmatmul.f32.gmra.mxu0 %v4942
          %v5114 = vpop.f32.mrf.mxu0
          %v5115 = vadd.f32 0.0, %v5114
          %5116 = vdwg.mxu0
          %v5117 = vrcp.pop %v5112
          %v5118 = vrcp.pop %v5115
          %v5119 = vmul.f32 %v5089, %v5117
          %v5120 = vmul.f32 %v5092, %v5118
          %v5121 = vld [vmem:[%s2134] sm:$0xff]
          %v5122 = vld [vmem:[%s2134 + $0x8] sm:$0xff]
          %v5123 = vld [vmem:[%s2134 + $0x10] sm:$0xff]
          %v5124 = vld [vmem:[%s2134 + $0x18] sm:$0xff]
          %v5125 = vld [vmem:[%s2567] sm:$0x1]
          %v5127 = vperm.slane %v5125, 0
          %v5130 = vsel %vm4333, %v5119, 0
          %v5133 = vsel %vm4333, %v5120, 0
          %5135 = vmatpush.msra.mxu0 0.0
          %5136 = vmatpush.msra.mxu0 0.0
          %5137 = vmatpush.msra.mxu0 0.0
          %5138 = vmatpush.msra.mxu0 0.0
          %5139 = vmatpush.msra.mxu0 0.0
          %5140 = vmatpush.msra.mxu0 0.0
          %5141 = vmatpush.msra.mxu0 0.0
          %5142 = vmatpush.msra.mxu0 0.0
          %5143 = vmatpush.msra.mxu0 0.0
          %5144 = vmatpush.msra.mxu0 0.0
          %5145 = vmatpush.msra.mxu0 0.0
          %5146 = vmatpush.msra.mxu0 0.0
          %5147 = vmatpush.msra.mxu0 %v5124
          %5148 = vmatpush.msra.mxu0 %v5123
          %5149 = vmatpush.msra.mxu0 %v5122
          %5150 = vmatpush.msra.mxu0 %v5121
          %5151 = vmatmul.f32.gmra.mxu0 %v5130
          %v5152 = vpop.f32.mrf.mxu0
          %v5153 = vadd.f32 %v5127, %v5152
          %5154 = vmatmul.f32.gmra.mxu0 %v5133
          %v5155 = vpop.f32.mrf.mxu0
          %v5156 = vadd.f32 %v5127, %v5155
          %5157 = vdwg.mxu0
          %v5158 = vadd.f32 %v4779, %v5153
          %v5159 = vadd.f32 %v4780, %v5156
          %v5160 = vld [vmem:[%s2161] sm:$0x1]
          %v5161 = vld [vmem:[%s2170] sm:$0x1]
          %v5162 = vsel %vm4333, %v5158, 0.0
          %5163 = vadd.xlane.f32.xlu0 %v5162
          %v5164 = vpop.xlane.xlu0 %5163
          %v5165 = vsel %vm4333, %v5159, 0.0
          %5166 = vadd.xlane.f32.xlu0 %v5165
          %v5167 = vpop.xlane.xlu0 %5166
          %v5168 = vmul.f32 %v5164, %v4732
          %v5169 = vmul.f32 %v5167, %v4732
          %v5170 = vsub.f32 %v5158, %v5168
          %v5171 = vsub.f32 %v5159, %v5169
          %v5172 = vmul.f32 %v5170, %v5170
          %v5173 = vmul.f32 %v5171, %v5171
          %v5174 = vsel %vm4333, %v5172, 0.0
          %5175 = vadd.xlane.f32.xlu0 %v5174
          %v5176 = vpop.xlane.xlu0 %5175
          %v5177 = vsel %vm4333, %v5173, 0.0
          %5178 = vadd.xlane.f32.xlu0 %v5177
          %v5179 = vpop.xlane.xlu0 %5178
          %v5180 = vmul.f32 %v5176, %v4732
          %v5181 = vmul.f32 %v5179, %v4732
          %v5182 = vadd.f32 %v5180, 1e-05
          %v5183 = vadd.f32 %v5181, 1e-05
          %v5184 = vrsqrt.pop %v5182
          %v5185 = vmul.f32 %v5184, %v5182
          %v5186 = vmul.f32 %v5185, %v5184
          %v5187 = vmul.f32 0.5, %v5186
          %v5188 = vsub.f32 1.5, %v5187
          %v5189 = vmul.f32 %v5184, %v5188
          %vm5190 = vweird.f32 %v5182
          %vm5191 = vweird.f32 %v5184
          %vm5192 = vmor %vm5190, %vm5191
          %v5193 = vsel %vm5192, %v5184, %v5189
          %v5194 = vrsqrt.pop %v5183
          %v5195 = vmul.f32 %v5194, %v5183
          %v5196 = vmul.f32 %v5195, %v5194
          %v5197 = vmul.f32 0.5, %v5196
          %v5198 = vsub.f32 1.5, %v5197
          %v5199 = vmul.f32 %v5194, %v5198
          %vm5200 = vweird.f32 %v5183
          %vm5201 = vweird.f32 %v5194
          %vm5202 = vmor %vm5200, %vm5201
          %v5203 = vsel %vm5202, %v5194, %v5199
          %v5204 = vmul.f32 %v5170, %v5193
          %v5205 = vmul.f32 %v5171, %v5203
          %v5207 = vperm.slane %v5160, 0
          %v5209 = vmul.f32 %v5204, %v5207
          %v5210 = vmul.f32 %v5205, %v5207
          %v5212 = vperm.slane %v5161, 0
          %v5214 = vadd.f32 %v5209, %v5212
          %v5215 = vadd.f32 %v5210, %v5212
          %v5216 = vpack.c.bf16 %v5215, %v5214
          %v5217 = vld [vmem:[%s2198] sm:$0xff]
          %v5218 = vld [vmem:[%s2198 + $0x8] sm:$0xff]
          %v5219 = vld [vmem:[%s2198 + $0x40] sm:$0xff]
          %v5220 = vld [vmem:[%s2198 + $0x48] sm:$0xff]
          %v5221 = vld [vmem:[%s2198 + $0x80] sm:$0xff]
          %v5222 = vld [vmem:[%s2198 + $0x88] sm:$0xff]
          %v5223 = vld [vmem:[%s2198 + $0xc0] sm:$0xff]
          %v5224 = vld [vmem:[%s2198 + $0xc8] sm:$0xff]
          %v5225 = vld [vmem:[%s2598] sm:$0xf]
          %v5227 = vperm.slane %v5225, 0
          %v5228 = vperm.slane %v5225, 1
          %v5229 = vperm.slane %v5225, 2
          %v5230 = vperm.slane %v5225, 3
          %v5243 = vunpack.c.l.b16 %v5217
          %v5244 = vunpack.c.h.b16 %v5217
          %v5245 = vunpack.c.l.b16 %v5218
          %v5246 = vunpack.c.h.b16 %v5218
          %v5247 = vunpack.c.l.b16 %v5219
          %v5248 = vunpack.c.h.b16 %v5219
          %v5249 = vunpack.c.l.b16 %v5220
          %v5250 = vunpack.c.h.b16 %v5220
          %v5251 = vunpack.c.l.b16 %v5221
          %v5252 = vunpack.c.h.b16 %v5221
          %v5253 = vunpack.c.l.b16 %v5222
          %v5254 = vunpack.c.h.b16 %v5222
          %v5255 = vunpack.c.l.b16 %v5223
          %v5256 = vunpack.c.h.b16 %v5223
          %v5257 = vunpack.c.l.b16 %v5224
          %v5258 = vunpack.c.h.b16 %v5224
          %v5259 = vpack.c.b16 %v5247, %v5243
          %v5260 = vpack.c.b16 %v5248, %v5244
          %v5261 = vpack.c.b16 %v5249, %v5245
          %v5262 = vpack.c.b16 %v5250, %v5246
          %v5263 = vpack.c.b16 %v5255, %v5251
          %v5264 = vpack.c.b16 %v5256, %v5252
          %v5265 = vpack.c.b16 %v5257, %v5253
          %v5266 = vpack.c.b16 %v5258, %v5254
          %v5276 = vsel %vm4333, %v5216, 0
          %5278 = vmatpush.bf16.msra.mxu0 0
          %5279 = vmatpush.bf16.msra.mxu0 0
          %5280 = vmatpush.bf16.msra.mxu0 0
          %5281 = vmatpush.bf16.msra.mxu0 0
          %5282 = vmatpush.bf16.msra.mxu0 0
          %5283 = vmatpush.bf16.msra.mxu0 0
          %5284 = vmatpush.bf16.msra.mxu0 %v5263
          %5285 = vmatpush.bf16.msra.mxu0 %v5259
          %5286 = vmatmul.bf16.gmra.mxu0 %v5276
          %v5287 = vpop.f32.mrf.mxu0
          %v5288 = vadd.f32 %v5227, %v5287
          %v5289 = vpop.f32.mrf.mxu0
          %v5290 = vadd.f32 %v5227, %v5289
          %5291 = vdwg.mxu0
          %5292 = vmatpush.bf16.msra.mxu0 0
          %5293 = vmatpush.bf16.msra.mxu0 0
          %5294 = vmatpush.bf16.msra.mxu0 0
          %5295 = vmatpush.bf16.msra.mxu0 0
          %5296 = vmatpush.bf16.msra.mxu0 0
          %5297 = vmatpush.bf16.msra.mxu0 0
          %5298 = vmatpush.bf16.msra.mxu0 %v5264
          %5299 = vmatpush.bf16.msra.mxu0 %v5260
          %5300 = vmatmul.bf16.gmra.mxu0 %v5276
          %v5301 = vpop.f32.mrf.mxu0
          %v5302 = vadd.f32 %v5228, %v5301
          %v5303 = vpop.f32.mrf.mxu0
          %v5304 = vadd.f32 %v5228, %v5303
          %5305 = vdwg.mxu0
          %5306 = vmatpush.bf16.msra.mxu0 0
          %5307 = vmatpush.bf16.msra.mxu0 0
          %5308 = vmatpush.bf16.msra.mxu0 0
          %5309 = vmatpush.bf16.msra.mxu0 0
          %5310 = vmatpush.bf16.msra.mxu0 0
          %5311 = vmatpush.bf16.msra.mxu0 0
          %5312 = vmatpush.bf16.msra.mxu0 %v5265
          %5313 = vmatpush.bf16.msra.mxu0 %v5261
          %5314 = vmatmul.bf16.gmra.mxu0 %v5276
          %v5315 = vpop.f32.mrf.mxu0
          %v5316 = vadd.f32 %v5229, %v5315
          %v5317 = vpop.f32.mrf.mxu0
          %v5318 = vadd.f32 %v5229, %v5317
          %5319 = vdwg.mxu0
          %5320 = vmatpush.bf16.msra.mxu0 0
          %5321 = vmatpush.bf16.msra.mxu0 0
          %5322 = vmatpush.bf16.msra.mxu0 0
          %5323 = vmatpush.bf16.msra.mxu0 0
          %5324 = vmatpush.bf16.msra.mxu0 0
          %5325 = vmatpush.bf16.msra.mxu0 0
          %5326 = vmatpush.bf16.msra.mxu0 %v5266
          %5327 = vmatpush.bf16.msra.mxu0 %v5262
          %5328 = vmatmul.bf16.gmra.mxu0 %v5276
          %v5329 = vpop.f32.mrf.mxu0
          %v5330 = vadd.f32 %v5230, %v5329
          %v5331 = vpop.f32.mrf.mxu0
          %v5332 = vadd.f32 %v5230, %v5331
          %5333 = vdwg.mxu0
          %v5334 = vmax.f32 %v5288, 0.0
          %v5335 = vmax.f32 %v5302, 0.0
          %v5336 = vmax.f32 %v5316, 0.0
          %v5337 = vmax.f32 %v5330, 0.0
          %v5338 = vmax.f32 %v5290, 0.0
          %v5339 = vmax.f32 %v5304, 0.0
          %v5340 = vmax.f32 %v5318, 0.0
          %v5341 = vmax.f32 %v5332, 0.0
          %v5342 = vpack.c.bf16 %v5338, %v5334
          %v5343 = vpack.c.bf16 %v5339, %v5335
          %v5344 = vpack.c.bf16 %v5340, %v5336
          %v5345 = vpack.c.bf16 %v5341, %v5337
          %v5346 = vld [vmem:[%s2208] sm:$0xff]
          %v5347 = vld [vmem:[%s2208 + $0x8] sm:$0xff]
          %v5348 = vld [vmem:[%s2208 + $0x40] sm:$0xff]
          %v5349 = vld [vmem:[%s2208 + $0x48] sm:$0xff]
          %v5350 = vld [vmem:[%s2208 + $0x80] sm:$0xff]
          %v5351 = vld [vmem:[%s2208 + $0x88] sm:$0xff]
          %v5352 = vld [vmem:[%s2208 + $0xc0] sm:$0xff]
          %v5353 = vld [vmem:[%s2208 + $0xc8] sm:$0xff]
          %v5354 = vld [vmem:[%s2198 + $0x10] sm:$0xff]
          %v5355 = vld [vmem:[%s2198 + $0x18] sm:$0xff]
          %v5356 = vld [vmem:[%s2198 + $0x50] sm:$0xff]
          %v5357 = vld [vmem:[%s2198 + $0x58] sm:$0xff]
          %v5358 = vld [vmem:[%s2198 + $0x90] sm:$0xff]
          %v5359 = vld [vmem:[%s2198 + $0x98] sm:$0xff]
          %v5360 = vld [vmem:[%s2198 + $0xd0] sm:$0xff]
          %v5361 = vld [vmem:[%s2198 + $0xd8] sm:$0xff]
          %v5362 = vld [vmem:[%s2598 + $0x4] sm:$0xf]
          %v5364 = vperm.slane %v5362, 0
          %v5365 = vperm.slane %v5362, 1
          %v5366 = vperm.slane %v5362, 2
          %v5367 = vperm.slane %v5362, 3
          %v5380 = vunpack.c.l.b16 %v5354
          %v5381 = vunpack.c.h.b16 %v5354
          %v5382 = vunpack.c.l.b16 %v5355
          %v5383 = vunpack.c.h.b16 %v5355
          %v5384 = vunpack.c.l.b16 %v5356
          %v5385 = vunpack.c.h.b16 %v5356
          %v5386 = vunpack.c.l.b16 %v5357
          %v5387 = vunpack.c.h.b16 %v5357
          %v5388 = vunpack.c.l.b16 %v5358
          %v5389 = vunpack.c.h.b16 %v5358
          %v5390 = vunpack.c.l.b16 %v5359
          %v5391 = vunpack.c.h.b16 %v5359
          %v5392 = vunpack.c.l.b16 %v5360
          %v5393 = vunpack.c.h.b16 %v5360
          %v5394 = vunpack.c.l.b16 %v5361
          %v5395 = vunpack.c.h.b16 %v5361
          %v5396 = vpack.c.b16 %v5384, %v5380
          %v5397 = vpack.c.b16 %v5385, %v5381
          %v5398 = vpack.c.b16 %v5386, %v5382
          %v5399 = vpack.c.b16 %v5387, %v5383
          %v5400 = vpack.c.b16 %v5392, %v5388
          %v5401 = vpack.c.b16 %v5393, %v5389
          %v5402 = vpack.c.b16 %v5394, %v5390
          %v5403 = vpack.c.b16 %v5395, %v5391
          %5412 = vmatpush.bf16.msra.mxu0 0
          %5413 = vmatpush.bf16.msra.mxu0 0
          %5414 = vmatpush.bf16.msra.mxu0 0
          %5415 = vmatpush.bf16.msra.mxu0 0
          %5416 = vmatpush.bf16.msra.mxu0 0
          %5417 = vmatpush.bf16.msra.mxu0 0
          %5418 = vmatpush.bf16.msra.mxu0 %v5400
          %5419 = vmatpush.bf16.msra.mxu0 %v5396
          %5420 = vmatmul.bf16.gmra.mxu0 %v5276
          %v5421 = vpop.f32.mrf.mxu0
          %v5422 = vadd.f32 %v5364, %v5421
          %v5423 = vpop.f32.mrf.mxu0
          %v5424 = vadd.f32 %v5364, %v5423
          %5425 = vdwg.mxu0
          %5426 = vmatpush.bf16.msra.mxu0 0
          %5427 = vmatpush.bf16.msra.mxu0 0
          %5428 = vmatpush.bf16.msra.mxu0 0
          %5429 = vmatpush.bf16.msra.mxu0 0
          %5430 = vmatpush.bf16.msra.mxu0 0
          %5431 = vmatpush.bf16.msra.mxu0 0
          %5432 = vmatpush.bf16.msra.mxu0 %v5401
          %5433 = vmatpush.bf16.msra.mxu0 %v5397
          %5434 = vmatmul.bf16.gmra.mxu0 %v5276
          %v5435 = vpop.f32.mrf.mxu0
          %v5436 = vadd.f32 %v5365, %v5435
          %v5437 = vpop.f32.mrf.mxu0
          %v5438 = vadd.f32 %v5365, %v5437
          %5439 = vdwg.mxu0
          %5440 = vmatpush.bf16.msra.mxu0 0
          %5441 = vmatpush.bf16.msra.mxu0 0
          %5442 = vmatpush.bf16.msra.mxu0 0
          %5443 = vmatpush.bf16.msra.mxu0 0
          %5444 = vmatpush.bf16.msra.mxu0 0
          %5445 = vmatpush.bf16.msra.mxu0 0
          %5446 = vmatpush.bf16.msra.mxu0 %v5402
          %5447 = vmatpush.bf16.msra.mxu0 %v5398
          %5448 = vmatmul.bf16.gmra.mxu0 %v5276
          %v5449 = vpop.f32.mrf.mxu0
          %v5450 = vadd.f32 %v5366, %v5449
          %v5451 = vpop.f32.mrf.mxu0
          %v5452 = vadd.f32 %v5366, %v5451
          %5453 = vdwg.mxu0
          %5454 = vmatpush.bf16.msra.mxu0 0
          %5455 = vmatpush.bf16.msra.mxu0 0
          %5456 = vmatpush.bf16.msra.mxu0 0
          %5457 = vmatpush.bf16.msra.mxu0 0
          %5458 = vmatpush.bf16.msra.mxu0 0
          %5459 = vmatpush.bf16.msra.mxu0 0
          %5460 = vmatpush.bf16.msra.mxu0 %v5403
          %5461 = vmatpush.bf16.msra.mxu0 %v5399
          %5462 = vmatmul.bf16.gmra.mxu0 %v5276
          %v5463 = vpop.f32.mrf.mxu0
          %v5464 = vadd.f32 %v5367, %v5463
          %v5465 = vpop.f32.mrf.mxu0
          %v5466 = vadd.f32 %v5367, %v5465
          %5467 = vdwg.mxu0
          %v5468 = vmax.f32 %v5422, 0.0
          %v5469 = vmax.f32 %v5436, 0.0
          %v5470 = vmax.f32 %v5450, 0.0
          %v5471 = vmax.f32 %v5464, 0.0
          %v5472 = vmax.f32 %v5424, 0.0
          %v5473 = vmax.f32 %v5438, 0.0
          %v5474 = vmax.f32 %v5452, 0.0
          %v5475 = vmax.f32 %v5466, 0.0
          %v5476 = vpack.c.bf16 %v5472, %v5468
          %v5477 = vpack.c.bf16 %v5473, %v5469
          %v5478 = vpack.c.bf16 %v5474, %v5470
          %v5479 = vpack.c.bf16 %v5475, %v5471
          %v5480 = vld [vmem:[%s2208 + $0x10] sm:$0xff]
          %v5481 = vld [vmem:[%s2208 + $0x18] sm:$0xff]
          %v5482 = vld [vmem:[%s2208 + $0x50] sm:$0xff]
          %v5483 = vld [vmem:[%s2208 + $0x58] sm:$0xff]
          %v5484 = vld [vmem:[%s2208 + $0x90] sm:$0xff]
          %v5485 = vld [vmem:[%s2208 + $0x98] sm:$0xff]
          %v5486 = vld [vmem:[%s2208 + $0xd0] sm:$0xff]
          %v5487 = vld [vmem:[%s2208 + $0xd8] sm:$0xff]
          %v5496 = vunpack.c.l.b16 %v5480
          %v5497 = vunpack.c.h.b16 %v5480
          %v5498 = vunpack.c.l.b16 %v5481
          %v5499 = vunpack.c.h.b16 %v5481
          %v5500 = vunpack.c.l.b16 %v5482
          %v5501 = vunpack.c.h.b16 %v5482
          %v5502 = vunpack.c.l.b16 %v5483
          %v5503 = vunpack.c.h.b16 %v5483
          %v5504 = vunpack.c.l.b16 %v5484
          %v5505 = vunpack.c.h.b16 %v5484
          %v5506 = vunpack.c.l.b16 %v5485
          %v5507 = vunpack.c.h.b16 %v5485
          %v5508 = vunpack.c.l.b16 %v5486
          %v5509 = vunpack.c.h.b16 %v5486
          %v5510 = vunpack.c.l.b16 %v5487
          %v5511 = vunpack.c.h.b16 %v5487
          %v5512 = vpack.c.b16 %v5500, %v5496
          %v5513 = vpack.c.b16 %v5501, %v5497
          %v5514 = vpack.c.b16 %v5502, %v5498
          %v5515 = vpack.c.b16 %v5503, %v5499
          %v5516 = vpack.c.b16 %v5508, %v5504
          %v5517 = vpack.c.b16 %v5509, %v5505
          %v5518 = vpack.c.b16 %v5510, %v5506
          %v5519 = vpack.c.b16 %v5511, %v5507
          %5528 = vmatpush.bf16.xpose.msra.mxu0 0
          %5529 = vmatpush.bf16.xpose.msra.mxu0 0
          %5530 = vmatpush.bf16.xpose.msra.mxu0 0
          %5531 = vmatpush.bf16.xpose.msra.mxu0 0
          %5532 = vmatpush.bf16.xpose.msra.mxu0 0
          %5533 = vmatpush.bf16.xpose.msra.mxu0 0
          %5534 = vmatpush.bf16.xpose.msra.mxu0 %v5516
          %5535 = vmatpush.bf16.xpose.msra.mxu0 %v5512
          %5536 = vmatmul.bf16.gmra.mxu0 %v5476
          %v5537 = vpop.f32.mrf.mxu0
          %v5538 = vadd.f32 0.0, %v5537
          %v5539 = vpop.f32.mrf.mxu0
          %v5540 = vadd.f32 0.0, %v5539
          %5541 = vdwg.mxu0
          %5542 = vmatpush.bf16.xpose.msra.mxu0 0
          %5543 = vmatpush.bf16.xpose.msra.mxu0 0
          %5544 = vmatpush.bf16.xpose.msra.mxu0 0
          %5545 = vmatpush.bf16.xpose.msra.mxu0 0
          %5546 = vmatpush.bf16.xpose.msra.mxu0 0
          %5547 = vmatpush.bf16.xpose.msra.mxu0 0
          %5548 = vmatpush.bf16.xpose.msra.mxu0 %v5517
          %5549 = vmatpush.bf16.xpose.msra.mxu0 %v5513
          %5550 = vmatmul.bf16.gmra.mxu0 %v5477
          %v5551 = vpop.f32.mrf.mxu0
          %v5552 = vadd.f32 %v5538, %v5551
          %v5553 = vpop.f32.mrf.mxu0
          %v5554 = vadd.f32 %v5540, %v5553
          %5555 = vdwg.mxu0
          %5556 = vmatpush.bf16.xpose.msra.mxu0 0
          %5557 = vmatpush.bf16.xpose.msra.mxu0 0
          %5558 = vmatpush.bf16.xpose.msra.mxu0 0
          %5559 = vmatpush.bf16.xpose.msra.mxu0 0
          %5560 = vmatpush.bf16.xpose.msra.mxu0 0
          %5561 = vmatpush.bf16.xpose.msra.mxu0 0
          %5562 = vmatpush.bf16.xpose.msra.mxu0 %v5518
          %5563 = vmatpush.bf16.xpose.msra.mxu0 %v5514
          %5564 = vmatmul.bf16.gmra.mxu0 %v5478
          %v5565 = vpop.f32.mrf.mxu0
          %v5566 = vadd.f32 %v5552, %v5565
          %v5567 = vpop.f32.mrf.mxu0
          %v5568 = vadd.f32 %v5554, %v5567
          %5569 = vdwg.mxu0
          %5570 = vmatpush.bf16.xpose.msra.mxu0 0
          %5571 = vmatpush.bf16.xpose.msra.mxu0 0
          %5572 = vmatpush.bf16.xpose.msra.mxu0 0
          %5573 = vmatpush.bf16.xpose.msra.mxu0 0
          %5574 = vmatpush.bf16.xpose.msra.mxu0 0
          %5575 = vmatpush.bf16.xpose.msra.mxu0 0
          %5576 = vmatpush.bf16.xpose.msra.mxu0 %v5519
          %5577 = vmatpush.bf16.xpose.msra.mxu0 %v5515
          %5578 = vmatmul.bf16.gmra.mxu0 %v5479
          %v5579 = vpop.f32.mrf.mxu0
          %v5580 = vadd.f32 %v5566, %v5579
          %v5581 = vpop.f32.mrf.mxu0
          %v5582 = vadd.f32 %v5568, %v5581
          %5583 = vdwg.mxu0
          %v5592 = vunpack.c.l.b16 %v5346
          %v5593 = vunpack.c.h.b16 %v5346
          %v5594 = vunpack.c.l.b16 %v5347
          %v5595 = vunpack.c.h.b16 %v5347
          %v5596 = vunpack.c.l.b16 %v5348
          %v5597 = vunpack.c.h.b16 %v5348
          %v5598 = vunpack.c.l.b16 %v5349
          %v5599 = vunpack.c.h.b16 %v5349
          %v5600 = vunpack.c.l.b16 %v5350
          %v5601 = vunpack.c.h.b16 %v5350
          %v5602 = vunpack.c.l.b16 %v5351
          %v5603 = vunpack.c.h.b16 %v5351
          %v5604 = vunpack.c.l.b16 %v5352
          %v5605 = vunpack.c.h.b16 %v5352
          %v5606 = vunpack.c.l.b16 %v5353
          %v5607 = vunpack.c.h.b16 %v5353
          %v5608 = vpack.c.b16 %v5596, %v5592
          %v5609 = vpack.c.b16 %v5597, %v5593
          %v5610 = vpack.c.b16 %v5598, %v5594
          %v5611 = vpack.c.b16 %v5599, %v5595
          %v5612 = vpack.c.b16 %v5604, %v5600
          %v5613 = vpack.c.b16 %v5605, %v5601
          %v5614 = vpack.c.b16 %v5606, %v5602
          %v5615 = vpack.c.b16 %v5607, %v5603
          %5624 = vmatpush.bf16.xpose.msra.mxu0 0
          %5625 = vmatpush.bf16.xpose.msra.mxu0 0
          %5626 = vmatpush.bf16.xpose.msra.mxu0 0
          %5627 = vmatpush.bf16.xpose.msra.mxu0 0
          %5628 = vmatpush.bf16.xpose.msra.mxu0 0
          %5629 = vmatpush.bf16.xpose.msra.mxu0 0
          %5630 = vmatpush.bf16.xpose.msra.mxu0 %v5612
          %5631 = vmatpush.bf16.xpose.msra.mxu0 %v5608
          %5632 = vmatmul.bf16.gmra.mxu0 %v5342
          %v5633 = vpop.f32.mrf.mxu0
          %v5634 = vadd.f32 %v5580, %v5633
          %v5635 = vpop.f32.mrf.mxu0
          %v5636 = vadd.f32 %v5582, %v5635
          %5637 = vdwg.mxu0
          %5638 = vmatpush.bf16.xpose.msra.mxu0 0
          %5639 = vmatpush.bf16.xpose.msra.mxu0 0
          %5640 = vmatpush.bf16.xpose.msra.mxu0 0
          %5641 = vmatpush.bf16.xpose.msra.mxu0 0
          %5642 = vmatpush.bf16.xpose.msra.mxu0 0
          %5643 = vmatpush.bf16.xpose.msra.mxu0 0
          %5644 = vmatpush.bf16.xpose.msra.mxu0 %v5613
          %5645 = vmatpush.bf16.xpose.msra.mxu0 %v5609
          %5646 = vmatmul.bf16.gmra.mxu0 %v5343
          %v5647 = vpop.f32.mrf.mxu0
          %v5648 = vadd.f32 %v5634, %v5647
          %v5649 = vpop.f32.mrf.mxu0
          %v5650 = vadd.f32 %v5636, %v5649
          %5651 = vdwg.mxu0
          %5652 = vmatpush.bf16.xpose.msra.mxu0 0
          %5653 = vmatpush.bf16.xpose.msra.mxu0 0
          %5654 = vmatpush.bf16.xpose.msra.mxu0 0
          %5655 = vmatpush.bf16.xpose.msra.mxu0 0
          %5656 = vmatpush.bf16.xpose.msra.mxu0 0
          %5657 = vmatpush.bf16.xpose.msra.mxu0 0
          %5658 = vmatpush.bf16.xpose.msra.mxu0 %v5614
          %5659 = vmatpush.bf16.xpose.msra.mxu0 %v5610
          %5660 = vmatmul.bf16.gmra.mxu0 %v5344
          %v5661 = vpop.f32.mrf.mxu0
          %v5662 = vadd.f32 %v5648, %v5661
          %v5663 = vpop.f32.mrf.mxu0
          %v5664 = vadd.f32 %v5650, %v5663
          %5665 = vdwg.mxu0
          %5666 = vmatpush.bf16.xpose.msra.mxu0 0
          %5667 = vmatpush.bf16.xpose.msra.mxu0 0
          %5668 = vmatpush.bf16.xpose.msra.mxu0 0
          %5669 = vmatpush.bf16.xpose.msra.mxu0 0
          %5670 = vmatpush.bf16.xpose.msra.mxu0 0
          %5671 = vmatpush.bf16.xpose.msra.mxu0 0
          %5672 = vmatpush.bf16.xpose.msra.mxu0 %v5615
          %5673 = vmatpush.bf16.xpose.msra.mxu0 %v5611
          %5674 = vmatmul.bf16.gmra.mxu0 %v5345
          %v5675 = vpop.f32.mrf.mxu0
          %v5676 = vadd.f32 %v5662, %v5675
          %v5677 = vpop.f32.mrf.mxu0
          %v5678 = vadd.f32 %v5664, %v5677
          %5679 = vdwg.mxu0
          %v5680 = vld [vmem:[%s2198 + $0x20] sm:$0xff]
          %v5681 = vld [vmem:[%s2198 + $0x28] sm:$0xff]
          %v5682 = vld [vmem:[%s2198 + $0x60] sm:$0xff]
          %v5683 = vld [vmem:[%s2198 + $0x68] sm:$0xff]
          %v5684 = vld [vmem:[%s2198 + $0xa0] sm:$0xff]
          %v5685 = vld [vmem:[%s2198 + $0xa8] sm:$0xff]
          %v5686 = vld [vmem:[%s2198 + $0xe0] sm:$0xff]
          %v5687 = vld [vmem:[%s2198 + $0xe8] sm:$0xff]
          %v5688 = vld [vmem:[%s2598 + $0x8] sm:$0xf]
          %v5690 = vperm.slane %v5688, 0
          %v5691 = vperm.slane %v5688, 1
          %v5692 = vperm.slane %v5688, 2
          %v5693 = vperm.slane %v5688, 3
          %v5706 = vunpack.c.l.b16 %v5680
          %v5707 = vunpack.c.h.b16 %v5680
          %v5708 = vunpack.c.l.b16 %v5681
          %v5709 = vunpack.c.h.b16 %v5681
          %v5710 = vunpack.c.l.b16 %v5682
          %v5711 = vunpack.c.h.b16 %v5682
          %v5712 = vunpack.c.l.b16 %v5683
          %v5713 = vunpack.c.h.b16 %v5683
          %v5714 = vunpack.c.l.b16 %v5684
          %v5715 = vunpack.c.h.b16 %v5684
          %v5716 = vunpack.c.l.b16 %v5685
          %v5717 = vunpack.c.h.b16 %v5685
          %v5718 = vunpack.c.l.b16 %v5686
          %v5719 = vunpack.c.h.b16 %v5686
          %v5720 = vunpack.c.l.b16 %v5687
          %v5721 = vunpack.c.h.b16 %v5687
          %v5722 = vpack.c.b16 %v5710, %v5706
          %v5723 = vpack.c.b16 %v5711, %v5707
          %v5724 = vpack.c.b16 %v5712, %v5708
          %v5725 = vpack.c.b16 %v5713, %v5709
          %v5726 = vpack.c.b16 %v5718, %v5714
          %v5727 = vpack.c.b16 %v5719, %v5715
          %v5728 = vpack.c.b16 %v5720, %v5716
          %v5729 = vpack.c.b16 %v5721, %v5717
          %5738 = vmatpush.bf16.msra.mxu0 0
          %5739 = vmatpush.bf16.msra.mxu0 0
          %5740 = vmatpush.bf16.msra.mxu0 0
          %5741 = vmatpush.bf16.msra.mxu0 0
          %5742 = vmatpush.bf16.msra.mxu0 0
          %5743 = vmatpush.bf16.msra.mxu0 0
          %5744 = vmatpush.bf16.msra.mxu0 %v5726
          %5745 = vmatpush.bf16.msra.mxu0 %v5722
          %5746 = vmatmul.bf16.gmra.mxu0 %v5276
          %v5747 = vpop.f32.mrf.mxu0
          %v5748 = vadd.f32 %v5690, %v5747
          %v5749 = vpop.f32.mrf.mxu0
          %v5750 = vadd.f32 %v5690, %v5749
          %5751 = vdwg.mxu0
          %5752 = vmatpush.bf16.msra.mxu0 0
          %5753 = vmatpush.bf16.msra.mxu0 0
          %5754 = vmatpush.bf16.msra.mxu0 0
          %5755 = vmatpush.bf16.msra.mxu0 0
          %5756 = vmatpush.bf16.msra.mxu0 0
          %5757 = vmatpush.bf16.msra.mxu0 0
          %5758 = vmatpush.bf16.msra.mxu0 %v5727
          %5759 = vmatpush.bf16.msra.mxu0 %v5723
          %5760 = vmatmul.bf16.gmra.mxu0 %v5276
          %v5761 = vpop.f32.mrf.mxu0
          %v5762 = vadd.f32 %v5691, %v5761
          %v5763 = vpop.f32.mrf.mxu0
          %v5764 = vadd.f32 %v5691, %v5763
          %5765 = vdwg.mxu0
          %5766 = vmatpush.bf16.msra.mxu0 0
          %5767 = vmatpush.bf16.msra.mxu0 0
          %5768 = vmatpush.bf16.msra.mxu0 0
          %5769 = vmatpush.bf16.msra.mxu0 0
          %5770 = vmatpush.bf16.msra.mxu0 0
          %5771 = vmatpush.bf16.msra.mxu0 0
          %5772 = vmatpush.bf16.msra.mxu0 %v5728
          %5773 = vmatpush.bf16.msra.mxu0 %v5724
          %5774 = vmatmul.bf16.gmra.mxu0 %v5276
          %v5775 = vpop.f32.mrf.mxu0
          %v5776 = vadd.f32 %v5692, %v5775
          %v5777 = vpop.f32.mrf.mxu0
          %v5778 = vadd.f32 %v5692, %v5777
          %5779 = vdwg.mxu0
          %5780 = vmatpush.bf16.msra.mxu0 0
          %5781 = vmatpush.bf16.msra.mxu0 0
          %5782 = vmatpush.bf16.msra.mxu0 0
          %5783 = vmatpush.bf16.msra.mxu0 0
          %5784 = vmatpush.bf16.msra.mxu0 0
          %5785 = vmatpush.bf16.msra.mxu0 0
          %5786 = vmatpush.bf16.msra.mxu0 %v5729
          %5787 = vmatpush.bf16.msra.mxu0 %v5725
          %5788 = vmatmul.bf16.gmra.mxu0 %v5276
          %v5789 = vpop.f32.mrf.mxu0
          %v5790 = vadd.f32 %v5693, %v5789
          %v5791 = vpop.f32.mrf.mxu0
          %v5792 = vadd.f32 %v5693, %v5791
          %5793 = vdwg.mxu0
          %v5794 = vmax.f32 %v5748, 0.0
          %v5795 = vmax.f32 %v5762, 0.0
          %v5796 = vmax.f32 %v5776, 0.0
          %v5797 = vmax.f32 %v5790, 0.0
          %v5798 = vmax.f32 %v5750, 0.0
          %v5799 = vmax.f32 %v5764, 0.0
          %v5800 = vmax.f32 %v5778, 0.0
          %v5801 = vmax.f32 %v5792, 0.0
          %v5802 = vpack.c.bf16 %v5798, %v5794
          %v5803 = vpack.c.bf16 %v5799, %v5795
          %v5804 = vpack.c.bf16 %v5800, %v5796
          %v5805 = vpack.c.bf16 %v5801, %v5797
          %v5806 = vld [vmem:[%s2208 + $0x20] sm:$0xff]
          %v5807 = vld [vmem:[%s2208 + $0x28] sm:$0xff]
          %v5808 = vld [vmem:[%s2208 + $0x60] sm:$0xff]
          %v5809 = vld [vmem:[%s2208 + $0x68] sm:$0xff]
          %v5810 = vld [vmem:[%s2208 + $0xa0] sm:$0xff]
          %v5811 = vld [vmem:[%s2208 + $0xa8] sm:$0xff]
          %v5812 = vld [vmem:[%s2208 + $0xe0] sm:$0xff]
          %v5813 = vld [vmem:[%s2208 + $0xe8] sm:$0xff]
          %v5822 = vunpack.c.l.b16 %v5806
          %v5823 = vunpack.c.h.b16 %v5806
          %v5824 = vunpack.c.l.b16 %v5807
          %v5825 = vunpack.c.h.b16 %v5807
          %v5826 = vunpack.c.l.b16 %v5808
          %v5827 = vunpack.c.h.b16 %v5808
          %v5828 = vunpack.c.l.b16 %v5809
          %v5829 = vunpack.c.h.b16 %v5809
          %v5830 = vunpack.c.l.b16 %v5810
          %v5831 = vunpack.c.h.b16 %v5810
          %v5832 = vunpack.c.l.b16 %v5811
          %v5833 = vunpack.c.h.b16 %v5811
          %v5834 = vunpack.c.l.b16 %v5812
          %v5835 = vunpack.c.h.b16 %v5812
          %v5836 = vunpack.c.l.b16 %v5813
          %v5837 = vunpack.c.h.b16 %v5813
          %v5838 = vpack.c.b16 %v5826, %v5822
          %v5839 = vpack.c.b16 %v5827, %v5823
          %v5840 = vpack.c.b16 %v5828, %v5824
          %v5841 = vpack.c.b16 %v5829, %v5825
          %v5842 = vpack.c.b16 %v5834, %v5830
          %v5843 = vpack.c.b16 %v5835, %v5831
          %v5844 = vpack.c.b16 %v5836, %v5832
          %v5845 = vpack.c.b16 %v5837, %v5833
          %5854 = vmatpush.bf16.xpose.msra.mxu0 0
          %5855 = vmatpush.bf16.xpose.msra.mxu0 0
          %5856 = vmatpush.bf16.xpose.msra.mxu0 0
          %5857 = vmatpush.bf16.xpose.msra.mxu0 0
          %5858 = vmatpush.bf16.xpose.msra.mxu0 0
          %5859 = vmatpush.bf16.xpose.msra.mxu0 0
          %5860 = vmatpush.bf16.xpose.msra.mxu0 %v5842
          %5861 = vmatpush.bf16.xpose.msra.mxu0 %v5838
          %5862 = vmatmul.bf16.gmra.mxu0 %v5802
          %v5863 = vpop.f32.mrf.mxu0
          %v5864 = vadd.f32 0.0, %v5863
          %v5865 = vpop.f32.mrf.mxu0
          %v5866 = vadd.f32 0.0, %v5865
          %5867 = vdwg.mxu0
          %5868 = vmatpush.bf16.xpose.msra.mxu0 0
          %5869 = vmatpush.bf16.xpose.msra.mxu0 0
          %5870 = vmatpush.bf16.xpose.msra.mxu0 0
          %5871 = vmatpush.bf16.xpose.msra.mxu0 0
          %5872 = vmatpush.bf16.xpose.msra.mxu0 0
          %5873 = vmatpush.bf16.xpose.msra.mxu0 0
          %5874 = vmatpush.bf16.xpose.msra.mxu0 %v5843
          %5875 = vmatpush.bf16.xpose.msra.mxu0 %v5839
          %5876 = vmatmul.bf16.gmra.mxu0 %v5803
          %v5877 = vpop.f32.mrf.mxu0
          %v5878 = vadd.f32 %v5864, %v5877
          %v5879 = vpop.f32.mrf.mxu0
          %v5880 = vadd.f32 %v5866, %v5879
          %5881 = vdwg.mxu0
          %5882 = vmatpush.bf16.xpose.msra.mxu0 0
          %5883 = vmatpush.bf16.xpose.msra.mxu0 0
          %5884 = vmatpush.bf16.xpose.msra.mxu0 0
          %5885 = vmatpush.bf16.xpose.msra.mxu0 0
          %5886 = vmatpush.bf16.xpose.msra.mxu0 0
          %5887 = vmatpush.bf16.xpose.msra.mxu0 0
          %5888 = vmatpush.bf16.xpose.msra.mxu0 %v5844
          %5889 = vmatpush.bf16.xpose.msra.mxu0 %v5840
          %5890 = vmatmul.bf16.gmra.mxu0 %v5804
          %v5891 = vpop.f32.mrf.mxu0
          %v5892 = vadd.f32 %v5878, %v5891
          %v5893 = vpop.f32.mrf.mxu0
          %v5894 = vadd.f32 %v5880, %v5893
          %5895 = vdwg.mxu0
          %5896 = vmatpush.bf16.xpose.msra.mxu0 0
          %5897 = vmatpush.bf16.xpose.msra.mxu0 0
          %5898 = vmatpush.bf16.xpose.msra.mxu0 0
          %5899 = vmatpush.bf16.xpose.msra.mxu0 0
          %5900 = vmatpush.bf16.xpose.msra.mxu0 0
          %5901 = vmatpush.bf16.xpose.msra.mxu0 0
          %5902 = vmatpush.bf16.xpose.msra.mxu0 %v5845
          %5903 = vmatpush.bf16.xpose.msra.mxu0 %v5841
          %5904 = vmatmul.bf16.gmra.mxu0 %v5805
          %v5905 = vpop.f32.mrf.mxu0
          %v5906 = vadd.f32 %v5892, %v5905
          %v5907 = vpop.f32.mrf.mxu0
          %v5908 = vadd.f32 %v5894, %v5907
          %5909 = vdwg.mxu0
          %v5910 = vadd.f32 %v5676, %v5906
          %v5911 = vadd.f32 %v5678, %v5908
          %v5912 = vld [vmem:[%s2198 + $0x30] sm:$0xff]
          %v5913 = vld [vmem:[%s2198 + $0x38] sm:$0xff]
          %v5914 = vld [vmem:[%s2198 + $0x70] sm:$0xff]
          %v5915 = vld [vmem:[%s2198 + $0x78] sm:$0xff]
          %v5916 = vld [vmem:[%s2198 + $0xb0] sm:$0xff]
          %v5917 = vld [vmem:[%s2198 + $0xb8] sm:$0xff]
          %v5918 = vld [vmem:[%s2198 + $0xf0] sm:$0xff]
          %v5919 = vld [vmem:[%s2198 + $0xf8] sm:$0xff]
          %v5920 = vld [vmem:[%s2598 + $0xc] sm:$0xf]
          %v5922 = vperm.slane %v5920, 0
          %v5923 = vperm.slane %v5920, 1
          %v5924 = vperm.slane %v5920, 2
          %v5925 = vperm.slane %v5920, 3
          %v5938 = vunpack.c.l.b16 %v5912
          %v5939 = vunpack.c.h.b16 %v5912
          %v5940 = vunpack.c.l.b16 %v5913
          %v5941 = vunpack.c.h.b16 %v5913
          %v5942 = vunpack.c.l.b16 %v5914
          %v5943 = vunpack.c.h.b16 %v5914
          %v5944 = vunpack.c.l.b16 %v5915
          %v5945 = vunpack.c.h.b16 %v5915
          %v5946 = vunpack.c.l.b16 %v5916
          %v5947 = vunpack.c.h.b16 %v5916
          %v5948 = vunpack.c.l.b16 %v5917
          %v5949 = vunpack.c.h.b16 %v5917
          %v5950 = vunpack.c.l.b16 %v5918
          %v5951 = vunpack.c.h.b16 %v5918
          %v5952 = vunpack.c.l.b16 %v5919
          %v5953 = vunpack.c.h.b16 %v5919
          %v5954 = vpack.c.b16 %v5942, %v5938
          %v5955 = vpack.c.b16 %v5943, %v5939
          %v5956 = vpack.c.b16 %v5944, %v5940
          %v5957 = vpack.c.b16 %v5945, %v5941
          %v5958 = vpack.c.b16 %v5950, %v5946
          %v5959 = vpack.c.b16 %v5951, %v5947
          %v5960 = vpack.c.b16 %v5952, %v5948
          %v5961 = vpack.c.b16 %v5953, %v5949
          %5970 = vmatpush.bf16.msra.mxu0 0
          %5971 = vmatpush.bf16.msra.mxu0 0
          %5972 = vmatpush.bf16.msra.mxu0 0
          %5973 = vmatpush.bf16.msra.mxu0 0
          %5974 = vmatpush.bf16.msra.mxu0 0
          %5975 = vmatpush.bf16.msra.mxu0 0
          %5976 = vmatpush.bf16.msra.mxu0 %v5958
          %5977 = vmatpush.bf16.msra.mxu0 %v5954
          %5978 = vmatmul.bf16.gmra.mxu0 %v5276
          %v5979 = vpop.f32.mrf.mxu0
          %v5980 = vadd.f32 %v5922, %v5979
          %v5981 = vpop.f32.mrf.mxu0
          %v5982 = vadd.f32 %v5922, %v5981
          %5983 = vdwg.mxu0
          %5984 = vmatpush.bf16.msra.mxu0 0
          %5985 = vmatpush.bf16.msra.mxu0 0
          %5986 = vmatpush.bf16.msra.mxu0 0
          %5987 = vmatpush.bf16.msra.mxu0 0
          %5988 = vmatpush.bf16.msra.mxu0 0
          %5989 = vmatpush.bf16.msra.mxu0 0
          %5990 = vmatpush.bf16.msra.mxu0 %v5959
          %5991 = vmatpush.bf16.msra.mxu0 %v5955
          %5992 = vmatmul.bf16.gmra.mxu0 %v5276
          %v5993 = vpop.f32.mrf.mxu0
          %v5994 = vadd.f32 %v5923, %v5993
          %v5995 = vpop.f32.mrf.mxu0
          %v5996 = vadd.f32 %v5923, %v5995
          %5997 = vdwg.mxu0
          %5998 = vmatpush.bf16.msra.mxu0 0
          %5999 = vmatpush.bf16.msra.mxu0 0
          %6000 = vmatpush.bf16.msra.mxu0 0
          %6001 = vmatpush.bf16.msra.mxu0 0
          %6002 = vmatpush.bf16.msra.mxu0 0
          %6003 = vmatpush.bf16.msra.mxu0 0
          %6004 = vmatpush.bf16.msra.mxu0 %v5960
          %6005 = vmatpush.bf16.msra.mxu0 %v5956
          %6006 = vmatmul.bf16.gmra.mxu0 %v5276
          %v6007 = vpop.f32.mrf.mxu0
          %v6008 = vadd.f32 %v5924, %v6007
          %v6009 = vpop.f32.mrf.mxu0
          %v6010 = vadd.f32 %v5924, %v6009
          %6011 = vdwg.mxu0
          %6012 = vmatpush.bf16.msra.mxu0 0
          %6013 = vmatpush.bf16.msra.mxu0 0
          %6014 = vmatpush.bf16.msra.mxu0 0
          %6015 = vmatpush.bf16.msra.mxu0 0
          %6016 = vmatpush.bf16.msra.mxu0 0
          %6017 = vmatpush.bf16.msra.mxu0 0
          %6018 = vmatpush.bf16.msra.mxu0 %v5961
          %6019 = vmatpush.bf16.msra.mxu0 %v5957
          %6020 = vmatmul.bf16.gmra.mxu0 %v5276
          %v6021 = vpop.f32.mrf.mxu0
          %v6022 = vadd.f32 %v5925, %v6021
          %v6023 = vpop.f32.mrf.mxu0
          %v6024 = vadd.f32 %v5925, %v6023
          %6025 = vdwg.mxu0
          %v6026 = vmax.f32 %v5980, 0.0
          %v6027 = vmax.f32 %v5994, 0.0
          %v6028 = vmax.f32 %v6008, 0.0
          %v6029 = vmax.f32 %v6022, 0.0
          %v6030 = vmax.f32 %v5982, 0.0
          %v6031 = vmax.f32 %v5996, 0.0
          %v6032 = vmax.f32 %v6010, 0.0
          %v6033 = vmax.f32 %v6024, 0.0
          %v6034 = vpack.c.bf16 %v6030, %v6026
          %v6035 = vpack.c.bf16 %v6031, %v6027
          %v6036 = vpack.c.bf16 %v6032, %v6028
          %v6037 = vpack.c.bf16 %v6033, %v6029
          %v6038 = vld [vmem:[%s2208 + $0x30] sm:$0xff]
          %v6039 = vld [vmem:[%s2208 + $0x38] sm:$0xff]
          %v6040 = vld [vmem:[%s2208 + $0x70] sm:$0xff]
          %v6041 = vld [vmem:[%s2208 + $0x78] sm:$0xff]
          %v6042 = vld [vmem:[%s2208 + $0xb0] sm:$0xff]
          %v6043 = vld [vmem:[%s2208 + $0xb8] sm:$0xff]
          %v6044 = vld [vmem:[%s2208 + $0xf0] sm:$0xff]
          %v6045 = vld [vmem:[%s2208 + $0xf8] sm:$0xff]
          %v6054 = vunpack.c.l.b16 %v6038
          %v6055 = vunpack.c.h.b16 %v6038
          %v6056 = vunpack.c.l.b16 %v6039
          %v6057 = vunpack.c.h.b16 %v6039
          %v6058 = vunpack.c.l.b16 %v6040
          %v6059 = vunpack.c.h.b16 %v6040
          %v6060 = vunpack.c.l.b16 %v6041
          %v6061 = vunpack.c.h.b16 %v6041
          %v6062 = vunpack.c.l.b16 %v6042
          %v6063 = vunpack.c.h.b16 %v6042
          %v6064 = vunpack.c.l.b16 %v6043
          %v6065 = vunpack.c.h.b16 %v6043
          %v6066 = vunpack.c.l.b16 %v6044
          %v6067 = vunpack.c.h.b16 %v6044
          %v6068 = vunpack.c.l.b16 %v6045
          %v6069 = vunpack.c.h.b16 %v6045
          %v6070 = vpack.c.b16 %v6058, %v6054
          %v6071 = vpack.c.b16 %v6059, %v6055
          %v6072 = vpack.c.b16 %v6060, %v6056
          %v6073 = vpack.c.b16 %v6061, %v6057
          %v6074 = vpack.c.b16 %v6066, %v6062
          %v6075 = vpack.c.b16 %v6067, %v6063
          %v6076 = vpack.c.b16 %v6068, %v6064
          %v6077 = vpack.c.b16 %v6069, %v6065
          %6086 = vmatpush.bf16.xpose.msra.mxu0 0
          %6087 = vmatpush.bf16.xpose.msra.mxu0 0
          %6088 = vmatpush.bf16.xpose.msra.mxu0 0
          %6089 = vmatpush.bf16.xpose.msra.mxu0 0
          %6090 = vmatpush.bf16.xpose.msra.mxu0 0
          %6091 = vmatpush.bf16.xpose.msra.mxu0 0
          %6092 = vmatpush.bf16.xpose.msra.mxu0 %v6074
          %6093 = vmatpush.bf16.xpose.msra.mxu0 %v6070
          %6094 = vmatmul.bf16.gmra.mxu0 %v6034
          %v6095 = vpop.f32.mrf.mxu0
          %v6096 = vadd.f32 0.0, %v6095
          %v6097 = vpop.f32.mrf.mxu0
          %v6098 = vadd.f32 0.0, %v6097
          %6099 = vdwg.mxu0
          %6100 = vmatpush.bf16.xpose.msra.mxu0 0
          %6101 = vmatpush.bf16.xpose.msra.mxu0 0
          %6102 = vmatpush.bf16.xpose.msra.mxu0 0
          %6103 = vmatpush.bf16.xpose.msra.mxu0 0
          %6104 = vmatpush.bf16.xpose.msra.mxu0 0
          %6105 = vmatpush.bf16.xpose.msra.mxu0 0
          %6106 = vmatpush.bf16.xpose.msra.mxu0 %v6075
          %6107 = vmatpush.bf16.xpose.msra.mxu0 %v6071
          %6108 = vmatmul.bf16.gmra.mxu0 %v6035
          %v6109 = vpop.f32.mrf.mxu0
          %v6110 = vadd.f32 %v6096, %v6109
          %v6111 = vpop.f32.mrf.mxu0
          %v6112 = vadd.f32 %v6098, %v6111
          %6113 = vdwg.mxu0
          %6114 = vmatpush.bf16.xpose.msra.mxu0 0
          %6115 = vmatpush.bf16.xpose.msra.mxu0 0
          %6116 = vmatpush.bf16.xpose.msra.mxu0 0
          %6117 = vmatpush.bf16.xpose.msra.mxu0 0
          %6118 = vmatpush.bf16.xpose.msra.mxu0 0
          %6119 = vmatpush.bf16.xpose.msra.mxu0 0
          %6120 = vmatpush.bf16.xpose.msra.mxu0 %v6076
          %6121 = vmatpush.bf16.xpose.msra.mxu0 %v6072
          %6122 = vmatmul.bf16.gmra.mxu0 %v6036
          %v6123 = vpop.f32.mrf.mxu0
          %v6124 = vadd.f32 %v6110, %v6123
          %v6125 = vpop.f32.mrf.mxu0
          %v6126 = vadd.f32 %v6112, %v6125
          %6127 = vdwg.mxu0
          %6128 = vmatpush.bf16.xpose.msra.mxu0 0
          %6129 = vmatpush.bf16.xpose.msra.mxu0 0
          %6130 = vmatpush.bf16.xpose.msra.mxu0 0
          %6131 = vmatpush.bf16.xpose.msra.mxu0 0
          %6132 = vmatpush.bf16.xpose.msra.mxu0 0
          %6133 = vmatpush.bf16.xpose.msra.mxu0 0
          %6134 = vmatpush.bf16.xpose.msra.mxu0 %v6077
          %6135 = vmatpush.bf16.xpose.msra.mxu0 %v6073
          %6136 = vmatmul.bf16.gmra.mxu0 %v6037
          %v6137 = vpop.f32.mrf.mxu0
          %v6138 = vadd.f32 %v6124, %v6137
          %v6139 = vpop.f32.mrf.mxu0
          %v6140 = vadd.f32 %v6126, %v6139
          %6141 = vdwg.mxu0
          %v6142 = vadd.f32 %v5910, %v6138
          %v6143 = vadd.f32 %v5911, %v6140
          %v6144 = vld [vmem:[%s2217] sm:$0x1]
          %v6146 = vperm.slane %v6144, 0
          %v6148 = vadd.f32 %v6142, %v6146
          %v6149 = vadd.f32 %v6143, %v6146
          %v6150 = vadd.f32 %v5214, %v6148
          %v6151 = vadd.f32 %v5215, %v6149
          %v6152 = vld [vmem:[%s2179] sm:$0x1]
          %v6153 = vld [vmem:[%s2188] sm:$0x1]
          %v6154 = vsel %vm4333, %v6150, 0.0
          %6155 = vadd.xlane.f32.xlu0 %v6154
          %v6156 = vpop.xlane.xlu0 %6155
          %v6157 = vsel %vm4333, %v6151, 0.0
          %6158 = vadd.xlane.f32.xlu0 %v6157
          %v6159 = vpop.xlane.xlu0 %6158
          %v6160 = vmul.f32 %v6156, %v4732
          %v6161 = vmul.f32 %v6159, %v4732
          %v6162 = vsub.f32 %v6150, %v6160
          %v6163 = vsub.f32 %v6151, %v6161
          %v6164 = vmul.f32 %v6162, %v6162
          %v6165 = vmul.f32 %v6163, %v6163
          %v6166 = vsel %vm4333, %v6164, 0.0
          %6167 = vadd.xlane.f32.xlu0 %v6166
          %v6168 = vpop.xlane.xlu0 %6167
          %v6169 = vsel %vm4333, %v6165, 0.0
          %6170 = vadd.xlane.f32.xlu0 %v6169
          %v6171 = vpop.xlane.xlu0 %6170
          %v6172 = vmul.f32 %v6168, %v4732
          %v6173 = vmul.f32 %v6171, %v4732
          %v6174 = vadd.f32 %v6172, 1e-05
          %v6175 = vadd.f32 %v6173, 1e-05
          %v6176 = vrsqrt.pop %v6174
          %v6177 = vmul.f32 %v6176, %v6174
          %v6178 = vmul.f32 %v6177, %v6176
          %v6179 = vmul.f32 0.5, %v6178
          %v6180 = vsub.f32 1.5, %v6179
          %v6181 = vmul.f32 %v6176, %v6180
          %vm6182 = vweird.f32 %v6174
          %vm6183 = vweird.f32 %v6176
          %vm6184 = vmor %vm6182, %vm6183
          %v6185 = vsel %vm6184, %v6176, %v6181
          %v6186 = vrsqrt.pop %v6175
          %v6187 = vmul.f32 %v6186, %v6175
          %v6188 = vmul.f32 %v6187, %v6186
          %v6189 = vmul.f32 0.5, %v6188
          %v6190 = vsub.f32 1.5, %v6189
          %v6191 = vmul.f32 %v6186, %v6190
          %vm6192 = vweird.f32 %v6175
          %vm6193 = vweird.f32 %v6186
          %vm6194 = vmor %vm6192, %vm6193
          %v6195 = vsel %vm6194, %v6186, %v6191
          %v6196 = vmul.f32 %v6162, %v6185
          %v6197 = vmul.f32 %v6163, %v6195
          %v6199 = vperm.slane %v6152, 0
          %v6201 = vmul.f32 %v6196, %v6199
          %v6202 = vmul.f32 %v6197, %v6199
          %v6204 = vperm.slane %v6153, 0
          %v6206 = vadd.f32 %v6201, %v6204
          %v6207 = vadd.f32 %v6202, %v6204
          %6208 = vst.msk [vmem:[#allocation2] sm:$0xff] %vm4333, %v6206
          %6209 = vst.msk [vmem:[#allocation2 + $0x8] sm:$0xff] %vm4333, %v6207
          %p6210 = scmp.eq.s32.totalorder %s135, 7
          // Predicated region
          $region309: #{bird_forecasting_forward.1} parent=307 // pred_check
            %p6211 = pneg %p6210
          $region310: #{bird_forecasting_forward.1} parent=307 // pred_check_branch
            %6213 = sbr.rel (%p6211) target = $region312
          $region311: #{bird_forecasting_forward.1} parent=307 // pred_region
            %v6214 = vld [vmem:[#allocation40] sm:$0x1]
            %v6215 = vld [vmem:[#allocation42] sm:$0x1]
            %v6216 = vsel %vm4333, %v6206, 0.0
            %6217 = vadd.xlane.f32.xlu0 %v6216
            %v6218 = vpop.xlane.xlu0 %6217
            %v6219 = vsel %vm4333, %v6207, 0.0
            %6220 = vadd.xlane.f32.xlu0 %v6219
            %v6221 = vpop.xlane.xlu0 %6220
            %v6222 = vmul.f32 %v6218, %v4732
            %v6223 = vmul.f32 %v6221, %v4732
            %v6224 = vsub.f32 %v6206, %v6222
            %v6225 = vsub.f32 %v6207, %v6223
            %v6226 = vmul.f32 %v6224, %v6224
            %v6227 = vmul.f32 %v6225, %v6225
            %v6228 = vsel %vm4333, %v6226, 0.0
            %6229 = vadd.xlane.f32.xlu0 %v6228
            %v6230 = vpop.xlane.xlu0 %6229
            %v6231 = vsel %vm4333, %v6227, 0.0
            %6232 = vadd.xlane.f32.xlu0 %v6231
            %v6233 = vpop.xlane.xlu0 %6232
            %v6234 = vmul.f32 %v6230, %v4732
            %v6235 = vmul.f32 %v6233, %v4732
            %v6236 = vadd.f32 %v6234, 1e-05
            %v6237 = vadd.f32 %v6235, 1e-05
            %v6238 = vrsqrt.pop %v6236
            %v6239 = vmul.f32 %v6238, %v6236
            %v6240 = vmul.f32 %v6239, %v6238
            %v6241 = vmul.f32 0.5, %v6240
            %v6242 = vsub.f32 1.5, %v6241
            %v6243 = vmul.f32 %v6238, %v6242
            %vm6244 = vweird.f32 %v6236
            %vm6245 = vweird.f32 %v6238
            %vm6246 = vmor %vm6244, %vm6245
            %v6247 = vsel %vm6246, %v6238, %v6243
            %v6248 = vrsqrt.pop %v6237
            %v6249 = vmul.f32 %v6248, %v6237
            %v6250 = vmul.f32 %v6249, %v6248
            %v6251 = vmul.f32 0.5, %v6250
            %v6252 = vsub.f32 1.5, %v6251
            %v6253 = vmul.f32 %v6248, %v6252
            %vm6254 = vweird.f32 %v6237
            %vm6255 = vweird.f32 %v6248
            %vm6256 = vmor %vm6254, %vm6255
            %v6257 = vsel %vm6256, %v6248, %v6253
            %v6258 = vmul.f32 %v6224, %v6247
            %v6259 = vmul.f32 %v6225, %v6257
            %v6261 = vperm.slane %v6214, 0
            %v6263 = vmul.f32 %v6258, %v6261
            %v6264 = vmul.f32 %v6259, %v6261
            %v6266 = vperm.slane %v6215, 0
            %v6268 = vadd.f32 %v6263, %v6266
            %v6269 = vadd.f32 %v6264, %v6266
            %v6270 = vld [vmem:[%s83] sm:$0xff]
            %v6271 = vld [vmem:[%s83 + $0x8] sm:$0xff]
            %v6272 = vld [vmem:[%s83 + $0x10] sm:$0xff]
            %v6273 = vld [vmem:[%s83 + $0x18] sm:$0xff]
            %v6274 = vld [vmem:[#allocation4] sm:$0x1]
            %v6276 = vperm.slane %v6274, 0
            %v6279 = vsel %vm4333, %v6268, 0
            %v6282 = vsel %vm4333, %v6269, 0
            %6284 = vmatpush.msra.mxu0 0.0
            %6285 = vmatpush.msra.mxu0 0.0
            %6286 = vmatpush.msra.mxu0 0.0
            %6287 = vmatpush.msra.mxu0 0.0
            %6288 = vmatpush.msra.mxu0 0.0
            %6289 = vmatpush.msra.mxu0 0.0
            %6290 = vmatpush.msra.mxu0 0.0
            %6291 = vmatpush.msra.mxu0 0.0
            %6292 = vmatpush.msra.mxu0 0.0
            %6293 = vmatpush.msra.mxu0 0.0
            %6294 = vmatpush.msra.mxu0 0.0
            %6295 = vmatpush.msra.mxu0 0.0
            %6296 = vmatpush.msra.mxu0 %v6273
            %6297 = vmatpush.msra.mxu0 %v6272
            %6298 = vmatpush.msra.mxu0 %v6271
            %6299 = vmatpush.msra.mxu0 %v6270
            %6300 = vmatmul.f32.gmra.mxu0 %v6279
            %v6301 = vpop.f32.mrf.mxu0
            %v6302 = vadd.f32 %v6276, %v6301
            %6303 = vmatmul.f32.gmra.mxu0 %v6282
            %v6304 = vpop.f32.mrf.mxu0
            %v6305 = vadd.f32 %v6276, %v6304
            %6306 = vdwg.mxu0
            %vm6307 = vcmask 7168
            %6308 = vst.msk [vmem:[%s87] sm:$0xff] %vm6307, %v6302
            %6309 = vst.msk [vmem:[%s87 + $0x8] sm:$0xff] %vm6307, %v6305
          $region312: #{bird_forecasting_forward.1} parent=307 // pred_fallthru
            _
        $region308: #{bird_forecasting_forward.1} parent=191 // pred_fallthru
          _
        // Predicated region
        $region313: #{bird_forecasting_forward.1} parent=191 // pred_check
          %p6310 = pneg %p1357
        $region314: #{bird_forecasting_forward.1} parent=191 // pred_check_branch
          %6312 = sbr.rel (%p6310) target = $region316
        $region315: #{bird_forecasting_forward.1} parent=191 // pred_region
          _
        $region316: #{bird_forecasting_forward.1} parent=191 // pred_fallthru
          _
        // Predicated region
        $region317: #{bird_forecasting_forward.1} parent=191 // pred_check
          %p6313 = pneg %p1357
        $region318: #{bird_forecasting_forward.1} parent=191 // pred_check_branch
          %6315 = sbr.rel (%p6313) target = $region320
        $region319: #{bird_forecasting_forward.1} parent=191 // pred_region
          _
        $region320: #{bird_forecasting_forward.1} parent=191 // pred_fallthru
          _
      $region192: #{bird_forecasting_forward.1} parent=5 // pred_fallthru
        _
      %p6316 = scmp.le.s32.totalorder 2, %s130
      // Predicated region
      $region321: #{bird_forecasting_forward.1} parent=5 // pred_check
        %p6317 = pneg %p6316
      $region322: #{bird_forecasting_forward.1} parent=5 // pred_check_branch
        %6319 = sbr.rel (%p6317) target = $region324
      $region323: #{bird_forecasting_forward.1} parent=5 // pred_region
        %s6320 = ssub.s32 %s130, 2
      $region324: #{bird_forecasting_forward.1} parent=5 // pred_fallthru
        _
    $region6: #{bird_forecasting_forward.1} parent=1 // loop_footer
      %s134 = sadd.s32 1, %s130
    $region7: #{bird_forecasting_forward.1} parent=1 // loop_footer_branch
      %129 = sbr.rel target = $region3
    $region8: #{bird_forecasting_forward.1} parent=1 // loop_exit
      _
    %6321 = vsyncpa [#allocation6], 1
    %s6322 = scalar_lea.sflag [#allocation6], 1
    %6323 = vsyncpa %s6322, 1
    %6324 = vsyncpa [#allocation8], 1
    %s6325 = scalar_lea.sflag [#allocation8], 1
    %6326 = vsyncpa %s6325, 1
    %6327 = vsyncpa [#allocation11], 1
    %s6328 = scalar_lea.sflag [#allocation11], 1
    %6329 = vsyncpa %s6328, 1
    %6330 = vsyncpa [#allocation14], 1
    %s6331 = scalar_lea.sflag [#allocation14], 1
    %6332 = vsyncpa %s6331, 1
    %6333 = vsyncpa [#allocation17], 1
    %s6334 = scalar_lea.sflag [#allocation17], 1
    %6335 = vsyncpa %s6334, 1
    %6336 = vsyncpa [#allocation20], 1
    %6337 = vsyncpa [#allocation23], 1
    %s6338 = scalar_lea.sflag [#allocation23], 1
    %6339 = vsyncpa %s6338, 1
    %6340 = vsyncpa [#allocation26], 1
    %s6341 = scalar_lea.sflag [#allocation26], 1
    %6342 = vsyncpa %s6341, 1
    %6343 = vsyncpa [#allocation29], 1
    %s6344 = scalar_lea.sflag [#allocation29], 1
    %6345 = vsyncpa %s6344, 1
    %6346 = vsyncpa [#allocation32], 1
    %s6347 = scalar_lea.sflag [#allocation32], 1
    %6348 = vsyncpa %s6347, 1
    %6349 = vsyncpa [#allocation35], 1
    %s6350 = scalar_lea.sflag [#allocation35], 1
    %6351 = vsyncpa %s6350, 1
    %6352 = vsyncpa [#allocation38], 1
    %s6353 = scalar_lea.sflag [#allocation38], 1
    %6354 = vsyncpa %s6353, 1
    %6355 = vsyncpa [#allocation41], 1

</llo_original>
